<compile_context>
chip_gen: v5e
topology: v5e:2x2
jax: 0.10.0
libtpu: 0.0.40
codegen_flags: <defaults>
</compile_context>

<pallas_src>
import functools

import jax
import jax.numpy as jnp
from jax.experimental import pallas as pl
from jax.experimental.pallas import tpu as pltpu


def _round_up(a, b):
    return ((a + b - 1) // b) * b


def _resblock_kernel(x_ref, w1_ref, w2_ref, s1_ref, b1_ref, s2_ref, b2_ref,
                     mask_ref, out_ref, *, wq):
    # x_ref   : (nb*RPE, Cp)  flattened zero-padded canvases (compute dtype)
    # wK_ref  : (3, 3*Cp, Cp) per-dx weight slabs; K rows are dy-major, Cin-minor
    # sK/bK   : (1, Cp)       folded conv-bias + eval-mode BatchNorm (f32)
    # mask_ref: (RPE, Cp)     1.0 at interior canvas rows, 0.0 at padding rows
    # out_ref : (nb*RPE, Cp)
    R, Cp = x_ref.shape
    rpe = mask_ref.shape[0]
    nb = R // rpe
    cdt = w1_ref.dtype

    x32 = x_ref[...].astype(jnp.float32)
    mask = jnp.broadcast_to(mask_ref[...][None, :, :], (nb, rpe, Cp)).reshape(R, Cp)

    def conv3x3(v32, w_ref):
        # v32: (R, Cp) f32 canvas with exact zeros at every padding row.
        # Canvas row r is spatial position (y, x) = (r // wq, r % wq), so a dy
        # shift is a +-wq row roll and a dx shift is a +-1 row roll (XLU slot,
        # no load/store-slot relayout copies).
        up = pltpu.roll(v32, wq, axis=0)        # value at row r - wq  (dy = 0 tap)
        dn = pltpu.roll(v32, R - wq, axis=0)    # value at row r + wq  (dy = 2 tap)
        u = jnp.concatenate([up, v32, dn], axis=1).astype(cdt)    # (R, 3*Cp)
        q0 = jnp.dot(u, w_ref[0], preferred_element_type=jnp.float32)
        q1 = jnp.dot(u, w_ref[1], preferred_element_type=jnp.float32)
        q2 = jnp.dot(u, w_ref[2], preferred_element_type=jnp.float32)
        # dx shifts applied to the f32 products, then accumulate.
        return pltpu.roll(q0, 1, axis=0) + q1 + pltpu.roll(q2, R - 1, axis=0)

    acc1 = conv3x3(x32, w1_ref)
    # bn1 (folded affine) + relu; mask zeroes the canvas-padding rows so conv2
    # sees exact zero padding (border rows of acc1 hold wrapped garbage).
    h = jnp.maximum(acc1 * s1_ref[...] + b1_ref[...], 0.0) * mask
    acc2 = conv3x3(h, w2_ref)
    y = (acc2 * s2_ref[...] + b2_ref[...]) * mask
    # residual add + relu in f32, single lane-dense store (bf16 by default).
    out_ref[...] = jnp.maximum(x32 + y, 0.0).astype(out_ref.dtype)


def _pick_batch_block(N, rpe, cp, cbytes, obytes, weight_bytes, vmem_budget):
    """Largest divisor of N fitting the VMEM budget; clamped so the grid has at
    least 2 steps (v7x megacore sharding / DMA-compute overlap)."""
    # Double-buffered input + output blocks plus the live f32/bf16 temporaries
    # (x32, U operand, 3 products, accumulators, h, mask) per canvas element.
    per_elem = rpe * cp * (2 * cbytes + 2 * obytes + 56)
    avail = max(vmem_budget - weight_bytes, per_elem)
    nb = int(max(1, min(N, avail // per_elem)))
    nb = min(nb, max(1, N // 2))          # >= 2 grid steps whenever N >= 2
    while N % nb:
        nb -= 1
    return nb


def residual_block_pallas(x_nchw, w1, b1c, g1, be1, m1, v1,
                          w2, b2c, g2, be2, m2, v2, eps=1e-5,
                          compute_dtype=jnp.bfloat16, out_dtype=jnp.bfloat16):
    """Forward pass of ResidualBlock.  Input/output are NCHW (PyTorch layout)."""
    N, C, H, W = x_nchw.shape
    CP = _round_up(C, 128)                 # lane-dense channels
    HP = H + 2                             # canvas height (1-row zero border)
    WQ = _round_up(W + 2, 16)              # canvas width  (border + zero fill)
    RPE = HP * WQ                          # canvas rows per image
    cbytes = jnp.dtype(compute_dtype).itemsize
    obytes = jnp.dtype(out_dtype).itemsize

    # ---- host-side prep (XLA): NCHW -> zero-padded NHWC canvas, flattened rows
    xh = jnp.transpose(x_nchw, (0, 2, 3, 1)).astype(jnp.float32)
    xh = jnp.pad(xh, ((0, 0), (1, 1), (1, WQ - 1 - W), (0, CP - C)))
    xflat = xh.reshape(N * RPE, CP).astype(compute_dtype)

    # conv weights (Cout, Cin, KH, KW) -> per-dx slabs (KW, KH*Cin, Cout)
    def prep_w(w):
        wk = jnp.transpose(w, (3, 2, 1, 0)).astype(jnp.float32)   # (KW,KH,Cin,Cout)
        wk = jnp.pad(wk, ((0, 0), (0, 0), (0, CP - C), (0, CP - C)))
        return wk.reshape(3, 3 * CP, CP).astype(compute_dtype)

    w1k, w2k = prep_w(w1), prep_w(w2)

    # fold conv bias + eval-mode BatchNorm into per-channel scale / bias (f32)
    def fold_bn(bc, g, be, m, v):
        s = (g / jnp.sqrt(v + eps)).astype(jnp.float32)
        b = ((bc - m) * s + be).astype(jnp.float32)
        s = jnp.pad(s, (0, CP - C))
        b = jnp.pad(b, (0, CP - C))
        return s.reshape(1, CP), b.reshape(1, CP)

    s1, bb1 = fold_bn(b1c, g1, be1, m1, v1)
    s2, bb2 = fold_bn(b2c, g2, be2, m2, v2)

    # interior-row mask (1.0 at real pixel rows of the canvas, 0.0 at padding)
    yp = jnp.arange(HP).reshape(HP, 1, 1)
    xq = jnp.arange(WQ).reshape(1, WQ, 1)
    interior = (yp >= 1) & (yp <= H) & (xq >= 1) & (xq <= W)
    mask2d = jnp.broadcast_to(interior, (HP, WQ, CP)).astype(jnp.float32)
    mask2d = mask2d.reshape(RPE, CP)

    # ---- generation-aware VMEM budgeting (weights + temporaries accounted)
    try:
        vmem_cap = int(pltpu.get_tpu_info().vmem_capacity_bytes)
    except Exception:
        vmem_cap = 64 * 1024 * 1024        # conservative: v7x per-core VMEM
    weight_bytes = 2 * (3 * 3 * CP * CP * cbytes) * 2 + RPE * CP * 4 * 2
    nb = _pick_batch_block(N, RPE, CP, cbytes, obytes, weight_bytes,
                           vmem_budget=int(0.4 * vmem_cap))
    vmem_limit = int(min(max(32 * 1024 * 1024, 0.75 * vmem_cap),
                         128 * 1024 * 1024))

    grid = (N // nb,)
    kernel = functools.partial(_resblock_kernel, wq=WQ)

    def build(single_buffer_consts):
        # Constant-index operands (weights, BN affine, mask) gain nothing from
        # double buffering; Buffered(1) drops their second VMEM copy.
        kw = {"pipeline_mode": pl.Buffered(1)} if single_buffer_consts else {}
        in_specs = [
            pl.BlockSpec((nb * RPE, CP), lambda n: (n, 0)),            # x canvas
            pl.BlockSpec((3, 3 * CP, CP), lambda n: (0, 0, 0), **kw),  # w1 slabs
            pl.BlockSpec((3, 3 * CP, CP), lambda n: (0, 0, 0), **kw),  # w2 slabs
            pl.BlockSpec((1, CP), lambda n: (0, 0), **kw),             # bn1 scale
            pl.BlockSpec((1, CP), lambda n: (0, 0), **kw),             # bn1 bias
            pl.BlockSpec((1, CP), lambda n: (0, 0), **kw),             # bn2 scale
            pl.BlockSpec((1, CP), lambda n: (0, 0), **kw),             # bn2 bias
            pl.BlockSpec((RPE, CP), lambda n: (0, 0), **kw),           # interior mask
        ]
        return pl.pallas_call(
            kernel,
            out_shape=jax.ShapeDtypeStruct((N * RPE, CP), out_dtype),
            grid=grid,
            in_specs=in_specs,
            out_specs=pl.BlockSpec((nb * RPE, CP), lambda n: (n, 0)),
            compiler_params=pltpu.CompilerParams(
                dimension_semantics=("parallel",),
                vmem_limit_bytes=vmem_limit),
        )

    args = (xflat, w1k, w2k, s1, bb1, s2, bb2, mask2d)
    try:
        out_flat = jax.block_until_ready(build(True)(*args))
    except Exception:
        # Runtimes without BlockSpec(pipeline_mode=...) / Buffered(1): fall back
        # to default double buffering (correctness identical).
        out_flat = jax.block_until_ready(build(False)(*args))

    out = out_flat.reshape(N, HP, WQ, CP)[:, 1:1 + H, 1:1 + W, :C]
    return jnp.transpose(out, (0, 3, 1, 2))       # back to NCHW (out_dtype)


def _reference(x, w1, b1c, g1, be1, m1, v1, w2, b2c, g2, be2, m2, v2, eps=1e-5):
    """Pure-JAX NCHW reference mirroring the PyTorch module (eval-mode BN)."""
    def conv(h, w, b):
        y = jax.lax.conv_general_dilated(h, w, (1, 1), ((1, 1), (1, 1)),
                                         dimension_numbers=("NCHW", "OIHW", "NCHW"))
        return y + b[None, :, None, None]

    def bn(h, g, be, m, v):
        return ((h - m[None, :, None, None]) / jnp.sqrt(v + eps)[None, :, None, None]
                * g[None, :, None, None] + be[None, :, None, None])

    h = jax.nn.relu(bn(conv(x, w1, b1c), g1, be1, m1, v1))
    h = bn(conv(h, w2, b2c), g2, be2, m2, v2)
    return jax.nn.relu(x + h)


if __name__ == "__main__":
    N, C, H, W = 4, 20, 8, 8          # n_kernels=20 (module default), small board
    key = jax.random.PRNGKey(0)
    keys = jax.random.split(key, 13)

    x = jax.random.normal(keys[0], (N, C, H, W), jnp.float32)

    # conv1 / conv2 params (PyTorch layout: (Cout, Cin, 3, 3) + bias (C,))
    w1 = 0.1 * jax.random.normal(keys[1], (C, C, 3, 3), jnp.float32)
    b1c = 0.1 * jax.random.normal(keys[2], (C,), jnp.float32)
    w2 = 0.1 * jax.random.normal(keys[3], (C, C, 3, 3), jnp.float32)
    b2c = 0.1 * jax.random.normal(keys[4], (C,), jnp.float32)

    # BatchNorm params (eval mode): gamma, beta, running_mean, running_var
    g1 = jax.random.uniform(keys[5], (C,), jnp.float32, 0.5, 1.5)
    be1 = 0.1 * jax.random.normal(keys[6], (C,), jnp.float32)
    m1 = 0.1 * jax.random.normal(keys[7], (C,), jnp.float32)
    v1 = jax.random.uniform(keys[8], (C,), jnp.float32, 0.5, 1.5)
    g2 = jax.random.uniform(keys[9], (C,), jnp.float32, 0.5, 1.5)
    be2 = 0.1 * jax.random.normal(keys[10], (C,), jnp.float32)
    m2 = 0.1 * jax.random.normal(keys[11], (C,), jnp.float32)
    v2 = jax.random.uniform(keys[12], (C,), jnp.float32, 0.5, 1.5)

    ref = _reference(x, w1, b1c, g1, be1, m1, v1, w2, b2c, g2, be2, m2, v2)

    # f32 path: tight correctness check of the conv/BN/residual/mask math.
    out32 = residual_block_pallas(x, w1, b1c, g1, be1, m1, v1,
                                  w2, b2c, g2, be2, m2, v2,
                                  compute_dtype=jnp.float32,
                                  out_dtype=jnp.float32)
    out32 = jax.block_until_ready(out32)
    assert out32.shape == (N, C, H, W) and out32.dtype == jnp.float32
    err32 = float(jnp.max(jnp.abs(out32 - ref)))
    assert err32 < 1e-3, f"f32 max abs err {err32}"

    # default path: bf16 MXU operands + bf16 output (recommended on all gens).
    out_bf = residual_block_pallas(x, w1, b1c, g1, be1, m1, v1,
                                   w2, b2c, g2, be2, m2, v2)
    out_bf = jax.block_until_ready(out_bf)
    assert out_bf.shape == (N, C, H, W)
    err_bf = float(jnp.max(jnp.abs(out_bf.astype(jnp.float32) - ref)))
    assert err_bf < 0.25, f"bf16 max abs err {err_bf}"

    print("KERNEL_OK")
</pallas_src>

<mosaic_0001>
module attributes {stable_mosaic.version = 11 : i64} {
  func.func @_resblock_kernel(%arg0: i32, %arg1: memref<320x128xf32, #tpu.memory_space<vmem>>, %arg2: memref<3x384x128xf32, #tpu.memory_space<vmem>>, %arg3: memref<3x384x128xf32, #tpu.memory_space<vmem>>, %arg4: memref<1x128xf32, #tpu.memory_space<vmem>>, %arg5: memref<1x128xf32, #tpu.memory_space<vmem>>, %arg6: memref<1x128xf32, #tpu.memory_space<vmem>>, %arg7: memref<1x128xf32, #tpu.memory_space<vmem>>, %arg8: memref<160x128xf32, #tpu.memory_space<vmem>>, %arg9: memref<320x128xf32, #tpu.memory_space<vmem>>) attributes {dimension_semantics = [#tpu.dimension_semantics<parallel>], iteration_bounds = array<i64: 2>, scalar_prefetch = 0 : i64, scratch_operands = 0 : i64, tpu.core_type = #tpu.core_type<tc>, window_params = [{transform_indices = @transform_0, window_bounds = array<i64: 320, 128>}, {pipeline_mode = #tpu.pipeline_mode<synchronous>, transform_indices = @transform_1, window_bounds = array<i64: 3, 384, 128>}, {pipeline_mode = #tpu.pipeline_mode<synchronous>, transform_indices = @transform_2, window_bounds = array<i64: 3, 384, 128>}, {pipeline_mode = #tpu.pipeline_mode<synchronous>, transform_indices = @transform_3, window_bounds = array<i64: 1, 128>}, {pipeline_mode = #tpu.pipeline_mode<synchronous>, transform_indices = @transform_4, window_bounds = array<i64: 1, 128>}, {pipeline_mode = #tpu.pipeline_mode<synchronous>, transform_indices = @transform_5, window_bounds = array<i64: 1, 128>}, {pipeline_mode = #tpu.pipeline_mode<synchronous>, transform_indices = @transform_6, window_bounds = array<i64: 1, 128>}, {pipeline_mode = #tpu.pipeline_mode<synchronous>, transform_indices = @transform_7, window_bounds = array<i64: 160, 128>}, {transform_indices = @transform_8, window_bounds = array<i64: 320, 128>}]} {
    %c0 = arith.constant 0 : index
    %c0_0 = arith.constant 0 : index
    %0 = vector.load %arg1[%c0, %c0_0] : memref<320x128xf32, #tpu.memory_space<vmem>>, vector<320x128xf32>
    %c0_1 = arith.constant 0 : index
    %c0_2 = arith.constant 0 : index
    %1 = vector.load %arg8[%c0_1, %c0_2] : memref<160x128xf32, #tpu.memory_space<vmem>>, vector<160x128xf32>
    %2 = vector.shape_cast %1 : vector<160x128xf32> to vector<1x160x128xf32>
    %3 = vector.shape_cast %2 : vector<1x160x128xf32> to vector<1x160x128xf32>
    %4 = vector.broadcast %3 : vector<1x160x128xf32> to vector<2x160x128xf32>
    %5 = vector.shape_cast %4 : vector<2x160x128xf32> to vector<320x128xf32>
    %c16_i32 = arith.constant 16 : i32
    %6 = tpu.dynamic_rotate %0 by %c16_i32 dim 0 : vector<320x128xf32>, i32 -> vector<320x128xf32>
    %c304_i32 = arith.constant 304 : i32
    %7 = tpu.dynamic_rotate %0 by %c304_i32 dim 0 : vector<320x128xf32>, i32 -> vector<320x128xf32>
    %8 = tpu.concatenate %6, %0, %7 in 1 : vector<320x128xf32>, vector<320x128xf32>, vector<320x128xf32> -> vector<320x384xf32>
    %c0_3 = arith.constant 0 : index
    %c0_4 = arith.constant 0 : index
    %c0_5 = arith.constant 0 : index
    %9 = vector.load %arg2[%c0_3, %c0_4, %c0_5] : memref<3x384x128xf32, #tpu.memory_space<vmem>>, vector<1x384x128xf32>
    %10 = vector.shape_cast %9 : vector<1x384x128xf32> to vector<384x128xf32>
    %cst = arith.constant dense<0.000000e+00> : vector<320x128xf32>
    %11 = tpu.matmul %8, %10, %cst {dimension_numbers = #tpu.dot_dimension_numbers<[1], [0], [0], [1], [0, 0, 1, 1], [], []>} : vector<320x384xf32>, vector<384x128xf32>, vector<320x128xf32> -> vector<320x128xf32>
    %c1 = arith.constant 1 : index
    %c0_6 = arith.constant 0 : index
    %c0_7 = arith.constant 0 : index
    %12 = vector.load %arg2[%c1, %c0_6, %c0_7] : memref<3x384x128xf32, #tpu.memory_space<vmem>>, vector<1x384x128xf32>
    %13 = vector.shape_cast %12 : vector<1x384x128xf32> to vector<384x128xf32>
    %cst_8 = arith.constant dense<0.000000e+00> : vector<320x128xf32>
    %14 = tpu.matmul %8, %13, %cst_8 {dimension_numbers = #tpu.dot_dimension_numbers<[1], [0], [0], [1], [0, 0, 1, 1], [], []>} : vector<320x384xf32>, vector<384x128xf32>, vector<320x128xf32> -> vector<320x128xf32>
    %c2 = arith.constant 2 : index
    %c0_9 = arith.constant 0 : index
    %c0_10 = arith.constant 0 : index
    %15 = vector.load %arg2[%c2, %c0_9, %c0_10] : memref<3x384x128xf32, #tpu.memory_space<vmem>>, vector<1x384x128xf32>
    %16 = vector.shape_cast %15 : vector<1x384x128xf32> to vector<384x128xf32>
    %cst_11 = arith.constant dense<0.000000e+00> : vector<320x128xf32>
    %17 = tpu.matmul %8, %16, %cst_11 {dimension_numbers = #tpu.dot_dimension_numbers<[1], [0], [0], [1], [0, 0, 1, 1], [], []>} : vector<320x384xf32>, vector<384x128xf32>, vector<320x128xf32> -> vector<320x128xf32>
    %c1_i32 = arith.constant 1 : i32
    %18 = tpu.dynamic_rotate %11 by %c1_i32 dim 0 : vector<320x128xf32>, i32 -> vector<320x128xf32>
    %19 = arith.addf %18, %14 : vector<320x128xf32>
    %c319_i32 = arith.constant 319 : i32
    %20 = tpu.dynamic_rotate %17 by %c319_i32 dim 0 : vector<320x128xf32>, i32 -> vector<320x128xf32>
    %21 = arith.addf %19, %20 : vector<320x128xf32>
    %c0_12 = arith.constant 0 : index
    %c0_13 = arith.constant 0 : index
    %22 = vector.load %arg4[%c0_12, %c0_13] : memref<1x128xf32, #tpu.memory_space<vmem>>, vector<1x128xf32>
    %23 = vector.broadcast %22 : vector<1x128xf32> to vector<320x128xf32>
    %24 = arith.mulf %21, %23 : vector<320x128xf32>
    %c0_14 = arith.constant 0 : index
    %c0_15 = arith.constant 0 : index
    %25 = vector.load %arg5[%c0_14, %c0_15] : memref<1x128xf32, #tpu.memory_space<vmem>>, vector<1x128xf32>
    %26 = vector.broadcast %25 : vector<1x128xf32> to vector<320x128xf32>
    %27 = arith.addf %24, %26 : vector<320x128xf32>
    %cst_16 = arith.constant 0.000000e+00 : f32
    %28 = vector.broadcast %cst_16 : f32 to vector<320x128xf32>
    %29 = arith.maximumf %27, %28 : vector<320x128xf32>
    %30 = arith.mulf %29, %5 : vector<320x128xf32>
    %c16_i32_17 = arith.constant 16 : i32
    %31 = tpu.dynamic_rotate %30 by %c16_i32_17 dim 0 : vector<320x128xf32>, i32 -> vector<320x128xf32>
    %c304_i32_18 = arith.constant 304 : i32
    %32 = tpu.dynamic_rotate %30 by %c304_i32_18 dim 0 : vector<320x128xf32>, i32 -> vector<320x128xf32>
    %33 = tpu.concatenate %31, %30, %32 in 1 : vector<320x128xf32>, vector<320x128xf32>, vector<320x128xf32> -> vector<320x384xf32>
    %c0_19 = arith.constant 0 : index
    %c0_20 = arith.constant 0 : index
    %c0_21 = arith.constant 0 : index
    %34 = vector.load %arg3[%c0_19, %c0_20, %c0_21] : memref<3x384x128xf32, #tpu.memory_space<vmem>>, vector<1x384x128xf32>
    %35 = vector.shape_cast %34 : vector<1x384x128xf32> to vector<384x128xf32>
    %cst_22 = arith.constant dense<0.000000e+00> : vector<320x128xf32>
    %36 = tpu.matmul %33, %35, %cst_22 {dimension_numbers = #tpu.dot_dimension_numbers<[1], [0], [0], [1], [0, 0, 1, 1], [], []>} : vector<320x384xf32>, vector<384x128xf32>, vector<320x128xf32> -> vector<320x128xf32>
    %c1_23 = arith.constant 1 : index
    %c0_24 = arith.constant 0 : index
    %c0_25 = arith.constant 0 : index
    %37 = vector.load %arg3[%c1_23, %c0_24, %c0_25] : memref<3x384x128xf32, #tpu.memory_space<vmem>>, vector<1x384x128xf32>
    %38 = vector.shape_cast %37 : vector<1x384x128xf32> to vector<384x128xf32>
    %cst_26 = arith.constant dense<0.000000e+00> : vector<320x128xf32>
    %39 = tpu.matmul %33, %38, %cst_26 {dimension_numbers = #tpu.dot_dimension_numbers<[1], [0], [0], [1], [0, 0, 1, 1], [], []>} : vector<320x384xf32>, vector<384x128xf32>, vector<320x128xf32> -> vector<320x128xf32>
    %c2_27 = arith.constant 2 : index
    %c0_28 = arith.constant 0 : index
    %c0_29 = arith.constant 0 : index
    %40 = vector.load %arg3[%c2_27, %c0_28, %c0_29] : memref<3x384x128xf32, #tpu.memory_space<vmem>>, vector<1x384x128xf32>
    %41 = vector.shape_cast %40 : vector<1x384x128xf32> to vector<384x128xf32>
    %cst_30 = arith.constant dense<0.000000e+00> : vector<320x128xf32>
    %42 = tpu.matmul %33, %41, %cst_30 {dimension_numbers = #tpu.dot_dimension_numbers<[1], [0], [0], [1], [0, 0, 1, 1], [], []>} : vector<320x384xf32>, vector<384x128xf32>, vector<320x128xf32> -> vector<320x128xf32>
    %c1_i32_31 = arith.constant 1 : i32
    %43 = tpu.dynamic_rotate %36 by %c1_i32_31 dim 0 : vector<320x128xf32>, i32 -> vector<320x128xf32>
    %44 = arith.addf %43, %39 : vector<320x128xf32>
    %c319_i32_32 = arith.constant 319 : i32
    %45 = tpu.dynamic_rotate %42 by %c319_i32_32 dim 0 : vector<320x128xf32>, i32 -> vector<320x128xf32>
    %46 = arith.addf %44, %45 : vector<320x128xf32>
    %c0_33 = arith.constant 0 : index
    %c0_34 = arith.constant 0 : index
    %47 = vector.load %arg6[%c0_33, %c0_34] : memref<1x128xf32, #tpu.memory_space<vmem>>, vector<1x128xf32>
    %48 = vector.broadcast %47 : vector<1x128xf32> to vector<320x128xf32>
    %49 = arith.mulf %46, %48 : vector<320x128xf32>
    %c0_35 = arith.constant 0 : index
    %c0_36 = arith.constant 0 : index
    %50 = vector.load %arg7[%c0_35, %c0_36] : memref<1x128xf32, #tpu.memory_space<vmem>>, vector<1x128xf32>
    %51 = vector.broadcast %50 : vector<1x128xf32> to vector<320x128xf32>
    %52 = arith.addf %49, %51 : vector<320x128xf32>
    %53 = arith.mulf %52, %5 : vector<320x128xf32>
    %54 = arith.addf %0, %53 : vector<320x128xf32>
    %cst_37 = arith.constant 0.000000e+00 : f32
    %55 = vector.broadcast %cst_37 : f32 to vector<320x128xf32>
    %56 = arith.maximumf %54, %55 : vector<320x128xf32>
    %c0_38 = arith.constant 0 : index
    %c0_39 = arith.constant 0 : index
    %57 = vector.load %arg9[%c0_38, %c0_39] : memref<320x128xf32, #tpu.memory_space<vmem>>, vector<320x128xf32>
    tpu.vector_store %arg9[%c0_38, %c0_39], %56 {strides = array<i32>} : memref<320x128xf32, #tpu.memory_space<vmem>>, vector<320x128xf32>,
    return
  }
  func.func @transform_0(%arg0: i32) -> (i32, i32) {
    %c0_i32 = arith.constant 0 : i32
    %c0_i32_0 = arith.constant 0 : i32
    return %arg0, %c0_i32 : i32, i32
  }
  func.func @transform_1(%arg0: i32) -> (i32, i32, i32) {
    %c0_i32 = arith.constant 0 : i32
    %c0_i32_0 = arith.constant 0 : i32
    %c0_i32_1 = arith.constant 0 : i32
    %c0_i32_2 = arith.constant 0 : i32
    return %c0_i32, %c0_i32_0, %c0_i32_1 : i32, i32, i32
  }
  func.func @transform_2(%arg0: i32) -> (i32, i32, i32) {
    %c0_i32 = arith.constant 0 : i32
    %c0_i32_0 = arith.constant 0 : i32
    %c0_i32_1 = arith.constant 0 : i32
    %c0_i32_2 = arith.constant 0 : i32
    return %c0_i32, %c0_i32_0, %c0_i32_1 : i32, i32, i32
  }
  func.func @transform_3(%arg0: i32) -> (i32, i32) {
    %c0_i32 = arith.constant 0 : i32
    %c0_i32_0 = arith.constant 0 : i32
    %c0_i32_1 = arith.constant 0 : i32
    return %c0_i32, %c0_i32_0 : i32, i32
  }
  func.func @transform_4(%arg0: i32) -> (i32, i32) {
    %c0_i32 = arith.constant 0 : i32
    %c0_i32_0 = arith.constant 0 : i32
    %c0_i32_1 = arith.constant 0 : i32
    return %c0_i32, %c0_i32_0 : i32, i32
  }
  func.func @transform_5(%arg0: i32) -> (i32, i32) {
    %c0_i32 = arith.constant 0 : i32
    %c0_i32_0 = arith.constant 0 : i32
    %c0_i32_1 = arith.constant 0 : i32
    return %c0_i32, %c0_i32_0 : i32, i32
  }
  func.func @transform_6(%arg0: i32) -> (i32, i32) {
    %c0_i32 = arith.constant 0 : i32
    %c0_i32_0 = arith.constant 0 : i32
    %c0_i32_1 = arith.constant 0 : i32
    return %c0_i32, %c0_i32_0 : i32, i32
  }
  func.func @transform_7(%arg0: i32) -> (i32, i32) {
    %c0_i32 = arith.constant 0 : i32
    %c0_i32_0 = arith.constant 0 : i32
    %c0_i32_1 = arith.constant 0 : i32
    return %c0_i32, %c0_i32_0 : i32, i32
  }
  func.func @transform_8(%arg0: i32) -> (i32, i32) {
    %c0_i32 = arith.constant 0 : i32
    %c0_i32_0 = arith.constant 0 : i32
    return %arg0, %c0_i32 : i32, i32
  }
}

module attributes {stable_mosaic.version = 11 : i64} {
  func.func @_resblock_kernel(%arg0: i32, %arg1: memref<320x128xf32, #tpu.memory_space<vmem>>, %arg2: memref<3x384x128xf32, #tpu.memory_space<vmem>>, %arg3: memref<3x384x128xf32, #tpu.memory_space<vmem>>, %arg4: memref<1x128xf32, #tpu.memory_space<vmem>>, %arg5: memref<1x128xf32, #tpu.memory_space<vmem>>, %arg6: memref<1x128xf32, #tpu.memory_space<vmem>>, %arg7: memref<1x128xf32, #tpu.memory_space<vmem>>, %arg8: memref<160x128xf32, #tpu.memory_space<vmem>>, %arg9: memref<320x128xf32, #tpu.memory_space<vmem>>) attributes {dimension_semantics = [#tpu.dimension_semantics<parallel>], iteration_bounds = array<i64: 2>, scalar_prefetch = 0 : i64, scratch_operands = 0 : i64, tpu.core_type = #tpu.core_type<tc>, window_params = [{transform_indices = @transform_0, window_bounds = array<i64: 320, 128>}, {pipeline_mode = #tpu.pipeline_mode<synchronous>, transform_indices = @transform_1, window_bounds = array<i64: 3, 384, 128>}, {pipeline_mode = #tpu.pipeline_mode<synchronous>, transform_indices = @transform_2, window_bounds = array<i64: 3, 384, 128>}, {pipeline_mode = #tpu.pipeline_mode<synchronous>, transform_indices = @transform_3, window_bounds = array<i64: 1, 128>}, {pipeline_mode = #tpu.pipeline_mode<synchronous>, transform_indices = @transform_4, window_bounds = array<i64: 1, 128>}, {pipeline_mode = #tpu.pipeline_mode<synchronous>, transform_indices = @transform_5, window_bounds = array<i64: 1, 128>}, {pipeline_mode = #tpu.pipeline_mode<synchronous>, transform_indices = @transform_6, window_bounds = array<i64: 1, 128>}, {pipeline_mode = #tpu.pipeline_mode<synchronous>, transform_indices = @transform_7, window_bounds = array<i64: 160, 128>}, {transform_indices = @transform_8, window_bounds = array<i64: 320, 128>}]} {
    %c0 = arith.constant 0 : index
    %c0_0 = arith.constant 0 : index
    %0 = vector.load %arg1[%c0, %c0_0] : memref<320x128xf32, #tpu.memory_space<vmem>>, vector<320x128xf32>
    %c0_1 = arith.constant 0 : index
    %c0_2 = arith.constant 0 : index
    %1 = vector.load %arg8[%c0_1, %c0_2] : memref<160x128xf32, #tpu.memory_space<vmem>>, vector<160x128xf32>
    %2 = vector.shape_cast %1 : vector<160x128xf32> to vector<1x160x128xf32>
    %3 = vector.shape_cast %2 : vector<1x160x128xf32> to vector<1x160x128xf32>
    %4 = vector.broadcast %3 : vector<1x160x128xf32> to vector<2x160x128xf32>
    %5 = vector.shape_cast %4 : vector<2x160x128xf32> to vector<320x128xf32>
    %c16_i32 = arith.constant 16 : i32
    %6 = tpu.dynamic_rotate %0 by %c16_i32 dim 0 : vector<320x128xf32>, i32 -> vector<320x128xf32>
    %c304_i32 = arith.constant 304 : i32
    %7 = tpu.dynamic_rotate %0 by %c304_i32 dim 0 : vector<320x128xf32>, i32 -> vector<320x128xf32>
    %8 = tpu.concatenate %6, %0, %7 in 1 : vector<320x128xf32>, vector<320x128xf32>, vector<320x128xf32> -> vector<320x384xf32>
    %c0_3 = arith.constant 0 : index
    %c0_4 = arith.constant 0 : index
    %c0_5 = arith.constant 0 : index
    %9 = vector.load %arg2[%c0_3, %c0_4, %c0_5] : memref<3x384x128xf32, #tpu.memory_space<vmem>>, vector<1x384x128xf32>
    %10 = vector.shape_cast %9 : vector<1x384x128xf32> to vector<384x128xf32>
    %cst = arith.constant dense<0.000000e+00> : vector<320x128xf32>
    %11 = tpu.matmul %8, %10, %cst {dimension_numbers = #tpu.dot_dimension_numbers<[1], [0], [0], [1], [0, 0, 1, 1], [], []>} : vector<320x384xf32>, vector<384x128xf32>, vector<320x128xf32> -> vector<320x128xf32>
    %c1 = arith.constant 1 : index
    %c0_6 = arith.constant 0 : index
    %c0_7 = arith.constant 0 : index
    %12 = vector.load %arg2[%c1, %c0_6, %c0_7] : memref<3x384x128xf32, #tpu.memory_space<vmem>>, vector<1x384x128xf32>
    %13 = vector.shape_cast %12 : vector<1x384x128xf32> to vector<384x128xf32>
    %cst_8 = arith.constant dense<0.000000e+00> : vector<320x128xf32>
    %14 = tpu.matmul %8, %13, %cst_8 {dimension_numbers = #tpu.dot_dimension_numbers<[1], [0], [0], [1], [0, 0, 1, 1], [], []>} : vector<320x384xf32>, vector<384x128xf32>, vector<320x128xf32> -> vector<320x128xf32>
    %c2 = arith.constant 2 : index
    %c0_9 = arith.constant 0 : index
    %c0_10 = arith.constant 0 : index
    %15 = vector.load %arg2[%c2, %c0_9, %c0_10] : memref<3x384x128xf32, #tpu.memory_space<vmem>>, vector<1x384x128xf32>
    %16 = vector.shape_cast %15 : vector<1x384x128xf32> to vector<384x128xf32>
    %cst_11 = arith.constant dense<0.000000e+00> : vector<320x128xf32>
    %17 = tpu.matmul %8, %16, %cst_11 {dimension_numbers = #tpu.dot_dimension_numbers<[1], [0], [0], [1], [0, 0, 1, 1], [], []>} : vector<320x384xf32>, vector<384x128xf32>, vector<320x128xf32> -> vector<320x128xf32>
    %c1_i32 = arith.constant 1 : i32
    %18 = tpu.dynamic_rotate %11 by %c1_i32 dim 0 : vector<320x128xf32>, i32 -> vector<320x128xf32>
    %19 = arith.addf %18, %14 : vector<320x128xf32>
    %c319_i32 = arith.constant 319 : i32
    %20 = tpu.dynamic_rotate %17 by %c319_i32 dim 0 : vector<320x128xf32>, i32 -> vector<320x128xf32>
    %21 = arith.addf %19, %20 : vector<320x128xf32>
    %c0_12 = arith.constant 0 : index
    %c0_13 = arith.constant 0 : index
    %22 = vector.load %arg4[%c0_12, %c0_13] : memref<1x128xf32, #tpu.memory_space<vmem>>, vector<1x128xf32>
    %23 = vector.broadcast %22 : vector<1x128xf32> to vector<320x128xf32>
    %24 = arith.mulf %21, %23 : vector<320x128xf32>
    %c0_14 = arith.constant 0 : index
    %c0_15 = arith.constant 0 : index
    %25 = vector.load %arg5[%c0_14, %c0_15] : memref<1x128xf32, #tpu.memory_space<vmem>>, vector<1x128xf32>
    %26 = vector.broadcast %25 : vector<1x128xf32> to vector<320x128xf32>
    %27 = arith.addf %24, %26 : vector<320x128xf32>
    %cst_16 = arith.constant 0.000000e+00 : f32
    %28 = vector.broadcast %cst_16 : f32 to vector<320x128xf32>
    %29 = arith.maximumf %27, %28 : vector<320x128xf32>
    %30 = arith.mulf %29, %5 : vector<320x128xf32>
    %c16_i32_17 = arith.constant 16 : i32
    %31 = tpu.dynamic_rotate %30 by %c16_i32_17 dim 0 : vector<320x128xf32>, i32 -> vector<320x128xf32>
    %c304_i32_18 = arith.constant 304 : i32
    %32 = tpu.dynamic_rotate %30 by %c304_i32_18 dim 0 : vector<320x128xf32>, i32 -> vector<320x128xf32>
    %33 = tpu.concatenate %31, %30, %32 in 1 : vector<320x128xf32>, vector<320x128xf32>, vector<320x128xf32> -> vector<320x384xf32>
    %c0_19 = arith.constant 0 : index
    %c0_20 = arith.constant 0 : index
    %c0_21 = arith.constant 0 : index
    %34 = vector.load %arg3[%c0_19, %c0_20, %c0_21] : memref<3x384x128xf32, #tpu.memory_space<vmem>>, vector<1x384x128xf32>
    %35 = vector.shape_cast %34 : vector<1x384x128xf32> to vector<384x128xf32>
    %cst_22 = arith.constant dense<0.000000e+00> : vector<320x128xf32>
    %36 = tpu.matmul %33, %35, %cst_22 {dimension_numbers = #tpu.dot_dimension_numbers<[1], [0], [0], [1], [0, 0, 1, 1], [], []>} : vector<320x384xf32>, vector<384x128xf32>, vector<320x128xf32> -> vector<320x128xf32>
    %c1_23 = arith.constant 1 : index
    %c0_24 = arith.constant 0 : index
    %c0_25 = arith.constant 0 : index
    %37 = vector.load %arg3[%c1_23, %c0_24, %c0_25] : memref<3x384x128xf32, #tpu.memory_space<vmem>>, vector<1x384x128xf32>
    %38 = vector.shape_cast %37 : vector<1x384x128xf32> to vector<384x128xf32>
    %cst_26 = arith.constant dense<0.000000e+00> : vector<320x128xf32>
    %39 = tpu.matmul %33, %38, %cst_26 {dimension_numbers = #tpu.dot_dimension_numbers<[1], [0], [0], [1], [0, 0, 1, 1], [], []>} : vector<320x384xf32>, vector<384x128xf32>, vector<320x128xf32> -> vector<320x128xf32>
    %c2_27 = arith.constant 2 : index
    %c0_28 = arith.constant 0 : index
    %c0_29 = arith.constant 0 : index
    %40 = vector.load %arg3[%c2_27, %c0_28, %c0_29] : memref<3x384x128xf32, #tpu.memory_space<vmem>>, vector<1x384x128xf32>
    %41 = vector.shape_cast %40 : vector<1x384x128xf32> to vector<384x128xf32>
    %cst_30 = arith.constant dense<0.000000e+00> : vector<320x128xf32>
    %42 = tpu.matmul %33, %41, %cst_30 {dimension_numbers = #tpu.dot_dimension_numbers<[1], [0], [0], [1], [0, 0, 1, 1], [], []>} : vector<320x384xf32>, vector<384x128xf32>, vector<320x128xf32> -> vector<320x128xf32>
    %c1_i32_31 = arith.constant 1 : i32
    %43 = tpu.dynamic_rotate %36 by %c1_i32_31 dim 0 : vector<320x128xf32>, i32 -> vector<320x128xf32>
    %44 = arith.addf %43, %39 : vector<320x128xf32>
    %c319_i32_32 = arith.constant 319 : i32
    %45 = tpu.dynamic_rotate %42 by %c319_i32_32 dim 0 : vector<320x128xf32>, i32 -> vector<320x128xf32>
    %46 = arith.addf %44, %45 : vector<320x128xf32>
    %c0_33 = arith.constant 0 : index
    %c0_34 = arith.constant 0 : index
    %47 = vector.load %arg6[%c0_33, %c0_34] : memref<1x128xf32, #tpu.memory_space<vmem>>, vector<1x128xf32>
    %48 = vector.broadcast %47 : vector<1x128xf32> to vector<320x128xf32>
    %49 = arith.mulf %46, %48 : vector<320x128xf32>
    %c0_35 = arith.constant 0 : index
    %c0_36 = arith.constant 0 : index
    %50 = vector.load %arg7[%c0_35, %c0_36] : memref<1x128xf32, #tpu.memory_space<vmem>>, vector<1x128xf32>
    %51 = vector.broadcast %50 : vector<1x128xf32> to vector<320x128xf32>
    %52 = arith.addf %49, %51 : vector<320x128xf32>
    %53 = arith.mulf %52, %5 : vector<320x128xf32>
    %54 = arith.addf %0, %53 : vector<320x128xf32>
    %cst_37 = arith.constant 0.000000e+00 : f32
    %55 = vector.broadcast %cst_37 : f32 to vector<320x128xf32>
    %56 = arith.maximumf %54, %55 : vector<320x128xf32>
    %c0_38 = arith.constant 0 : index
    %c0_39 = arith.constant 0 : index
    %57 = vector.load %arg9[%c0_38, %c0_39] : memref<320x128xf32, #tpu.memory_space<vmem>>, vector<320x128xf32>
    tpu.vector_store %arg9[%c0_38, %c0_39], %56 {strides = array<i32>} : memref<320x128xf32, #tpu.memory_space<vmem>>, vector<320x128xf32>,
    return
  }
  func.func @transform_0(%arg0: i32) -> (i32, i32) {
    %c0_i32 = arith.constant 0 : i32
    %c0_i32_0 = arith.constant 0 : i32
    return %arg0, %c0_i32 : i32, i32
  }
  func.func @transform_1(%arg0: i32) -> (i32, i32, i32) {
    %c0_i32 = arith.constant 0 : i32
    %c0_i32_0 = arith.constant 0 : i32
    %c0_i32_1 = arith.constant 0 : i32
    %c0_i32_2 = arith.constant 0 : i32
    return %c0_i32, %c0_i32_0, %c0_i32_1 : i32, i32, i32
  }
  func.func @transform_2(%arg0: i32) -> (i32, i32, i32) {
    %c0_i32 = arith.constant 0 : i32
    %c0_i32_0 = arith.constant 0 : i32
    %c0_i32_1 = arith.constant 0 : i32
    %c0_i32_2 = arith.constant 0 : i32
    return %c0_i32, %c0_i32_0, %c0_i32_1 : i32, i32, i32
  }
  func.func @transform_3(%arg0: i32) -> (i32, i32) {
    %c0_i32 = arith.constant 0 : i32
    %c0_i32_0 = arith.constant 0 : i32
    %c0_i32_1 = arith.constant 0 : i32
    return %c0_i32, %c0_i32_0 : i32, i32
  }
  func.func @transform_4(%arg0: i32) -> (i32, i32) {
    %c0_i32 = arith.constant 0 : i32
    %c0_i32_0 = arith.constant 0 : i32
    %c0_i32_1 = arith.constant 0 : i32
    return %c0_i32, %c0_i32_0 : i32, i32
  }
  func.func @transform_5(%arg0: i32) -> (i32, i32) {
    %c0_i32 = arith.constant 0 : i32
    %c0_i32_0 = arith.constant 0 : i32
    %c0_i32_1 = arith.constant 0 : i32
    return %c0_i32, %c0_i32_0 : i32, i32
  }
  func.func @transform_6(%arg0: i32) -> (i32, i32) {
    %c0_i32 = arith.constant 0 : i32
    %c0_i32_0 = arith.constant 0 : i32
    %c0_i32_1 = arith.constant 0 : i32
    return %c0_i32, %c0_i32_0 : i32, i32
  }
  func.func @transform_7(%arg0: i32) -> (i32, i32) {
    %c0_i32 = arith.constant 0 : i32
    %c0_i32_0 = arith.constant 0 : i32
    %c0_i32_1 = arith.constant 0 : i32
    return %c0_i32, %c0_i32_0 : i32, i32
  }
  func.func @transform_8(%arg0: i32) -> (i32, i32) {
    %c0_i32 = arith.constant 0 : i32
    %c0_i32_0 = arith.constant 0 : i32
    return %arg0, %c0_i32 : i32, i32
  }
}

</mosaic_0001>

<llo_original>
// kernel: tpu_custom_call.1
$region0: #{tpu_custom_call.1}
  #allocation0 [shape = 'u32[]', space=smem, size = 0x4, offset = 0x4, fixed_abs, tag = 'smem constant byte address 0x4 - core index']
  #allocation1 [shape = 'u32[72,128]{1,0:T(1,128)}', space=vmem, size = 0x9000, scoped, tag = 'internal scratch']
  %s0 = inlined_call_operand.hbm [shape: f32[640,128], index: 0, kind: input, shape index: {}]
  %s1 = inlined_call_operand.hbm [shape: f32[3,384,128], index: 1, kind: input, shape index: {}]
  %s2 = inlined_call_operand.hbm [shape: f32[3,384,128], index: 2, kind: input, shape index: {}]
  %s3 = inlined_call_operand.vmem [shape: f32[1,128], index: 3, kind: input, shape index: {}]
  %s4 = inlined_call_operand.vmem [shape: f32[1,128], index: 4, kind: input, shape index: {}]
  %s5 = inlined_call_operand.vmem [shape: f32[1,128], index: 5, kind: input, shape index: {}]
  %s6 = inlined_call_operand.vmem [shape: f32[1,128], index: 6, kind: input, shape index: {}]
  %s7 = inlined_call_operand.hbm [shape: f32[160,128], index: 7, kind: input, shape index: {}]
  %s8 = inlined_call_operand.hbm [shape: f32[640,128], index: 8, kind: output, shape index: {}]
  %s9 = sld [smem:[#allocation0]]
  $region81: #{tpu_custom_call.1} parent=0
    _
  %s11 = ssub.s32 1, %s9
  %s12 = scalar_select 0, %s11, %s9
  $region1: #{tpu_custom_call.1} parent=0
    #allocation2 [shape = 'u8[327680]{0}', space=vmem, size = 0x50000, scoped, tag = 'input window, operand 0']
    #allocation3 [shape = 's32[2]{0}', space=sflag, size = 0x8, scoped, tag = 'scoped memory for tpu_custom_call.1']
    #allocation4 [shape = 's32[2]{0}', space=sflag, size = 0x8, scoped, tag = 'scoped memory for tpu_custom_call.1']
    #allocation5 [shape = 'u8[589824]{0}', space=vmem, size = 0x90000, scoped, tag = 'input window, operand 1, single buffered']
    #allocation6 [shape = 's32[1]{0}', space=sflag, size = 0x4, scoped, tag = 'scoped memory for tpu_custom_call.1']
    #allocation7 [shape = 'u8[589824]{0}', space=vmem, size = 0x90000, scoped, tag = 'input window, operand 2, single buffered']
    #allocation8 [shape = 'u8[81920]{0}', space=vmem, size = 0x14000, scoped, tag = 'input window, operand 7, single buffered']
    #allocation9 [shape = 's32[1]{0}', space=sflag, size = 0x4, scoped, tag = 'scoped memory for tpu_custom_call.1']
    #allocation10 [shape = 'u8[327680]{0}', space=vmem, size = 0x50000, scoped, tag = 'output window, operand 0']
    %13 = vsyncpa [#allocation3], 0
    %s14 = scalar_lea.sflag [#allocation3], 1
    %15 = vsyncpa %s14, 0
    %16 = vsyncpa [#allocation6], 0
    %17 = vsyncpa [#allocation9], 0
    %18 = vsyncpa [#allocation4], 0
    %s19 = scalar_lea.sflag [#allocation4], 1
    %20 = vsyncpa %s19, 0
    loop: start=0, step=1, limit=4
    $region2: #{tpu_custom_call.1} parent=1 // loop_pre_header
      _
    $region3: #{tpu_custom_call.1} parent=1 // loop_header
      %s22 = sphi 0, %s26
      %p23 = scmp.ge.s32.totalorder %s22, 4
      %s32 = sphi 0, %s34
      %s35 = sphi 0, %s32
      %s36 = sphi 0, %s35
      %s52 = sphi 0, %s36
      %s56 = sphi 0, %s56
      %s58 = sphi 0, %s56
      %s59 = sphi 0, %s58
      %s73 = sphi 0, %s59
      %s77 = sphi 0, %s77
      %s79 = sphi 0, %s77
      %s80 = sphi 0, %s79
      %s94 = sphi 0, %s80
      %s98 = sphi 0, %s98
      %s100 = sphi 0, %s98
      %s101 = sphi 0, %s100
      %s115 = sphi 0, %s101
      %s119 = sphi 0, %s119
      %s121 = sphi 0, %s119
      %s122 = sphi 0, %s121
      %s136 = sphi 0, %s122
      %s140 = sphi 0, %s140
      %s142 = sphi 0, %s140
      %s143 = sphi 0, %s142
      %s157 = sphi 0, %s143
      %s161 = sphi 0, %s161
      %s163 = sphi 0, %s161
      %s164 = sphi 0, %s163
      %s178 = sphi 0, %s164
      %s182 = sphi 0, %s182
      %s184 = sphi 0, %s182
      %s185 = sphi 0, %s184
      %s199 = sphi 0, %s185
      %s205 = sphi 0, %s207
      %s208 = sphi 0, %s205
      %s209 = sphi 0, %s208
      %s225 = sphi 0, %s209
    $region4: #{tpu_custom_call.1} parent=1 // loop_header_branch
      %25 = sbr.rel (%p23) target = $region8
    $region5: #{tpu_custom_call.1} parent=1 // loop_body
      %s27 = ssub.s32 %s22, 1
      %s28 = ssub.s32 %s22, 2
      %s29 = sadd.s32 %s22, 1
      %s30 = ssub.s32 %s22, %s29
      %p31 = scmp.eq.s32.totalorder %s30, 0
      %s33 = sadd.s32 %s32, 1
      %s34 = scalar_select %p31, %s32, %s33
      %p37 = pneg %p31
      %p38 = scmp.eq.s32.totalorder %s22, 1
      %p39 = por %p37, %p38
      %p40 = scmp.ne.s32.totalorder %s32, %s35
      %p41 = scmp.eq.s32.totalorder %s22, 0
      %p42 = por %p40, %p41
      %p43 = scmp.ne.s32.totalorder %s32, %s35
      %p44 = scmp.eq.s32.totalorder %s27, 1
      %p45 = por %p43, %p44
      %p46 = scmp.ne.s32.totalorder %s35, %s36
      %p47 = scmp.eq.s32.totalorder %s27, 0
      %p48 = por %p46, %p47
      %p49 = scmp.ne.s32.totalorder %s35, %s36
      %p50 = scmp.eq.s32.totalorder %s28, 1
      %p51 = por %p49, %p50
      %p53 = scmp.ne.s32.totalorder %s36, %s52
      %p54 = scmp.eq.s32.totalorder %s28, 0
      %p55 = por %p53, %p54
      %s57 = sadd.s32 %s56, 1
      %p60 = scmp.eq.s32.totalorder %s22, 1
      %p61 = scmp.ne.s32.totalorder %s56, %s58
      %p62 = scmp.eq.s32.totalorder %s22, 0
      %p63 = por %p61, %p62
      %p64 = scmp.ne.s32.totalorder %s56, %s58
      %p65 = scmp.eq.s32.totalorder %s27, 1
      %p66 = por %p64, %p65
      %p67 = scmp.ne.s32.totalorder %s58, %s59
      %p68 = scmp.eq.s32.totalorder %s27, 0
      %p69 = por %p67, %p68
      %p70 = scmp.ne.s32.totalorder %s58, %s59
      %p71 = scmp.eq.s32.totalorder %s28, 1
      %p72 = por %p70, %p71
      %p74 = scmp.ne.s32.totalorder %s59, %s73
      %p75 = scmp.eq.s32.totalorder %s28, 0
      %p76 = por %p74, %p75
      %s78 = sadd.s32 %s77, 1
      %p81 = scmp.eq.s32.totalorder %s22, 1
      %p82 = scmp.ne.s32.totalorder %s77, %s79
      %p83 = scmp.eq.s32.totalorder %s22, 0
      %p84 = por %p82, %p83
      %p85 = scmp.ne.s32.totalorder %s77, %s79
      %p86 = scmp.eq.s32.totalorder %s27, 1
      %p87 = por %p85, %p86
      %p88 = scmp.ne.s32.totalorder %s79, %s80
      %p89 = scmp.eq.s32.totalorder %s27, 0
      %p90 = por %p88, %p89
      %p91 = scmp.ne.s32.totalorder %s79, %s80
      %p92 = scmp.eq.s32.totalorder %s28, 1
      %p93 = por %p91, %p92
      %p95 = scmp.ne.s32.totalorder %s80, %s94
      %p96 = scmp.eq.s32.totalorder %s28, 0
      %p97 = por %p95, %p96
      %s99 = sadd.s32 %s98, 1
      %p102 = scmp.eq.s32.totalorder %s22, 1
      %p103 = scmp.ne.s32.totalorder %s98, %s100
      %p104 = scmp.eq.s32.totalorder %s22, 0
      %p105 = por %p103, %p104
      %p106 = scmp.ne.s32.totalorder %s98, %s100
      %p107 = scmp.eq.s32.totalorder %s27, 1
      %p108 = por %p106, %p107
      %p109 = scmp.ne.s32.totalorder %s100, %s101
      %p110 = scmp.eq.s32.totalorder %s27, 0
      %p111 = por %p109, %p110
      %p112 = scmp.ne.s32.totalorder %s100, %s101
      %p113 = scmp.eq.s32.totalorder %s28, 1
      %p114 = por %p112, %p113
      %p116 = scmp.ne.s32.totalorder %s101, %s115
      %p117 = scmp.eq.s32.totalorder %s28, 0
      %p118 = por %p116, %p117
      %s120 = sadd.s32 %s119, 1
      %p123 = scmp.eq.s32.totalorder %s22, 1
      %p124 = scmp.ne.s32.totalorder %s119, %s121
      %p125 = scmp.eq.s32.totalorder %s22, 0
      %p126 = por %p124, %p125
      %p127 = scmp.ne.s32.totalorder %s119, %s121
      %p128 = scmp.eq.s32.totalorder %s27, 1
      %p129 = por %p127, %p128
      %p130 = scmp.ne.s32.totalorder %s121, %s122
      %p131 = scmp.eq.s32.totalorder %s27, 0
      %p132 = por %p130, %p131
      %p133 = scmp.ne.s32.totalorder %s121, %s122
      %p134 = scmp.eq.s32.totalorder %s28, 1
      %p135 = por %p133, %p134
      %p137 = scmp.ne.s32.totalorder %s122, %s136
      %p138 = scmp.eq.s32.totalorder %s28, 0
      %p139 = por %p137, %p138
      %s141 = sadd.s32 %s140, 1
      %p144 = scmp.eq.s32.totalorder %s22, 1
      %p145 = scmp.ne.s32.totalorder %s140, %s142
      %p146 = scmp.eq.s32.totalorder %s22, 0
      %p147 = por %p145, %p146
      %p148 = scmp.ne.s32.totalorder %s140, %s142
      %p149 = scmp.eq.s32.totalorder %s27, 1
      %p150 = por %p148, %p149
      %p151 = scmp.ne.s32.totalorder %s142, %s143
      %p152 = scmp.eq.s32.totalorder %s27, 0
      %p153 = por %p151, %p152
      %p154 = scmp.ne.s32.totalorder %s142, %s143
      %p155 = scmp.eq.s32.totalorder %s28, 1
      %p156 = por %p154, %p155
      %p158 = scmp.ne.s32.totalorder %s143, %s157
      %p159 = scmp.eq.s32.totalorder %s28, 0
      %p160 = por %p158, %p159
      %s162 = sadd.s32 %s161, 1
      %p165 = scmp.eq.s32.totalorder %s22, 1
      %p166 = scmp.ne.s32.totalorder %s161, %s163
      %p167 = scmp.eq.s32.totalorder %s22, 0
      %p168 = por %p166, %p167
      %p169 = scmp.ne.s32.totalorder %s161, %s163
      %p170 = scmp.eq.s32.totalorder %s27, 1
      %p171 = por %p169, %p170
      %p172 = scmp.ne.s32.totalorder %s163, %s164
      %p173 = scmp.eq.s32.totalorder %s27, 0
      %p174 = por %p172, %p173
      %p175 = scmp.ne.s32.totalorder %s163, %s164
      %p176 = scmp.eq.s32.totalorder %s28, 1
      %p177 = por %p175, %p176
      %p179 = scmp.ne.s32.totalorder %s164, %s178
      %p180 = scmp.eq.s32.totalorder %s28, 0
      %p181 = por %p179, %p180
      %s183 = sadd.s32 %s182, 1
      %p186 = scmp.eq.s32.totalorder %s22, 1
      %p187 = scmp.ne.s32.totalorder %s182, %s184
      %p188 = scmp.eq.s32.totalorder %s22, 0
      %p189 = por %p187, %p188
      %p190 = scmp.ne.s32.totalorder %s182, %s184
      %p191 = scmp.eq.s32.totalorder %s27, 1
      %p192 = por %p190, %p191
      %p193 = scmp.ne.s32.totalorder %s184, %s185
      %p194 = scmp.eq.s32.totalorder %s27, 0
      %p195 = por %p193, %p194
      %p196 = scmp.ne.s32.totalorder %s184, %s185
      %p197 = scmp.eq.s32.totalorder %s28, 1
      %p198 = por %p196, %p197
      %p200 = scmp.ne.s32.totalorder %s185, %s199
      %p201 = scmp.eq.s32.totalorder %s28, 0
      %p202 = por %p200, %p201
      %s203 = ssub.s32 %s22, %s29
      %p204 = scmp.eq.s32.totalorder %s203, 0
      %s206 = sadd.s32 %s205, 1
      %s207 = scalar_select %p204, %s205, %s206
      %p210 = pneg %p204
      %p211 = scmp.eq.s32.totalorder %s22, 1
      %p212 = por %p210, %p211
      %p213 = scmp.ne.s32.totalorder %s205, %s208
      %p214 = scmp.eq.s32.totalorder %s22, 0
      %p215 = por %p213, %p214
      %p216 = scmp.ne.s32.totalorder %s205, %s208
      %p217 = scmp.eq.s32.totalorder %s27, 1
      %p218 = por %p216, %p217
      %p219 = scmp.ne.s32.totalorder %s208, %s209
      %p220 = scmp.eq.s32.totalorder %s27, 0
      %p221 = por %p219, %p220
      %p222 = scmp.ne.s32.totalorder %s208, %s209
      %p223 = scmp.eq.s32.totalorder %s28, 1
      %p224 = por %p222, %p223
      %p226 = scmp.ne.s32.totalorder %s209, %s225
      %p227 = scmp.eq.s32.totalorder %s28, 0
      %p228 = por %p226, %p227
      %p229 = scmp.le.s32.totalorder 1, %s22
      %p230 = scmp.lt.s32.totalorder %s22, 3
      %p231 = pnand %p229, %p230
      %p232 = pneg %p231
      // Predicated region
      $region9: #{tpu_custom_call.1} parent=5 // pred_check
        _
      $region10: #{tpu_custom_call.1} parent=5 // pred_check_branch
        %234 = sbr.rel (%p231) target = $region12
      $region11: #{tpu_custom_call.1} parent=5 // pred_region
        %s235 = ssub.s32 %s22, 1
        // Predicated region
        $region13: #{tpu_custom_call.1} parent=11 // pred_check
          %p236 = pneg %p69
        $region14: #{tpu_custom_call.1} parent=11 // pred_check_branch
          %238 = sbr.rel (%p236) target = $region16
        $region15: #{tpu_custom_call.1} parent=11 // pred_region
          %240 = vsyncadd [#allocation6], 0
          %s241 = sshll.u32 %s1, 4
          %s242 = int_to_ptr.hbm [resolvable:$true] %s241
          %s243 = sshll.u32 [#allocation5], 4
          %s244 = int_to_ptr.vmem [resolvable:$true] %s243
          %249 = dma.hbm_to_vmem [thread:$0]  %s242, 18432, %s244, [#allocation6], 128, 128, 8
        $region16: #{tpu_custom_call.1} parent=11 // pred_fallthru
          _
        // Predicated region
        $region17: #{tpu_custom_call.1} parent=11 // pred_check
          %p250 = pneg %p90
        $region18: #{tpu_custom_call.1} parent=11 // pred_check_branch
          %252 = sbr.rel (%p250) target = $region20
        $region19: #{tpu_custom_call.1} parent=11 // pred_region
          %254 = vsyncadd [#allocation6], 0
          %s255 = sshll.u32 %s2, 4
          %s256 = int_to_ptr.hbm [resolvable:$true] %s255
          %s257 = sshll.u32 [#allocation7], 4
          %s258 = int_to_ptr.vmem [resolvable:$true] %s257
          %263 = dma.hbm_to_vmem [thread:$0]  %s256, 18432, %s258, [#allocation6], 128, 128, 8
        $region20: #{tpu_custom_call.1} parent=11 // pred_fallthru
          _
        // Predicated region
        $region21: #{tpu_custom_call.1} parent=11 // pred_check
          %p264 = pneg %p111
        $region22: #{tpu_custom_call.1} parent=11 // pred_check_branch
          %266 = sbr.rel (%p264) target = $region24
        $region23: #{tpu_custom_call.1} parent=11 // pred_region
          _
        $region24: #{tpu_custom_call.1} parent=11 // pred_fallthru
          _
        // Predicated region
        $region25: #{tpu_custom_call.1} parent=11 // pred_check
          %p267 = pneg %p132
        $region26: #{tpu_custom_call.1} parent=11 // pred_check_branch
          %269 = sbr.rel (%p267) target = $region28
        $region27: #{tpu_custom_call.1} parent=11 // pred_region
          _
        $region28: #{tpu_custom_call.1} parent=11 // pred_fallthru
          _
        // Predicated region
        $region29: #{tpu_custom_call.1} parent=11 // pred_check
          %p270 = pneg %p153
        $region30: #{tpu_custom_call.1} parent=11 // pred_check_branch
          %272 = sbr.rel (%p270) target = $region32
        $region31: #{tpu_custom_call.1} parent=11 // pred_region
          _
        $region32: #{tpu_custom_call.1} parent=11 // pred_fallthru
          _
        // Predicated region
        $region33: #{tpu_custom_call.1} parent=11 // pred_check
          %p273 = pneg %p174
        $region34: #{tpu_custom_call.1} parent=11 // pred_check_branch
          %275 = sbr.rel (%p273) target = $region36
        $region35: #{tpu_custom_call.1} parent=11 // pred_region
          _
        $region36: #{tpu_custom_call.1} parent=11 // pred_fallthru
          _
        // Predicated region
        $region37: #{tpu_custom_call.1} parent=11 // pred_check
          %p276 = pneg %p195
        $region38: #{tpu_custom_call.1} parent=11 // pred_check_branch
          %278 = sbr.rel (%p276) target = $region40
        $region39: #{tpu_custom_call.1} parent=11 // pred_region
          %280 = vsyncadd [#allocation9], 0
          %s281 = sshll.u32 %s7, 4
          %s282 = int_to_ptr.hbm [resolvable:$true] %s281
          %s283 = sshll.u32 [#allocation8], 4
          %s284 = int_to_ptr.vmem [resolvable:$true] %s283
          %289 = dma.hbm_to_vmem [thread:$0]  %s282, 2560, %s284, [#allocation9], 128, 128, 8
        $region40: #{tpu_custom_call.1} parent=11 // pred_fallthru
          _
      $region12: #{tpu_custom_call.1} parent=5 // pred_fallthru
        _
      %p290 = scmp.lt.s32.totalorder %s22, 2
      // Predicated region
      $region41: #{tpu_custom_call.1} parent=5 // pred_check
        %p291 = pneg %p290
      $region42: #{tpu_custom_call.1} parent=5 // pred_check_branch
        %293 = sbr.rel (%p291) target = $region44
      $region43: #{tpu_custom_call.1} parent=5 // pred_region
        // Predicated region
        $region45: #{tpu_custom_call.1} parent=43 // pred_check
          %p294 = pneg %p42
        $region46: #{tpu_custom_call.1} parent=43 // pred_check_branch
          %296 = sbr.rel (%p294) target = $region48
        $region47: #{tpu_custom_call.1} parent=43 // pred_region
          %s297 = sand.u32 %s32, 1
          %s298 = scalar_lea.sflag [#allocation3], %s297
          %s299 = sand.u32 %s32, 1
          %s300 = smul.addr %s299, 320
          %s301 = scalar_lea.vmem [#allocation2], %s300
          %s302 = smul.u32 40, %s22
          %304 = vsyncadd %s298, 0
          %s305 = smul.addr %s302, 8
          %s306 = scalar_lea.hbm %s0, %s305
          %s307 = sshll.u32 %s306, 4
          %s308 = int_to_ptr.hbm [resolvable:$true] %s307
          %s309 = sshll.u32 %s301, 4
          %s310 = int_to_ptr.vmem [resolvable:$true] %s309
          %315 = dma.hbm_to_vmem [thread:$0]  %s308, 5120, %s310, %s298, 128, 128, 8
        $region48: #{tpu_custom_call.1} parent=43 // pred_fallthru
          _
      $region44: #{tpu_custom_call.1} parent=5 // pred_fallthru
        _
      %p316 = scmp.le.s32.totalorder 1, %s22
      %p317 = scmp.lt.s32.totalorder %s22, 3
      %p318 = pnand %p316, %p317
      %p319 = pneg %p318
      // Predicated region
      $region49: #{tpu_custom_call.1} parent=5 // pred_check
        _
      $region50: #{tpu_custom_call.1} parent=5 // pred_check_branch
        %321 = sbr.rel (%p318) target = $region52
      $region51: #{tpu_custom_call.1} parent=5 // pred_region
        %s322 = ssub.s32 %s22, 1
        %s323 = sand.u32 %s35, 1
        %s324 = scalar_lea.sflag [#allocation3], %s323
        %s325 = sand.u32 %s35, 1
        %s326 = smul.addr %s325, 320
        %s327 = scalar_lea.vmem [#allocation2], %s326
        // Predicated region
        $region53: #{tpu_custom_call.1} parent=51 // pred_check
          %p328 = pneg %p48
        $region54: #{tpu_custom_call.1} parent=51 // pred_check_branch
          %330 = sbr.rel (%p328) target = $region56
        $region55: #{tpu_custom_call.1} parent=51 // pred_region
          %332 = dma.done %s324, 5120
        $region56: #{tpu_custom_call.1} parent=51 // pred_fallthru
          _
        // Predicated region
        $region57: #{tpu_custom_call.1} parent=51 // pred_check
          %p333 = pneg %p69
        $region58: #{tpu_custom_call.1} parent=51 // pred_check_branch
          %335 = sbr.rel (%p333) target = $region60
        $region59: #{tpu_custom_call.1} parent=51 // pred_region
          %337 = dma.done [#allocation6], 18432
        $region60: #{tpu_custom_call.1} parent=51 // pred_fallthru
          _
        // Predicated region
        $region61: #{tpu_custom_call.1} parent=51 // pred_check
          %p338 = pneg %p90
        $region62: #{tpu_custom_call.1} parent=51 // pred_check_branch
          %340 = sbr.rel (%p338) target = $region64
        $region63: #{tpu_custom_call.1} parent=51 // pred_region
          %342 = dma.done [#allocation6], 18432
        $region64: #{tpu_custom_call.1} parent=51 // pred_fallthru
          _
        // Predicated region
        $region65: #{tpu_custom_call.1} parent=51 // pred_check
          %p343 = pneg %p195
        $region66: #{tpu_custom_call.1} parent=51 // pred_check_branch
          %345 = sbr.rel (%p343) target = $region68
        $region67: #{tpu_custom_call.1} parent=51 // pred_region
          %347 = dma.done [#allocation9], 2560
        $region68: #{tpu_custom_call.1} parent=51 // pred_fallthru
          _
        %s348 = sand.u32 %s35, 1
        %s349 = scalar_lea.sflag [#allocation3], %s348
        %s350 = sand.u32 %s35, 1
        %s351 = smul.addr %s350, 320
        %s352 = scalar_lea.vmem [#allocation2], %s351
        %p353 = pneg %p48
        %p354 = pneg %p45
        %p355 = pneg %p69
        %p356 = pneg %p66
        %p357 = pneg %p90
        %p358 = pneg %p87
        %p359 = pneg %p111
        %p360 = pneg %p108
        %p361 = pneg %p132
        %p362 = pneg %p129
        %p363 = pneg %p153
        %p364 = pneg %p150
        %p365 = pneg %p174
        %p366 = pneg %p171
        %p367 = pneg %p195
        %p368 = pneg %p192
        %p369 = pneg %p221
        %p370 = pneg %p218
        %s371 = sand.u32 %s208, 1
        %s372 = scalar_lea.sflag [#allocation4], %s371
        %s373 = sand.u32 %s208, 1
        %s374 = smul.addr %s373, 320
        %s375 = scalar_lea.vmem [#allocation10], %s374
        %s376 = smul.u32 40, %s27
        %s377 = smul.u32 40, %s27
        %v378 = vld [vmem:[%s327] sm:$0xff]
        %v379 = vld [vmem:[%s327 + $0x8] sm:$0xff]
        %v380 = vld [vmem:[%s327 + $0x10] sm:$0xff]
        %v381 = vld [vmem:[%s327 + $0x18] sm:$0xff]
        %v382 = vld [vmem:[%s327 + $0x20] sm:$0xff]
        %v383 = vld [vmem:[%s327 + $0x28] sm:$0xff]
        %v384 = vld [vmem:[%s327 + $0x30] sm:$0xff]
        %v385 = vld [vmem:[%s327 + $0x38] sm:$0xff]
        %v386 = vld [vmem:[%s327 + $0x40] sm:$0xff]
        %v387 = vld [vmem:[%s327 + $0x48] sm:$0xff]
        %v388 = vld [vmem:[%s327 + $0x50] sm:$0xff]
        %v389 = vld [vmem:[%s327 + $0x58] sm:$0xff]
        %v390 = vld [vmem:[%s327 + $0x60] sm:$0xff]
        %v391 = vld [vmem:[%s327 + $0x68] sm:$0xff]
        %v392 = vld [vmem:[%s327 + $0x70] sm:$0xff]
        %v393 = vld [vmem:[%s327 + $0x78] sm:$0xff]
        %v394 = vld [vmem:[%s327 + $0x80] sm:$0xff]
        %v395 = vld [vmem:[%s327 + $0x88] sm:$0xff]
        %v396 = vld [vmem:[%s327 + $0x90] sm:$0xff]
        %v397 = vld [vmem:[%s327 + $0x98] sm:$0xff]
        %v398 = vld [vmem:[%s327 + $0xa0] sm:$0xff]
        %v399 = vld [vmem:[%s327 + $0xa8] sm:$0xff]
        %v400 = vld [vmem:[%s327 + $0xb0] sm:$0xff]
        %v401 = vld [vmem:[%s327 + $0xb8] sm:$0xff]
        %v402 = vld [vmem:[%s327 + $0xc0] sm:$0xff]
        %v403 = vld [vmem:[%s327 + $0xc8] sm:$0xff]
        %v404 = vld [vmem:[%s327 + $0xd0] sm:$0xff]
        %v405 = vld [vmem:[%s327 + $0xd8] sm:$0xff]
        %v406 = vld [vmem:[%s327 + $0xe0] sm:$0xff]
        %v407 = vld [vmem:[%s327 + $0xe8] sm:$0xff]
        %v408 = vld [vmem:[%s327 + $0xf0] sm:$0xff]
        %v409 = vld [vmem:[%s327 + $0xf8] sm:$0xff]
        %v410 = vld [vmem:[%s327 + $0x100] sm:$0xff]
        %v411 = vld [vmem:[%s327 + $0x108] sm:$0xff]
        %v412 = vld [vmem:[%s327 + $0x110] sm:$0xff]
        %v413 = vld [vmem:[%s327 + $0x118] sm:$0xff]
        %v414 = vld [vmem:[%s327 + $0x120] sm:$0xff]
        %v415 = vld [vmem:[%s327 + $0x128] sm:$0xff]
        %v416 = vld [vmem:[%s327 + $0x130] sm:$0xff]
        %v417 = vld [vmem:[%s327 + $0x138] sm:$0xff]
        %v418 = vld [vmem:[#allocation8] sm:$0xff]
        %v419 = vld [vmem:[#allocation8 + $0x8] sm:$0xff]
        %v420 = vld [vmem:[#allocation8 + $0x10] sm:$0xff]
        %v421 = vld [vmem:[#allocation8 + $0x18] sm:$0xff]
        %v422 = vld [vmem:[#allocation8 + $0x20] sm:$0xff]
        %v423 = vld [vmem:[#allocation8 + $0x28] sm:$0xff]
        %v424 = vld [vmem:[#allocation8 + $0x30] sm:$0xff]
        %v425 = vld [vmem:[#allocation8 + $0x38] sm:$0xff]
        %v426 = vld [vmem:[#allocation8 + $0x40] sm:$0xff]
        %v427 = vld [vmem:[#allocation8 + $0x48] sm:$0xff]
        %v428 = vld [vmem:[#allocation8 + $0x50] sm:$0xff]
        %v429 = vld [vmem:[#allocation8 + $0x58] sm:$0xff]
        %v430 = vld [vmem:[#allocation8 + $0x60] sm:$0xff]
        %v431 = vld [vmem:[#allocation8 + $0x68] sm:$0xff]
        %v432 = vld [vmem:[#allocation8 + $0x70] sm:$0xff]
        %v433 = vld [vmem:[#allocation8 + $0x78] sm:$0xff]
        %v434 = vld [vmem:[#allocation8 + $0x80] sm:$0xff]
        %v435 = vld [vmem:[#allocation8 + $0x88] sm:$0xff]
        %v436 = vld [vmem:[#allocation8 + $0x90] sm:$0xff]
        %v437 = vld [vmem:[#allocation8 + $0x98] sm:$0xff]
        %v438 = vld [vmem:[#allocation5] sm:$0xff]
        %v439 = vld [vmem:[#allocation5 + $0x8] sm:$0xff]
        %v440 = vld [vmem:[#allocation5 + $0x10] sm:$0xff]
        %v441 = vld [vmem:[#allocation5 + $0x18] sm:$0xff]
        %v442 = vld [vmem:[#allocation5 + $0x20] sm:$0xff]
        %v443 = vld [vmem:[#allocation5 + $0x28] sm:$0xff]
        %v444 = vld [vmem:[#allocation5 + $0x30] sm:$0xff]
        %v445 = vld [vmem:[#allocation5 + $0x38] sm:$0xff]
        %v446 = vld [vmem:[#allocation5 + $0x40] sm:$0xff]
        %v447 = vld [vmem:[#allocation5 + $0x48] sm:$0xff]
        %v448 = vld [vmem:[#allocation5 + $0x50] sm:$0xff]
        %v449 = vld [vmem:[#allocation5 + $0x58] sm:$0xff]
        %v450 = vld [vmem:[#allocation5 + $0x60] sm:$0xff]
        %v451 = vld [vmem:[#allocation5 + $0x68] sm:$0xff]
        %v452 = vld [vmem:[#allocation5 + $0x70] sm:$0xff]
        %v453 = vld [vmem:[#allocation5 + $0x78] sm:$0xff]
        %v454 = vld [vmem:[#allocation5 + $0x80] sm:$0xff]
        %v455 = vld [vmem:[#allocation5 + $0x88] sm:$0xff]
        %v456 = vld [vmem:[#allocation5 + $0x90] sm:$0xff]
        %v457 = vld [vmem:[#allocation5 + $0x98] sm:$0xff]
        %v458 = vld [vmem:[#allocation5 + $0xa0] sm:$0xff]
        %v459 = vld [vmem:[#allocation5 + $0xa8] sm:$0xff]
        %v460 = vld [vmem:[#allocation5 + $0xb0] sm:$0xff]
        %v461 = vld [vmem:[#allocation5 + $0xb8] sm:$0xff]
        %v462 = vld [vmem:[#allocation5 + $0xc0] sm:$0xff]
        %v463 = vld [vmem:[#allocation5 + $0xc8] sm:$0xff]
        %v464 = vld [vmem:[#allocation5 + $0xd0] sm:$0xff]
        %v465 = vld [vmem:[#allocation5 + $0xd8] sm:$0xff]
        %v466 = vld [vmem:[#allocation5 + $0xe0] sm:$0xff]
        %v467 = vld [vmem:[#allocation5 + $0xe8] sm:$0xff]
        %v468 = vld [vmem:[#allocation5 + $0xf0] sm:$0xff]
        %v469 = vld [vmem:[#allocation5 + $0xf8] sm:$0xff]
        %v470 = vld [vmem:[#allocation5 + $0x100] sm:$0xff]
        %v471 = vld [vmem:[#allocation5 + $0x108] sm:$0xff]
        %v472 = vld [vmem:[#allocation5 + $0x110] sm:$0xff]
        %v473 = vld [vmem:[#allocation5 + $0x118] sm:$0xff]
        %v474 = vld [vmem:[#allocation5 + $0x120] sm:$0xff]
        %v475 = vld [vmem:[#allocation5 + $0x128] sm:$0xff]
        %v476 = vld [vmem:[#allocation5 + $0x130] sm:$0xff]
        %v477 = vld [vmem:[#allocation5 + $0x138] sm:$0xff]
        %v478 = vld [vmem:[#allocation5 + $0x140] sm:$0xff]
        %v479 = vld [vmem:[#allocation5 + $0x148] sm:$0xff]
        %v480 = vld [vmem:[#allocation5 + $0x150] sm:$0xff]
        %v481 = vld [vmem:[#allocation5 + $0x158] sm:$0xff]
        %v482 = vld [vmem:[#allocation5 + $0x160] sm:$0xff]
        %v483 = vld [vmem:[#allocation5 + $0x168] sm:$0xff]
        %v484 = vld [vmem:[#allocation5 + $0x170] sm:$0xff]
        %v485 = vld [vmem:[#allocation5 + $0x178] sm:$0xff]
        %486 = vmatpush.msra.mxu0 %v453
        %487 = vmatpush.msra.mxu0 %v452
        %488 = vmatpush.msra.mxu0 %v451
        %489 = vmatpush.msra.mxu0 %v450
        %490 = vmatpush.msra.mxu0 %v449
        %491 = vmatpush.msra.mxu0 %v448
        %492 = vmatpush.msra.mxu0 %v447
        %493 = vmatpush.msra.mxu0 %v446
        %494 = vmatpush.msra.mxu0 %v445
        %495 = vmatpush.msra.mxu0 %v444
        %496 = vmatpush.msra.mxu0 %v443
        %497 = vmatpush.msra.mxu0 %v442
        %498 = vmatpush.msra.mxu0 %v441
        %499 = vmatpush.msra.mxu0 %v440
        %500 = vmatpush.msra.mxu0 %v439
        %501 = vmatpush.msra.mxu0 %v438
        %502 = vmatmul.f32.gmra.mxu0 %v416
        %v503 = vpop.f32.mrf.mxu0
        %v504 = vadd.f32 0.0, %v503
        %505 = vmatmul.f32.gmra.mxu0 %v417
        %v506 = vpop.f32.mrf.mxu0
        %v507 = vadd.f32 0.0, %v506
        %508 = vmatmul.f32.gmra.mxu0 %v378
        %v509 = vpop.f32.mrf.mxu0
        %v510 = vadd.f32 0.0, %v509
        %511 = vmatmul.f32.gmra.mxu0 %v379
        %v512 = vpop.f32.mrf.mxu0
        %v513 = vadd.f32 0.0, %v512
        %514 = vmatmul.f32.gmra.mxu0 %v380
        %v515 = vpop.f32.mrf.mxu0
        %v516 = vadd.f32 0.0, %v515
        %517 = vmatmul.f32.gmra.mxu0 %v381
        %v518 = vpop.f32.mrf.mxu0
        %v519 = vadd.f32 0.0, %v518
        %520 = vmatmul.f32.gmra.mxu0 %v382
        %v521 = vpop.f32.mrf.mxu0
        %v522 = vadd.f32 0.0, %v521
        %523 = vmatmul.f32.gmra.mxu0 %v383
        %v524 = vpop.f32.mrf.mxu0
        %v525 = vadd.f32 0.0, %v524
        %526 = vmatmul.f32.gmra.mxu0 %v384
        %v527 = vpop.f32.mrf.mxu0
        %v528 = vadd.f32 0.0, %v527
        %529 = vmatmul.f32.gmra.mxu0 %v385
        %v530 = vpop.f32.mrf.mxu0
        %v531 = vadd.f32 0.0, %v530
        %532 = vmatmul.f32.gmra.mxu0 %v386
        %v533 = vpop.f32.mrf.mxu0
        %v534 = vadd.f32 0.0, %v533
        %535 = vmatmul.f32.gmra.mxu0 %v387
        %v536 = vpop.f32.mrf.mxu0
        %v537 = vadd.f32 0.0, %v536
        %538 = vmatmul.f32.gmra.mxu0 %v388
        %v539 = vpop.f32.mrf.mxu0
        %v540 = vadd.f32 0.0, %v539
        %541 = vmatmul.f32.gmra.mxu0 %v389
        %v542 = vpop.f32.mrf.mxu0
        %v543 = vadd.f32 0.0, %v542
        %544 = vmatmul.f32.gmra.mxu0 %v390
        %v545 = vpop.f32.mrf.mxu0
        %v546 = vadd.f32 0.0, %v545
        %547 = vmatmul.f32.gmra.mxu0 %v391
        %v548 = vpop.f32.mrf.mxu0
        %v549 = vadd.f32 0.0, %v548
        %550 = vmatmul.f32.gmra.mxu0 %v392
        %v551 = vpop.f32.mrf.mxu0
        %v552 = vadd.f32 0.0, %v551
        %553 = vmatmul.f32.gmra.mxu0 %v393
        %v554 = vpop.f32.mrf.mxu0
        %v555 = vadd.f32 0.0, %v554
        %556 = vmatmul.f32.gmra.mxu0 %v394
        %v557 = vpop.f32.mrf.mxu0
        %v558 = vadd.f32 0.0, %v557
        %559 = vmatmul.f32.gmra.mxu0 %v395
        %v560 = vpop.f32.mrf.mxu0
        %v561 = vadd.f32 0.0, %v560
        %562 = vmatmul.f32.gmra.mxu0 %v396
        %v563 = vpop.f32.mrf.mxu0
        %v564 = vadd.f32 0.0, %v563
        %565 = vmatmul.f32.gmra.mxu0 %v397
        %v566 = vpop.f32.mrf.mxu0
        %v567 = vadd.f32 0.0, %v566
        %568 = vmatmul.f32.gmra.mxu0 %v398
        %v569 = vpop.f32.mrf.mxu0
        %v570 = vadd.f32 0.0, %v569
        %571 = vmatmul.f32.gmra.mxu0 %v399
        %v572 = vpop.f32.mrf.mxu0
        %v573 = vadd.f32 0.0, %v572
        %574 = vmatmul.f32.gmra.mxu0 %v400
        %v575 = vpop.f32.mrf.mxu0
        %v576 = vadd.f32 0.0, %v575
        %577 = vmatmul.f32.gmra.mxu0 %v401
        %v578 = vpop.f32.mrf.mxu0
        %v579 = vadd.f32 0.0, %v578
        %580 = vmatmul.f32.gmra.mxu0 %v402
        %v581 = vpop.f32.mrf.mxu0
        %v582 = vadd.f32 0.0, %v581
        %583 = vmatmul.f32.gmra.mxu0 %v403
        %v584 = vpop.f32.mrf.mxu0
        %v585 = vadd.f32 0.0, %v584
        %586 = vmatmul.f32.gmra.mxu0 %v404
        %v587 = vpop.f32.mrf.mxu0
        %v588 = vadd.f32 0.0, %v587
        %589 = vmatmul.f32.gmra.mxu0 %v405
        %v590 = vpop.f32.mrf.mxu0
        %v591 = vadd.f32 0.0, %v590
        %592 = vmatmul.f32.gmra.mxu0 %v406
        %v593 = vpop.f32.mrf.mxu0
        %v594 = vadd.f32 0.0, %v593
        %595 = vmatmul.f32.gmra.mxu0 %v407
        %v596 = vpop.f32.mrf.mxu0
        %v597 = vadd.f32 0.0, %v596
        %598 = vmatmul.f32.gmra.mxu0 %v408
        %v599 = vpop.f32.mrf.mxu0
        %v600 = vadd.f32 0.0, %v599
        %601 = vmatmul.f32.gmra.mxu0 %v409
        %v602 = vpop.f32.mrf.mxu0
        %v603 = vadd.f32 0.0, %v602
        %604 = vmatmul.f32.gmra.mxu0 %v410
        %v605 = vpop.f32.mrf.mxu0
        %v606 = vadd.f32 0.0, %v605
        %607 = vmatmul.f32.gmra.mxu0 %v411
        %v608 = vpop.f32.mrf.mxu0
        %v609 = vadd.f32 0.0, %v608
        %610 = vmatmul.f32.gmra.mxu0 %v412
        %v611 = vpop.f32.mrf.mxu0
        %v612 = vadd.f32 0.0, %v611
        %613 = vmatmul.f32.gmra.mxu0 %v413
        %v614 = vpop.f32.mrf.mxu0
        %v615 = vadd.f32 0.0, %v614
        %616 = vmatmul.f32.gmra.mxu0 %v414
        %v617 = vpop.f32.mrf.mxu0
        %v618 = vadd.f32 0.0, %v617
        %619 = vmatmul.f32.gmra.mxu0 %v415
        %v620 = vpop.f32.mrf.mxu0
        %v621 = vadd.f32 0.0, %v620
        %622 = vdwg.mxu0
        %623 = vmatpush.msra.mxu0 %v469
        %624 = vmatpush.msra.mxu0 %v468
        %625 = vmatpush.msra.mxu0 %v467
        %626 = vmatpush.msra.mxu0 %v466
        %627 = vmatpush.msra.mxu0 %v465
        %628 = vmatpush.msra.mxu0 %v464
        %629 = vmatpush.msra.mxu0 %v463
        %630 = vmatpush.msra.mxu0 %v462
        %631 = vmatpush.msra.mxu0 %v461
        %632 = vmatpush.msra.mxu0 %v460
        %633 = vmatpush.msra.mxu0 %v459
        %634 = vmatpush.msra.mxu0 %v458
        %635 = vmatpush.msra.mxu0 %v457
        %636 = vmatpush.msra.mxu0 %v456
        %637 = vmatpush.msra.mxu0 %v455
        %638 = vmatpush.msra.mxu0 %v454
        %639 = vmatmul.f32.gmra.mxu0 %v378
        %v640 = vpop.f32.mrf.mxu0
        %v641 = vadd.f32 %v504, %v640
        %642 = vmatmul.f32.gmra.mxu0 %v379
        %v643 = vpop.f32.mrf.mxu0
        %v644 = vadd.f32 %v507, %v643
        %645 = vmatmul.f32.gmra.mxu0 %v380
        %v646 = vpop.f32.mrf.mxu0
        %v647 = vadd.f32 %v510, %v646
        %648 = vmatmul.f32.gmra.mxu0 %v381
        %v649 = vpop.f32.mrf.mxu0
        %v650 = vadd.f32 %v513, %v649
        %651 = vmatmul.f32.gmra.mxu0 %v382
        %v652 = vpop.f32.mrf.mxu0
        %v653 = vadd.f32 %v516, %v652
        %654 = vmatmul.f32.gmra.mxu0 %v383
        %v655 = vpop.f32.mrf.mxu0
        %v656 = vadd.f32 %v519, %v655
        %657 = vmatmul.f32.gmra.mxu0 %v384
        %v658 = vpop.f32.mrf.mxu0
        %v659 = vadd.f32 %v522, %v658
        %660 = vmatmul.f32.gmra.mxu0 %v385
        %v661 = vpop.f32.mrf.mxu0
        %v662 = vadd.f32 %v525, %v661
        %663 = vmatmul.f32.gmra.mxu0 %v386
        %v664 = vpop.f32.mrf.mxu0
        %v665 = vadd.f32 %v528, %v664
        %666 = vmatmul.f32.gmra.mxu0 %v387
        %v667 = vpop.f32.mrf.mxu0
        %v668 = vadd.f32 %v531, %v667
        %669 = vmatmul.f32.gmra.mxu0 %v388
        %v670 = vpop.f32.mrf.mxu0
        %v671 = vadd.f32 %v534, %v670
        %672 = vmatmul.f32.gmra.mxu0 %v389
        %v673 = vpop.f32.mrf.mxu0
        %v674 = vadd.f32 %v537, %v673
        %675 = vmatmul.f32.gmra.mxu0 %v390
        %v676 = vpop.f32.mrf.mxu0
        %v677 = vadd.f32 %v540, %v676
        %678 = vmatmul.f32.gmra.mxu0 %v391
        %v679 = vpop.f32.mrf.mxu0
        %v680 = vadd.f32 %v543, %v679
        %681 = vmatmul.f32.gmra.mxu0 %v392
        %v682 = vpop.f32.mrf.mxu0
        %v683 = vadd.f32 %v546, %v682
        %684 = vmatmul.f32.gmra.mxu0 %v393
        %v685 = vpop.f32.mrf.mxu0
        %v686 = vadd.f32 %v549, %v685
        %687 = vmatmul.f32.gmra.mxu0 %v394
        %v688 = vpop.f32.mrf.mxu0
        %v689 = vadd.f32 %v552, %v688
        %690 = vmatmul.f32.gmra.mxu0 %v395
        %v691 = vpop.f32.mrf.mxu0
        %v692 = vadd.f32 %v555, %v691
        %693 = vmatmul.f32.gmra.mxu0 %v396
        %v694 = vpop.f32.mrf.mxu0
        %v695 = vadd.f32 %v558, %v694
        %696 = vmatmul.f32.gmra.mxu0 %v397
        %v697 = vpop.f32.mrf.mxu0
        %v698 = vadd.f32 %v561, %v697
        %699 = vmatmul.f32.gmra.mxu0 %v398
        %v700 = vpop.f32.mrf.mxu0
        %v701 = vadd.f32 %v564, %v700
        %702 = vmatmul.f32.gmra.mxu0 %v399
        %v703 = vpop.f32.mrf.mxu0
        %v704 = vadd.f32 %v567, %v703
        %705 = vmatmul.f32.gmra.mxu0 %v400
        %v706 = vpop.f32.mrf.mxu0
        %v707 = vadd.f32 %v570, %v706
        %708 = vmatmul.f32.gmra.mxu0 %v401
        %v709 = vpop.f32.mrf.mxu0
        %v710 = vadd.f32 %v573, %v709
        %711 = vmatmul.f32.gmra.mxu0 %v402
        %v712 = vpop.f32.mrf.mxu0
        %v713 = vadd.f32 %v576, %v712
        %714 = vmatmul.f32.gmra.mxu0 %v403
        %v715 = vpop.f32.mrf.mxu0
        %v716 = vadd.f32 %v579, %v715
        %717 = vmatmul.f32.gmra.mxu0 %v404
        %v718 = vpop.f32.mrf.mxu0
        %v719 = vadd.f32 %v582, %v718
        %720 = vmatmul.f32.gmra.mxu0 %v405
        %v721 = vpop.f32.mrf.mxu0
        %v722 = vadd.f32 %v585, %v721
        %723 = vmatmul.f32.gmra.mxu0 %v406
        %v724 = vpop.f32.mrf.mxu0
        %v725 = vadd.f32 %v588, %v724
        %726 = vmatmul.f32.gmra.mxu0 %v407
        %v727 = vpop.f32.mrf.mxu0
        %v728 = vadd.f32 %v591, %v727
        %729 = vmatmul.f32.gmra.mxu0 %v408
        %v730 = vpop.f32.mrf.mxu0
        %v731 = vadd.f32 %v594, %v730
        %732 = vmatmul.f32.gmra.mxu0 %v409
        %v733 = vpop.f32.mrf.mxu0
        %v734 = vadd.f32 %v597, %v733
        %735 = vmatmul.f32.gmra.mxu0 %v410
        %v736 = vpop.f32.mrf.mxu0
        %v737 = vadd.f32 %v600, %v736
        %738 = vmatmul.f32.gmra.mxu0 %v411
        %v739 = vpop.f32.mrf.mxu0
        %v740 = vadd.f32 %v603, %v739
        %741 = vmatmul.f32.gmra.mxu0 %v412
        %v742 = vpop.f32.mrf.mxu0
        %v743 = vadd.f32 %v606, %v742
        %744 = vmatmul.f32.gmra.mxu0 %v413
        %v745 = vpop.f32.mrf.mxu0
        %v746 = vadd.f32 %v609, %v745
        %747 = vmatmul.f32.gmra.mxu0 %v414
        %v748 = vpop.f32.mrf.mxu0
        %v749 = vadd.f32 %v612, %v748
        %750 = vmatmul.f32.gmra.mxu0 %v415
        %v751 = vpop.f32.mrf.mxu0
        %v752 = vadd.f32 %v615, %v751
        %753 = vmatmul.f32.gmra.mxu0 %v416
        %v754 = vpop.f32.mrf.mxu0
        %v755 = vadd.f32 %v618, %v754
        %756 = vmatmul.f32.gmra.mxu0 %v417
        %v757 = vpop.f32.mrf.mxu0
        %v758 = vadd.f32 %v621, %v757
        %759 = vdwg.mxu0
        %760 = vmatpush.msra.mxu0 %v485
        %761 = vmatpush.msra.mxu0 %v484
        %762 = vmatpush.msra.mxu0 %v483
        %763 = vmatpush.msra.mxu0 %v482
        %764 = vmatpush.msra.mxu0 %v481
        %765 = vmatpush.msra.mxu0 %v480
        %766 = vmatpush.msra.mxu0 %v479
        %767 = vmatpush.msra.mxu0 %v478
        %768 = vmatpush.msra.mxu0 %v477
        %769 = vmatpush.msra.mxu0 %v476
        %770 = vmatpush.msra.mxu0 %v475
        %771 = vmatpush.msra.mxu0 %v474
        %772 = vmatpush.msra.mxu0 %v473
        %773 = vmatpush.msra.mxu0 %v472
        %774 = vmatpush.msra.mxu0 %v471
        %775 = vmatpush.msra.mxu0 %v470
        %776 = vmatmul.f32.gmra.mxu0 %v380
        %v777 = vpop.f32.mrf.mxu0
        %v778 = vadd.f32 %v641, %v777
        %779 = vmatmul.f32.gmra.mxu0 %v381
        %v780 = vpop.f32.mrf.mxu0
        %v781 = vadd.f32 %v644, %v780
        %782 = vmatmul.f32.gmra.mxu0 %v382
        %v783 = vpop.f32.mrf.mxu0
        %v784 = vadd.f32 %v647, %v783
        %785 = vmatmul.f32.gmra.mxu0 %v383
        %v786 = vpop.f32.mrf.mxu0
        %v787 = vadd.f32 %v650, %v786
        %788 = vmatmul.f32.gmra.mxu0 %v384
        %v789 = vpop.f32.mrf.mxu0
        %v790 = vadd.f32 %v653, %v789
        %791 = vmatmul.f32.gmra.mxu0 %v385
        %v792 = vpop.f32.mrf.mxu0
        %v793 = vadd.f32 %v656, %v792
        %794 = vmatmul.f32.gmra.mxu0 %v386
        %v795 = vpop.f32.mrf.mxu0
        %v796 = vadd.f32 %v659, %v795
        %797 = vmatmul.f32.gmra.mxu0 %v387
        %v798 = vpop.f32.mrf.mxu0
        %v799 = vadd.f32 %v662, %v798
        %800 = vmatmul.f32.gmra.mxu0 %v388
        %v801 = vpop.f32.mrf.mxu0
        %v802 = vadd.f32 %v665, %v801
        %803 = vmatmul.f32.gmra.mxu0 %v389
        %v804 = vpop.f32.mrf.mxu0
        %v805 = vadd.f32 %v668, %v804
        %806 = vmatmul.f32.gmra.mxu0 %v390
        %v807 = vpop.f32.mrf.mxu0
        %v808 = vadd.f32 %v671, %v807
        %809 = vmatmul.f32.gmra.mxu0 %v391
        %v810 = vpop.f32.mrf.mxu0
        %v811 = vadd.f32 %v674, %v810
        %812 = vmatmul.f32.gmra.mxu0 %v392
        %v813 = vpop.f32.mrf.mxu0
        %v814 = vadd.f32 %v677, %v813
        %815 = vmatmul.f32.gmra.mxu0 %v393
        %v816 = vpop.f32.mrf.mxu0
        %v817 = vadd.f32 %v680, %v816
        %818 = vmatmul.f32.gmra.mxu0 %v394
        %v819 = vpop.f32.mrf.mxu0
        %v820 = vadd.f32 %v683, %v819
        %821 = vmatmul.f32.gmra.mxu0 %v395
        %v822 = vpop.f32.mrf.mxu0
        %v823 = vadd.f32 %v686, %v822
        %824 = vmatmul.f32.gmra.mxu0 %v396
        %v825 = vpop.f32.mrf.mxu0
        %v826 = vadd.f32 %v689, %v825
        %827 = vmatmul.f32.gmra.mxu0 %v397
        %v828 = vpop.f32.mrf.mxu0
        %v829 = vadd.f32 %v692, %v828
        %830 = vmatmul.f32.gmra.mxu0 %v398
        %v831 = vpop.f32.mrf.mxu0
        %v832 = vadd.f32 %v695, %v831
        %833 = vmatmul.f32.gmra.mxu0 %v399
        %v834 = vpop.f32.mrf.mxu0
        %v835 = vadd.f32 %v698, %v834
        %836 = vmatmul.f32.gmra.mxu0 %v400
        %v837 = vpop.f32.mrf.mxu0
        %v838 = vadd.f32 %v701, %v837
        %839 = vmatmul.f32.gmra.mxu0 %v401
        %v840 = vpop.f32.mrf.mxu0
        %v841 = vadd.f32 %v704, %v840
        %842 = vmatmul.f32.gmra.mxu0 %v402
        %v843 = vpop.f32.mrf.mxu0
        %v844 = vadd.f32 %v707, %v843
        %845 = vmatmul.f32.gmra.mxu0 %v403
        %v846 = vpop.f32.mrf.mxu0
        %v847 = vadd.f32 %v710, %v846
        %848 = vmatmul.f32.gmra.mxu0 %v404
        %v849 = vpop.f32.mrf.mxu0
        %v850 = vadd.f32 %v713, %v849
        %851 = vmatmul.f32.gmra.mxu0 %v405
        %v852 = vpop.f32.mrf.mxu0
        %v853 = vadd.f32 %v716, %v852
        %854 = vmatmul.f32.gmra.mxu0 %v406
        %v855 = vpop.f32.mrf.mxu0
        %v856 = vadd.f32 %v719, %v855
        %857 = vmatmul.f32.gmra.mxu0 %v407
        %v858 = vpop.f32.mrf.mxu0
        %v859 = vadd.f32 %v722, %v858
        %860 = vmatmul.f32.gmra.mxu0 %v408
        %v861 = vpop.f32.mrf.mxu0
        %v862 = vadd.f32 %v725, %v861
        %863 = vmatmul.f32.gmra.mxu0 %v409
        %v864 = vpop.f32.mrf.mxu0
        %v865 = vadd.f32 %v728, %v864
        %866 = vmatmul.f32.gmra.mxu0 %v410
        %v867 = vpop.f32.mrf.mxu0
        %v868 = vadd.f32 %v731, %v867
        %869 = vmatmul.f32.gmra.mxu0 %v411
        %v870 = vpop.f32.mrf.mxu0
        %v871 = vadd.f32 %v734, %v870
        %872 = vmatmul.f32.gmra.mxu0 %v412
        %v873 = vpop.f32.mrf.mxu0
        %v874 = vadd.f32 %v737, %v873
        %875 = vmatmul.f32.gmra.mxu0 %v413
        %v876 = vpop.f32.mrf.mxu0
        %v877 = vadd.f32 %v740, %v876
        %878 = vmatmul.f32.gmra.mxu0 %v414
        %v879 = vpop.f32.mrf.mxu0
        %v880 = vadd.f32 %v743, %v879
        %881 = vmatmul.f32.gmra.mxu0 %v415
        %v882 = vpop.f32.mrf.mxu0
        %v883 = vadd.f32 %v746, %v882
        %884 = vmatmul.f32.gmra.mxu0 %v416
        %v885 = vpop.f32.mrf.mxu0
        %v886 = vadd.f32 %v749, %v885
        %887 = vmatmul.f32.gmra.mxu0 %v417
        %v888 = vpop.f32.mrf.mxu0
        %v889 = vadd.f32 %v752, %v888
        %890 = vmatmul.f32.gmra.mxu0 %v378
        %v891 = vpop.f32.mrf.mxu0
        %v892 = vadd.f32 %v755, %v891
        %893 = vmatmul.f32.gmra.mxu0 %v379
        %v894 = vpop.f32.mrf.mxu0
        %v895 = vadd.f32 %v758, %v894
        %896 = vdwg.mxu0
        %s897 = scalar_lea.vmem [#allocation5], 384
        %v898 = vld [vmem:[%s897] sm:$0xff]
        %v899 = vld [vmem:[%s897 + $0x8] sm:$0xff]
        %v900 = vld [vmem:[%s897 + $0x10] sm:$0xff]
        %v901 = vld [vmem:[%s897 + $0x18] sm:$0xff]
        %v902 = vld [vmem:[%s897 + $0x20] sm:$0xff]
        %v903 = vld [vmem:[%s897 + $0x28] sm:$0xff]
        %v904 = vld [vmem:[%s897 + $0x30] sm:$0xff]
        %v905 = vld [vmem:[%s897 + $0x38] sm:$0xff]
        %v906 = vld [vmem:[%s897 + $0x40] sm:$0xff]
        %v907 = vld [vmem:[%s897 + $0x48] sm:$0xff]
        %v908 = vld [vmem:[%s897 + $0x50] sm:$0xff]
        %v909 = vld [vmem:[%s897 + $0x58] sm:$0xff]
        %v910 = vld [vmem:[%s897 + $0x60] sm:$0xff]
        %v911 = vld [vmem:[%s897 + $0x68] sm:$0xff]
        %v912 = vld [vmem:[%s897 + $0x70] sm:$0xff]
        %v913 = vld [vmem:[%s897 + $0x78] sm:$0xff]
        %v914 = vld [vmem:[%s897 + $0x80] sm:$0xff]
        %v915 = vld [vmem:[%s897 + $0x88] sm:$0xff]
        %v916 = vld [vmem:[%s897 + $0x90] sm:$0xff]
        %v917 = vld [vmem:[%s897 + $0x98] sm:$0xff]
        %v918 = vld [vmem:[%s897 + $0xa0] sm:$0xff]
        %v919 = vld [vmem:[%s897 + $0xa8] sm:$0xff]
        %v920 = vld [vmem:[%s897 + $0xb0] sm:$0xff]
        %v921 = vld [vmem:[%s897 + $0xb8] sm:$0xff]
        %v922 = vld [vmem:[%s897 + $0xc0] sm:$0xff]
        %v923 = vld [vmem:[%s897 + $0xc8] sm:$0xff]
        %v924 = vld [vmem:[%s897 + $0xd0] sm:$0xff]
        %v925 = vld [vmem:[%s897 + $0xd8] sm:$0xff]
        %v926 = vld [vmem:[%s897 + $0xe0] sm:$0xff]
        %v927 = vld [vmem:[%s897 + $0xe8] sm:$0xff]
        %v928 = vld [vmem:[%s897 + $0xf0] sm:$0xff]
        %v929 = vld [vmem:[%s897 + $0xf8] sm:$0xff]
        %v930 = vld [vmem:[%s897 + $0x100] sm:$0xff]
        %v931 = vld [vmem:[%s897 + $0x108] sm:$0xff]
        %v932 = vld [vmem:[%s897 + $0x110] sm:$0xff]
        %v933 = vld [vmem:[%s897 + $0x118] sm:$0xff]
        %v934 = vld [vmem:[%s897 + $0x120] sm:$0xff]
        %v935 = vld [vmem:[%s897 + $0x128] sm:$0xff]
        %v936 = vld [vmem:[%s897 + $0x130] sm:$0xff]
        %v937 = vld [vmem:[%s897 + $0x138] sm:$0xff]
        %v938 = vld [vmem:[%s897 + $0x140] sm:$0xff]
        %v939 = vld [vmem:[%s897 + $0x148] sm:$0xff]
        %v940 = vld [vmem:[%s897 + $0x150] sm:$0xff]
        %v941 = vld [vmem:[%s897 + $0x158] sm:$0xff]
        %v942 = vld [vmem:[%s897 + $0x160] sm:$0xff]
        %v943 = vld [vmem:[%s897 + $0x168] sm:$0xff]
        %v944 = vld [vmem:[%s897 + $0x170] sm:$0xff]
        %v945 = vld [vmem:[%s897 + $0x178] sm:$0xff]
        %946 = vmatpush.msra.mxu0 %v913
        %947 = vmatpush.msra.mxu0 %v912
        %948 = vmatpush.msra.mxu0 %v911
        %949 = vmatpush.msra.mxu0 %v910
        %950 = vmatpush.msra.mxu0 %v909
        %951 = vmatpush.msra.mxu0 %v908
        %952 = vmatpush.msra.mxu0 %v907
        %953 = vmatpush.msra.mxu0 %v906
        %954 = vmatpush.msra.mxu0 %v905
        %955 = vmatpush.msra.mxu0 %v904
        %956 = vmatpush.msra.mxu0 %v903
        %957 = vmatpush.msra.mxu0 %v902
        %958 = vmatpush.msra.mxu0 %v901
        %959 = vmatpush.msra.mxu0 %v900
        %960 = vmatpush.msra.mxu0 %v899
        %961 = vmatpush.msra.mxu0 %v898
        %962 = vmatmul.f32.gmra.mxu0 %v416
        %v963 = vpop.f32.mrf.mxu0
        %v964 = vadd.f32 0.0, %v963
        %965 = vmatmul.f32.gmra.mxu0 %v417
        %v966 = vpop.f32.mrf.mxu0
        %v967 = vadd.f32 0.0, %v966
        %968 = vmatmul.f32.gmra.mxu0 %v378
        %v969 = vpop.f32.mrf.mxu0
        %v970 = vadd.f32 0.0, %v969
        %971 = vmatmul.f32.gmra.mxu0 %v379
        %v972 = vpop.f32.mrf.mxu0
        %v973 = vadd.f32 0.0, %v972
        %974 = vmatmul.f32.gmra.mxu0 %v380
        %v975 = vpop.f32.mrf.mxu0
        %v976 = vadd.f32 0.0, %v975
        %977 = vmatmul.f32.gmra.mxu0 %v381
        %v978 = vpop.f32.mrf.mxu0
        %v979 = vadd.f32 0.0, %v978
        %980 = vmatmul.f32.gmra.mxu0 %v382
        %v981 = vpop.f32.mrf.mxu0
        %v982 = vadd.f32 0.0, %v981
        %983 = vmatmul.f32.gmra.mxu0 %v383
        %v984 = vpop.f32.mrf.mxu0
        %v985 = vadd.f32 0.0, %v984
        %986 = vmatmul.f32.gmra.mxu0 %v384
        %v987 = vpop.f32.mrf.mxu0
        %v988 = vadd.f32 0.0, %v987
        %989 = vmatmul.f32.gmra.mxu0 %v385
        %v990 = vpop.f32.mrf.mxu0
        %v991 = vadd.f32 0.0, %v990
        %992 = vmatmul.f32.gmra.mxu0 %v386
        %v993 = vpop.f32.mrf.mxu0
        %v994 = vadd.f32 0.0, %v993
        %995 = vmatmul.f32.gmra.mxu0 %v387
        %v996 = vpop.f32.mrf.mxu0
        %v997 = vadd.f32 0.0, %v996
        %998 = vmatmul.f32.gmra.mxu0 %v388
        %v999 = vpop.f32.mrf.mxu0
        %v1000 = vadd.f32 0.0, %v999
        %1001 = vmatmul.f32.gmra.mxu0 %v389
        %v1002 = vpop.f32.mrf.mxu0
        %v1003 = vadd.f32 0.0, %v1002
        %1004 = vmatmul.f32.gmra.mxu0 %v390
        %v1005 = vpop.f32.mrf.mxu0
        %v1006 = vadd.f32 0.0, %v1005
        %1007 = vmatmul.f32.gmra.mxu0 %v391
        %v1008 = vpop.f32.mrf.mxu0
        %v1009 = vadd.f32 0.0, %v1008
        %1010 = vmatmul.f32.gmra.mxu0 %v392
        %v1011 = vpop.f32.mrf.mxu0
        %v1012 = vadd.f32 0.0, %v1011
        %1013 = vmatmul.f32.gmra.mxu0 %v393
        %v1014 = vpop.f32.mrf.mxu0
        %v1015 = vadd.f32 0.0, %v1014
        %1016 = vmatmul.f32.gmra.mxu0 %v394
        %v1017 = vpop.f32.mrf.mxu0
        %v1018 = vadd.f32 0.0, %v1017
        %1019 = vmatmul.f32.gmra.mxu0 %v395
        %v1020 = vpop.f32.mrf.mxu0
        %v1021 = vadd.f32 0.0, %v1020
        %1022 = vmatmul.f32.gmra.mxu0 %v396
        %v1023 = vpop.f32.mrf.mxu0
        %v1024 = vadd.f32 0.0, %v1023
        %1025 = vmatmul.f32.gmra.mxu0 %v397
        %v1026 = vpop.f32.mrf.mxu0
        %v1027 = vadd.f32 0.0, %v1026
        %1028 = vmatmul.f32.gmra.mxu0 %v398
        %v1029 = vpop.f32.mrf.mxu0
        %v1030 = vadd.f32 0.0, %v1029
        %1031 = vmatmul.f32.gmra.mxu0 %v399
        %v1032 = vpop.f32.mrf.mxu0
        %v1033 = vadd.f32 0.0, %v1032
        %1034 = vmatmul.f32.gmra.mxu0 %v400
        %v1035 = vpop.f32.mrf.mxu0
        %v1036 = vadd.f32 0.0, %v1035
        %1037 = vmatmul.f32.gmra.mxu0 %v401
        %v1038 = vpop.f32.mrf.mxu0
        %v1039 = vadd.f32 0.0, %v1038
        %1040 = vmatmul.f32.gmra.mxu0 %v402
        %v1041 = vpop.f32.mrf.mxu0
        %v1042 = vadd.f32 0.0, %v1041
        %1043 = vmatmul.f32.gmra.mxu0 %v403
        %v1044 = vpop.f32.mrf.mxu0
        %v1045 = vadd.f32 0.0, %v1044
        %1046 = vmatmul.f32.gmra.mxu0 %v404
        %v1047 = vpop.f32.mrf.mxu0
        %v1048 = vadd.f32 0.0, %v1047
        %1049 = vmatmul.f32.gmra.mxu0 %v405
        %v1050 = vpop.f32.mrf.mxu0
        %v1051 = vadd.f32 0.0, %v1050
        %1052 = vmatmul.f32.gmra.mxu0 %v406
        %v1053 = vpop.f32.mrf.mxu0
        %v1054 = vadd.f32 0.0, %v1053
        %1055 = vmatmul.f32.gmra.mxu0 %v407
        %v1056 = vpop.f32.mrf.mxu0
        %v1057 = vadd.f32 0.0, %v1056
        %1058 = vmatmul.f32.gmra.mxu0 %v408
        %v1059 = vpop.f32.mrf.mxu0
        %v1060 = vadd.f32 0.0, %v1059
        %1061 = vmatmul.f32.gmra.mxu0 %v409
        %v1062 = vpop.f32.mrf.mxu0
        %v1063 = vadd.f32 0.0, %v1062
        %1064 = vmatmul.f32.gmra.mxu0 %v410
        %v1065 = vpop.f32.mrf.mxu0
        %v1066 = vadd.f32 0.0, %v1065
        %1067 = vmatmul.f32.gmra.mxu0 %v411
        %v1068 = vpop.f32.mrf.mxu0
        %v1069 = vadd.f32 0.0, %v1068
        %1070 = vmatmul.f32.gmra.mxu0 %v412
        %v1071 = vpop.f32.mrf.mxu0
        %v1072 = vadd.f32 0.0, %v1071
        %1073 = vmatmul.f32.gmra.mxu0 %v413
        %v1074 = vpop.f32.mrf.mxu0
        %v1075 = vadd.f32 0.0, %v1074
        %1076 = vmatmul.f32.gmra.mxu0 %v414
        %v1077 = vpop.f32.mrf.mxu0
        %v1078 = vadd.f32 0.0, %v1077
        %1079 = vmatmul.f32.gmra.mxu0 %v415
        %v1080 = vpop.f32.mrf.mxu0
        %v1081 = vadd.f32 0.0, %v1080
        %1082 = vdwg.mxu0
        %1083 = vmatpush.msra.mxu0 %v929
        %1084 = vmatpush.msra.mxu0 %v928
        %1085 = vmatpush.msra.mxu0 %v927
        %1086 = vmatpush.msra.mxu0 %v926
        %1087 = vmatpush.msra.mxu0 %v925
        %1088 = vmatpush.msra.mxu0 %v924
        %1089 = vmatpush.msra.mxu0 %v923
        %1090 = vmatpush.msra.mxu0 %v922
        %1091 = vmatpush.msra.mxu0 %v921
        %1092 = vmatpush.msra.mxu0 %v920
        %1093 = vmatpush.msra.mxu0 %v919
        %1094 = vmatpush.msra.mxu0 %v918
        %1095 = vmatpush.msra.mxu0 %v917
        %1096 = vmatpush.msra.mxu0 %v916
        %1097 = vmatpush.msra.mxu0 %v915
        %1098 = vmatpush.msra.mxu0 %v914
        %1099 = vmatmul.f32.gmra.mxu0 %v378
        %v1100 = vpop.f32.mrf.mxu0
        %v1101 = vadd.f32 %v964, %v1100
        %1102 = vmatmul.f32.gmra.mxu0 %v379
        %v1103 = vpop.f32.mrf.mxu0
        %v1104 = vadd.f32 %v967, %v1103
        %1105 = vmatmul.f32.gmra.mxu0 %v380
        %v1106 = vpop.f32.mrf.mxu0
        %v1107 = vadd.f32 %v970, %v1106
        %1108 = vmatmul.f32.gmra.mxu0 %v381
        %v1109 = vpop.f32.mrf.mxu0
        %v1110 = vadd.f32 %v973, %v1109
        %1111 = vmatmul.f32.gmra.mxu0 %v382
        %v1112 = vpop.f32.mrf.mxu0
        %v1113 = vadd.f32 %v976, %v1112
        %1114 = vmatmul.f32.gmra.mxu0 %v383
        %v1115 = vpop.f32.mrf.mxu0
        %v1116 = vadd.f32 %v979, %v1115
        %1117 = vmatmul.f32.gmra.mxu0 %v384
        %v1118 = vpop.f32.mrf.mxu0
        %v1119 = vadd.f32 %v982, %v1118
        %1120 = vmatmul.f32.gmra.mxu0 %v385
        %v1121 = vpop.f32.mrf.mxu0
        %v1122 = vadd.f32 %v985, %v1121
        %1123 = vmatmul.f32.gmra.mxu0 %v386
        %v1124 = vpop.f32.mrf.mxu0
        %v1125 = vadd.f32 %v988, %v1124
        %1126 = vmatmul.f32.gmra.mxu0 %v387
        %v1127 = vpop.f32.mrf.mxu0
        %v1128 = vadd.f32 %v991, %v1127
        %1129 = vmatmul.f32.gmra.mxu0 %v388
        %v1130 = vpop.f32.mrf.mxu0
        %v1131 = vadd.f32 %v994, %v1130
        %1132 = vmatmul.f32.gmra.mxu0 %v389
        %v1133 = vpop.f32.mrf.mxu0
        %v1134 = vadd.f32 %v997, %v1133
        %1135 = vmatmul.f32.gmra.mxu0 %v390
        %v1136 = vpop.f32.mrf.mxu0
        %v1137 = vadd.f32 %v1000, %v1136
        %1138 = vmatmul.f32.gmra.mxu0 %v391
        %v1139 = vpop.f32.mrf.mxu0
        %v1140 = vadd.f32 %v1003, %v1139
        %1141 = vmatmul.f32.gmra.mxu0 %v392
        %v1142 = vpop.f32.mrf.mxu0
        %v1143 = vadd.f32 %v1006, %v1142
        %1144 = vmatmul.f32.gmra.mxu0 %v393
        %v1145 = vpop.f32.mrf.mxu0
        %v1146 = vadd.f32 %v1009, %v1145
        %1147 = vmatmul.f32.gmra.mxu0 %v394
        %v1148 = vpop.f32.mrf.mxu0
        %v1149 = vadd.f32 %v1012, %v1148
        %1150 = vmatmul.f32.gmra.mxu0 %v395
        %v1151 = vpop.f32.mrf.mxu0
        %v1152 = vadd.f32 %v1015, %v1151
        %1153 = vmatmul.f32.gmra.mxu0 %v396
        %v1154 = vpop.f32.mrf.mxu0
        %v1155 = vadd.f32 %v1018, %v1154
        %1156 = vmatmul.f32.gmra.mxu0 %v397
        %v1157 = vpop.f32.mrf.mxu0
        %v1158 = vadd.f32 %v1021, %v1157
        %1159 = vmatmul.f32.gmra.mxu0 %v398
        %v1160 = vpop.f32.mrf.mxu0
        %v1161 = vadd.f32 %v1024, %v1160
        %1162 = vmatmul.f32.gmra.mxu0 %v399
        %v1163 = vpop.f32.mrf.mxu0
        %v1164 = vadd.f32 %v1027, %v1163
        %1165 = vmatmul.f32.gmra.mxu0 %v400
        %v1166 = vpop.f32.mrf.mxu0
        %v1167 = vadd.f32 %v1030, %v1166
        %1168 = vmatmul.f32.gmra.mxu0 %v401
        %v1169 = vpop.f32.mrf.mxu0
        %v1170 = vadd.f32 %v1033, %v1169
        %1171 = vmatmul.f32.gmra.mxu0 %v402
        %v1172 = vpop.f32.mrf.mxu0
        %v1173 = vadd.f32 %v1036, %v1172
        %1174 = vmatmul.f32.gmra.mxu0 %v403
        %v1175 = vpop.f32.mrf.mxu0
        %v1176 = vadd.f32 %v1039, %v1175
        %1177 = vmatmul.f32.gmra.mxu0 %v404
        %v1178 = vpop.f32.mrf.mxu0
        %v1179 = vadd.f32 %v1042, %v1178
        %1180 = vmatmul.f32.gmra.mxu0 %v405
        %v1181 = vpop.f32.mrf.mxu0
        %v1182 = vadd.f32 %v1045, %v1181
        %1183 = vmatmul.f32.gmra.mxu0 %v406
        %v1184 = vpop.f32.mrf.mxu0
        %v1185 = vadd.f32 %v1048, %v1184
        %1186 = vmatmul.f32.gmra.mxu0 %v407
        %v1187 = vpop.f32.mrf.mxu0
        %v1188 = vadd.f32 %v1051, %v1187
        %1189 = vmatmul.f32.gmra.mxu0 %v408
        %v1190 = vpop.f32.mrf.mxu0
        %v1191 = vadd.f32 %v1054, %v1190
        %1192 = vmatmul.f32.gmra.mxu0 %v409
        %v1193 = vpop.f32.mrf.mxu0
        %v1194 = vadd.f32 %v1057, %v1193
        %1195 = vmatmul.f32.gmra.mxu0 %v410
        %v1196 = vpop.f32.mrf.mxu0
        %v1197 = vadd.f32 %v1060, %v1196
        %1198 = vmatmul.f32.gmra.mxu0 %v411
        %v1199 = vpop.f32.mrf.mxu0
        %v1200 = vadd.f32 %v1063, %v1199
        %1201 = vmatmul.f32.gmra.mxu0 %v412
        %v1202 = vpop.f32.mrf.mxu0
        %v1203 = vadd.f32 %v1066, %v1202
        %1204 = vmatmul.f32.gmra.mxu0 %v413
        %v1205 = vpop.f32.mrf.mxu0
        %v1206 = vadd.f32 %v1069, %v1205
        %1207 = vmatmul.f32.gmra.mxu0 %v414
        %v1208 = vpop.f32.mrf.mxu0
        %v1209 = vadd.f32 %v1072, %v1208
        %1210 = vmatmul.f32.gmra.mxu0 %v415
        %v1211 = vpop.f32.mrf.mxu0
        %v1212 = vadd.f32 %v1075, %v1211
        %1213 = vmatmul.f32.gmra.mxu0 %v416
        %v1214 = vpop.f32.mrf.mxu0
        %v1215 = vadd.f32 %v1078, %v1214
        %1216 = vmatmul.f32.gmra.mxu0 %v417
        %v1217 = vpop.f32.mrf.mxu0
        %v1218 = vadd.f32 %v1081, %v1217
        %1219 = vdwg.mxu0
        %1220 = vmatpush.msra.mxu0 %v945
        %1221 = vmatpush.msra.mxu0 %v944
        %1222 = vmatpush.msra.mxu0 %v943
        %1223 = vmatpush.msra.mxu0 %v942
        %1224 = vmatpush.msra.mxu0 %v941
        %1225 = vmatpush.msra.mxu0 %v940
        %1226 = vmatpush.msra.mxu0 %v939
        %1227 = vmatpush.msra.mxu0 %v938
        %1228 = vmatpush.msra.mxu0 %v937
        %1229 = vmatpush.msra.mxu0 %v936
        %1230 = vmatpush.msra.mxu0 %v935
        %1231 = vmatpush.msra.mxu0 %v934
        %1232 = vmatpush.msra.mxu0 %v933
        %1233 = vmatpush.msra.mxu0 %v932
        %1234 = vmatpush.msra.mxu0 %v931
        %1235 = vmatpush.msra.mxu0 %v930
        %1236 = vmatmul.f32.gmra.mxu0 %v380
        %v1237 = vpop.f32.mrf.mxu0
        %v1238 = vadd.f32 %v1101, %v1237
        %1239 = vmatmul.f32.gmra.mxu0 %v381
        %v1240 = vpop.f32.mrf.mxu0
        %v1241 = vadd.f32 %v1104, %v1240
        %1242 = vmatmul.f32.gmra.mxu0 %v382
        %v1243 = vpop.f32.mrf.mxu0
        %v1244 = vadd.f32 %v1107, %v1243
        %1245 = vmatmul.f32.gmra.mxu0 %v383
        %v1246 = vpop.f32.mrf.mxu0
        %v1247 = vadd.f32 %v1110, %v1246
        %1248 = vmatmul.f32.gmra.mxu0 %v384
        %v1249 = vpop.f32.mrf.mxu0
        %v1250 = vadd.f32 %v1113, %v1249
        %1251 = vmatmul.f32.gmra.mxu0 %v385
        %v1252 = vpop.f32.mrf.mxu0
        %v1253 = vadd.f32 %v1116, %v1252
        %1254 = vmatmul.f32.gmra.mxu0 %v386
        %v1255 = vpop.f32.mrf.mxu0
        %v1256 = vadd.f32 %v1119, %v1255
        %1257 = vmatmul.f32.gmra.mxu0 %v387
        %v1258 = vpop.f32.mrf.mxu0
        %v1259 = vadd.f32 %v1122, %v1258
        %1260 = vmatmul.f32.gmra.mxu0 %v388
        %v1261 = vpop.f32.mrf.mxu0
        %v1262 = vadd.f32 %v1125, %v1261
        %1263 = vmatmul.f32.gmra.mxu0 %v389
        %v1264 = vpop.f32.mrf.mxu0
        %v1265 = vadd.f32 %v1128, %v1264
        %1266 = vmatmul.f32.gmra.mxu0 %v390
        %v1267 = vpop.f32.mrf.mxu0
        %v1268 = vadd.f32 %v1131, %v1267
        %1269 = vmatmul.f32.gmra.mxu0 %v391
        %v1270 = vpop.f32.mrf.mxu0
        %v1271 = vadd.f32 %v1134, %v1270
        %1272 = vmatmul.f32.gmra.mxu0 %v392
        %v1273 = vpop.f32.mrf.mxu0
        %v1274 = vadd.f32 %v1137, %v1273
        %1275 = vmatmul.f32.gmra.mxu0 %v393
        %v1276 = vpop.f32.mrf.mxu0
        %v1277 = vadd.f32 %v1140, %v1276
        %1278 = vmatmul.f32.gmra.mxu0 %v394
        %v1279 = vpop.f32.mrf.mxu0
        %v1280 = vadd.f32 %v1143, %v1279
        %1281 = vmatmul.f32.gmra.mxu0 %v395
        %v1282 = vpop.f32.mrf.mxu0
        %v1283 = vadd.f32 %v1146, %v1282
        %1284 = vmatmul.f32.gmra.mxu0 %v396
        %v1285 = vpop.f32.mrf.mxu0
        %v1286 = vadd.f32 %v1149, %v1285
        %1287 = vmatmul.f32.gmra.mxu0 %v397
        %v1288 = vpop.f32.mrf.mxu0
        %v1289 = vadd.f32 %v1152, %v1288
        %1290 = vmatmul.f32.gmra.mxu0 %v398
        %v1291 = vpop.f32.mrf.mxu0
        %v1292 = vadd.f32 %v1155, %v1291
        %1293 = vmatmul.f32.gmra.mxu0 %v399
        %v1294 = vpop.f32.mrf.mxu0
        %v1295 = vadd.f32 %v1158, %v1294
        %1296 = vmatmul.f32.gmra.mxu0 %v400
        %v1297 = vpop.f32.mrf.mxu0
        %v1298 = vadd.f32 %v1161, %v1297
        %1299 = vmatmul.f32.gmra.mxu0 %v401
        %v1300 = vpop.f32.mrf.mxu0
        %v1301 = vadd.f32 %v1164, %v1300
        %1302 = vmatmul.f32.gmra.mxu0 %v402
        %v1303 = vpop.f32.mrf.mxu0
        %v1304 = vadd.f32 %v1167, %v1303
        %1305 = vmatmul.f32.gmra.mxu0 %v403
        %v1306 = vpop.f32.mrf.mxu0
        %v1307 = vadd.f32 %v1170, %v1306
        %1308 = vmatmul.f32.gmra.mxu0 %v404
        %v1309 = vpop.f32.mrf.mxu0
        %v1310 = vadd.f32 %v1173, %v1309
        %1311 = vmatmul.f32.gmra.mxu0 %v405
        %v1312 = vpop.f32.mrf.mxu0
        %v1313 = vadd.f32 %v1176, %v1312
        %1314 = vmatmul.f32.gmra.mxu0 %v406
        %v1315 = vpop.f32.mrf.mxu0
        %v1316 = vadd.f32 %v1179, %v1315
        %1317 = vmatmul.f32.gmra.mxu0 %v407
        %v1318 = vpop.f32.mrf.mxu0
        %v1319 = vadd.f32 %v1182, %v1318
        %1320 = vmatmul.f32.gmra.mxu0 %v408
        %v1321 = vpop.f32.mrf.mxu0
        %v1322 = vadd.f32 %v1185, %v1321
        %1323 = vmatmul.f32.gmra.mxu0 %v409
        %v1324 = vpop.f32.mrf.mxu0
        %v1325 = vadd.f32 %v1188, %v1324
        %1326 = vmatmul.f32.gmra.mxu0 %v410
        %v1327 = vpop.f32.mrf.mxu0
        %v1328 = vadd.f32 %v1191, %v1327
        %1329 = vmatmul.f32.gmra.mxu0 %v411
        %v1330 = vpop.f32.mrf.mxu0
        %v1331 = vadd.f32 %v1194, %v1330
        %1332 = vmatmul.f32.gmra.mxu0 %v412
        %v1333 = vpop.f32.mrf.mxu0
        %v1334 = vadd.f32 %v1197, %v1333
        %1335 = vmatmul.f32.gmra.mxu0 %v413
        %v1336 = vpop.f32.mrf.mxu0
        %v1337 = vadd.f32 %v1200, %v1336
        %1338 = vmatmul.f32.gmra.mxu0 %v414
        %v1339 = vpop.f32.mrf.mxu0
        %v1340 = vadd.f32 %v1203, %v1339
        %1341 = vmatmul.f32.gmra.mxu0 %v415
        %v1342 = vpop.f32.mrf.mxu0
        %v1343 = vadd.f32 %v1206, %v1342
        %1344 = vmatmul.f32.gmra.mxu0 %v416
        %v1345 = vpop.f32.mrf.mxu0
        %v1346 = vadd.f32 %v1209, %v1345
        %1347 = vmatmul.f32.gmra.mxu0 %v417
        %v1348 = vpop.f32.mrf.mxu0
        %v1349 = vadd.f32 %v1212, %v1348
        %1350 = vmatmul.f32.gmra.mxu0 %v378
        %v1351 = vpop.f32.mrf.mxu0
        %v1352 = vadd.f32 %v1215, %v1351
        %1353 = vmatmul.f32.gmra.mxu0 %v379
        %v1354 = vpop.f32.mrf.mxu0
        %v1355 = vadd.f32 %v1218, %v1354
        %1356 = vdwg.mxu0
        %s1357 = scalar_lea.vmem [#allocation5], 768
        %v1358 = vld [vmem:[%s1357] sm:$0xff]
        %v1359 = vld [vmem:[%s1357 + $0x8] sm:$0xff]
        %v1360 = vld [vmem:[%s1357 + $0x10] sm:$0xff]
        %v1361 = vld [vmem:[%s1357 + $0x18] sm:$0xff]
        %v1362 = vld [vmem:[%s1357 + $0x20] sm:$0xff]
        %v1363 = vld [vmem:[%s1357 + $0x28] sm:$0xff]
        %v1364 = vld [vmem:[%s1357 + $0x30] sm:$0xff]
        %v1365 = vld [vmem:[%s1357 + $0x38] sm:$0xff]
        %v1366 = vld [vmem:[%s1357 + $0x40] sm:$0xff]
        %v1367 = vld [vmem:[%s1357 + $0x48] sm:$0xff]
        %v1368 = vld [vmem:[%s1357 + $0x50] sm:$0xff]
        %v1369 = vld [vmem:[%s1357 + $0x58] sm:$0xff]
        %v1370 = vld [vmem:[%s1357 + $0x60] sm:$0xff]
        %v1371 = vld [vmem:[%s1357 + $0x68] sm:$0xff]
        %v1372 = vld [vmem:[%s1357 + $0x70] sm:$0xff]
        %v1373 = vld [vmem:[%s1357 + $0x78] sm:$0xff]
        %v1374 = vld [vmem:[%s1357 + $0x80] sm:$0xff]
        %v1375 = vld [vmem:[%s1357 + $0x88] sm:$0xff]
        %v1376 = vld [vmem:[%s1357 + $0x90] sm:$0xff]
        %v1377 = vld [vmem:[%s1357 + $0x98] sm:$0xff]
        %v1378 = vld [vmem:[%s1357 + $0xa0] sm:$0xff]
        %v1379 = vld [vmem:[%s1357 + $0xa8] sm:$0xff]
        %v1380 = vld [vmem:[%s1357 + $0xb0] sm:$0xff]
        %v1381 = vld [vmem:[%s1357 + $0xb8] sm:$0xff]
        %v1382 = vld [vmem:[%s1357 + $0xc0] sm:$0xff]
        %v1383 = vld [vmem:[%s1357 + $0xc8] sm:$0xff]
        %v1384 = vld [vmem:[%s1357 + $0xd0] sm:$0xff]
        %v1385 = vld [vmem:[%s1357 + $0xd8] sm:$0xff]
        %v1386 = vld [vmem:[%s1357 + $0xe0] sm:$0xff]
        %v1387 = vld [vmem:[%s1357 + $0xe8] sm:$0xff]
        %v1388 = vld [vmem:[%s1357 + $0xf0] sm:$0xff]
        %v1389 = vld [vmem:[%s1357 + $0xf8] sm:$0xff]
        %v1390 = vld [vmem:[%s1357 + $0x100] sm:$0xff]
        %v1391 = vld [vmem:[%s1357 + $0x108] sm:$0xff]
        %v1392 = vld [vmem:[%s1357 + $0x110] sm:$0xff]
        %v1393 = vld [vmem:[%s1357 + $0x118] sm:$0xff]
        %v1394 = vld [vmem:[%s1357 + $0x120] sm:$0xff]
        %v1395 = vld [vmem:[%s1357 + $0x128] sm:$0xff]
        %v1396 = vld [vmem:[%s1357 + $0x130] sm:$0xff]
        %v1397 = vld [vmem:[%s1357 + $0x138] sm:$0xff]
        %v1398 = vld [vmem:[%s1357 + $0x140] sm:$0xff]
        %v1399 = vld [vmem:[%s1357 + $0x148] sm:$0xff]
        %v1400 = vld [vmem:[%s1357 + $0x150] sm:$0xff]
        %v1401 = vld [vmem:[%s1357 + $0x158] sm:$0xff]
        %v1402 = vld [vmem:[%s1357 + $0x160] sm:$0xff]
        %v1403 = vld [vmem:[%s1357 + $0x168] sm:$0xff]
        %v1404 = vld [vmem:[%s1357 + $0x170] sm:$0xff]
        %v1405 = vld [vmem:[%s1357 + $0x178] sm:$0xff]
        %1406 = vmatpush.msra.mxu0 %v1373
        %1407 = vmatpush.msra.mxu0 %v1372
        %1408 = vmatpush.msra.mxu0 %v1371
        %1409 = vmatpush.msra.mxu0 %v1370
        %1410 = vmatpush.msra.mxu0 %v1369
        %1411 = vmatpush.msra.mxu0 %v1368
        %1412 = vmatpush.msra.mxu0 %v1367
        %1413 = vmatpush.msra.mxu0 %v1366
        %1414 = vmatpush.msra.mxu0 %v1365
        %1415 = vmatpush.msra.mxu0 %v1364
        %1416 = vmatpush.msra.mxu0 %v1363
        %1417 = vmatpush.msra.mxu0 %v1362
        %1418 = vmatpush.msra.mxu0 %v1361
        %1419 = vmatpush.msra.mxu0 %v1360
        %1420 = vmatpush.msra.mxu0 %v1359
        %1421 = vmatpush.msra.mxu0 %v1358
        %1422 = vmatmul.f32.gmra.mxu0 %v416
        %v1423 = vpop.f32.mrf.mxu0
        %v1424 = vadd.f32 0.0, %v1423
        %1425 = vmatmul.f32.gmra.mxu0 %v417
        %v1426 = vpop.f32.mrf.mxu0
        %v1427 = vadd.f32 0.0, %v1426
        %1428 = vmatmul.f32.gmra.mxu0 %v378
        %v1429 = vpop.f32.mrf.mxu0
        %v1430 = vadd.f32 0.0, %v1429
        %1431 = vmatmul.f32.gmra.mxu0 %v379
        %v1432 = vpop.f32.mrf.mxu0
        %v1433 = vadd.f32 0.0, %v1432
        %1434 = vmatmul.f32.gmra.mxu0 %v380
        %v1435 = vpop.f32.mrf.mxu0
        %v1436 = vadd.f32 0.0, %v1435
        %1437 = vmatmul.f32.gmra.mxu0 %v381
        %v1438 = vpop.f32.mrf.mxu0
        %v1439 = vadd.f32 0.0, %v1438
        %1440 = vmatmul.f32.gmra.mxu0 %v382
        %v1441 = vpop.f32.mrf.mxu0
        %v1442 = vadd.f32 0.0, %v1441
        %1443 = vmatmul.f32.gmra.mxu0 %v383
        %v1444 = vpop.f32.mrf.mxu0
        %v1445 = vadd.f32 0.0, %v1444
        %1446 = vmatmul.f32.gmra.mxu0 %v384
        %v1447 = vpop.f32.mrf.mxu0
        %v1448 = vadd.f32 0.0, %v1447
        %1449 = vmatmul.f32.gmra.mxu0 %v385
        %v1450 = vpop.f32.mrf.mxu0
        %v1451 = vadd.f32 0.0, %v1450
        %1452 = vmatmul.f32.gmra.mxu0 %v386
        %v1453 = vpop.f32.mrf.mxu0
        %v1454 = vadd.f32 0.0, %v1453
        %1455 = vmatmul.f32.gmra.mxu0 %v387
        %v1456 = vpop.f32.mrf.mxu0
        %v1457 = vadd.f32 0.0, %v1456
        %1458 = vmatmul.f32.gmra.mxu0 %v388
        %v1459 = vpop.f32.mrf.mxu0
        %v1460 = vadd.f32 0.0, %v1459
        %1461 = vmatmul.f32.gmra.mxu0 %v389
        %v1462 = vpop.f32.mrf.mxu0
        %v1463 = vadd.f32 0.0, %v1462
        %1464 = vmatmul.f32.gmra.mxu0 %v390
        %v1465 = vpop.f32.mrf.mxu0
        %v1466 = vadd.f32 0.0, %v1465
        %1467 = vmatmul.f32.gmra.mxu0 %v391
        %v1468 = vpop.f32.mrf.mxu0
        %v1469 = vadd.f32 0.0, %v1468
        %1470 = vmatmul.f32.gmra.mxu0 %v392
        %v1471 = vpop.f32.mrf.mxu0
        %v1472 = vadd.f32 0.0, %v1471
        %1473 = vmatmul.f32.gmra.mxu0 %v393
        %v1474 = vpop.f32.mrf.mxu0
        %v1475 = vadd.f32 0.0, %v1474
        %1476 = vmatmul.f32.gmra.mxu0 %v394
        %v1477 = vpop.f32.mrf.mxu0
        %v1478 = vadd.f32 0.0, %v1477
        %1479 = vmatmul.f32.gmra.mxu0 %v395
        %v1480 = vpop.f32.mrf.mxu0
        %v1481 = vadd.f32 0.0, %v1480
        %1482 = vmatmul.f32.gmra.mxu0 %v396
        %v1483 = vpop.f32.mrf.mxu0
        %v1484 = vadd.f32 0.0, %v1483
        %1485 = vmatmul.f32.gmra.mxu0 %v397
        %v1486 = vpop.f32.mrf.mxu0
        %v1487 = vadd.f32 0.0, %v1486
        %1488 = vmatmul.f32.gmra.mxu0 %v398
        %v1489 = vpop.f32.mrf.mxu0
        %v1490 = vadd.f32 0.0, %v1489
        %1491 = vmatmul.f32.gmra.mxu0 %v399
        %v1492 = vpop.f32.mrf.mxu0
        %v1493 = vadd.f32 0.0, %v1492
        %1494 = vmatmul.f32.gmra.mxu0 %v400
        %v1495 = vpop.f32.mrf.mxu0
        %v1496 = vadd.f32 0.0, %v1495
        %1497 = vmatmul.f32.gmra.mxu0 %v401
        %v1498 = vpop.f32.mrf.mxu0
        %v1499 = vadd.f32 0.0, %v1498
        %1500 = vmatmul.f32.gmra.mxu0 %v402
        %v1501 = vpop.f32.mrf.mxu0
        %v1502 = vadd.f32 0.0, %v1501
        %1503 = vmatmul.f32.gmra.mxu0 %v403
        %v1504 = vpop.f32.mrf.mxu0
        %v1505 = vadd.f32 0.0, %v1504
        %1506 = vmatmul.f32.gmra.mxu0 %v404
        %v1507 = vpop.f32.mrf.mxu0
        %v1508 = vadd.f32 0.0, %v1507
        %1509 = vmatmul.f32.gmra.mxu0 %v405
        %v1510 = vpop.f32.mrf.mxu0
        %v1511 = vadd.f32 0.0, %v1510
        %1512 = vmatmul.f32.gmra.mxu0 %v406
        %v1513 = vpop.f32.mrf.mxu0
        %v1514 = vadd.f32 0.0, %v1513
        %1515 = vmatmul.f32.gmra.mxu0 %v407
        %v1516 = vpop.f32.mrf.mxu0
        %v1517 = vadd.f32 0.0, %v1516
        %1518 = vmatmul.f32.gmra.mxu0 %v408
        %v1519 = vpop.f32.mrf.mxu0
        %v1520 = vadd.f32 0.0, %v1519
        %1521 = vmatmul.f32.gmra.mxu0 %v409
        %v1522 = vpop.f32.mrf.mxu0
        %v1523 = vadd.f32 0.0, %v1522
        %1524 = vmatmul.f32.gmra.mxu0 %v410
        %v1525 = vpop.f32.mrf.mxu0
        %v1526 = vadd.f32 0.0, %v1525
        %1527 = vmatmul.f32.gmra.mxu0 %v411
        %v1528 = vpop.f32.mrf.mxu0
        %v1529 = vadd.f32 0.0, %v1528
        %1530 = vmatmul.f32.gmra.mxu0 %v412
        %v1531 = vpop.f32.mrf.mxu0
        %v1532 = vadd.f32 0.0, %v1531
        %1533 = vmatmul.f32.gmra.mxu0 %v413
        %v1534 = vpop.f32.mrf.mxu0
        %v1535 = vadd.f32 0.0, %v1534
        %1536 = vmatmul.f32.gmra.mxu0 %v414
        %v1537 = vpop.f32.mrf.mxu0
        %v1538 = vadd.f32 0.0, %v1537
        %1539 = vmatmul.f32.gmra.mxu0 %v415
        %v1540 = vpop.f32.mrf.mxu0
        %v1541 = vadd.f32 0.0, %v1540
        %1542 = vdwg.mxu0
        %1543 = vmatpush.msra.mxu0 %v1389
        %1544 = vmatpush.msra.mxu0 %v1388
        %1545 = vmatpush.msra.mxu0 %v1387
        %1546 = vmatpush.msra.mxu0 %v1386
        %1547 = vmatpush.msra.mxu0 %v1385
        %1548 = vmatpush.msra.mxu0 %v1384
        %1549 = vmatpush.msra.mxu0 %v1383
        %1550 = vmatpush.msra.mxu0 %v1382
        %1551 = vmatpush.msra.mxu0 %v1381
        %1552 = vmatpush.msra.mxu0 %v1380
        %1553 = vmatpush.msra.mxu0 %v1379
        %1554 = vmatpush.msra.mxu0 %v1378
        %1555 = vmatpush.msra.mxu0 %v1377
        %1556 = vmatpush.msra.mxu0 %v1376
        %1557 = vmatpush.msra.mxu0 %v1375
        %1558 = vmatpush.msra.mxu0 %v1374
        %1559 = vmatmul.f32.gmra.mxu0 %v378
        %v1560 = vpop.f32.mrf.mxu0
        %v1561 = vadd.f32 %v1424, %v1560
        %1562 = vmatmul.f32.gmra.mxu0 %v379
        %v1563 = vpop.f32.mrf.mxu0
        %v1564 = vadd.f32 %v1427, %v1563
        %1565 = vmatmul.f32.gmra.mxu0 %v380
        %v1566 = vpop.f32.mrf.mxu0
        %v1567 = vadd.f32 %v1430, %v1566
        %1568 = vmatmul.f32.gmra.mxu0 %v381
        %v1569 = vpop.f32.mrf.mxu0
        %v1570 = vadd.f32 %v1433, %v1569
        %1571 = vmatmul.f32.gmra.mxu0 %v382
        %v1572 = vpop.f32.mrf.mxu0
        %v1573 = vadd.f32 %v1436, %v1572
        %1574 = vmatmul.f32.gmra.mxu0 %v383
        %v1575 = vpop.f32.mrf.mxu0
        %v1576 = vadd.f32 %v1439, %v1575
        %1577 = vmatmul.f32.gmra.mxu0 %v384
        %v1578 = vpop.f32.mrf.mxu0
        %v1579 = vadd.f32 %v1442, %v1578
        %1580 = vmatmul.f32.gmra.mxu0 %v385
        %v1581 = vpop.f32.mrf.mxu0
        %v1582 = vadd.f32 %v1445, %v1581
        %1583 = vmatmul.f32.gmra.mxu0 %v386
        %v1584 = vpop.f32.mrf.mxu0
        %v1585 = vadd.f32 %v1448, %v1584
        %1586 = vmatmul.f32.gmra.mxu0 %v387
        %v1587 = vpop.f32.mrf.mxu0
        %v1588 = vadd.f32 %v1451, %v1587
        %1589 = vmatmul.f32.gmra.mxu0 %v388
        %v1590 = vpop.f32.mrf.mxu0
        %v1591 = vadd.f32 %v1454, %v1590
        %1592 = vmatmul.f32.gmra.mxu0 %v389
        %v1593 = vpop.f32.mrf.mxu0
        %v1594 = vadd.f32 %v1457, %v1593
        %1595 = vmatmul.f32.gmra.mxu0 %v390
        %v1596 = vpop.f32.mrf.mxu0
        %v1597 = vadd.f32 %v1460, %v1596
        %1598 = vmatmul.f32.gmra.mxu0 %v391
        %v1599 = vpop.f32.mrf.mxu0
        %v1600 = vadd.f32 %v1463, %v1599
        %1601 = vmatmul.f32.gmra.mxu0 %v392
        %v1602 = vpop.f32.mrf.mxu0
        %v1603 = vadd.f32 %v1466, %v1602
        %1604 = vmatmul.f32.gmra.mxu0 %v393
        %v1605 = vpop.f32.mrf.mxu0
        %v1606 = vadd.f32 %v1469, %v1605
        %1607 = vmatmul.f32.gmra.mxu0 %v394
        %v1608 = vpop.f32.mrf.mxu0
        %v1609 = vadd.f32 %v1472, %v1608
        %1610 = vmatmul.f32.gmra.mxu0 %v395
        %v1611 = vpop.f32.mrf.mxu0
        %v1612 = vadd.f32 %v1475, %v1611
        %1613 = vmatmul.f32.gmra.mxu0 %v396
        %v1614 = vpop.f32.mrf.mxu0
        %v1615 = vadd.f32 %v1478, %v1614
        %1616 = vmatmul.f32.gmra.mxu0 %v397
        %v1617 = vpop.f32.mrf.mxu0
        %v1618 = vadd.f32 %v1481, %v1617
        %1619 = vmatmul.f32.gmra.mxu0 %v398
        %v1620 = vpop.f32.mrf.mxu0
        %v1621 = vadd.f32 %v1484, %v1620
        %1622 = vmatmul.f32.gmra.mxu0 %v399
        %v1623 = vpop.f32.mrf.mxu0
        %v1624 = vadd.f32 %v1487, %v1623
        %1625 = vmatmul.f32.gmra.mxu0 %v400
        %v1626 = vpop.f32.mrf.mxu0
        %v1627 = vadd.f32 %v1490, %v1626
        %1628 = vmatmul.f32.gmra.mxu0 %v401
        %v1629 = vpop.f32.mrf.mxu0
        %v1630 = vadd.f32 %v1493, %v1629
        %1631 = vmatmul.f32.gmra.mxu0 %v402
        %v1632 = vpop.f32.mrf.mxu0
        %v1633 = vadd.f32 %v1496, %v1632
        %1634 = vmatmul.f32.gmra.mxu0 %v403
        %v1635 = vpop.f32.mrf.mxu0
        %v1636 = vadd.f32 %v1499, %v1635
        %1637 = vmatmul.f32.gmra.mxu0 %v404
        %v1638 = vpop.f32.mrf.mxu0
        %v1639 = vadd.f32 %v1502, %v1638
        %1640 = vmatmul.f32.gmra.mxu0 %v405
        %v1641 = vpop.f32.mrf.mxu0
        %v1642 = vadd.f32 %v1505, %v1641
        %1643 = vmatmul.f32.gmra.mxu0 %v406
        %v1644 = vpop.f32.mrf.mxu0
        %v1645 = vadd.f32 %v1508, %v1644
        %1646 = vmatmul.f32.gmra.mxu0 %v407
        %v1647 = vpop.f32.mrf.mxu0
        %v1648 = vadd.f32 %v1511, %v1647
        %1649 = vmatmul.f32.gmra.mxu0 %v408
        %v1650 = vpop.f32.mrf.mxu0
        %v1651 = vadd.f32 %v1514, %v1650
        %1652 = vmatmul.f32.gmra.mxu0 %v409
        %v1653 = vpop.f32.mrf.mxu0
        %v1654 = vadd.f32 %v1517, %v1653
        %1655 = vmatmul.f32.gmra.mxu0 %v410
        %v1656 = vpop.f32.mrf.mxu0
        %v1657 = vadd.f32 %v1520, %v1656
        %1658 = vmatmul.f32.gmra.mxu0 %v411
        %v1659 = vpop.f32.mrf.mxu0
        %v1660 = vadd.f32 %v1523, %v1659
        %1661 = vmatmul.f32.gmra.mxu0 %v412
        %v1662 = vpop.f32.mrf.mxu0
        %v1663 = vadd.f32 %v1526, %v1662
        %1664 = vmatmul.f32.gmra.mxu0 %v413
        %v1665 = vpop.f32.mrf.mxu0
        %v1666 = vadd.f32 %v1529, %v1665
        %1667 = vmatmul.f32.gmra.mxu0 %v414
        %v1668 = vpop.f32.mrf.mxu0
        %v1669 = vadd.f32 %v1532, %v1668
        %1670 = vmatmul.f32.gmra.mxu0 %v415
        %v1671 = vpop.f32.mrf.mxu0
        %v1672 = vadd.f32 %v1535, %v1671
        %1673 = vmatmul.f32.gmra.mxu0 %v416
        %v1674 = vpop.f32.mrf.mxu0
        %v1675 = vadd.f32 %v1538, %v1674
        %1676 = vmatmul.f32.gmra.mxu0 %v417
        %v1677 = vpop.f32.mrf.mxu0
        %v1678 = vadd.f32 %v1541, %v1677
        %1679 = vdwg.mxu0
        %1680 = vmatpush.msra.mxu0 %v1405
        %1681 = vmatpush.msra.mxu0 %v1404
        %1682 = vmatpush.msra.mxu0 %v1403
        %1683 = vmatpush.msra.mxu0 %v1402
        %1684 = vmatpush.msra.mxu0 %v1401
        %1685 = vmatpush.msra.mxu0 %v1400
        %1686 = vmatpush.msra.mxu0 %v1399
        %1687 = vmatpush.msra.mxu0 %v1398
        %1688 = vmatpush.msra.mxu0 %v1397
        %1689 = vmatpush.msra.mxu0 %v1396
        %1690 = vmatpush.msra.mxu0 %v1395
        %1691 = vmatpush.msra.mxu0 %v1394
        %1692 = vmatpush.msra.mxu0 %v1393
        %1693 = vmatpush.msra.mxu0 %v1392
        %1694 = vmatpush.msra.mxu0 %v1391
        %1695 = vmatpush.msra.mxu0 %v1390
        %1696 = vmatmul.f32.gmra.mxu0 %v380
        %v1697 = vpop.f32.mrf.mxu0
        %v1698 = vadd.f32 %v1561, %v1697
        %1699 = vmatmul.f32.gmra.mxu0 %v381
        %v1700 = vpop.f32.mrf.mxu0
        %v1701 = vadd.f32 %v1564, %v1700
        %1702 = vmatmul.f32.gmra.mxu0 %v382
        %v1703 = vpop.f32.mrf.mxu0
        %v1704 = vadd.f32 %v1567, %v1703
        %1705 = vmatmul.f32.gmra.mxu0 %v383
        %v1706 = vpop.f32.mrf.mxu0
        %v1707 = vadd.f32 %v1570, %v1706
        %1708 = vmatmul.f32.gmra.mxu0 %v384
        %v1709 = vpop.f32.mrf.mxu0
        %v1710 = vadd.f32 %v1573, %v1709
        %1711 = vmatmul.f32.gmra.mxu0 %v385
        %v1712 = vpop.f32.mrf.mxu0
        %v1713 = vadd.f32 %v1576, %v1712
        %1714 = vmatmul.f32.gmra.mxu0 %v386
        %v1715 = vpop.f32.mrf.mxu0
        %v1716 = vadd.f32 %v1579, %v1715
        %1717 = vmatmul.f32.gmra.mxu0 %v387
        %v1718 = vpop.f32.mrf.mxu0
        %v1719 = vadd.f32 %v1582, %v1718
        %1720 = vmatmul.f32.gmra.mxu0 %v388
        %v1721 = vpop.f32.mrf.mxu0
        %v1722 = vadd.f32 %v1585, %v1721
        %1723 = vmatmul.f32.gmra.mxu0 %v389
        %v1724 = vpop.f32.mrf.mxu0
        %v1725 = vadd.f32 %v1588, %v1724
        %1726 = vmatmul.f32.gmra.mxu0 %v390
        %v1727 = vpop.f32.mrf.mxu0
        %v1728 = vadd.f32 %v1591, %v1727
        %1729 = vmatmul.f32.gmra.mxu0 %v391
        %v1730 = vpop.f32.mrf.mxu0
        %v1731 = vadd.f32 %v1594, %v1730
        %1732 = vmatmul.f32.gmra.mxu0 %v392
        %v1733 = vpop.f32.mrf.mxu0
        %v1734 = vadd.f32 %v1597, %v1733
        %1735 = vmatmul.f32.gmra.mxu0 %v393
        %v1736 = vpop.f32.mrf.mxu0
        %v1737 = vadd.f32 %v1600, %v1736
        %1738 = vmatmul.f32.gmra.mxu0 %v394
        %v1739 = vpop.f32.mrf.mxu0
        %v1740 = vadd.f32 %v1603, %v1739
        %1741 = vmatmul.f32.gmra.mxu0 %v395
        %v1742 = vpop.f32.mrf.mxu0
        %v1743 = vadd.f32 %v1606, %v1742
        %1744 = vmatmul.f32.gmra.mxu0 %v396
        %v1745 = vpop.f32.mrf.mxu0
        %v1746 = vadd.f32 %v1609, %v1745
        %1747 = vmatmul.f32.gmra.mxu0 %v397
        %v1748 = vpop.f32.mrf.mxu0
        %v1749 = vadd.f32 %v1612, %v1748
        %1750 = vmatmul.f32.gmra.mxu0 %v398
        %v1751 = vpop.f32.mrf.mxu0
        %v1752 = vadd.f32 %v1615, %v1751
        %1753 = vmatmul.f32.gmra.mxu0 %v399
        %v1754 = vpop.f32.mrf.mxu0
        %v1755 = vadd.f32 %v1618, %v1754
        %1756 = vmatmul.f32.gmra.mxu0 %v400
        %v1757 = vpop.f32.mrf.mxu0
        %v1758 = vadd.f32 %v1621, %v1757
        %1759 = vmatmul.f32.gmra.mxu0 %v401
        %v1760 = vpop.f32.mrf.mxu0
        %v1761 = vadd.f32 %v1624, %v1760
        %1762 = vmatmul.f32.gmra.mxu0 %v402
        %v1763 = vpop.f32.mrf.mxu0
        %v1764 = vadd.f32 %v1627, %v1763
        %1765 = vmatmul.f32.gmra.mxu0 %v403
        %v1766 = vpop.f32.mrf.mxu0
        %v1767 = vadd.f32 %v1630, %v1766
        %1768 = vmatmul.f32.gmra.mxu0 %v404
        %v1769 = vpop.f32.mrf.mxu0
        %v1770 = vadd.f32 %v1633, %v1769
        %1771 = vmatmul.f32.gmra.mxu0 %v405
        %v1772 = vpop.f32.mrf.mxu0
        %v1773 = vadd.f32 %v1636, %v1772
        %1774 = vmatmul.f32.gmra.mxu0 %v406
        %v1775 = vpop.f32.mrf.mxu0
        %v1776 = vadd.f32 %v1639, %v1775
        %1777 = vmatmul.f32.gmra.mxu0 %v407
        %v1778 = vpop.f32.mrf.mxu0
        %v1779 = vadd.f32 %v1642, %v1778
        %1780 = vmatmul.f32.gmra.mxu0 %v408
        %v1781 = vpop.f32.mrf.mxu0
        %v1782 = vadd.f32 %v1645, %v1781
        %1783 = vmatmul.f32.gmra.mxu0 %v409
        %v1784 = vpop.f32.mrf.mxu0
        %v1785 = vadd.f32 %v1648, %v1784
        %1786 = vmatmul.f32.gmra.mxu0 %v410
        %v1787 = vpop.f32.mrf.mxu0
        %v1788 = vadd.f32 %v1651, %v1787
        %1789 = vmatmul.f32.gmra.mxu0 %v411
        %v1790 = vpop.f32.mrf.mxu0
        %v1791 = vadd.f32 %v1654, %v1790
        %1792 = vmatmul.f32.gmra.mxu0 %v412
        %v1793 = vpop.f32.mrf.mxu0
        %v1794 = vadd.f32 %v1657, %v1793
        %1795 = vmatmul.f32.gmra.mxu0 %v413
        %v1796 = vpop.f32.mrf.mxu0
        %v1797 = vadd.f32 %v1660, %v1796
        %1798 = vmatmul.f32.gmra.mxu0 %v414
        %v1799 = vpop.f32.mrf.mxu0
        %v1800 = vadd.f32 %v1663, %v1799
        %1801 = vmatmul.f32.gmra.mxu0 %v415
        %v1802 = vpop.f32.mrf.mxu0
        %v1803 = vadd.f32 %v1666, %v1802
        %1804 = vmatmul.f32.gmra.mxu0 %v416
        %v1805 = vpop.f32.mrf.mxu0
        %v1806 = vadd.f32 %v1669, %v1805
        %1807 = vmatmul.f32.gmra.mxu0 %v417
        %v1808 = vpop.f32.mrf.mxu0
        %v1809 = vadd.f32 %v1672, %v1808
        %1810 = vmatmul.f32.gmra.mxu0 %v378
        %v1811 = vpop.f32.mrf.mxu0
        %v1812 = vadd.f32 %v1675, %v1811
        %1813 = vmatmul.f32.gmra.mxu0 %v379
        %v1814 = vpop.f32.mrf.mxu0
        %v1815 = vadd.f32 %v1678, %v1814
        %1816 = vdwg.mxu0
        %v1817 = vrot.slane %v778, 7
        %v1818 = vrot.slane %v781, 7
        %v1819 = vrot.slane %v784, 7
        %v1820 = vrot.slane %v787, 7
        %v1821 = vrot.slane %v790, 7
        %v1822 = vrot.slane %v793, 7
        %v1823 = vrot.slane %v796, 7
        %v1824 = vrot.slane %v799, 7
        %v1825 = vrot.slane %v802, 7
        %v1826 = vrot.slane %v805, 7
        %v1827 = vrot.slane %v808, 7
        %v1828 = vrot.slane %v811, 7
        %v1829 = vrot.slane %v814, 7
        %v1830 = vrot.slane %v817, 7
        %v1831 = vrot.slane %v820, 7
        %v1832 = vrot.slane %v823, 7
        %v1833 = vrot.slane %v826, 7
        %v1834 = vrot.slane %v829, 7
        %v1835 = vrot.slane %v832, 7
        %v1836 = vrot.slane %v835, 7
        %v1837 = vrot.slane %v838, 7
        %v1838 = vrot.slane %v841, 7
        %v1839 = vrot.slane %v844, 7
        %v1840 = vrot.slane %v847, 7
        %v1841 = vrot.slane %v850, 7
        %v1842 = vrot.slane %v853, 7
        %v1843 = vrot.slane %v856, 7
        %v1844 = vrot.slane %v859, 7
        %v1845 = vrot.slane %v862, 7
        %v1846 = vrot.slane %v865, 7
        %v1847 = vrot.slane %v868, 7
        %v1848 = vrot.slane %v871, 7
        %v1849 = vrot.slane %v874, 7
        %v1850 = vrot.slane %v877, 7
        %v1851 = vrot.slane %v880, 7
        %v1852 = vrot.slane %v883, 7
        %v1853 = vrot.slane %v886, 7
        %v1854 = vrot.slane %v889, 7
        %v1855 = vrot.slane %v892, 7
        %v1856 = vrot.slane %v895, 7
        %v1857 = vlaneseq
        %v1858 = vshrl.u32 %v1857, 7
        %vm1859 = vcmp.lt.s32.totalorder %v1858, 1
        %v1860 = vsel %vm1859, %v1855, %v1856
        %v1861 = vsel %vm1859, %v1854, %v1855
        %v1862 = vsel %vm1859, %v1853, %v1854
        %v1863 = vsel %vm1859, %v1852, %v1853
        %v1864 = vsel %vm1859, %v1851, %v1852
        %v1865 = vsel %vm1859, %v1850, %v1851
        %v1866 = vsel %vm1859, %v1849, %v1850
        %v1867 = vsel %vm1859, %v1848, %v1849
        %v1868 = vsel %vm1859, %v1847, %v1848
        %v1869 = vsel %vm1859, %v1846, %v1847
        %v1870 = vsel %vm1859, %v1845, %v1846
        %v1871 = vsel %vm1859, %v1844, %v1845
        %v1872 = vsel %vm1859, %v1843, %v1844
        %v1873 = vsel %vm1859, %v1842, %v1843
        %v1874 = vsel %vm1859, %v1841, %v1842
        %v1875 = vsel %vm1859, %v1840, %v1841
        %v1876 = vsel %vm1859, %v1839, %v1840
        %v1877 = vsel %vm1859, %v1838, %v1839
        %v1878 = vsel %vm1859, %v1837, %v1838
        %v1879 = vsel %vm1859, %v1836, %v1837
        %v1880 = vsel %vm1859, %v1835, %v1836
        %v1881 = vsel %vm1859, %v1834, %v1835
        %v1882 = vsel %vm1859, %v1833, %v1834
        %v1883 = vsel %vm1859, %v1832, %v1833
        %v1884 = vsel %vm1859, %v1831, %v1832
        %v1885 = vsel %vm1859, %v1830, %v1831
        %v1886 = vsel %vm1859, %v1829, %v1830
        %v1887 = vsel %vm1859, %v1828, %v1829
        %v1888 = vsel %vm1859, %v1827, %v1828
        %v1889 = vsel %vm1859, %v1826, %v1827
        %v1890 = vsel %vm1859, %v1825, %v1826
        %v1891 = vsel %vm1859, %v1824, %v1825
        %v1892 = vsel %vm1859, %v1823, %v1824
        %v1893 = vsel %vm1859, %v1822, %v1823
        %v1894 = vsel %vm1859, %v1821, %v1822
        %v1895 = vsel %vm1859, %v1820, %v1821
        %v1896 = vsel %vm1859, %v1819, %v1820
        %v1897 = vsel %vm1859, %v1818, %v1819
        %v1898 = vsel %vm1859, %v1817, %v1818
        %v1899 = vsel %vm1859, %v1856, %v1817
        %v1900 = vadd.f32 %v1899, %v1238
        %v1901 = vadd.f32 %v1898, %v1241
        %v1902 = vadd.f32 %v1897, %v1244
        %v1903 = vadd.f32 %v1896, %v1247
        %v1904 = vadd.f32 %v1895, %v1250
        %v1905 = vadd.f32 %v1894, %v1253
        %v1906 = vadd.f32 %v1893, %v1256
        %v1907 = vadd.f32 %v1892, %v1259
        %v1908 = vadd.f32 %v1891, %v1262
        %v1909 = vadd.f32 %v1890, %v1265
        %v1910 = vadd.f32 %v1889, %v1268
        %v1911 = vadd.f32 %v1888, %v1271
        %v1912 = vadd.f32 %v1887, %v1274
        %v1913 = vadd.f32 %v1886, %v1277
        %v1914 = vadd.f32 %v1885, %v1280
        %v1915 = vadd.f32 %v1884, %v1283
        %v1916 = vadd.f32 %v1883, %v1286
        %v1917 = vadd.f32 %v1882, %v1289
        %v1918 = vadd.f32 %v1881, %v1292
        %v1919 = vadd.f32 %v1880, %v1295
        %v1920 = vadd.f32 %v1879, %v1298
        %v1921 = vadd.f32 %v1878, %v1301
        %v1922 = vadd.f32 %v1877, %v1304
        %v1923 = vadd.f32 %v1876, %v1307
        %v1924 = vadd.f32 %v1875, %v1310
        %v1925 = vadd.f32 %v1874, %v1313
        %v1926 = vadd.f32 %v1873, %v1316
        %v1927 = vadd.f32 %v1872, %v1319
        %v1928 = vadd.f32 %v1871, %v1322
        %v1929 = vadd.f32 %v1870, %v1325
        %v1930 = vadd.f32 %v1869, %v1328
        %v1931 = vadd.f32 %v1868, %v1331
        %v1932 = vadd.f32 %v1867, %v1334
        %v1933 = vadd.f32 %v1866, %v1337
        %v1934 = vadd.f32 %v1865, %v1340
        %v1935 = vadd.f32 %v1864, %v1343
        %v1936 = vadd.f32 %v1863, %v1346
        %v1937 = vadd.f32 %v1862, %v1349
        %v1938 = vadd.f32 %v1861, %v1352
        %v1939 = vadd.f32 %v1860, %v1355
        %v1940 = vrot.slane %v1698, 1
        %v1941 = vrot.slane %v1701, 1
        %v1942 = vrot.slane %v1704, 1
        %v1943 = vrot.slane %v1707, 1
        %v1944 = vrot.slane %v1710, 1
        %v1945 = vrot.slane %v1713, 1
        %v1946 = vrot.slane %v1716, 1
        %v1947 = vrot.slane %v1719, 1
        %v1948 = vrot.slane %v1722, 1
        %v1949 = vrot.slane %v1725, 1
        %v1950 = vrot.slane %v1728, 1
        %v1951 = vrot.slane %v1731, 1
        %v1952 = vrot.slane %v1734, 1
        %v1953 = vrot.slane %v1737, 1
        %v1954 = vrot.slane %v1740, 1
        %v1955 = vrot.slane %v1743, 1
        %v1956 = vrot.slane %v1746, 1
        %v1957 = vrot.slane %v1749, 1
        %v1958 = vrot.slane %v1752, 1
        %v1959 = vrot.slane %v1755, 1
        %v1960 = vrot.slane %v1758, 1
        %v1961 = vrot.slane %v1761, 1
        %v1962 = vrot.slane %v1764, 1
        %v1963 = vrot.slane %v1767, 1
        %v1964 = vrot.slane %v1770, 1
        %v1965 = vrot.slane %v1773, 1
        %v1966 = vrot.slane %v1776, 1
        %v1967 = vrot.slane %v1779, 1
        %v1968 = vrot.slane %v1782, 1
        %v1969 = vrot.slane %v1785, 1
        %v1970 = vrot.slane %v1788, 1
        %v1971 = vrot.slane %v1791, 1
        %v1972 = vrot.slane %v1794, 1
        %v1973 = vrot.slane %v1797, 1
        %v1974 = vrot.slane %v1800, 1
        %v1975 = vrot.slane %v1803, 1
        %v1976 = vrot.slane %v1806, 1
        %v1977 = vrot.slane %v1809, 1
        %v1978 = vrot.slane %v1812, 1
        %v1979 = vrot.slane %v1815, 1
        %vm1980 = vcmp.lt.s32.totalorder %v1858, 7
        %v1981 = vsel %vm1980, %v1978, %v1979
        %v1982 = vsel %vm1980, %v1977, %v1978
        %v1983 = vsel %vm1980, %v1976, %v1977
        %v1984 = vsel %vm1980, %v1975, %v1976
        %v1985 = vsel %vm1980, %v1974, %v1975
        %v1986 = vsel %vm1980, %v1973, %v1974
        %v1987 = vsel %vm1980, %v1972, %v1973
        %v1988 = vsel %vm1980, %v1971, %v1972
        %v1989 = vsel %vm1980, %v1970, %v1971
        %v1990 = vsel %vm1980, %v1969, %v1970
        %v1991 = vsel %vm1980, %v1968, %v1969
        %v1992 = vsel %vm1980, %v1967, %v1968
        %v1993 = vsel %vm1980, %v1966, %v1967
        %v1994 = vsel %vm1980, %v1965, %v1966
        %v1995 = vsel %vm1980, %v1964, %v1965
        %v1996 = vsel %vm1980, %v1963, %v1964
        %v1997 = vsel %vm1980, %v1962, %v1963
        %v1998 = vsel %vm1980, %v1961, %v1962
        %v1999 = vsel %vm1980, %v1960, %v1961
        %v2000 = vsel %vm1980, %v1959, %v1960
        %v2001 = vsel %vm1980, %v1958, %v1959
        %v2002 = vsel %vm1980, %v1957, %v1958
        %v2003 = vsel %vm1980, %v1956, %v1957
        %v2004 = vsel %vm1980, %v1955, %v1956
        %v2005 = vsel %vm1980, %v1954, %v1955
        %v2006 = vsel %vm1980, %v1953, %v1954
        %v2007 = vsel %vm1980, %v1952, %v1953
        %v2008 = vsel %vm1980, %v1951, %v1952
        %v2009 = vsel %vm1980, %v1950, %v1951
        %v2010 = vsel %vm1980, %v1949, %v1950
        %v2011 = vsel %vm1980, %v1948, %v1949
        %v2012 = vsel %vm1980, %v1947, %v1948
        %v2013 = vsel %vm1980, %v1946, %v1947
        %v2014 = vsel %vm1980, %v1945, %v1946
        %v2015 = vsel %vm1980, %v1944, %v1945
        %v2016 = vsel %vm1980, %v1943, %v1944
        %v2017 = vsel %vm1980, %v1942, %v1943
        %v2018 = vsel %vm1980, %v1941, %v1942
        %v2019 = vsel %vm1980, %v1940, %v1941
        %v2020 = vsel %vm1980, %v1979, %v1940
        %v2021 = vadd.f32 %v1900, %v2019
        %v2022 = vadd.f32 %v1901, %v2018
        %v2023 = vadd.f32 %v1902, %v2017
        %v2024 = vadd.f32 %v1903, %v2016
        %v2025 = vadd.f32 %v1904, %v2015
        %v2026 = vadd.f32 %v1905, %v2014
        %v2027 = vadd.f32 %v1906, %v2013
        %v2028 = vadd.f32 %v1907, %v2012
        %v2029 = vadd.f32 %v1908, %v2011
        %v2030 = vadd.f32 %v1909, %v2010
        %v2031 = vadd.f32 %v1910, %v2009
        %v2032 = vadd.f32 %v1911, %v2008
        %v2033 = vadd.f32 %v1912, %v2007
        %v2034 = vadd.f32 %v1913, %v2006
        %v2035 = vadd.f32 %v1914, %v2005
        %v2036 = vadd.f32 %v1915, %v2004
        %v2037 = vadd.f32 %v1916, %v2003
        %v2038 = vadd.f32 %v1917, %v2002
        %v2039 = vadd.f32 %v1918, %v2001
        %v2040 = vadd.f32 %v1919, %v2000
        %v2041 = vadd.f32 %v1920, %v1999
        %v2042 = vadd.f32 %v1921, %v1998
        %v2043 = vadd.f32 %v1922, %v1997
        %v2044 = vadd.f32 %v1923, %v1996
        %v2045 = vadd.f32 %v1924, %v1995
        %v2046 = vadd.f32 %v1925, %v1994
        %v2047 = vadd.f32 %v1926, %v1993
        %v2048 = vadd.f32 %v1927, %v1992
        %v2049 = vadd.f32 %v1928, %v1991
        %v2050 = vadd.f32 %v1929, %v1990
        %v2051 = vadd.f32 %v1930, %v1989
        %v2052 = vadd.f32 %v1931, %v1988
        %v2053 = vadd.f32 %v1932, %v1987
        %v2054 = vadd.f32 %v1933, %v1986
        %v2055 = vadd.f32 %v1934, %v1985
        %v2056 = vadd.f32 %v1935, %v1984
        %v2057 = vadd.f32 %v1936, %v1983
        %v2058 = vadd.f32 %v1937, %v1982
        %v2059 = vadd.f32 %v1938, %v1981
        %v2060 = vadd.f32 %v1939, %v2020
        %v2061 = vld [vmem:[%s3] sm:$0x1]
        %v2063 = vperm.slane %v2061, 0
        %v2065 = vmul.f32 %v2021, %v2063
        %v2066 = vmul.f32 %v2022, %v2063
        %v2067 = vmul.f32 %v2023, %v2063
        %v2068 = vmul.f32 %v2024, %v2063
        %v2069 = vmul.f32 %v2025, %v2063
        %v2070 = vmul.f32 %v2026, %v2063
        %v2071 = vmul.f32 %v2027, %v2063
        %v2072 = vmul.f32 %v2028, %v2063
        %v2073 = vmul.f32 %v2029, %v2063
        %v2074 = vmul.f32 %v2030, %v2063
        %v2075 = vmul.f32 %v2031, %v2063
        %v2076 = vmul.f32 %v2032, %v2063
        %v2077 = vmul.f32 %v2033, %v2063
        %v2078 = vmul.f32 %v2034, %v2063
        %v2079 = vmul.f32 %v2035, %v2063
        %v2080 = vmul.f32 %v2036, %v2063
        %v2081 = vmul.f32 %v2037, %v2063
        %v2082 = vmul.f32 %v2038, %v2063
        %v2083 = vmul.f32 %v2039, %v2063
        %v2084 = vmul.f32 %v2040, %v2063
        %v2085 = vmul.f32 %v2041, %v2063
        %v2086 = vmul.f32 %v2042, %v2063
        %v2087 = vmul.f32 %v2043, %v2063
        %v2088 = vmul.f32 %v2044, %v2063
        %v2089 = vmul.f32 %v2045, %v2063
        %v2090 = vmul.f32 %v2046, %v2063
        %v2091 = vmul.f32 %v2047, %v2063
        %v2092 = vmul.f32 %v2048, %v2063
        %v2093 = vmul.f32 %v2049, %v2063
        %v2094 = vmul.f32 %v2050, %v2063
        %v2095 = vmul.f32 %v2051, %v2063
        %v2096 = vmul.f32 %v2052, %v2063
        %v2097 = vmul.f32 %v2053, %v2063
        %v2098 = vmul.f32 %v2054, %v2063
        %v2099 = vmul.f32 %v2055, %v2063
        %v2100 = vmul.f32 %v2056, %v2063
        %v2101 = vmul.f32 %v2057, %v2063
        %v2102 = vmul.f32 %v2058, %v2063
        %v2103 = vmul.f32 %v2059, %v2063
        %v2104 = vmul.f32 %v2060, %v2063
        %v2105 = vld [vmem:[%s4] sm:$0x1]
        %v2107 = vperm.slane %v2105, 0
        %v2109 = vadd.f32 %v2065, %v2107
        %v2110 = vadd.f32 %v2066, %v2107
        %v2111 = vadd.f32 %v2067, %v2107
        %v2112 = vadd.f32 %v2068, %v2107
        %v2113 = vadd.f32 %v2069, %v2107
        %v2114 = vadd.f32 %v2070, %v2107
        %v2115 = vadd.f32 %v2071, %v2107
        %v2116 = vadd.f32 %v2072, %v2107
        %v2117 = vadd.f32 %v2073, %v2107
        %v2118 = vadd.f32 %v2074, %v2107
        %v2119 = vadd.f32 %v2075, %v2107
        %v2120 = vadd.f32 %v2076, %v2107
        %v2121 = vadd.f32 %v2077, %v2107
        %v2122 = vadd.f32 %v2078, %v2107
        %v2123 = vadd.f32 %v2079, %v2107
        %v2124 = vadd.f32 %v2080, %v2107
        %v2125 = vadd.f32 %v2081, %v2107
        %v2126 = vadd.f32 %v2082, %v2107
        %v2127 = vadd.f32 %v2083, %v2107
        %v2128 = vadd.f32 %v2084, %v2107
        %v2129 = vadd.f32 %v2085, %v2107
        %v2130 = vadd.f32 %v2086, %v2107
        %v2131 = vadd.f32 %v2087, %v2107
        %v2132 = vadd.f32 %v2088, %v2107
        %v2133 = vadd.f32 %v2089, %v2107
        %v2134 = vadd.f32 %v2090, %v2107
        %v2135 = vadd.f32 %v2091, %v2107
        %v2136 = vadd.f32 %v2092, %v2107
        %v2137 = vadd.f32 %v2093, %v2107
        %v2138 = vadd.f32 %v2094, %v2107
        %v2139 = vadd.f32 %v2095, %v2107
        %v2140 = vadd.f32 %v2096, %v2107
        %v2141 = vadd.f32 %v2097, %v2107
        %v2142 = vadd.f32 %v2098, %v2107
        %v2143 = vadd.f32 %v2099, %v2107
        %v2144 = vadd.f32 %v2100, %v2107
        %v2145 = vadd.f32 %v2101, %v2107
        %v2146 = vadd.f32 %v2102, %v2107
        %v2147 = vadd.f32 %v2103, %v2107
        %v2148 = vadd.f32 %v2104, %v2107
        %v2149 = vmax.f32 %v2109, 0.0
        %v2150 = vmax.f32 %v2110, 0.0
        %v2151 = vmax.f32 %v2111, 0.0
        %v2152 = vmax.f32 %v2112, 0.0
        %v2153 = vmax.f32 %v2113, 0.0
        %v2154 = vmax.f32 %v2114, 0.0
        %v2155 = vmax.f32 %v2115, 0.0
        %v2156 = vmax.f32 %v2116, 0.0
        %v2157 = vmax.f32 %v2117, 0.0
        %v2158 = vmax.f32 %v2118, 0.0
        %v2159 = vmax.f32 %v2119, 0.0
        %v2160 = vmax.f32 %v2120, 0.0
        %v2161 = vmax.f32 %v2121, 0.0
        %v2162 = vmax.f32 %v2122, 0.0
        %v2163 = vmax.f32 %v2123, 0.0
        %v2164 = vmax.f32 %v2124, 0.0
        %v2165 = vmax.f32 %v2125, 0.0
        %v2166 = vmax.f32 %v2126, 0.0
        %v2167 = vmax.f32 %v2127, 0.0
        %v2168 = vmax.f32 %v2128, 0.0
        %v2169 = vmax.f32 %v2129, 0.0
        %v2170 = vmax.f32 %v2130, 0.0
        %v2171 = vmax.f32 %v2131, 0.0
        %v2172 = vmax.f32 %v2132, 0.0
        %v2173 = vmax.f32 %v2133, 0.0
        %v2174 = vmax.f32 %v2134, 0.0
        %v2175 = vmax.f32 %v2135, 0.0
        %v2176 = vmax.f32 %v2136, 0.0
        %v2177 = vmax.f32 %v2137, 0.0
        %v2178 = vmax.f32 %v2138, 0.0
        %v2179 = vmax.f32 %v2139, 0.0
        %v2180 = vmax.f32 %v2140, 0.0
        %v2181 = vmax.f32 %v2141, 0.0
        %v2182 = vmax.f32 %v2142, 0.0
        %v2183 = vmax.f32 %v2143, 0.0
        %v2184 = vmax.f32 %v2144, 0.0
        %v2185 = vmax.f32 %v2145, 0.0
        %v2186 = vmax.f32 %v2146, 0.0
        %v2187 = vmax.f32 %v2147, 0.0
        %v2188 = vmax.f32 %v2148, 0.0
        %v2189 = vmul.f32 %v2149, %v418
        %v2190 = vmul.f32 %v2150, %v419
        %v2191 = vmul.f32 %v2151, %v420
        %v2192 = vmul.f32 %v2152, %v421
        %v2193 = vmul.f32 %v2153, %v422
        %v2194 = vmul.f32 %v2154, %v423
        %v2195 = vmul.f32 %v2155, %v424
        %v2196 = vmul.f32 %v2156, %v425
        %v2197 = vmul.f32 %v2157, %v426
        %v2198 = vmul.f32 %v2158, %v427
        %v2199 = vmul.f32 %v2159, %v428
        %v2200 = vmul.f32 %v2160, %v429
        %v2201 = vmul.f32 %v2161, %v430
        %v2202 = vmul.f32 %v2162, %v431
        %v2203 = vmul.f32 %v2163, %v432
        %v2204 = vmul.f32 %v2164, %v433
        %v2205 = vmul.f32 %v2165, %v434
        %v2206 = vmul.f32 %v2166, %v435
        %v2207 = vmul.f32 %v2167, %v436
        %v2208 = vmul.f32 %v2168, %v437
        %v2209 = vmul.f32 %v2169, %v418
        %v2210 = vmul.f32 %v2170, %v419
        %v2211 = vmul.f32 %v2171, %v420
        %v2212 = vmul.f32 %v2172, %v421
        %v2213 = vmul.f32 %v2173, %v422
        %v2214 = vmul.f32 %v2174, %v423
        %v2215 = vmul.f32 %v2175, %v424
        %v2216 = vmul.f32 %v2176, %v425
        %v2217 = vmul.f32 %v2177, %v426
        %v2218 = vmul.f32 %v2178, %v427
        %v2219 = vmul.f32 %v2179, %v428
        %v2220 = vmul.f32 %v2180, %v429
        %v2221 = vmul.f32 %v2181, %v430
        %v2222 = vmul.f32 %v2182, %v431
        %v2223 = vmul.f32 %v2183, %v432
        %v2224 = vmul.f32 %v2184, %v433
        %v2225 = vmul.f32 %v2185, %v434
        %v2226 = vmul.f32 %v2186, %v435
        %v2227 = vmul.f32 %v2187, %v436
        %v2228 = vmul.f32 %v2188, %v437
        %v2229 = vld [vmem:[#allocation7] sm:$0xff]
        %v2230 = vld [vmem:[#allocation7 + $0x8] sm:$0xff]
        %v2231 = vld [vmem:[#allocation7 + $0x10] sm:$0xff]
        %v2232 = vld [vmem:[#allocation7 + $0x18] sm:$0xff]
        %v2233 = vld [vmem:[#allocation7 + $0x20] sm:$0xff]
        %v2234 = vld [vmem:[#allocation7 + $0x28] sm:$0xff]
        %v2235 = vld [vmem:[#allocation7 + $0x30] sm:$0xff]
        %v2236 = vld [vmem:[#allocation7 + $0x38] sm:$0xff]
        %v2237 = vld [vmem:[#allocation7 + $0x40] sm:$0xff]
        %v2238 = vld [vmem:[#allocation7 + $0x48] sm:$0xff]
        %v2239 = vld [vmem:[#allocation7 + $0x50] sm:$0xff]
        %v2240 = vld [vmem:[#allocation7 + $0x58] sm:$0xff]
        %v2241 = vld [vmem:[#allocation7 + $0x60] sm:$0xff]
        %v2242 = vld [vmem:[#allocation7 + $0x68] sm:$0xff]
        %v2243 = vld [vmem:[#allocation7 + $0x70] sm:$0xff]
        %v2244 = vld [vmem:[#allocation7 + $0x78] sm:$0xff]
        %v2245 = vld [vmem:[#allocation7 + $0x80] sm:$0xff]
        %v2246 = vld [vmem:[#allocation7 + $0x88] sm:$0xff]
        %v2247 = vld [vmem:[#allocation7 + $0x90] sm:$0xff]
        %v2248 = vld [vmem:[#allocation7 + $0x98] sm:$0xff]
        %v2249 = vld [vmem:[#allocation7 + $0xa0] sm:$0xff]
        %v2250 = vld [vmem:[#allocation7 + $0xa8] sm:$0xff]
        %v2251 = vld [vmem:[#allocation7 + $0xb0] sm:$0xff]
        %v2252 = vld [vmem:[#allocation7 + $0xb8] sm:$0xff]
        %v2253 = vld [vmem:[#allocation7 + $0xc0] sm:$0xff]
        %v2254 = vld [vmem:[#allocation7 + $0xc8] sm:$0xff]
        %v2255 = vld [vmem:[#allocation7 + $0xd0] sm:$0xff]
        %v2256 = vld [vmem:[#allocation7 + $0xd8] sm:$0xff]
        %v2257 = vld [vmem:[#allocation7 + $0xe0] sm:$0xff]
        %v2258 = vld [vmem:[#allocation7 + $0xe8] sm:$0xff]
        %v2259 = vld [vmem:[#allocation7 + $0xf0] sm:$0xff]
        %v2260 = vld [vmem:[#allocation7 + $0xf8] sm:$0xff]
        %v2261 = vld [vmem:[#allocation7 + $0x100] sm:$0xff]
        %v2262 = vld [vmem:[#allocation7 + $0x108] sm:$0xff]
        %v2263 = vld [vmem:[#allocation7 + $0x110] sm:$0xff]
        %v2264 = vld [vmem:[#allocation7 + $0x118] sm:$0xff]
        %v2265 = vld [vmem:[#allocation7 + $0x120] sm:$0xff]
        %v2266 = vld [vmem:[#allocation7 + $0x128] sm:$0xff]
        %v2267 = vld [vmem:[#allocation7 + $0x130] sm:$0xff]
        %v2268 = vld [vmem:[#allocation7 + $0x138] sm:$0xff]
        %v2269 = vld [vmem:[#allocation7 + $0x140] sm:$0xff]
        %v2270 = vld [vmem:[#allocation7 + $0x148] sm:$0xff]
        %v2271 = vld [vmem:[#allocation7 + $0x150] sm:$0xff]
        %v2272 = vld [vmem:[#allocation7 + $0x158] sm:$0xff]
        %v2273 = vld [vmem:[#allocation7 + $0x160] sm:$0xff]
        %v2274 = vld [vmem:[#allocation7 + $0x168] sm:$0xff]
        %v2275 = vld [vmem:[#allocation7 + $0x170] sm:$0xff]
        %v2276 = vld [vmem:[#allocation7 + $0x178] sm:$0xff]
        %2277 = vmatpush.msra.mxu0 %v2244
        %2278 = vmatpush.msra.mxu0 %v2243
        %2279 = vmatpush.msra.mxu0 %v2242
        %2280 = vmatpush.msra.mxu0 %v2241
        %2281 = vmatpush.msra.mxu0 %v2240
        %2282 = vmatpush.msra.mxu0 %v2239
        %2283 = vmatpush.msra.mxu0 %v2238
        %2284 = vmatpush.msra.mxu0 %v2237
        %2285 = vmatpush.msra.mxu0 %v2236
        %2286 = vmatpush.msra.mxu0 %v2235
        %2287 = vmatpush.msra.mxu0 %v2234
        %2288 = vmatpush.msra.mxu0 %v2233
        %2289 = vmatpush.msra.mxu0 %v2232
        %2290 = vmatpush.msra.mxu0 %v2231
        %2291 = vmatpush.msra.mxu0 %v2230
        %2292 = vmatpush.msra.mxu0 %v2229
        %2293 = vmatmul.f32.gmra.mxu0 %v2227
        %v2294 = vpop.f32.mrf.mxu0
        %v2295 = vadd.f32 0.0, %v2294
        %2296 = vmatmul.f32.gmra.mxu0 %v2228
        %v2297 = vpop.f32.mrf.mxu0
        %v2298 = vadd.f32 0.0, %v2297
        %2299 = vmatmul.f32.gmra.mxu0 %v2189
        %v2300 = vpop.f32.mrf.mxu0
        %v2301 = vadd.f32 0.0, %v2300
        %2302 = vmatmul.f32.gmra.mxu0 %v2190
        %v2303 = vpop.f32.mrf.mxu0
        %v2304 = vadd.f32 0.0, %v2303
        %2305 = vmatmul.f32.gmra.mxu0 %v2191
        %v2306 = vpop.f32.mrf.mxu0
        %v2307 = vadd.f32 0.0, %v2306
        %2308 = vmatmul.f32.gmra.mxu0 %v2192
        %v2309 = vpop.f32.mrf.mxu0
        %v2310 = vadd.f32 0.0, %v2309
        %2311 = vmatmul.f32.gmra.mxu0 %v2193
        %v2312 = vpop.f32.mrf.mxu0
        %v2313 = vadd.f32 0.0, %v2312
        %2314 = vmatmul.f32.gmra.mxu0 %v2194
        %v2315 = vpop.f32.mrf.mxu0
        %v2316 = vadd.f32 0.0, %v2315
        %2317 = vmatmul.f32.gmra.mxu0 %v2195
        %v2318 = vpop.f32.mrf.mxu0
        %v2319 = vadd.f32 0.0, %v2318
        %2320 = vmatmul.f32.gmra.mxu0 %v2196
        %v2321 = vpop.f32.mrf.mxu0
        %v2322 = vadd.f32 0.0, %v2321
        %2323 = vmatmul.f32.gmra.mxu0 %v2197
        %v2324 = vpop.f32.mrf.mxu0
        %v2325 = vadd.f32 0.0, %v2324
        %2326 = vmatmul.f32.gmra.mxu0 %v2198
        %v2327 = vpop.f32.mrf.mxu0
        %v2328 = vadd.f32 0.0, %v2327
        %2329 = vmatmul.f32.gmra.mxu0 %v2199
        %v2330 = vpop.f32.mrf.mxu0
        %v2331 = vadd.f32 0.0, %v2330
        %2332 = vmatmul.f32.gmra.mxu0 %v2200
        %v2333 = vpop.f32.mrf.mxu0
        %v2334 = vadd.f32 0.0, %v2333
        %2335 = vmatmul.f32.gmra.mxu0 %v2201
        %v2336 = vpop.f32.mrf.mxu0
        %v2337 = vadd.f32 0.0, %v2336
        %2338 = vmatmul.f32.gmra.mxu0 %v2202
        %v2339 = vpop.f32.mrf.mxu0
        %v2340 = vadd.f32 0.0, %v2339
        %2341 = vmatmul.f32.gmra.mxu0 %v2203
        %v2342 = vpop.f32.mrf.mxu0
        %v2343 = vadd.f32 0.0, %v2342
        %2344 = vmatmul.f32.gmra.mxu0 %v2204
        %v2345 = vpop.f32.mrf.mxu0
        %v2346 = vadd.f32 0.0, %v2345
        %2347 = vmatmul.f32.gmra.mxu0 %v2205
        %v2348 = vpop.f32.mrf.mxu0
        %v2349 = vadd.f32 0.0, %v2348
        %2350 = vmatmul.f32.gmra.mxu0 %v2206
        %v2351 = vpop.f32.mrf.mxu0
        %v2352 = vadd.f32 0.0, %v2351
        %2353 = vmatmul.f32.gmra.mxu0 %v2207
        %v2354 = vpop.f32.mrf.mxu0
        %v2355 = vadd.f32 0.0, %v2354
        %2356 = vmatmul.f32.gmra.mxu0 %v2208
        %v2357 = vpop.f32.mrf.mxu0
        %v2358 = vadd.f32 0.0, %v2357
        %2359 = vmatmul.f32.gmra.mxu0 %v2209
        %v2360 = vpop.f32.mrf.mxu0
        %v2361 = vadd.f32 0.0, %v2360
        %2362 = vmatmul.f32.gmra.mxu0 %v2210
        %v2363 = vpop.f32.mrf.mxu0
        %v2364 = vadd.f32 0.0, %v2363
        %2365 = vmatmul.f32.gmra.mxu0 %v2211
        %v2366 = vpop.f32.mrf.mxu0
        %v2367 = vadd.f32 0.0, %v2366
        %2368 = vmatmul.f32.gmra.mxu0 %v2212
        %v2369 = vpop.f32.mrf.mxu0
        %v2370 = vadd.f32 0.0, %v2369
        %2371 = vmatmul.f32.gmra.mxu0 %v2213
        %v2372 = vpop.f32.mrf.mxu0
        %v2373 = vadd.f32 0.0, %v2372
        %2374 = vmatmul.f32.gmra.mxu0 %v2214
        %v2375 = vpop.f32.mrf.mxu0
        %v2376 = vadd.f32 0.0, %v2375
        %2377 = vmatmul.f32.gmra.mxu0 %v2215
        %v2378 = vpop.f32.mrf.mxu0
        %v2379 = vadd.f32 0.0, %v2378
        %2380 = vmatmul.f32.gmra.mxu0 %v2216
        %v2381 = vpop.f32.mrf.mxu0
        %v2382 = vadd.f32 0.0, %v2381
        %2383 = vmatmul.f32.gmra.mxu0 %v2217
        %v2384 = vpop.f32.mrf.mxu0
        %v2385 = vadd.f32 0.0, %v2384
        %2386 = vmatmul.f32.gmra.mxu0 %v2218
        %v2387 = vpop.f32.mrf.mxu0
        %v2388 = vadd.f32 0.0, %v2387
        %2389 = vmatmul.f32.gmra.mxu0 %v2219
        %v2390 = vpop.f32.mrf.mxu0
        %v2391 = vadd.f32 0.0, %v2390
        %2392 = vmatmul.f32.gmra.mxu0 %v2220
        %v2393 = vpop.f32.mrf.mxu0
        %v2394 = vadd.f32 0.0, %v2393
        %2395 = vmatmul.f32.gmra.mxu0 %v2221
        %v2396 = vpop.f32.mrf.mxu0
        %v2397 = vadd.f32 0.0, %v2396
        %2398 = vmatmul.f32.gmra.mxu0 %v2222
        %v2399 = vpop.f32.mrf.mxu0
        %v2400 = vadd.f32 0.0, %v2399
        %2401 = vmatmul.f32.gmra.mxu0 %v2223
        %v2402 = vpop.f32.mrf.mxu0
        %v2403 = vadd.f32 0.0, %v2402
        %2404 = vmatmul.f32.gmra.mxu0 %v2224
        %v2405 = vpop.f32.mrf.mxu0
        %v2406 = vadd.f32 0.0, %v2405
        %2407 = vmatmul.f32.gmra.mxu0 %v2225
        %v2408 = vpop.f32.mrf.mxu0
        %v2409 = vadd.f32 0.0, %v2408
        %2410 = vmatmul.f32.gmra.mxu0 %v2226
        %v2411 = vpop.f32.mrf.mxu0
        %v2412 = vadd.f32 0.0, %v2411
        %2413 = vdwg.mxu0
        %2414 = vmatpush.msra.mxu0 %v2260
        %2415 = vmatpush.msra.mxu0 %v2259
        %2416 = vmatpush.msra.mxu0 %v2258
        %2417 = vmatpush.msra.mxu0 %v2257
        %2418 = vmatpush.msra.mxu0 %v2256
        %2419 = vmatpush.msra.mxu0 %v2255
        %2420 = vmatpush.msra.mxu0 %v2254
        %2421 = vmatpush.msra.mxu0 %v2253
        %2422 = vmatpush.msra.mxu0 %v2252
        %2423 = vmatpush.msra.mxu0 %v2251
        %2424 = vmatpush.msra.mxu0 %v2250
        %2425 = vmatpush.msra.mxu0 %v2249
        %2426 = vmatpush.msra.mxu0 %v2248
        %2427 = vmatpush.msra.mxu0 %v2247
        %2428 = vmatpush.msra.mxu0 %v2246
        %2429 = vmatpush.msra.mxu0 %v2245
        %2430 = vmatmul.f32.gmra.mxu0 %v2189
        %v2431 = vpop.f32.mrf.mxu0
        %v2432 = vadd.f32 %v2295, %v2431
        %2433 = vmatmul.f32.gmra.mxu0 %v2190
        %v2434 = vpop.f32.mrf.mxu0
        %v2435 = vadd.f32 %v2298, %v2434
        %2436 = vmatmul.f32.gmra.mxu0 %v2191
        %v2437 = vpop.f32.mrf.mxu0
        %v2438 = vadd.f32 %v2301, %v2437
        %2439 = vmatmul.f32.gmra.mxu0 %v2192
        %v2440 = vpop.f32.mrf.mxu0
        %v2441 = vadd.f32 %v2304, %v2440
        %2442 = vmatmul.f32.gmra.mxu0 %v2193
        %v2443 = vpop.f32.mrf.mxu0
        %v2444 = vadd.f32 %v2307, %v2443
        %2445 = vmatmul.f32.gmra.mxu0 %v2194
        %v2446 = vpop.f32.mrf.mxu0
        %v2447 = vadd.f32 %v2310, %v2446
        %2448 = vmatmul.f32.gmra.mxu0 %v2195
        %v2449 = vpop.f32.mrf.mxu0
        %v2450 = vadd.f32 %v2313, %v2449
        %2451 = vmatmul.f32.gmra.mxu0 %v2196
        %v2452 = vpop.f32.mrf.mxu0
        %v2453 = vadd.f32 %v2316, %v2452
        %2454 = vmatmul.f32.gmra.mxu0 %v2197
        %v2455 = vpop.f32.mrf.mxu0
        %v2456 = vadd.f32 %v2319, %v2455
        %2457 = vmatmul.f32.gmra.mxu0 %v2198
        %v2458 = vpop.f32.mrf.mxu0
        %v2459 = vadd.f32 %v2322, %v2458
        %2460 = vmatmul.f32.gmra.mxu0 %v2199
        %v2461 = vpop.f32.mrf.mxu0
        %v2462 = vadd.f32 %v2325, %v2461
        %2463 = vmatmul.f32.gmra.mxu0 %v2200
        %v2464 = vpop.f32.mrf.mxu0
        %v2465 = vadd.f32 %v2328, %v2464
        %2466 = vmatmul.f32.gmra.mxu0 %v2201
        %v2467 = vpop.f32.mrf.mxu0
        %v2468 = vadd.f32 %v2331, %v2467
        %2469 = vmatmul.f32.gmra.mxu0 %v2202
        %v2470 = vpop.f32.mrf.mxu0
        %v2471 = vadd.f32 %v2334, %v2470
        %2472 = vmatmul.f32.gmra.mxu0 %v2203
        %v2473 = vpop.f32.mrf.mxu0
        %v2474 = vadd.f32 %v2337, %v2473
        %2475 = vmatmul.f32.gmra.mxu0 %v2204
        %v2476 = vpop.f32.mrf.mxu0
        %v2477 = vadd.f32 %v2340, %v2476
        %2478 = vmatmul.f32.gmra.mxu0 %v2205
        %v2479 = vpop.f32.mrf.mxu0
        %v2480 = vadd.f32 %v2343, %v2479
        %2481 = vmatmul.f32.gmra.mxu0 %v2206
        %v2482 = vpop.f32.mrf.mxu0
        %v2483 = vadd.f32 %v2346, %v2482
        %2484 = vmatmul.f32.gmra.mxu0 %v2207
        %v2485 = vpop.f32.mrf.mxu0
        %v2486 = vadd.f32 %v2349, %v2485
        %2487 = vmatmul.f32.gmra.mxu0 %v2208
        %v2488 = vpop.f32.mrf.mxu0
        %v2489 = vadd.f32 %v2352, %v2488
        %2490 = vmatmul.f32.gmra.mxu0 %v2209
        %v2491 = vpop.f32.mrf.mxu0
        %v2492 = vadd.f32 %v2355, %v2491
        %2493 = vmatmul.f32.gmra.mxu0 %v2210
        %v2494 = vpop.f32.mrf.mxu0
        %v2495 = vadd.f32 %v2358, %v2494
        %2496 = vmatmul.f32.gmra.mxu0 %v2211
        %v2497 = vpop.f32.mrf.mxu0
        %v2498 = vadd.f32 %v2361, %v2497
        %2499 = vmatmul.f32.gmra.mxu0 %v2212
        %v2500 = vpop.f32.mrf.mxu0
        %v2501 = vadd.f32 %v2364, %v2500
        %2502 = vmatmul.f32.gmra.mxu0 %v2213
        %v2503 = vpop.f32.mrf.mxu0
        %v2504 = vadd.f32 %v2367, %v2503
        %2505 = vmatmul.f32.gmra.mxu0 %v2214
        %v2506 = vpop.f32.mrf.mxu0
        %v2507 = vadd.f32 %v2370, %v2506
        %2508 = vmatmul.f32.gmra.mxu0 %v2215
        %v2509 = vpop.f32.mrf.mxu0
        %v2510 = vadd.f32 %v2373, %v2509
        %2511 = vmatmul.f32.gmra.mxu0 %v2216
        %v2512 = vpop.f32.mrf.mxu0
        %v2513 = vadd.f32 %v2376, %v2512
        %2514 = vmatmul.f32.gmra.mxu0 %v2217
        %v2515 = vpop.f32.mrf.mxu0
        %v2516 = vadd.f32 %v2379, %v2515
        %2517 = vmatmul.f32.gmra.mxu0 %v2218
        %v2518 = vpop.f32.mrf.mxu0
        %v2519 = vadd.f32 %v2382, %v2518
        %2520 = vmatmul.f32.gmra.mxu0 %v2219
        %v2521 = vpop.f32.mrf.mxu0
        %v2522 = vadd.f32 %v2385, %v2521
        %2523 = vmatmul.f32.gmra.mxu0 %v2220
        %v2524 = vpop.f32.mrf.mxu0
        %v2525 = vadd.f32 %v2388, %v2524
        %2526 = vmatmul.f32.gmra.mxu0 %v2221
        %v2527 = vpop.f32.mrf.mxu0
        %v2528 = vadd.f32 %v2391, %v2527
        %2529 = vmatmul.f32.gmra.mxu0 %v2222
        %v2530 = vpop.f32.mrf.mxu0
        %v2531 = vadd.f32 %v2394, %v2530
        %2532 = vmatmul.f32.gmra.mxu0 %v2223
        %v2533 = vpop.f32.mrf.mxu0
        %v2534 = vadd.f32 %v2397, %v2533
        %2535 = vmatmul.f32.gmra.mxu0 %v2224
        %v2536 = vpop.f32.mrf.mxu0
        %v2537 = vadd.f32 %v2400, %v2536
        %2538 = vmatmul.f32.gmra.mxu0 %v2225
        %v2539 = vpop.f32.mrf.mxu0
        %v2540 = vadd.f32 %v2403, %v2539
        %2541 = vmatmul.f32.gmra.mxu0 %v2226
        %v2542 = vpop.f32.mrf.mxu0
        %v2543 = vadd.f32 %v2406, %v2542
        %2544 = vmatmul.f32.gmra.mxu0 %v2227
        %v2545 = vpop.f32.mrf.mxu0
        %v2546 = vadd.f32 %v2409, %v2545
        %2547 = vmatmul.f32.gmra.mxu0 %v2228
        %v2548 = vpop.f32.mrf.mxu0
        %v2549 = vadd.f32 %v2412, %v2548
        %2550 = vdwg.mxu0
        %2551 = vmatpush.msra.mxu0 %v2276
        %2552 = vmatpush.msra.mxu0 %v2275
        %2553 = vmatpush.msra.mxu0 %v2274
        %2554 = vmatpush.msra.mxu0 %v2273
        %2555 = vmatpush.msra.mxu0 %v2272
        %2556 = vmatpush.msra.mxu0 %v2271
        %2557 = vmatpush.msra.mxu0 %v2270
        %2558 = vmatpush.msra.mxu0 %v2269
        %2559 = vmatpush.msra.mxu0 %v2268
        %2560 = vmatpush.msra.mxu0 %v2267
        %2561 = vmatpush.msra.mxu0 %v2266
        %2562 = vmatpush.msra.mxu0 %v2265
        %2563 = vmatpush.msra.mxu0 %v2264
        %2564 = vmatpush.msra.mxu0 %v2263
        %2565 = vmatpush.msra.mxu0 %v2262
        %2566 = vmatpush.msra.mxu0 %v2261
        %2567 = vmatmul.f32.gmra.mxu0 %v2191
        %v2568 = vpop.f32.mrf.mxu0
        %v2569 = vadd.f32 %v2432, %v2568
        %2570 = vmatmul.f32.gmra.mxu0 %v2192
        %v2571 = vpop.f32.mrf.mxu0
        %v2572 = vadd.f32 %v2435, %v2571
        %2573 = vmatmul.f32.gmra.mxu0 %v2193
        %v2574 = vpop.f32.mrf.mxu0
        %v2575 = vadd.f32 %v2438, %v2574
        %2576 = vmatmul.f32.gmra.mxu0 %v2194
        %v2577 = vpop.f32.mrf.mxu0
        %v2578 = vadd.f32 %v2441, %v2577
        %2579 = vmatmul.f32.gmra.mxu0 %v2195
        %v2580 = vpop.f32.mrf.mxu0
        %v2581 = vadd.f32 %v2444, %v2580
        %2582 = vmatmul.f32.gmra.mxu0 %v2196
        %v2583 = vpop.f32.mrf.mxu0
        %v2584 = vadd.f32 %v2447, %v2583
        %2585 = vmatmul.f32.gmra.mxu0 %v2197
        %v2586 = vpop.f32.mrf.mxu0
        %v2587 = vadd.f32 %v2450, %v2586
        %2588 = vmatmul.f32.gmra.mxu0 %v2198
        %v2589 = vpop.f32.mrf.mxu0
        %v2590 = vadd.f32 %v2453, %v2589
        %2591 = vmatmul.f32.gmra.mxu0 %v2199
        %v2592 = vpop.f32.mrf.mxu0
        %v2593 = vadd.f32 %v2456, %v2592
        %2594 = vmatmul.f32.gmra.mxu0 %v2200
        %v2595 = vpop.f32.mrf.mxu0
        %v2596 = vadd.f32 %v2459, %v2595
        %2597 = vmatmul.f32.gmra.mxu0 %v2201
        %v2598 = vpop.f32.mrf.mxu0
        %v2599 = vadd.f32 %v2462, %v2598
        %2600 = vmatmul.f32.gmra.mxu0 %v2202
        %v2601 = vpop.f32.mrf.mxu0
        %v2602 = vadd.f32 %v2465, %v2601
        %2603 = vmatmul.f32.gmra.mxu0 %v2203
        %v2604 = vpop.f32.mrf.mxu0
        %v2605 = vadd.f32 %v2468, %v2604
        %2606 = vmatmul.f32.gmra.mxu0 %v2204
        %v2607 = vpop.f32.mrf.mxu0
        %v2608 = vadd.f32 %v2471, %v2607
        %2609 = vmatmul.f32.gmra.mxu0 %v2205
        %v2610 = vpop.f32.mrf.mxu0
        %v2611 = vadd.f32 %v2474, %v2610
        %2612 = vmatmul.f32.gmra.mxu0 %v2206
        %v2613 = vpop.f32.mrf.mxu0
        %v2614 = vadd.f32 %v2477, %v2613
        %2615 = vmatmul.f32.gmra.mxu0 %v2207
        %v2616 = vpop.f32.mrf.mxu0
        %v2617 = vadd.f32 %v2480, %v2616
        %2618 = vmatmul.f32.gmra.mxu0 %v2208
        %v2619 = vpop.f32.mrf.mxu0
        %v2620 = vadd.f32 %v2483, %v2619
        %2621 = vmatmul.f32.gmra.mxu0 %v2209
        %v2622 = vpop.f32.mrf.mxu0
        %v2623 = vadd.f32 %v2486, %v2622
        %2624 = vmatmul.f32.gmra.mxu0 %v2210
        %v2625 = vpop.f32.mrf.mxu0
        %v2626 = vadd.f32 %v2489, %v2625
        %2627 = vmatmul.f32.gmra.mxu0 %v2211
        %v2628 = vpop.f32.mrf.mxu0
        %v2629 = vadd.f32 %v2492, %v2628
        %2630 = vmatmul.f32.gmra.mxu0 %v2212
        %v2631 = vpop.f32.mrf.mxu0
        %v2632 = vadd.f32 %v2495, %v2631
        %2633 = vmatmul.f32.gmra.mxu0 %v2213
        %v2634 = vpop.f32.mrf.mxu0
        %v2635 = vadd.f32 %v2498, %v2634
        %2636 = vmatmul.f32.gmra.mxu0 %v2214
        %v2637 = vpop.f32.mrf.mxu0
        %v2638 = vadd.f32 %v2501, %v2637
        %2639 = vmatmul.f32.gmra.mxu0 %v2215
        %v2640 = vpop.f32.mrf.mxu0
        %v2641 = vadd.f32 %v2504, %v2640
        %2642 = vmatmul.f32.gmra.mxu0 %v2216
        %v2643 = vpop.f32.mrf.mxu0
        %v2644 = vadd.f32 %v2507, %v2643
        %2645 = vmatmul.f32.gmra.mxu0 %v2217
        %v2646 = vpop.f32.mrf.mxu0
        %v2647 = vadd.f32 %v2510, %v2646
        %2648 = vmatmul.f32.gmra.mxu0 %v2218
        %v2649 = vpop.f32.mrf.mxu0
        %v2650 = vadd.f32 %v2513, %v2649
        %2651 = vmatmul.f32.gmra.mxu0 %v2219
        %v2652 = vpop.f32.mrf.mxu0
        %v2653 = vadd.f32 %v2516, %v2652
        %2654 = vmatmul.f32.gmra.mxu0 %v2220
        %v2655 = vpop.f32.mrf.mxu0
        %v2656 = vadd.f32 %v2519, %v2655
        %2657 = vmatmul.f32.gmra.mxu0 %v2221
        %v2658 = vpop.f32.mrf.mxu0
        %v2659 = vadd.f32 %v2522, %v2658
        %2660 = vmatmul.f32.gmra.mxu0 %v2222
        %v2661 = vpop.f32.mrf.mxu0
        %v2662 = vadd.f32 %v2525, %v2661
        %2663 = vmatmul.f32.gmra.mxu0 %v2223
        %v2664 = vpop.f32.mrf.mxu0
        %v2665 = vadd.f32 %v2528, %v2664
        %2666 = vmatmul.f32.gmra.mxu0 %v2224
        %v2667 = vpop.f32.mrf.mxu0
        %v2668 = vadd.f32 %v2531, %v2667
        %2669 = vmatmul.f32.gmra.mxu0 %v2225
        %v2670 = vpop.f32.mrf.mxu0
        %v2671 = vadd.f32 %v2534, %v2670
        %2672 = vmatmul.f32.gmra.mxu0 %v2226
        %v2673 = vpop.f32.mrf.mxu0
        %v2674 = vadd.f32 %v2537, %v2673
        %2675 = vmatmul.f32.gmra.mxu0 %v2227
        %v2676 = vpop.f32.mrf.mxu0
        %v2677 = vadd.f32 %v2540, %v2676
        %2678 = vmatmul.f32.gmra.mxu0 %v2228
        %v2679 = vpop.f32.mrf.mxu0
        %v2680 = vadd.f32 %v2543, %v2679
        %2681 = vmatmul.f32.gmra.mxu0 %v2189
        %v2682 = vpop.f32.mrf.mxu0
        %v2683 = vadd.f32 %v2546, %v2682
        %2684 = vmatmul.f32.gmra.mxu0 %v2190
        %v2685 = vpop.f32.mrf.mxu0
        %v2686 = vadd.f32 %v2549, %v2685
        %2687 = vdwg.mxu0
        %s2688 = scalar_lea.vmem [#allocation7], 384
        %v2689 = vld [vmem:[%s2688] sm:$0xff]
        %v2690 = vld [vmem:[%s2688 + $0x8] sm:$0xff]
        %v2691 = vld [vmem:[%s2688 + $0x10] sm:$0xff]
        %v2692 = vld [vmem:[%s2688 + $0x18] sm:$0xff]
        %v2693 = vld [vmem:[%s2688 + $0x20] sm:$0xff]
        %v2694 = vld [vmem:[%s2688 + $0x28] sm:$0xff]
        %v2695 = vld [vmem:[%s2688 + $0x30] sm:$0xff]
        %v2696 = vld [vmem:[%s2688 + $0x38] sm:$0xff]
        %v2697 = vld [vmem:[%s2688 + $0x40] sm:$0xff]
        %v2698 = vld [vmem:[%s2688 + $0x48] sm:$0xff]
        %v2699 = vld [vmem:[%s2688 + $0x50] sm:$0xff]
        %v2700 = vld [vmem:[%s2688 + $0x58] sm:$0xff]
        %v2701 = vld [vmem:[%s2688 + $0x60] sm:$0xff]
        %v2702 = vld [vmem:[%s2688 + $0x68] sm:$0xff]
        %v2703 = vld [vmem:[%s2688 + $0x70] sm:$0xff]
        %v2704 = vld [vmem:[%s2688 + $0x78] sm:$0xff]
        %v2705 = vld [vmem:[%s2688 + $0x80] sm:$0xff]
        %v2706 = vld [vmem:[%s2688 + $0x88] sm:$0xff]
        %v2707 = vld [vmem:[%s2688 + $0x90] sm:$0xff]
        %v2708 = vld [vmem:[%s2688 + $0x98] sm:$0xff]
        %v2709 = vld [vmem:[%s2688 + $0xa0] sm:$0xff]
        %v2710 = vld [vmem:[%s2688 + $0xa8] sm:$0xff]
        %v2711 = vld [vmem:[%s2688 + $0xb0] sm:$0xff]
        %v2712 = vld [vmem:[%s2688 + $0xb8] sm:$0xff]
        %v2713 = vld [vmem:[%s2688 + $0xc0] sm:$0xff]
        %v2714 = vld [vmem:[%s2688 + $0xc8] sm:$0xff]
        %v2715 = vld [vmem:[%s2688 + $0xd0] sm:$0xff]
        %v2716 = vld [vmem:[%s2688 + $0xd8] sm:$0xff]
        %v2717 = vld [vmem:[%s2688 + $0xe0] sm:$0xff]
        %v2718 = vld [vmem:[%s2688 + $0xe8] sm:$0xff]
        %v2719 = vld [vmem:[%s2688 + $0xf0] sm:$0xff]
        %v2720 = vld [vmem:[%s2688 + $0xf8] sm:$0xff]
        %v2721 = vld [vmem:[%s2688 + $0x100] sm:$0xff]
        %v2722 = vld [vmem:[%s2688 + $0x108] sm:$0xff]
        %v2723 = vld [vmem:[%s2688 + $0x110] sm:$0xff]
        %v2724 = vld [vmem:[%s2688 + $0x118] sm:$0xff]
        %v2725 = vld [vmem:[%s2688 + $0x120] sm:$0xff]
        %v2726 = vld [vmem:[%s2688 + $0x128] sm:$0xff]
        %v2727 = vld [vmem:[%s2688 + $0x130] sm:$0xff]
        %v2728 = vld [vmem:[%s2688 + $0x138] sm:$0xff]
        %v2729 = vld [vmem:[%s2688 + $0x140] sm:$0xff]
        %v2730 = vld [vmem:[%s2688 + $0x148] sm:$0xff]
        %v2731 = vld [vmem:[%s2688 + $0x150] sm:$0xff]
        %v2732 = vld [vmem:[%s2688 + $0x158] sm:$0xff]
        %v2733 = vld [vmem:[%s2688 + $0x160] sm:$0xff]
        %v2734 = vld [vmem:[%s2688 + $0x168] sm:$0xff]
        %v2735 = vld [vmem:[%s2688 + $0x170] sm:$0xff]
        %v2736 = vld [vmem:[%s2688 + $0x178] sm:$0xff]
        %2737 = vmatpush.msra.mxu0 %v2704
        %2738 = vmatpush.msra.mxu0 %v2703
        %2739 = vmatpush.msra.mxu0 %v2702
        %2740 = vmatpush.msra.mxu0 %v2701
        %2741 = vmatpush.msra.mxu0 %v2700
        %2742 = vmatpush.msra.mxu0 %v2699
        %2743 = vmatpush.msra.mxu0 %v2698
        %2744 = vmatpush.msra.mxu0 %v2697
        %2745 = vmatpush.msra.mxu0 %v2696
        %2746 = vmatpush.msra.mxu0 %v2695
        %2747 = vmatpush.msra.mxu0 %v2694
        %2748 = vmatpush.msra.mxu0 %v2693
        %2749 = vmatpush.msra.mxu0 %v2692
        %2750 = vmatpush.msra.mxu0 %v2691
        %2751 = vmatpush.msra.mxu0 %v2690
        %2752 = vmatpush.msra.mxu0 %v2689
        %2753 = vmatmul.f32.gmra.mxu0 %v2227
        %v2754 = vpop.f32.mrf.mxu0
        %v2755 = vadd.f32 0.0, %v2754
        %2756 = vmatmul.f32.gmra.mxu0 %v2228
        %v2757 = vpop.f32.mrf.mxu0
        %v2758 = vadd.f32 0.0, %v2757
        %2759 = vmatmul.f32.gmra.mxu0 %v2189
        %v2760 = vpop.f32.mrf.mxu0
        %v2761 = vadd.f32 0.0, %v2760
        %2762 = vmatmul.f32.gmra.mxu0 %v2190
        %v2763 = vpop.f32.mrf.mxu0
        %v2764 = vadd.f32 0.0, %v2763
        %2765 = vmatmul.f32.gmra.mxu0 %v2191
        %v2766 = vpop.f32.mrf.mxu0
        %v2767 = vadd.f32 0.0, %v2766
        %2768 = vmatmul.f32.gmra.mxu0 %v2192
        %v2769 = vpop.f32.mrf.mxu0
        %v2770 = vadd.f32 0.0, %v2769
        %2771 = vmatmul.f32.gmra.mxu0 %v2193
        %v2772 = vpop.f32.mrf.mxu0
        %v2773 = vadd.f32 0.0, %v2772
        %2774 = vmatmul.f32.gmra.mxu0 %v2194
        %v2775 = vpop.f32.mrf.mxu0
        %v2776 = vadd.f32 0.0, %v2775
        %2777 = vmatmul.f32.gmra.mxu0 %v2195
        %v2778 = vpop.f32.mrf.mxu0
        %v2779 = vadd.f32 0.0, %v2778
        %2780 = vmatmul.f32.gmra.mxu0 %v2196
        %v2781 = vpop.f32.mrf.mxu0
        %v2782 = vadd.f32 0.0, %v2781
        %2783 = vmatmul.f32.gmra.mxu0 %v2197
        %v2784 = vpop.f32.mrf.mxu0
        %v2785 = vadd.f32 0.0, %v2784
        %2786 = vmatmul.f32.gmra.mxu0 %v2198
        %v2787 = vpop.f32.mrf.mxu0
        %v2788 = vadd.f32 0.0, %v2787
        %2789 = vmatmul.f32.gmra.mxu0 %v2199
        %v2790 = vpop.f32.mrf.mxu0
        %v2791 = vadd.f32 0.0, %v2790
        %2792 = vmatmul.f32.gmra.mxu0 %v2200
        %v2793 = vpop.f32.mrf.mxu0
        %v2794 = vadd.f32 0.0, %v2793
        %2795 = vmatmul.f32.gmra.mxu0 %v2201
        %v2796 = vpop.f32.mrf.mxu0
        %v2797 = vadd.f32 0.0, %v2796
        %2798 = vmatmul.f32.gmra.mxu0 %v2202
        %v2799 = vpop.f32.mrf.mxu0
        %v2800 = vadd.f32 0.0, %v2799
        %2801 = vmatmul.f32.gmra.mxu0 %v2203
        %v2802 = vpop.f32.mrf.mxu0
        %v2803 = vadd.f32 0.0, %v2802
        %2804 = vmatmul.f32.gmra.mxu0 %v2204
        %v2805 = vpop.f32.mrf.mxu0
        %v2806 = vadd.f32 0.0, %v2805
        %2807 = vmatmul.f32.gmra.mxu0 %v2205
        %v2808 = vpop.f32.mrf.mxu0
        %v2809 = vadd.f32 0.0, %v2808
        %2810 = vmatmul.f32.gmra.mxu0 %v2206
        %v2811 = vpop.f32.mrf.mxu0
        %v2812 = vadd.f32 0.0, %v2811
        %2813 = vmatmul.f32.gmra.mxu0 %v2207
        %v2814 = vpop.f32.mrf.mxu0
        %v2815 = vadd.f32 0.0, %v2814
        %2816 = vmatmul.f32.gmra.mxu0 %v2208
        %v2817 = vpop.f32.mrf.mxu0
        %v2818 = vadd.f32 0.0, %v2817
        %2819 = vmatmul.f32.gmra.mxu0 %v2209
        %v2820 = vpop.f32.mrf.mxu0
        %v2821 = vadd.f32 0.0, %v2820
        %2822 = vmatmul.f32.gmra.mxu0 %v2210
        %v2823 = vpop.f32.mrf.mxu0
        %v2824 = vadd.f32 0.0, %v2823
        %2825 = vmatmul.f32.gmra.mxu0 %v2211
        %v2826 = vpop.f32.mrf.mxu0
        %v2827 = vadd.f32 0.0, %v2826
        %2828 = vmatmul.f32.gmra.mxu0 %v2212
        %v2829 = vpop.f32.mrf.mxu0
        %v2830 = vadd.f32 0.0, %v2829
        %2831 = vmatmul.f32.gmra.mxu0 %v2213
        %v2832 = vpop.f32.mrf.mxu0
        %v2833 = vadd.f32 0.0, %v2832
        %2834 = vmatmul.f32.gmra.mxu0 %v2214
        %v2835 = vpop.f32.mrf.mxu0
        %v2836 = vadd.f32 0.0, %v2835
        %2837 = vmatmul.f32.gmra.mxu0 %v2215
        %v2838 = vpop.f32.mrf.mxu0
        %v2839 = vadd.f32 0.0, %v2838
        %2840 = vmatmul.f32.gmra.mxu0 %v2216
        %v2841 = vpop.f32.mrf.mxu0
        %v2842 = vadd.f32 0.0, %v2841
        %2843 = vmatmul.f32.gmra.mxu0 %v2217
        %v2844 = vpop.f32.mrf.mxu0
        %v2845 = vadd.f32 0.0, %v2844
        %2846 = vmatmul.f32.gmra.mxu0 %v2218
        %v2847 = vpop.f32.mrf.mxu0
        %v2848 = vadd.f32 0.0, %v2847
        %2849 = vmatmul.f32.gmra.mxu0 %v2219
        %v2850 = vpop.f32.mrf.mxu0
        %v2851 = vadd.f32 0.0, %v2850
        %2852 = vmatmul.f32.gmra.mxu0 %v2220
        %v2853 = vpop.f32.mrf.mxu0
        %v2854 = vadd.f32 0.0, %v2853
        %2855 = vmatmul.f32.gmra.mxu0 %v2221
        %v2856 = vpop.f32.mrf.mxu0
        %v2857 = vadd.f32 0.0, %v2856
        %2858 = vmatmul.f32.gmra.mxu0 %v2222
        %v2859 = vpop.f32.mrf.mxu0
        %v2860 = vadd.f32 0.0, %v2859
        %2861 = vmatmul.f32.gmra.mxu0 %v2223
        %v2862 = vpop.f32.mrf.mxu0
        %v2863 = vadd.f32 0.0, %v2862
        %2864 = vmatmul.f32.gmra.mxu0 %v2224
        %v2865 = vpop.f32.mrf.mxu0
        %v2866 = vadd.f32 0.0, %v2865
        %2867 = vmatmul.f32.gmra.mxu0 %v2225
        %v2868 = vpop.f32.mrf.mxu0
        %v2869 = vadd.f32 0.0, %v2868
        %2870 = vmatmul.f32.gmra.mxu0 %v2226
        %v2871 = vpop.f32.mrf.mxu0
        %v2872 = vadd.f32 0.0, %v2871
        %2873 = vdwg.mxu0
        %2874 = vmatpush.msra.mxu0 %v2720
        %2875 = vmatpush.msra.mxu0 %v2719
        %2876 = vmatpush.msra.mxu0 %v2718
        %2877 = vmatpush.msra.mxu0 %v2717
        %2878 = vmatpush.msra.mxu0 %v2716
        %2879 = vmatpush.msra.mxu0 %v2715
        %2880 = vmatpush.msra.mxu0 %v2714
        %2881 = vmatpush.msra.mxu0 %v2713
        %2882 = vmatpush.msra.mxu0 %v2712
        %2883 = vmatpush.msra.mxu0 %v2711
        %2884 = vmatpush.msra.mxu0 %v2710
        %2885 = vmatpush.msra.mxu0 %v2709
        %2886 = vmatpush.msra.mxu0 %v2708
        %2887 = vmatpush.msra.mxu0 %v2707
        %2888 = vmatpush.msra.mxu0 %v2706
        %2889 = vmatpush.msra.mxu0 %v2705
        %2890 = vmatmul.f32.gmra.mxu0 %v2189
        %v2891 = vpop.f32.mrf.mxu0
        %v2892 = vadd.f32 %v2755, %v2891
        %2893 = vmatmul.f32.gmra.mxu0 %v2190
        %v2894 = vpop.f32.mrf.mxu0
        %v2895 = vadd.f32 %v2758, %v2894
        %2896 = vmatmul.f32.gmra.mxu0 %v2191
        %v2897 = vpop.f32.mrf.mxu0
        %v2898 = vadd.f32 %v2761, %v2897
        %2899 = vmatmul.f32.gmra.mxu0 %v2192
        %v2900 = vpop.f32.mrf.mxu0
        %v2901 = vadd.f32 %v2764, %v2900
        %2902 = vmatmul.f32.gmra.mxu0 %v2193
        %v2903 = vpop.f32.mrf.mxu0
        %v2904 = vadd.f32 %v2767, %v2903
        %2905 = vmatmul.f32.gmra.mxu0 %v2194
        %v2906 = vpop.f32.mrf.mxu0
        %v2907 = vadd.f32 %v2770, %v2906
        %2908 = vmatmul.f32.gmra.mxu0 %v2195
        %v2909 = vpop.f32.mrf.mxu0
        %v2910 = vadd.f32 %v2773, %v2909
        %2911 = vmatmul.f32.gmra.mxu0 %v2196
        %v2912 = vpop.f32.mrf.mxu0
        %v2913 = vadd.f32 %v2776, %v2912
        %2914 = vmatmul.f32.gmra.mxu0 %v2197
        %v2915 = vpop.f32.mrf.mxu0
        %v2916 = vadd.f32 %v2779, %v2915
        %2917 = vmatmul.f32.gmra.mxu0 %v2198
        %v2918 = vpop.f32.mrf.mxu0
        %v2919 = vadd.f32 %v2782, %v2918
        %2920 = vmatmul.f32.gmra.mxu0 %v2199
        %v2921 = vpop.f32.mrf.mxu0
        %v2922 = vadd.f32 %v2785, %v2921
        %2923 = vmatmul.f32.gmra.mxu0 %v2200
        %v2924 = vpop.f32.mrf.mxu0
        %v2925 = vadd.f32 %v2788, %v2924
        %2926 = vmatmul.f32.gmra.mxu0 %v2201
        %v2927 = vpop.f32.mrf.mxu0
        %v2928 = vadd.f32 %v2791, %v2927
        %2929 = vmatmul.f32.gmra.mxu0 %v2202
        %v2930 = vpop.f32.mrf.mxu0
        %v2931 = vadd.f32 %v2794, %v2930
        %2932 = vmatmul.f32.gmra.mxu0 %v2203
        %v2933 = vpop.f32.mrf.mxu0
        %v2934 = vadd.f32 %v2797, %v2933
        %2935 = vmatmul.f32.gmra.mxu0 %v2204
        %v2936 = vpop.f32.mrf.mxu0
        %v2937 = vadd.f32 %v2800, %v2936
        %2938 = vmatmul.f32.gmra.mxu0 %v2205
        %v2939 = vpop.f32.mrf.mxu0
        %v2940 = vadd.f32 %v2803, %v2939
        %2941 = vmatmul.f32.gmra.mxu0 %v2206
        %v2942 = vpop.f32.mrf.mxu0
        %v2943 = vadd.f32 %v2806, %v2942
        %2944 = vmatmul.f32.gmra.mxu0 %v2207
        %v2945 = vpop.f32.mrf.mxu0
        %v2946 = vadd.f32 %v2809, %v2945
        %2947 = vmatmul.f32.gmra.mxu0 %v2208
        %v2948 = vpop.f32.mrf.mxu0
        %v2949 = vadd.f32 %v2812, %v2948
        %2950 = vmatmul.f32.gmra.mxu0 %v2209
        %v2951 = vpop.f32.mrf.mxu0
        %v2952 = vadd.f32 %v2815, %v2951
        %2953 = vmatmul.f32.gmra.mxu0 %v2210
        %v2954 = vpop.f32.mrf.mxu0
        %v2955 = vadd.f32 %v2818, %v2954
        %2956 = vmatmul.f32.gmra.mxu0 %v2211
        %v2957 = vpop.f32.mrf.mxu0
        %v2958 = vadd.f32 %v2821, %v2957
        %2959 = vmatmul.f32.gmra.mxu0 %v2212
        %v2960 = vpop.f32.mrf.mxu0
        %v2961 = vadd.f32 %v2824, %v2960
        %2962 = vmatmul.f32.gmra.mxu0 %v2213
        %v2963 = vpop.f32.mrf.mxu0
        %v2964 = vadd.f32 %v2827, %v2963
        %2965 = vmatmul.f32.gmra.mxu0 %v2214
        %v2966 = vpop.f32.mrf.mxu0
        %v2967 = vadd.f32 %v2830, %v2966
        %2968 = vmatmul.f32.gmra.mxu0 %v2215
        %v2969 = vpop.f32.mrf.mxu0
        %v2970 = vadd.f32 %v2833, %v2969
        %2971 = vmatmul.f32.gmra.mxu0 %v2216
        %v2972 = vpop.f32.mrf.mxu0
        %v2973 = vadd.f32 %v2836, %v2972
        %2974 = vmatmul.f32.gmra.mxu0 %v2217
        %v2975 = vpop.f32.mrf.mxu0
        %v2976 = vadd.f32 %v2839, %v2975
        %2977 = vmatmul.f32.gmra.mxu0 %v2218
        %v2978 = vpop.f32.mrf.mxu0
        %v2979 = vadd.f32 %v2842, %v2978
        %2980 = vmatmul.f32.gmra.mxu0 %v2219
        %v2981 = vpop.f32.mrf.mxu0
        %v2982 = vadd.f32 %v2845, %v2981
        %2983 = vmatmul.f32.gmra.mxu0 %v2220
        %v2984 = vpop.f32.mrf.mxu0
        %v2985 = vadd.f32 %v2848, %v2984
        %2986 = vmatmul.f32.gmra.mxu0 %v2221
        %v2987 = vpop.f32.mrf.mxu0
        %v2988 = vadd.f32 %v2851, %v2987
        %2989 = vmatmul.f32.gmra.mxu0 %v2222
        %v2990 = vpop.f32.mrf.mxu0
        %v2991 = vadd.f32 %v2854, %v2990
        %2992 = vmatmul.f32.gmra.mxu0 %v2223
        %v2993 = vpop.f32.mrf.mxu0
        %v2994 = vadd.f32 %v2857, %v2993
        %2995 = vmatmul.f32.gmra.mxu0 %v2224
        %v2996 = vpop.f32.mrf.mxu0
        %v2997 = vadd.f32 %v2860, %v2996
        %2998 = vmatmul.f32.gmra.mxu0 %v2225
        %v2999 = vpop.f32.mrf.mxu0
        %v3000 = vadd.f32 %v2863, %v2999
        %3001 = vmatmul.f32.gmra.mxu0 %v2226
        %v3002 = vpop.f32.mrf.mxu0
        %v3003 = vadd.f32 %v2866, %v3002
        %3004 = vmatmul.f32.gmra.mxu0 %v2227
        %v3005 = vpop.f32.mrf.mxu0
        %v3006 = vadd.f32 %v2869, %v3005
        %3007 = vmatmul.f32.gmra.mxu0 %v2228
        %v3008 = vpop.f32.mrf.mxu0
        %v3009 = vadd.f32 %v2872, %v3008
        %3010 = vdwg.mxu0
        %3011 = vmatpush.msra.mxu0 %v2736
        %3012 = vmatpush.msra.mxu0 %v2735
        %3013 = vmatpush.msra.mxu0 %v2734
        %3014 = vmatpush.msra.mxu0 %v2733
        %3015 = vmatpush.msra.mxu0 %v2732
        %3016 = vmatpush.msra.mxu0 %v2731
        %3017 = vmatpush.msra.mxu0 %v2730
        %3018 = vmatpush.msra.mxu0 %v2729
        %3019 = vmatpush.msra.mxu0 %v2728
        %3020 = vmatpush.msra.mxu0 %v2727
        %3021 = vmatpush.msra.mxu0 %v2726
        %3022 = vmatpush.msra.mxu0 %v2725
        %3023 = vmatpush.msra.mxu0 %v2724
        %3024 = vmatpush.msra.mxu0 %v2723
        %3025 = vmatpush.msra.mxu0 %v2722
        %3026 = vmatpush.msra.mxu0 %v2721
        %3027 = vmatmul.f32.gmra.mxu0 %v2191
        %v3028 = vpop.f32.mrf.mxu0
        %v3029 = vadd.f32 %v2892, %v3028
        %3030 = vmatmul.f32.gmra.mxu0 %v2192
        %v3031 = vpop.f32.mrf.mxu0
        %v3032 = vadd.f32 %v2895, %v3031
        %3033 = vmatmul.f32.gmra.mxu0 %v2193
        %v3034 = vpop.f32.mrf.mxu0
        %v3035 = vadd.f32 %v2898, %v3034
        %3036 = vmatmul.f32.gmra.mxu0 %v2194
        %v3037 = vpop.f32.mrf.mxu0
        %v3038 = vadd.f32 %v2901, %v3037
        %3039 = vmatmul.f32.gmra.mxu0 %v2195
        %v3040 = vpop.f32.mrf.mxu0
        %v3041 = vadd.f32 %v2904, %v3040
        %3042 = vmatmul.f32.gmra.mxu0 %v2196
        %v3043 = vpop.f32.mrf.mxu0
        %v3044 = vadd.f32 %v2907, %v3043
        %3045 = vmatmul.f32.gmra.mxu0 %v2197
        %v3046 = vpop.f32.mrf.mxu0
        %v3047 = vadd.f32 %v2910, %v3046
        %3048 = vmatmul.f32.gmra.mxu0 %v2198
        %v3049 = vpop.f32.mrf.mxu0
        %v3050 = vadd.f32 %v2913, %v3049
        %3051 = vmatmul.f32.gmra.mxu0 %v2199
        %v3052 = vpop.f32.mrf.mxu0
        %v3053 = vadd.f32 %v2916, %v3052
        %3054 = vmatmul.f32.gmra.mxu0 %v2200
        %v3055 = vpop.f32.mrf.mxu0
        %v3056 = vadd.f32 %v2919, %v3055
        %3057 = vmatmul.f32.gmra.mxu0 %v2201
        %v3058 = vpop.f32.mrf.mxu0
        %v3059 = vadd.f32 %v2922, %v3058
        %3060 = vmatmul.f32.gmra.mxu0 %v2202
        %v3061 = vpop.f32.mrf.mxu0
        %v3062 = vadd.f32 %v2925, %v3061
        %3063 = vmatmul.f32.gmra.mxu0 %v2203
        %v3064 = vpop.f32.mrf.mxu0
        %v3065 = vadd.f32 %v2928, %v3064
        %3066 = vmatmul.f32.gmra.mxu0 %v2204
        %v3067 = vpop.f32.mrf.mxu0
        %v3068 = vadd.f32 %v2931, %v3067
        %3069 = vmatmul.f32.gmra.mxu0 %v2205
        %v3070 = vpop.f32.mrf.mxu0
        %v3071 = vadd.f32 %v2934, %v3070
        %3072 = vmatmul.f32.gmra.mxu0 %v2206
        %v3073 = vpop.f32.mrf.mxu0
        %v3074 = vadd.f32 %v2937, %v3073
        %3075 = vmatmul.f32.gmra.mxu0 %v2207
        %v3076 = vpop.f32.mrf.mxu0
        %v3077 = vadd.f32 %v2940, %v3076
        %3078 = vmatmul.f32.gmra.mxu0 %v2208
        %v3079 = vpop.f32.mrf.mxu0
        %v3080 = vadd.f32 %v2943, %v3079
        %3081 = vmatmul.f32.gmra.mxu0 %v2209
        %v3082 = vpop.f32.mrf.mxu0
        %v3083 = vadd.f32 %v2946, %v3082
        %3084 = vmatmul.f32.gmra.mxu0 %v2210
        %v3085 = vpop.f32.mrf.mxu0
        %v3086 = vadd.f32 %v2949, %v3085
        %3087 = vmatmul.f32.gmra.mxu0 %v2211
        %v3088 = vpop.f32.mrf.mxu0
        %v3089 = vadd.f32 %v2952, %v3088
        %3090 = vmatmul.f32.gmra.mxu0 %v2212
        %v3091 = vpop.f32.mrf.mxu0
        %v3092 = vadd.f32 %v2955, %v3091
        %3093 = vmatmul.f32.gmra.mxu0 %v2213
        %v3094 = vpop.f32.mrf.mxu0
        %v3095 = vadd.f32 %v2958, %v3094
        %3096 = vmatmul.f32.gmra.mxu0 %v2214
        %v3097 = vpop.f32.mrf.mxu0
        %v3098 = vadd.f32 %v2961, %v3097
        %3099 = vmatmul.f32.gmra.mxu0 %v2215
        %v3100 = vpop.f32.mrf.mxu0
        %v3101 = vadd.f32 %v2964, %v3100
        %3102 = vmatmul.f32.gmra.mxu0 %v2216
        %v3103 = vpop.f32.mrf.mxu0
        %v3104 = vadd.f32 %v2967, %v3103
        %3105 = vmatmul.f32.gmra.mxu0 %v2217
        %v3106 = vpop.f32.mrf.mxu0
        %v3107 = vadd.f32 %v2970, %v3106
        %3108 = vmatmul.f32.gmra.mxu0 %v2218
        %v3109 = vpop.f32.mrf.mxu0
        %v3110 = vadd.f32 %v2973, %v3109
        %3111 = vmatmul.f32.gmra.mxu0 %v2219
        %v3112 = vpop.f32.mrf.mxu0
        %v3113 = vadd.f32 %v2976, %v3112
        %3114 = vmatmul.f32.gmra.mxu0 %v2220
        %v3115 = vpop.f32.mrf.mxu0
        %v3116 = vadd.f32 %v2979, %v3115
        %3117 = vmatmul.f32.gmra.mxu0 %v2221
        %v3118 = vpop.f32.mrf.mxu0
        %v3119 = vadd.f32 %v2982, %v3118
        %3120 = vmatmul.f32.gmra.mxu0 %v2222
        %v3121 = vpop.f32.mrf.mxu0
        %v3122 = vadd.f32 %v2985, %v3121
        %3123 = vmatmul.f32.gmra.mxu0 %v2223
        %v3124 = vpop.f32.mrf.mxu0
        %v3125 = vadd.f32 %v2988, %v3124
        %3126 = vmatmul.f32.gmra.mxu0 %v2224
        %v3127 = vpop.f32.mrf.mxu0
        %v3128 = vadd.f32 %v2991, %v3127
        %3129 = vmatmul.f32.gmra.mxu0 %v2225
        %v3130 = vpop.f32.mrf.mxu0
        %v3131 = vadd.f32 %v2994, %v3130
        %3132 = vmatmul.f32.gmra.mxu0 %v2226
        %v3133 = vpop.f32.mrf.mxu0
        %v3134 = vadd.f32 %v2997, %v3133
        %3135 = vmatmul.f32.gmra.mxu0 %v2227
        %v3136 = vpop.f32.mrf.mxu0
        %v3137 = vadd.f32 %v3000, %v3136
        %3138 = vmatmul.f32.gmra.mxu0 %v2228
        %v3139 = vpop.f32.mrf.mxu0
        %v3140 = vadd.f32 %v3003, %v3139
        %3141 = vmatmul.f32.gmra.mxu0 %v2189
        %v3142 = vpop.f32.mrf.mxu0
        %v3143 = vadd.f32 %v3006, %v3142
        %3144 = vmatmul.f32.gmra.mxu0 %v2190
        %v3145 = vpop.f32.mrf.mxu0
        %v3146 = vadd.f32 %v3009, %v3145
        %3147 = vdwg.mxu0
        %s3148 = scalar_lea.vmem [#allocation7], 768
        %v3149 = vld [vmem:[%s3148] sm:$0xff]
        %v3150 = vld [vmem:[%s3148 + $0x8] sm:$0xff]
        %v3151 = vld [vmem:[%s3148 + $0x10] sm:$0xff]
        %v3152 = vld [vmem:[%s3148 + $0x18] sm:$0xff]
        %v3153 = vld [vmem:[%s3148 + $0x20] sm:$0xff]
        %v3154 = vld [vmem:[%s3148 + $0x28] sm:$0xff]
        %v3155 = vld [vmem:[%s3148 + $0x30] sm:$0xff]
        %v3156 = vld [vmem:[%s3148 + $0x38] sm:$0xff]
        %v3157 = vld [vmem:[%s3148 + $0x40] sm:$0xff]
        %v3158 = vld [vmem:[%s3148 + $0x48] sm:$0xff]
        %v3159 = vld [vmem:[%s3148 + $0x50] sm:$0xff]
        %v3160 = vld [vmem:[%s3148 + $0x58] sm:$0xff]
        %v3161 = vld [vmem:[%s3148 + $0x60] sm:$0xff]
        %v3162 = vld [vmem:[%s3148 + $0x68] sm:$0xff]
        %v3163 = vld [vmem:[%s3148 + $0x70] sm:$0xff]
        %v3164 = vld [vmem:[%s3148 + $0x78] sm:$0xff]
        %v3165 = vld [vmem:[%s3148 + $0x80] sm:$0xff]
        %v3166 = vld [vmem:[%s3148 + $0x88] sm:$0xff]
        %v3167 = vld [vmem:[%s3148 + $0x90] sm:$0xff]
        %v3168 = vld [vmem:[%s3148 + $0x98] sm:$0xff]
        %v3169 = vld [vmem:[%s3148 + $0xa0] sm:$0xff]
        %v3170 = vld [vmem:[%s3148 + $0xa8] sm:$0xff]
        %v3171 = vld [vmem:[%s3148 + $0xb0] sm:$0xff]
        %v3172 = vld [vmem:[%s3148 + $0xb8] sm:$0xff]
        %v3173 = vld [vmem:[%s3148 + $0xc0] sm:$0xff]
        %v3174 = vld [vmem:[%s3148 + $0xc8] sm:$0xff]
        %v3175 = vld [vmem:[%s3148 + $0xd0] sm:$0xff]
        %v3176 = vld [vmem:[%s3148 + $0xd8] sm:$0xff]
        %v3177 = vld [vmem:[%s3148 + $0xe0] sm:$0xff]
        %v3178 = vld [vmem:[%s3148 + $0xe8] sm:$0xff]
        %v3179 = vld [vmem:[%s3148 + $0xf0] sm:$0xff]
        %v3180 = vld [vmem:[%s3148 + $0xf8] sm:$0xff]
        %v3181 = vld [vmem:[%s3148 + $0x100] sm:$0xff]
        %v3182 = vld [vmem:[%s3148 + $0x108] sm:$0xff]
        %v3183 = vld [vmem:[%s3148 + $0x110] sm:$0xff]
        %v3184 = vld [vmem:[%s3148 + $0x118] sm:$0xff]
        %v3185 = vld [vmem:[%s3148 + $0x120] sm:$0xff]
        %v3186 = vld [vmem:[%s3148 + $0x128] sm:$0xff]
        %v3187 = vld [vmem:[%s3148 + $0x130] sm:$0xff]
        %v3188 = vld [vmem:[%s3148 + $0x138] sm:$0xff]
        %v3189 = vld [vmem:[%s3148 + $0x140] sm:$0xff]
        %v3190 = vld [vmem:[%s3148 + $0x148] sm:$0xff]
        %v3191 = vld [vmem:[%s3148 + $0x150] sm:$0xff]
        %v3192 = vld [vmem:[%s3148 + $0x158] sm:$0xff]
        %v3193 = vld [vmem:[%s3148 + $0x160] sm:$0xff]
        %v3194 = vld [vmem:[%s3148 + $0x168] sm:$0xff]
        %v3195 = vld [vmem:[%s3148 + $0x170] sm:$0xff]
        %v3196 = vld [vmem:[%s3148 + $0x178] sm:$0xff]
        %3197 = vmatpush.msra.mxu0 %v3164
        %3198 = vmatpush.msra.mxu0 %v3163
        %3199 = vmatpush.msra.mxu0 %v3162
        %3200 = vmatpush.msra.mxu0 %v3161
        %3201 = vmatpush.msra.mxu0 %v3160
        %3202 = vmatpush.msra.mxu0 %v3159
        %3203 = vmatpush.msra.mxu0 %v3158
        %3204 = vmatpush.msra.mxu0 %v3157
        %3205 = vmatpush.msra.mxu0 %v3156
        %3206 = vmatpush.msra.mxu0 %v3155
        %3207 = vmatpush.msra.mxu0 %v3154
        %3208 = vmatpush.msra.mxu0 %v3153
        %3209 = vmatpush.msra.mxu0 %v3152
        %3210 = vmatpush.msra.mxu0 %v3151
        %3211 = vmatpush.msra.mxu0 %v3150
        %3212 = vmatpush.msra.mxu0 %v3149
        %3213 = vmatmul.f32.gmra.mxu0 %v2227
        %v3214 = vpop.f32.mrf.mxu0
        %v3215 = vadd.f32 0.0, %v3214
        %3216 = vmatmul.f32.gmra.mxu0 %v2228
        %v3217 = vpop.f32.mrf.mxu0
        %v3218 = vadd.f32 0.0, %v3217
        %3219 = vmatmul.f32.gmra.mxu0 %v2189
        %v3220 = vpop.f32.mrf.mxu0
        %v3221 = vadd.f32 0.0, %v3220
        %3222 = vmatmul.f32.gmra.mxu0 %v2190
        %v3223 = vpop.f32.mrf.mxu0
        %v3224 = vadd.f32 0.0, %v3223
        %3225 = vmatmul.f32.gmra.mxu0 %v2191
        %v3226 = vpop.f32.mrf.mxu0
        %v3227 = vadd.f32 0.0, %v3226
        %3228 = vmatmul.f32.gmra.mxu0 %v2192
        %v3229 = vpop.f32.mrf.mxu0
        %v3230 = vadd.f32 0.0, %v3229
        %3231 = vmatmul.f32.gmra.mxu0 %v2193
        %v3232 = vpop.f32.mrf.mxu0
        %v3233 = vadd.f32 0.0, %v3232
        %3234 = vmatmul.f32.gmra.mxu0 %v2194
        %v3235 = vpop.f32.mrf.mxu0
        %v3236 = vadd.f32 0.0, %v3235
        %3237 = vmatmul.f32.gmra.mxu0 %v2195
        %v3238 = vpop.f32.mrf.mxu0
        %v3239 = vadd.f32 0.0, %v3238
        %3240 = vmatmul.f32.gmra.mxu0 %v2196
        %v3241 = vpop.f32.mrf.mxu0
        %v3242 = vadd.f32 0.0, %v3241
        %3243 = vmatmul.f32.gmra.mxu0 %v2197
        %v3244 = vpop.f32.mrf.mxu0
        %v3245 = vadd.f32 0.0, %v3244
        %3246 = vmatmul.f32.gmra.mxu0 %v2198
        %v3247 = vpop.f32.mrf.mxu0
        %v3248 = vadd.f32 0.0, %v3247
        %3249 = vmatmul.f32.gmra.mxu0 %v2199
        %v3250 = vpop.f32.mrf.mxu0
        %v3251 = vadd.f32 0.0, %v3250
        %3252 = vmatmul.f32.gmra.mxu0 %v2200
        %v3253 = vpop.f32.mrf.mxu0
        %v3254 = vadd.f32 0.0, %v3253
        %3255 = vmatmul.f32.gmra.mxu0 %v2201
        %v3256 = vpop.f32.mrf.mxu0
        %v3257 = vadd.f32 0.0, %v3256
        %3258 = vmatmul.f32.gmra.mxu0 %v2202
        %v3259 = vpop.f32.mrf.mxu0
        %v3260 = vadd.f32 0.0, %v3259
        %3261 = vmatmul.f32.gmra.mxu0 %v2203
        %v3262 = vpop.f32.mrf.mxu0
        %v3263 = vadd.f32 0.0, %v3262
        %3264 = vmatmul.f32.gmra.mxu0 %v2204
        %v3265 = vpop.f32.mrf.mxu0
        %v3266 = vadd.f32 0.0, %v3265
        %3267 = vmatmul.f32.gmra.mxu0 %v2205
        %v3268 = vpop.f32.mrf.mxu0
        %v3269 = vadd.f32 0.0, %v3268
        %3270 = vmatmul.f32.gmra.mxu0 %v2206
        %v3271 = vpop.f32.mrf.mxu0
        %v3272 = vadd.f32 0.0, %v3271
        %3273 = vmatmul.f32.gmra.mxu0 %v2207
        %v3274 = vpop.f32.mrf.mxu0
        %v3275 = vadd.f32 0.0, %v3274
        %3276 = vmatmul.f32.gmra.mxu0 %v2208
        %v3277 = vpop.f32.mrf.mxu0
        %v3278 = vadd.f32 0.0, %v3277
        %3279 = vmatmul.f32.gmra.mxu0 %v2209
        %v3280 = vpop.f32.mrf.mxu0
        %v3281 = vadd.f32 0.0, %v3280
        %3282 = vmatmul.f32.gmra.mxu0 %v2210
        %v3283 = vpop.f32.mrf.mxu0
        %v3284 = vadd.f32 0.0, %v3283
        %3285 = vmatmul.f32.gmra.mxu0 %v2211
        %v3286 = vpop.f32.mrf.mxu0
        %v3287 = vadd.f32 0.0, %v3286
        %3288 = vmatmul.f32.gmra.mxu0 %v2212
        %v3289 = vpop.f32.mrf.mxu0
        %v3290 = vadd.f32 0.0, %v3289
        %3291 = vmatmul.f32.gmra.mxu0 %v2213
        %v3292 = vpop.f32.mrf.mxu0
        %v3293 = vadd.f32 0.0, %v3292
        %3294 = vmatmul.f32.gmra.mxu0 %v2214
        %v3295 = vpop.f32.mrf.mxu0
        %v3296 = vadd.f32 0.0, %v3295
        %3297 = vmatmul.f32.gmra.mxu0 %v2215
        %v3298 = vpop.f32.mrf.mxu0
        %v3299 = vadd.f32 0.0, %v3298
        %3300 = vmatmul.f32.gmra.mxu0 %v2216
        %v3301 = vpop.f32.mrf.mxu0
        %v3302 = vadd.f32 0.0, %v3301
        %3303 = vmatmul.f32.gmra.mxu0 %v2217
        %v3304 = vpop.f32.mrf.mxu0
        %v3305 = vadd.f32 0.0, %v3304
        %3306 = vmatmul.f32.gmra.mxu0 %v2218
        %v3307 = vpop.f32.mrf.mxu0
        %v3308 = vadd.f32 0.0, %v3307
        %3309 = vmatmul.f32.gmra.mxu0 %v2219
        %v3310 = vpop.f32.mrf.mxu0
        %v3311 = vadd.f32 0.0, %v3310
        %3312 = vmatmul.f32.gmra.mxu0 %v2220
        %v3313 = vpop.f32.mrf.mxu0
        %v3314 = vadd.f32 0.0, %v3313
        %3315 = vmatmul.f32.gmra.mxu0 %v2221
        %v3316 = vpop.f32.mrf.mxu0
        %v3317 = vadd.f32 0.0, %v3316
        %3318 = vmatmul.f32.gmra.mxu0 %v2222
        %v3319 = vpop.f32.mrf.mxu0
        %v3320 = vadd.f32 0.0, %v3319
        %3321 = vmatmul.f32.gmra.mxu0 %v2223
        %v3322 = vpop.f32.mrf.mxu0
        %v3323 = vadd.f32 0.0, %v3322
        %3324 = vmatmul.f32.gmra.mxu0 %v2224
        %v3325 = vpop.f32.mrf.mxu0
        %v3326 = vadd.f32 0.0, %v3325
        %3327 = vmatmul.f32.gmra.mxu0 %v2225
        %v3328 = vpop.f32.mrf.mxu0
        %v3329 = vadd.f32 0.0, %v3328
        %3330 = vmatmul.f32.gmra.mxu0 %v2226
        %v3331 = vpop.f32.mrf.mxu0
        %v3332 = vadd.f32 0.0, %v3331
        %3333 = vdwg.mxu0
        %3334 = vmatpush.msra.mxu0 %v3180
        %3335 = vmatpush.msra.mxu0 %v3179
        %3336 = vmatpush.msra.mxu0 %v3178
        %3337 = vmatpush.msra.mxu0 %v3177
        %3338 = vmatpush.msra.mxu0 %v3176
        %3339 = vmatpush.msra.mxu0 %v3175
        %3340 = vmatpush.msra.mxu0 %v3174
        %3341 = vmatpush.msra.mxu0 %v3173
        %3342 = vmatpush.msra.mxu0 %v3172
        %3343 = vmatpush.msra.mxu0 %v3171
        %3344 = vmatpush.msra.mxu0 %v3170
        %3345 = vmatpush.msra.mxu0 %v3169
        %3346 = vmatpush.msra.mxu0 %v3168
        %3347 = vmatpush.msra.mxu0 %v3167
        %3348 = vmatpush.msra.mxu0 %v3166
        %3349 = vmatpush.msra.mxu0 %v3165
        %3350 = vmatmul.f32.gmra.mxu0 %v2189
        %v3351 = vpop.f32.mrf.mxu0
        %v3352 = vadd.f32 %v3215, %v3351
        %3353 = vmatmul.f32.gmra.mxu0 %v2190
        %v3354 = vpop.f32.mrf.mxu0
        %v3355 = vadd.f32 %v3218, %v3354
        %3356 = vmatmul.f32.gmra.mxu0 %v2191
        %v3357 = vpop.f32.mrf.mxu0
        %v3358 = vadd.f32 %v3221, %v3357
        %3359 = vmatmul.f32.gmra.mxu0 %v2192
        %v3360 = vpop.f32.mrf.mxu0
        %v3361 = vadd.f32 %v3224, %v3360
        %3362 = vmatmul.f32.gmra.mxu0 %v2193
        %v3363 = vpop.f32.mrf.mxu0
        %v3364 = vadd.f32 %v3227, %v3363
        %3365 = vmatmul.f32.gmra.mxu0 %v2194
        %v3366 = vpop.f32.mrf.mxu0
        %v3367 = vadd.f32 %v3230, %v3366
        %3368 = vmatmul.f32.gmra.mxu0 %v2195
        %v3369 = vpop.f32.mrf.mxu0
        %v3370 = vadd.f32 %v3233, %v3369
        %3371 = vmatmul.f32.gmra.mxu0 %v2196
        %v3372 = vpop.f32.mrf.mxu0
        %v3373 = vadd.f32 %v3236, %v3372
        %3374 = vmatmul.f32.gmra.mxu0 %v2197
        %v3375 = vpop.f32.mrf.mxu0
        %v3376 = vadd.f32 %v3239, %v3375
        %3377 = vmatmul.f32.gmra.mxu0 %v2198
        %v3378 = vpop.f32.mrf.mxu0
        %v3379 = vadd.f32 %v3242, %v3378
        %3380 = vmatmul.f32.gmra.mxu0 %v2199
        %v3381 = vpop.f32.mrf.mxu0
        %v3382 = vadd.f32 %v3245, %v3381
        %3383 = vmatmul.f32.gmra.mxu0 %v2200
        %v3384 = vpop.f32.mrf.mxu0
        %v3385 = vadd.f32 %v3248, %v3384
        %3386 = vmatmul.f32.gmra.mxu0 %v2201
        %v3387 = vpop.f32.mrf.mxu0
        %v3388 = vadd.f32 %v3251, %v3387
        %3389 = vmatmul.f32.gmra.mxu0 %v2202
        %v3390 = vpop.f32.mrf.mxu0
        %v3391 = vadd.f32 %v3254, %v3390
        %3392 = vmatmul.f32.gmra.mxu0 %v2203
        %v3393 = vpop.f32.mrf.mxu0
        %v3394 = vadd.f32 %v3257, %v3393
        %3395 = vmatmul.f32.gmra.mxu0 %v2204
        %v3396 = vpop.f32.mrf.mxu0
        %v3397 = vadd.f32 %v3260, %v3396
        %3398 = vmatmul.f32.gmra.mxu0 %v2205
        %v3399 = vpop.f32.mrf.mxu0
        %v3400 = vadd.f32 %v3263, %v3399
        %3401 = vmatmul.f32.gmra.mxu0 %v2206
        %v3402 = vpop.f32.mrf.mxu0
        %v3403 = vadd.f32 %v3266, %v3402
        %3404 = vmatmul.f32.gmra.mxu0 %v2207
        %v3405 = vpop.f32.mrf.mxu0
        %v3406 = vadd.f32 %v3269, %v3405
        %3407 = vmatmul.f32.gmra.mxu0 %v2208
        %v3408 = vpop.f32.mrf.mxu0
        %v3409 = vadd.f32 %v3272, %v3408
        %3410 = vmatmul.f32.gmra.mxu0 %v2209
        %v3411 = vpop.f32.mrf.mxu0
        %v3412 = vadd.f32 %v3275, %v3411
        %3413 = vmatmul.f32.gmra.mxu0 %v2210
        %v3414 = vpop.f32.mrf.mxu0
        %v3415 = vadd.f32 %v3278, %v3414
        %3416 = vmatmul.f32.gmra.mxu0 %v2211
        %v3417 = vpop.f32.mrf.mxu0
        %v3418 = vadd.f32 %v3281, %v3417
        %3419 = vmatmul.f32.gmra.mxu0 %v2212
        %v3420 = vpop.f32.mrf.mxu0
        %v3421 = vadd.f32 %v3284, %v3420
        %3422 = vmatmul.f32.gmra.mxu0 %v2213
        %v3423 = vpop.f32.mrf.mxu0
        %v3424 = vadd.f32 %v3287, %v3423
        %3425 = vmatmul.f32.gmra.mxu0 %v2214
        %v3426 = vpop.f32.mrf.mxu0
        %v3427 = vadd.f32 %v3290, %v3426
        %3428 = vmatmul.f32.gmra.mxu0 %v2215
        %v3429 = vpop.f32.mrf.mxu0
        %v3430 = vadd.f32 %v3293, %v3429
        %3431 = vmatmul.f32.gmra.mxu0 %v2216
        %v3432 = vpop.f32.mrf.mxu0
        %v3433 = vadd.f32 %v3296, %v3432
        %3434 = vmatmul.f32.gmra.mxu0 %v2217
        %v3435 = vpop.f32.mrf.mxu0
        %v3436 = vadd.f32 %v3299, %v3435
        %3437 = vmatmul.f32.gmra.mxu0 %v2218
        %v3438 = vpop.f32.mrf.mxu0
        %v3439 = vadd.f32 %v3302, %v3438
        %3440 = vmatmul.f32.gmra.mxu0 %v2219
        %v3441 = vpop.f32.mrf.mxu0
        %v3442 = vadd.f32 %v3305, %v3441
        %3443 = vmatmul.f32.gmra.mxu0 %v2220
        %v3444 = vpop.f32.mrf.mxu0
        %v3445 = vadd.f32 %v3308, %v3444
        %3446 = vmatmul.f32.gmra.mxu0 %v2221
        %v3447 = vpop.f32.mrf.mxu0
        %v3448 = vadd.f32 %v3311, %v3447
        %3449 = vmatmul.f32.gmra.mxu0 %v2222
        %v3450 = vpop.f32.mrf.mxu0
        %v3451 = vadd.f32 %v3314, %v3450
        %3452 = vmatmul.f32.gmra.mxu0 %v2223
        %v3453 = vpop.f32.mrf.mxu0
        %v3454 = vadd.f32 %v3317, %v3453
        %3455 = vmatmul.f32.gmra.mxu0 %v2224
        %v3456 = vpop.f32.mrf.mxu0
        %v3457 = vadd.f32 %v3320, %v3456
        %3458 = vmatmul.f32.gmra.mxu0 %v2225
        %v3459 = vpop.f32.mrf.mxu0
        %v3460 = vadd.f32 %v3323, %v3459
        %3461 = vmatmul.f32.gmra.mxu0 %v2226
        %v3462 = vpop.f32.mrf.mxu0
        %v3463 = vadd.f32 %v3326, %v3462
        %3464 = vmatmul.f32.gmra.mxu0 %v2227
        %v3465 = vpop.f32.mrf.mxu0
        %v3466 = vadd.f32 %v3329, %v3465
        %3467 = vmatmul.f32.gmra.mxu0 %v2228
        %v3468 = vpop.f32.mrf.mxu0
        %v3469 = vadd.f32 %v3332, %v3468
        %3470 = vdwg.mxu0
        %3471 = vmatpush.msra.mxu0 %v3196
        %3472 = vmatpush.msra.mxu0 %v3195
        %3473 = vmatpush.msra.mxu0 %v3194
        %3474 = vmatpush.msra.mxu0 %v3193
        %3475 = vmatpush.msra.mxu0 %v3192
        %3476 = vmatpush.msra.mxu0 %v3191
        %3477 = vmatpush.msra.mxu0 %v3190
        %3478 = vmatpush.msra.mxu0 %v3189
        %3479 = vmatpush.msra.mxu0 %v3188
        %3480 = vmatpush.msra.mxu0 %v3187
        %3481 = vmatpush.msra.mxu0 %v3186
        %3482 = vmatpush.msra.mxu0 %v3185
        %3483 = vmatpush.msra.mxu0 %v3184
        %3484 = vmatpush.msra.mxu0 %v3183
        %3485 = vmatpush.msra.mxu0 %v3182
        %3486 = vmatpush.msra.mxu0 %v3181
        %3487 = vmatmul.f32.gmra.mxu0 %v2191
        %v3488 = vpop.f32.mrf.mxu0
        %v3489 = vadd.f32 %v3352, %v3488
        %3490 = vmatmul.f32.gmra.mxu0 %v2192
        %v3491 = vpop.f32.mrf.mxu0
        %v3492 = vadd.f32 %v3355, %v3491
        %3493 = vmatmul.f32.gmra.mxu0 %v2193
        %v3494 = vpop.f32.mrf.mxu0
        %v3495 = vadd.f32 %v3358, %v3494
        %3496 = vmatmul.f32.gmra.mxu0 %v2194
        %v3497 = vpop.f32.mrf.mxu0
        %v3498 = vadd.f32 %v3361, %v3497
        %3499 = vmatmul.f32.gmra.mxu0 %v2195
        %v3500 = vpop.f32.mrf.mxu0
        %v3501 = vadd.f32 %v3364, %v3500
        %3502 = vmatmul.f32.gmra.mxu0 %v2196
        %v3503 = vpop.f32.mrf.mxu0
        %v3504 = vadd.f32 %v3367, %v3503
        %3505 = vmatmul.f32.gmra.mxu0 %v2197
        %v3506 = vpop.f32.mrf.mxu0
        %v3507 = vadd.f32 %v3370, %v3506
        %3508 = vmatmul.f32.gmra.mxu0 %v2198
        %v3509 = vpop.f32.mrf.mxu0
        %v3510 = vadd.f32 %v3373, %v3509
        %3511 = vmatmul.f32.gmra.mxu0 %v2199
        %v3512 = vpop.f32.mrf.mxu0
        %v3513 = vadd.f32 %v3376, %v3512
        %3514 = vmatmul.f32.gmra.mxu0 %v2200
        %v3515 = vpop.f32.mrf.mxu0
        %v3516 = vadd.f32 %v3379, %v3515
        %3517 = vmatmul.f32.gmra.mxu0 %v2201
        %v3518 = vpop.f32.mrf.mxu0
        %v3519 = vadd.f32 %v3382, %v3518
        %3520 = vmatmul.f32.gmra.mxu0 %v2202
        %v3521 = vpop.f32.mrf.mxu0
        %v3522 = vadd.f32 %v3385, %v3521
        %3523 = vmatmul.f32.gmra.mxu0 %v2203
        %v3524 = vpop.f32.mrf.mxu0
        %v3525 = vadd.f32 %v3388, %v3524
        %3526 = vmatmul.f32.gmra.mxu0 %v2204
        %v3527 = vpop.f32.mrf.mxu0
        %v3528 = vadd.f32 %v3391, %v3527
        %3529 = vmatmul.f32.gmra.mxu0 %v2205
        %v3530 = vpop.f32.mrf.mxu0
        %v3531 = vadd.f32 %v3394, %v3530
        %3532 = vmatmul.f32.gmra.mxu0 %v2206
        %v3533 = vpop.f32.mrf.mxu0
        %v3534 = vadd.f32 %v3397, %v3533
        %3535 = vmatmul.f32.gmra.mxu0 %v2207
        %v3536 = vpop.f32.mrf.mxu0
        %v3537 = vadd.f32 %v3400, %v3536
        %3538 = vmatmul.f32.gmra.mxu0 %v2208
        %v3539 = vpop.f32.mrf.mxu0
        %v3540 = vadd.f32 %v3403, %v3539
        %3541 = vmatmul.f32.gmra.mxu0 %v2209
        %v3542 = vpop.f32.mrf.mxu0
        %v3543 = vadd.f32 %v3406, %v3542
        %3544 = vmatmul.f32.gmra.mxu0 %v2210
        %v3545 = vpop.f32.mrf.mxu0
        %v3546 = vadd.f32 %v3409, %v3545
        %3547 = vmatmul.f32.gmra.mxu0 %v2211
        %v3548 = vpop.f32.mrf.mxu0
        %v3549 = vadd.f32 %v3412, %v3548
        %3550 = vmatmul.f32.gmra.mxu0 %v2212
        %v3551 = vpop.f32.mrf.mxu0
        %v3552 = vadd.f32 %v3415, %v3551
        %3553 = vmatmul.f32.gmra.mxu0 %v2213
        %v3554 = vpop.f32.mrf.mxu0
        %v3555 = vadd.f32 %v3418, %v3554
        %3556 = vmatmul.f32.gmra.mxu0 %v2214
        %v3557 = vpop.f32.mrf.mxu0
        %v3558 = vadd.f32 %v3421, %v3557
        %3559 = vmatmul.f32.gmra.mxu0 %v2215
        %v3560 = vpop.f32.mrf.mxu0
        %v3561 = vadd.f32 %v3424, %v3560
        %3562 = vmatmul.f32.gmra.mxu0 %v2216
        %v3563 = vpop.f32.mrf.mxu0
        %v3564 = vadd.f32 %v3427, %v3563
        %3565 = vmatmul.f32.gmra.mxu0 %v2217
        %v3566 = vpop.f32.mrf.mxu0
        %v3567 = vadd.f32 %v3430, %v3566
        %3568 = vmatmul.f32.gmra.mxu0 %v2218
        %v3569 = vpop.f32.mrf.mxu0
        %v3570 = vadd.f32 %v3433, %v3569
        %3571 = vmatmul.f32.gmra.mxu0 %v2219
        %v3572 = vpop.f32.mrf.mxu0
        %v3573 = vadd.f32 %v3436, %v3572
        %3574 = vmatmul.f32.gmra.mxu0 %v2220
        %v3575 = vpop.f32.mrf.mxu0
        %v3576 = vadd.f32 %v3439, %v3575
        %3577 = vmatmul.f32.gmra.mxu0 %v2221
        %v3578 = vpop.f32.mrf.mxu0
        %v3579 = vadd.f32 %v3442, %v3578
        %3580 = vmatmul.f32.gmra.mxu0 %v2222
        %v3581 = vpop.f32.mrf.mxu0
        %v3582 = vadd.f32 %v3445, %v3581
        %3583 = vmatmul.f32.gmra.mxu0 %v2223
        %v3584 = vpop.f32.mrf.mxu0
        %v3585 = vadd.f32 %v3448, %v3584
        %3586 = vmatmul.f32.gmra.mxu0 %v2224
        %v3587 = vpop.f32.mrf.mxu0
        %v3588 = vadd.f32 %v3451, %v3587
        %3589 = vmatmul.f32.gmra.mxu0 %v2225
        %v3590 = vpop.f32.mrf.mxu0
        %v3591 = vadd.f32 %v3454, %v3590
        %3592 = vmatmul.f32.gmra.mxu0 %v2226
        %v3593 = vpop.f32.mrf.mxu0
        %v3594 = vadd.f32 %v3457, %v3593
        %3595 = vmatmul.f32.gmra.mxu0 %v2227
        %v3596 = vpop.f32.mrf.mxu0
        %v3597 = vadd.f32 %v3460, %v3596
        %3598 = vmatmul.f32.gmra.mxu0 %v2228
        %v3599 = vpop.f32.mrf.mxu0
        %v3600 = vadd.f32 %v3463, %v3599
        %3601 = vmatmul.f32.gmra.mxu0 %v2189
        %v3602 = vpop.f32.mrf.mxu0
        %v3603 = vadd.f32 %v3466, %v3602
        %3604 = vmatmul.f32.gmra.mxu0 %v2190
        %v3605 = vpop.f32.mrf.mxu0
        %v3606 = vadd.f32 %v3469, %v3605
        %3607 = vdwg.mxu0
        %v3608 = vrot.slane %v2569, 7
        %v3609 = vrot.slane %v2572, 7
        %v3610 = vrot.slane %v2575, 7
        %v3611 = vrot.slane %v2578, 7
        %v3612 = vrot.slane %v2581, 7
        %v3613 = vrot.slane %v2584, 7
        %v3614 = vrot.slane %v2587, 7
        %v3615 = vrot.slane %v2590, 7
        %v3616 = vrot.slane %v2593, 7
        %v3617 = vrot.slane %v2596, 7
        %v3618 = vrot.slane %v2599, 7
        %v3619 = vrot.slane %v2602, 7
        %v3620 = vrot.slane %v2605, 7
        %v3621 = vrot.slane %v2608, 7
        %v3622 = vrot.slane %v2611, 7
        %v3623 = vrot.slane %v2614, 7
        %v3624 = vrot.slane %v2617, 7
        %v3625 = vrot.slane %v2620, 7
        %v3626 = vrot.slane %v2623, 7
        %v3627 = vrot.slane %v2626, 7
        %v3628 = vrot.slane %v2629, 7
        %v3629 = vrot.slane %v2632, 7
        %v3630 = vrot.slane %v2635, 7
        %v3631 = vrot.slane %v2638, 7
        %v3632 = vrot.slane %v2641, 7
        %v3633 = vrot.slane %v2644, 7
        %v3634 = vrot.slane %v2647, 7
        %v3635 = vrot.slane %v2650, 7
        %v3636 = vrot.slane %v2653, 7
        %v3637 = vrot.slane %v2656, 7
        %v3638 = vrot.slane %v2659, 7
        %v3639 = vrot.slane %v2662, 7
        %v3640 = vrot.slane %v2665, 7
        %v3641 = vrot.slane %v2668, 7
        %v3642 = vrot.slane %v2671, 7
        %v3643 = vrot.slane %v2674, 7
        %v3644 = vrot.slane %v2677, 7
        %v3645 = vrot.slane %v2680, 7
        %v3646 = vrot.slane %v2683, 7
        %v3647 = vrot.slane %v2686, 7
        %v3648 = vsel %vm1859, %v3646, %v3647
        %v3649 = vsel %vm1859, %v3645, %v3646
        %v3650 = vsel %vm1859, %v3644, %v3645
        %v3651 = vsel %vm1859, %v3643, %v3644
        %v3652 = vsel %vm1859, %v3642, %v3643
        %v3653 = vsel %vm1859, %v3641, %v3642
        %v3654 = vsel %vm1859, %v3640, %v3641
        %v3655 = vsel %vm1859, %v3639, %v3640
        %v3656 = vsel %vm1859, %v3638, %v3639
        %v3657 = vsel %vm1859, %v3637, %v3638
        %v3658 = vsel %vm1859, %v3636, %v3637
        %v3659 = vsel %vm1859, %v3635, %v3636
        %v3660 = vsel %vm1859, %v3634, %v3635
        %v3661 = vsel %vm1859, %v3633, %v3634
        %v3662 = vsel %vm1859, %v3632, %v3633
        %v3663 = vsel %vm1859, %v3631, %v3632
        %v3664 = vsel %vm1859, %v3630, %v3631
        %v3665 = vsel %vm1859, %v3629, %v3630
        %v3666 = vsel %vm1859, %v3628, %v3629
        %v3667 = vsel %vm1859, %v3627, %v3628
        %v3668 = vsel %vm1859, %v3626, %v3627
        %v3669 = vsel %vm1859, %v3625, %v3626
        %v3670 = vsel %vm1859, %v3624, %v3625
        %v3671 = vsel %vm1859, %v3623, %v3624
        %v3672 = vsel %vm1859, %v3622, %v3623
        %v3673 = vsel %vm1859, %v3621, %v3622
        %v3674 = vsel %vm1859, %v3620, %v3621
        %v3675 = vsel %vm1859, %v3619, %v3620
        %v3676 = vsel %vm1859, %v3618, %v3619
        %v3677 = vsel %vm1859, %v3617, %v3618
        %v3678 = vsel %vm1859, %v3616, %v3617
        %v3679 = vsel %vm1859, %v3615, %v3616
        %v3680 = vsel %vm1859, %v3614, %v3615
        %v3681 = vsel %vm1859, %v3613, %v3614
        %v3682 = vsel %vm1859, %v3612, %v3613
        %v3683 = vsel %vm1859, %v3611, %v3612
        %v3684 = vsel %vm1859, %v3610, %v3611
        %v3685 = vsel %vm1859, %v3609, %v3610
        %v3686 = vsel %vm1859, %v3608, %v3609
        %v3687 = vsel %vm1859, %v3647, %v3608
        %v3688 = vadd.f32 %v3687, %v3029
        %v3689 = vadd.f32 %v3686, %v3032
        %v3690 = vadd.f32 %v3685, %v3035
        %v3691 = vadd.f32 %v3684, %v3038
        %v3692 = vadd.f32 %v3683, %v3041
        %v3693 = vadd.f32 %v3682, %v3044
        %v3694 = vadd.f32 %v3681, %v3047
        %v3695 = vadd.f32 %v3680, %v3050
        %v3696 = vadd.f32 %v3679, %v3053
        %v3697 = vadd.f32 %v3678, %v3056
        %v3698 = vadd.f32 %v3677, %v3059
        %v3699 = vadd.f32 %v3676, %v3062
        %v3700 = vadd.f32 %v3675, %v3065
        %v3701 = vadd.f32 %v3674, %v3068
        %v3702 = vadd.f32 %v3673, %v3071
        %v3703 = vadd.f32 %v3672, %v3074
        %v3704 = vadd.f32 %v3671, %v3077
        %v3705 = vadd.f32 %v3670, %v3080
        %v3706 = vadd.f32 %v3669, %v3083
        %v3707 = vadd.f32 %v3668, %v3086
        %v3708 = vadd.f32 %v3667, %v3089
        %v3709 = vadd.f32 %v3666, %v3092
        %v3710 = vadd.f32 %v3665, %v3095
        %v3711 = vadd.f32 %v3664, %v3098
        %v3712 = vadd.f32 %v3663, %v3101
        %v3713 = vadd.f32 %v3662, %v3104
        %v3714 = vadd.f32 %v3661, %v3107
        %v3715 = vadd.f32 %v3660, %v3110
        %v3716 = vadd.f32 %v3659, %v3113
        %v3717 = vadd.f32 %v3658, %v3116
        %v3718 = vadd.f32 %v3657, %v3119
        %v3719 = vadd.f32 %v3656, %v3122
        %v3720 = vadd.f32 %v3655, %v3125
        %v3721 = vadd.f32 %v3654, %v3128
        %v3722 = vadd.f32 %v3653, %v3131
        %v3723 = vadd.f32 %v3652, %v3134
        %v3724 = vadd.f32 %v3651, %v3137
        %v3725 = vadd.f32 %v3650, %v3140
        %v3726 = vadd.f32 %v3649, %v3143
        %v3727 = vadd.f32 %v3648, %v3146
        %v3728 = vrot.slane %v3489, 1
        %v3729 = vrot.slane %v3492, 1
        %v3730 = vrot.slane %v3495, 1
        %v3731 = vrot.slane %v3498, 1
        %v3732 = vrot.slane %v3501, 1
        %v3733 = vrot.slane %v3504, 1
        %v3734 = vrot.slane %v3507, 1
        %v3735 = vrot.slane %v3510, 1
        %v3736 = vrot.slane %v3513, 1
        %v3737 = vrot.slane %v3516, 1
        %v3738 = vrot.slane %v3519, 1
        %v3739 = vrot.slane %v3522, 1
        %v3740 = vrot.slane %v3525, 1
        %v3741 = vrot.slane %v3528, 1
        %v3742 = vrot.slane %v3531, 1
        %v3743 = vrot.slane %v3534, 1
        %v3744 = vrot.slane %v3537, 1
        %v3745 = vrot.slane %v3540, 1
        %v3746 = vrot.slane %v3543, 1
        %v3747 = vrot.slane %v3546, 1
        %v3748 = vrot.slane %v3549, 1
        %v3749 = vrot.slane %v3552, 1
        %v3750 = vrot.slane %v3555, 1
        %v3751 = vrot.slane %v3558, 1
        %v3752 = vrot.slane %v3561, 1
        %v3753 = vrot.slane %v3564, 1
        %v3754 = vrot.slane %v3567, 1
        %v3755 = vrot.slane %v3570, 1
        %v3756 = vrot.slane %v3573, 1
        %v3757 = vrot.slane %v3576, 1
        %v3758 = vrot.slane %v3579, 1
        %v3759 = vrot.slane %v3582, 1
        %v3760 = vrot.slane %v3585, 1
        %v3761 = vrot.slane %v3588, 1
        %v3762 = vrot.slane %v3591, 1
        %v3763 = vrot.slane %v3594, 1
        %v3764 = vrot.slane %v3597, 1
        %v3765 = vrot.slane %v3600, 1
        %v3766 = vrot.slane %v3603, 1
        %v3767 = vrot.slane %v3606, 1
        %v3768 = vsel %vm1980, %v3766, %v3767
        %v3769 = vsel %vm1980, %v3765, %v3766
        %v3770 = vsel %vm1980, %v3764, %v3765
        %v3771 = vsel %vm1980, %v3763, %v3764
        %v3772 = vsel %vm1980, %v3762, %v3763
        %v3773 = vsel %vm1980, %v3761, %v3762
        %v3774 = vsel %vm1980, %v3760, %v3761
        %v3775 = vsel %vm1980, %v3759, %v3760
        %v3776 = vsel %vm1980, %v3758, %v3759
        %v3777 = vsel %vm1980, %v3757, %v3758
        %v3778 = vsel %vm1980, %v3756, %v3757
        %v3779 = vsel %vm1980, %v3755, %v3756
        %v3780 = vsel %vm1980, %v3754, %v3755
        %v3781 = vsel %vm1980, %v3753, %v3754
        %v3782 = vsel %vm1980, %v3752, %v3753
        %v3783 = vsel %vm1980, %v3751, %v3752
        %v3784 = vsel %vm1980, %v3750, %v3751
        %v3785 = vsel %vm1980, %v3749, %v3750
        %v3786 = vsel %vm1980, %v3748, %v3749
        %v3787 = vsel %vm1980, %v3747, %v3748
        %v3788 = vsel %vm1980, %v3746, %v3747
        %v3789 = vsel %vm1980, %v3745, %v3746
        %v3790 = vsel %vm1980, %v3744, %v3745
        %v3791 = vsel %vm1980, %v3743, %v3744
        %v3792 = vsel %vm1980, %v3742, %v3743
        %v3793 = vsel %vm1980, %v3741, %v3742
        %v3794 = vsel %vm1980, %v3740, %v3741
        %v3795 = vsel %vm1980, %v3739, %v3740
        %v3796 = vsel %vm1980, %v3738, %v3739
        %v3797 = vsel %vm1980, %v3737, %v3738
        %v3798 = vsel %vm1980, %v3736, %v3737
        %v3799 = vsel %vm1980, %v3735, %v3736
        %v3800 = vsel %vm1980, %v3734, %v3735
        %v3801 = vsel %vm1980, %v3733, %v3734
        %v3802 = vsel %vm1980, %v3732, %v3733
        %v3803 = vsel %vm1980, %v3731, %v3732
        %v3804 = vsel %vm1980, %v3730, %v3731
        %v3805 = vsel %vm1980, %v3729, %v3730
        %v3806 = vsel %vm1980, %v3728, %v3729
        %v3807 = vsel %vm1980, %v3767, %v3728
        %v3808 = vadd.f32 %v3688, %v3806
        %v3809 = vadd.f32 %v3689, %v3805
        %v3810 = vadd.f32 %v3690, %v3804
        %v3811 = vadd.f32 %v3691, %v3803
        %v3812 = vadd.f32 %v3692, %v3802
        %v3813 = vadd.f32 %v3693, %v3801
        %v3814 = vadd.f32 %v3694, %v3800
        %v3815 = vadd.f32 %v3695, %v3799
        %v3816 = vadd.f32 %v3696, %v3798
        %v3817 = vadd.f32 %v3697, %v3797
        %v3818 = vadd.f32 %v3698, %v3796
        %v3819 = vadd.f32 %v3699, %v3795
        %v3820 = vadd.f32 %v3700, %v3794
        %v3821 = vadd.f32 %v3701, %v3793
        %v3822 = vadd.f32 %v3702, %v3792
        %v3823 = vadd.f32 %v3703, %v3791
        %v3824 = vadd.f32 %v3704, %v3790
        %v3825 = vadd.f32 %v3705, %v3789
        %v3826 = vadd.f32 %v3706, %v3788
        %v3827 = vadd.f32 %v3707, %v3787
        %v3828 = vadd.f32 %v3708, %v3786
        %v3829 = vadd.f32 %v3709, %v3785
        %v3830 = vadd.f32 %v3710, %v3784
        %v3831 = vadd.f32 %v3711, %v3783
        %v3832 = vadd.f32 %v3712, %v3782
        %v3833 = vadd.f32 %v3713, %v3781
        %v3834 = vadd.f32 %v3714, %v3780
        %v3835 = vadd.f32 %v3715, %v3779
        %v3836 = vadd.f32 %v3716, %v3778
        %v3837 = vadd.f32 %v3717, %v3777
        %v3838 = vadd.f32 %v3718, %v3776
        %v3839 = vadd.f32 %v3719, %v3775
        %v3840 = vadd.f32 %v3720, %v3774
        %v3841 = vadd.f32 %v3721, %v3773
        %v3842 = vadd.f32 %v3722, %v3772
        %v3843 = vadd.f32 %v3723, %v3771
        %v3844 = vadd.f32 %v3724, %v3770
        %v3845 = vadd.f32 %v3725, %v3769
        %v3846 = vadd.f32 %v3726, %v3768
        %v3847 = vadd.f32 %v3727, %v3807
        %v3848 = vld [vmem:[%s5] sm:$0x1]
        %v3850 = vperm.slane %v3848, 0
        %v3852 = vmul.f32 %v3808, %v3850
        %v3853 = vmul.f32 %v3809, %v3850
        %v3854 = vmul.f32 %v3810, %v3850
        %v3855 = vmul.f32 %v3811, %v3850
        %v3856 = vmul.f32 %v3812, %v3850
        %v3857 = vmul.f32 %v3813, %v3850
        %v3858 = vmul.f32 %v3814, %v3850
        %v3859 = vmul.f32 %v3815, %v3850
        %v3860 = vmul.f32 %v3816, %v3850
        %v3861 = vmul.f32 %v3817, %v3850
        %v3862 = vmul.f32 %v3818, %v3850
        %v3863 = vmul.f32 %v3819, %v3850
        %v3864 = vmul.f32 %v3820, %v3850
        %v3865 = vmul.f32 %v3821, %v3850
        %v3866 = vmul.f32 %v3822, %v3850
        %v3867 = vmul.f32 %v3823, %v3850
        %v3868 = vmul.f32 %v3824, %v3850
        %v3869 = vmul.f32 %v3825, %v3850
        %v3870 = vmul.f32 %v3826, %v3850
        %v3871 = vmul.f32 %v3827, %v3850
        %v3872 = vmul.f32 %v3828, %v3850
        %v3873 = vmul.f32 %v3829, %v3850
        %v3874 = vmul.f32 %v3830, %v3850
        %v3875 = vmul.f32 %v3831, %v3850
        %v3876 = vmul.f32 %v3832, %v3850
        %v3877 = vmul.f32 %v3833, %v3850
        %v3878 = vmul.f32 %v3834, %v3850
        %v3879 = vmul.f32 %v3835, %v3850
        %v3880 = vmul.f32 %v3836, %v3850
        %v3881 = vmul.f32 %v3837, %v3850
        %v3882 = vmul.f32 %v3838, %v3850
        %v3883 = vmul.f32 %v3839, %v3850
        %v3884 = vmul.f32 %v3840, %v3850
        %v3885 = vmul.f32 %v3841, %v3850
        %v3886 = vmul.f32 %v3842, %v3850
        %v3887 = vmul.f32 %v3843, %v3850
        %v3888 = vmul.f32 %v3844, %v3850
        %v3889 = vmul.f32 %v3845, %v3850
        %v3890 = vmul.f32 %v3846, %v3850
        %v3891 = vmul.f32 %v3847, %v3850
        %v3892 = vld [vmem:[%s6] sm:$0x1]
        %v3894 = vperm.slane %v3892, 0
        %v3896 = vadd.f32 %v3852, %v3894
        %v3897 = vadd.f32 %v3853, %v3894
        %v3898 = vadd.f32 %v3854, %v3894
        %v3899 = vadd.f32 %v3855, %v3894
        %v3900 = vadd.f32 %v3856, %v3894
        %v3901 = vadd.f32 %v3857, %v3894
        %v3902 = vadd.f32 %v3858, %v3894
        %v3903 = vadd.f32 %v3859, %v3894
        %v3904 = vadd.f32 %v3860, %v3894
        %v3905 = vadd.f32 %v3861, %v3894
        %v3906 = vadd.f32 %v3862, %v3894
        %v3907 = vadd.f32 %v3863, %v3894
        %v3908 = vadd.f32 %v3864, %v3894
        %v3909 = vadd.f32 %v3865, %v3894
        %v3910 = vadd.f32 %v3866, %v3894
        %v3911 = vadd.f32 %v3867, %v3894
        %v3912 = vadd.f32 %v3868, %v3894
        %v3913 = vadd.f32 %v3869, %v3894
        %v3914 = vadd.f32 %v3870, %v3894
        %v3915 = vadd.f32 %v3871, %v3894
        %v3916 = vadd.f32 %v3872, %v3894
        %v3917 = vadd.f32 %v3873, %v3894
        %v3918 = vadd.f32 %v3874, %v3894
        %v3919 = vadd.f32 %v3875, %v3894
        %v3920 = vadd.f32 %v3876, %v3894
        %v3921 = vadd.f32 %v3877, %v3894
        %v3922 = vadd.f32 %v3878, %v3894
        %v3923 = vadd.f32 %v3879, %v3894
        %v3924 = vadd.f32 %v3880, %v3894
        %v3925 = vadd.f32 %v3881, %v3894
        %v3926 = vadd.f32 %v3882, %v3894
        %v3927 = vadd.f32 %v3883, %v3894
        %v3928 = vadd.f32 %v3884, %v3894
        %v3929 = vadd.f32 %v3885, %v3894
        %v3930 = vadd.f32 %v3886, %v3894
        %v3931 = vadd.f32 %v3887, %v3894
        %v3932 = vadd.f32 %v3888, %v3894
        %v3933 = vadd.f32 %v3889, %v3894
        %v3934 = vadd.f32 %v3890, %v3894
        %v3935 = vadd.f32 %v3891, %v3894
        %v3936 = vmul.f32 %v3896, %v418
        %v3937 = vmul.f32 %v3897, %v419
        %v3938 = vmul.f32 %v3898, %v420
        %v3939 = vmul.f32 %v3899, %v421
        %v3940 = vmul.f32 %v3900, %v422
        %v3941 = vmul.f32 %v3901, %v423
        %v3942 = vmul.f32 %v3902, %v424
        %v3943 = vmul.f32 %v3903, %v425
        %v3944 = vmul.f32 %v3904, %v426
        %v3945 = vmul.f32 %v3905, %v427
        %v3946 = vmul.f32 %v3906, %v428
        %v3947 = vmul.f32 %v3907, %v429
        %v3948 = vmul.f32 %v3908, %v430
        %v3949 = vmul.f32 %v3909, %v431
        %v3950 = vmul.f32 %v3910, %v432
        %v3951 = vmul.f32 %v3911, %v433
        %v3952 = vmul.f32 %v3912, %v434
        %v3953 = vmul.f32 %v3913, %v435
        %v3954 = vmul.f32 %v3914, %v436
        %v3955 = vmul.f32 %v3915, %v437
        %v3956 = vmul.f32 %v3916, %v418
        %v3957 = vmul.f32 %v3917, %v419
        %v3958 = vmul.f32 %v3918, %v420
        %v3959 = vmul.f32 %v3919, %v421
        %v3960 = vmul.f32 %v3920, %v422
        %v3961 = vmul.f32 %v3921, %v423
        %v3962 = vmul.f32 %v3922, %v424
        %v3963 = vmul.f32 %v3923, %v425
        %v3964 = vmul.f32 %v3924, %v426
        %v3965 = vmul.f32 %v3925, %v427
        %v3966 = vmul.f32 %v3926, %v428
        %v3967 = vmul.f32 %v3927, %v429
        %v3968 = vmul.f32 %v3928, %v430
        %v3969 = vmul.f32 %v3929, %v431
        %v3970 = vmul.f32 %v3930, %v432
        %v3971 = vmul.f32 %v3931, %v433
        %v3972 = vmul.f32 %v3932, %v434
        %v3973 = vmul.f32 %v3933, %v435
        %v3974 = vmul.f32 %v3934, %v436
        %v3975 = vmul.f32 %v3935, %v437
        %v3976 = vadd.f32 %v378, %v3936
        %v3977 = vadd.f32 %v379, %v3937
        %v3978 = vadd.f32 %v380, %v3938
        %v3979 = vadd.f32 %v381, %v3939
        %v3980 = vadd.f32 %v382, %v3940
        %v3981 = vadd.f32 %v383, %v3941
        %v3982 = vadd.f32 %v384, %v3942
        %v3983 = vadd.f32 %v385, %v3943
        %v3984 = vadd.f32 %v386, %v3944
        %v3985 = vadd.f32 %v387, %v3945
        %v3986 = vadd.f32 %v388, %v3946
        %v3987 = vadd.f32 %v389, %v3947
        %v3988 = vadd.f32 %v390, %v3948
        %v3989 = vadd.f32 %v391, %v3949
        %v3990 = vadd.f32 %v392, %v3950
        %v3991 = vadd.f32 %v393, %v3951
        %v3992 = vadd.f32 %v394, %v3952
        %v3993 = vadd.f32 %v395, %v3953
        %v3994 = vadd.f32 %v396, %v3954
        %v3995 = vadd.f32 %v397, %v3955
        %v3996 = vadd.f32 %v398, %v3956
        %v3997 = vadd.f32 %v399, %v3957
        %v3998 = vadd.f32 %v400, %v3958
        %v3999 = vadd.f32 %v401, %v3959
        %v4000 = vadd.f32 %v402, %v3960
        %v4001 = vadd.f32 %v403, %v3961
        %v4002 = vadd.f32 %v404, %v3962
        %v4003 = vadd.f32 %v405, %v3963
        %v4004 = vadd.f32 %v406, %v3964
        %v4005 = vadd.f32 %v407, %v3965
        %v4006 = vadd.f32 %v408, %v3966
        %v4007 = vadd.f32 %v409, %v3967
        %v4008 = vadd.f32 %v410, %v3968
        %v4009 = vadd.f32 %v411, %v3969
        %v4010 = vadd.f32 %v412, %v3970
        %v4011 = vadd.f32 %v413, %v3971
        %v4012 = vadd.f32 %v414, %v3972
        %v4013 = vadd.f32 %v415, %v3973
        %v4014 = vadd.f32 %v416, %v3974
        %v4015 = vadd.f32 %v417, %v3975
        %v4016 = vmax.f32 %v3976, 0.0
        %v4017 = vmax.f32 %v3977, 0.0
        %v4018 = vmax.f32 %v3978, 0.0
        %v4019 = vmax.f32 %v3979, 0.0
        %v4020 = vmax.f32 %v3980, 0.0
        %v4021 = vmax.f32 %v3981, 0.0
        %v4022 = vmax.f32 %v3982, 0.0
        %v4023 = vmax.f32 %v3983, 0.0
        %v4024 = vmax.f32 %v3984, 0.0
        %v4025 = vmax.f32 %v3985, 0.0
        %v4026 = vmax.f32 %v3986, 0.0
        %v4027 = vmax.f32 %v3987, 0.0
        %v4028 = vmax.f32 %v3988, 0.0
        %v4029 = vmax.f32 %v3989, 0.0
        %v4030 = vmax.f32 %v3990, 0.0
        %v4031 = vmax.f32 %v3991, 0.0
        %v4032 = vmax.f32 %v3992, 0.0
        %v4033 = vmax.f32 %v3993, 0.0
        %v4034 = vmax.f32 %v3994, 0.0
        %v4035 = vmax.f32 %v3995, 0.0
        %v4036 = vmax.f32 %v3996, 0.0
        %v4037 = vmax.f32 %v3997, 0.0
        %v4038 = vmax.f32 %v3998, 0.0
        %v4039 = vmax.f32 %v3999, 0.0
        %v4040 = vmax.f32 %v4000, 0.0
        %v4041 = vmax.f32 %v4001, 0.0
        %v4042 = vmax.f32 %v4002, 0.0
        %v4043 = vmax.f32 %v4003, 0.0
        %v4044 = vmax.f32 %v4004, 0.0
        %v4045 = vmax.f32 %v4005, 0.0
        %v4046 = vmax.f32 %v4006, 0.0
        %v4047 = vmax.f32 %v4007, 0.0
        %v4048 = vmax.f32 %v4008, 0.0
        %v4049 = vmax.f32 %v4009, 0.0
        %v4050 = vmax.f32 %v4010, 0.0
        %v4051 = vmax.f32 %v4011, 0.0
        %v4052 = vmax.f32 %v4012, 0.0
        %v4053 = vmax.f32 %v4013, 0.0
        %v4054 = vmax.f32 %v4014, 0.0
        %v4055 = vmax.f32 %v4015, 0.0
        %4056 = vst [vmem:[%s375] sm:$0xff] %v4016
        %4057 = vst [vmem:[%s375 + $0x8] sm:$0xff] %v4017
        %4058 = vst [vmem:[%s375 + $0x10] sm:$0xff] %v4018
        %4059 = vst [vmem:[%s375 + $0x18] sm:$0xff] %v4019
        %4060 = vst [vmem:[%s375 + $0x20] sm:$0xff] %v4020
        %4061 = vst [vmem:[%s375 + $0x28] sm:$0xff] %v4021
        %4062 = vst [vmem:[%s375 + $0x30] sm:$0xff] %v4022
        %4063 = vst [vmem:[%s375 + $0x38] sm:$0xff] %v4023
        %4064 = vst [vmem:[%s375 + $0x40] sm:$0xff] %v4024
        %4065 = vst [vmem:[%s375 + $0x48] sm:$0xff] %v4025
        %4066 = vst [vmem:[%s375 + $0x50] sm:$0xff] %v4026
        %4067 = vst [vmem:[%s375 + $0x58] sm:$0xff] %v4027
        %4068 = vst [vmem:[%s375 + $0x60] sm:$0xff] %v4028
        %4069 = vst [vmem:[%s375 + $0x68] sm:$0xff] %v4029
        %4070 = vst [vmem:[%s375 + $0x70] sm:$0xff] %v4030
        %4071 = vst [vmem:[%s375 + $0x78] sm:$0xff] %v4031
        %4072 = vst [vmem:[%s375 + $0x80] sm:$0xff] %v4032
        %4073 = vst [vmem:[%s375 + $0x88] sm:$0xff] %v4033
        %4074 = vst [vmem:[%s375 + $0x90] sm:$0xff] %v4034
        %4075 = vst [vmem:[%s375 + $0x98] sm:$0xff] %v4035
        %4076 = vst [vmem:[%s375 + $0xa0] sm:$0xff] %v4036
        %4077 = vst [vmem:[%s375 + $0xa8] sm:$0xff] %v4037
        %4078 = vst [vmem:[%s375 + $0xb0] sm:$0xff] %v4038
        %4079 = vst [vmem:[%s375 + $0xb8] sm:$0xff] %v4039
        %4080 = vst [vmem:[%s375 + $0xc0] sm:$0xff] %v4040
        %4081 = vst [vmem:[%s375 + $0xc8] sm:$0xff] %v4041
        %4082 = vst [vmem:[%s375 + $0xd0] sm:$0xff] %v4042
        %4083 = vst [vmem:[%s375 + $0xd8] sm:$0xff] %v4043
        %4084 = vst [vmem:[%s375 + $0xe0] sm:$0xff] %v4044
        %4085 = vst [vmem:[%s375 + $0xe8] sm:$0xff] %v4045
        %4086 = vst [vmem:[%s375 + $0xf0] sm:$0xff] %v4046
        %4087 = vst [vmem:[%s375 + $0xf8] sm:$0xff] %v4047
        %4088 = vst [vmem:[%s375 + $0x100] sm:$0xff] %v4048
        %4089 = vst [vmem:[%s375 + $0x108] sm:$0xff] %v4049
        %4090 = vst [vmem:[%s375 + $0x110] sm:$0xff] %v4050
        %4091 = vst [vmem:[%s375 + $0x118] sm:$0xff] %v4051
        %4092 = vst [vmem:[%s375 + $0x120] sm:$0xff] %v4052
        %4093 = vst [vmem:[%s375 + $0x128] sm:$0xff] %v4053
        %4094 = vst [vmem:[%s375 + $0x130] sm:$0xff] %v4054
        %4095 = vst [vmem:[%s375 + $0x138] sm:$0xff] %v4055
        %s4096 = sand.u32 %s208, 1
        %s4097 = scalar_lea.sflag [#allocation4], %s4096
        %s4098 = sand.u32 %s208, 1
        %s4099 = smul.addr %s4098, 320
        %s4100 = scalar_lea.vmem [#allocation10], %s4099
        // Predicated region
        $region69: #{tpu_custom_call.1} parent=51 // pred_check
          %p4101 = pneg %p218
        $region70: #{tpu_custom_call.1} parent=51 // pred_check_branch
          %4103 = sbr.rel (%p4101) target = $region72
        $region71: #{tpu_custom_call.1} parent=51 // pred_region
          %s4104 = smul.u32 40, %s27
          %4106 = vsyncadd %s4097, 0
          %s4107 = smul.addr %s4104, 8
          %s4108 = scalar_lea.hbm %s8, %s4107
          %s4109 = sshll.u32 %s4100, 4
          %s4110 = int_to_ptr.vmem [resolvable:$true] %s4109
          %s4111 = sshll.u32 %s4108, 4
          %s4112 = int_to_ptr.hbm [resolvable:$true] %s4111
          %4117 = dma.vmem_to_hbm [thread:$0]  %s4110, 5120, %s4112, %s4097, 128, 128, 8
        $region72: #{tpu_custom_call.1} parent=51 // pred_fallthru
          _
      $region52: #{tpu_custom_call.1} parent=5 // pred_fallthru
        _
      %p4118 = scmp.le.s32.totalorder 2, %s22
      // Predicated region
      $region73: #{tpu_custom_call.1} parent=5 // pred_check
        %p4119 = pneg %p4118
      $region74: #{tpu_custom_call.1} parent=5 // pred_check_branch
        %4121 = sbr.rel (%p4119) target = $region76
      $region75: #{tpu_custom_call.1} parent=5 // pred_region
        %s4122 = ssub.s32 %s22, 2
        // Predicated region
        $region77: #{tpu_custom_call.1} parent=75 // pred_check
          %p4123 = pneg %p224
        $region78: #{tpu_custom_call.1} parent=75 // pred_check_branch
          %4125 = sbr.rel (%p4123) target = $region80
        $region79: #{tpu_custom_call.1} parent=75 // pred_region
          %s4126 = sand.u32 %s209, 1
          %s4127 = scalar_lea.sflag [#allocation4], %s4126
          %s4128 = sand.u32 %s209, 1
          %s4129 = smul.addr %s4128, 320
          %s4130 = scalar_lea.vmem [#allocation10], %s4129
          %4132 = dma.done %s4127, 5120
        $region80: #{tpu_custom_call.1} parent=75 // pred_fallthru
          _
      $region76: #{tpu_custom_call.1} parent=5 // pred_fallthru
        _
    $region6: #{tpu_custom_call.1} parent=1 // loop_footer
      %s26 = sadd.s32 1, %s22
    $region7: #{tpu_custom_call.1} parent=1 // loop_footer_branch
      %21 = sbr.rel target = $region3
    $region8: #{tpu_custom_call.1} parent=1 // loop_exit
      _
    %4133 = vsyncpa [#allocation3], 1
    %s4134 = scalar_lea.sflag [#allocation3], 1
    %4135 = vsyncpa %s4134, 1
    %4136 = vsyncpa [#allocation6], 1
    %4137 = vsyncpa [#allocation9], 1
    %4138 = vsyncpa [#allocation4], 1
    %s4139 = scalar_lea.sflag [#allocation4], 1
    %4140 = vsyncpa %s4139, 1

// kernel: tpu_custom_call.1
$region0: #{tpu_custom_call.1}
  #allocation0 [shape = 'u32[]', space=smem, size = 0x4, offset = 0x4, fixed_abs, tag = 'smem constant byte address 0x4 - core index']
  #allocation1 [shape = 'u32[72,128]{1,0:T(1,128)}', space=vmem, size = 0x9000, scoped, tag = 'internal scratch']
  %s0 = inlined_call_operand.hbm [shape: f32[640,128], index: 0, kind: input, shape index: {}]
  %s1 = inlined_call_operand.hbm [shape: f32[3,384,128], index: 1, kind: input, shape index: {}]
  %s2 = inlined_call_operand.hbm [shape: f32[3,384,128], index: 2, kind: input, shape index: {}]
  %s3 = inlined_call_operand.vmem [shape: f32[1,128], index: 3, kind: input, shape index: {}]
  %s4 = inlined_call_operand.vmem [shape: f32[1,128], index: 4, kind: input, shape index: {}]
  %s5 = inlined_call_operand.vmem [shape: f32[1,128], index: 5, kind: input, shape index: {}]
  %s6 = inlined_call_operand.vmem [shape: f32[1,128], index: 6, kind: input, shape index: {}]
  %s7 = inlined_call_operand.hbm [shape: f32[160,128], index: 7, kind: input, shape index: {}]
  %s8 = inlined_call_operand.hbm [shape: f32[640,128], index: 8, kind: output, shape index: {}]
  %s9 = sld [smem:[#allocation0]]
  $region81: #{tpu_custom_call.1} parent=0
    _
  %s11 = ssub.s32 1, %s9
  %s12 = scalar_select 0, %s11, %s9
  $region1: #{tpu_custom_call.1} parent=0
    #allocation2 [shape = 'u8[327680]{0}', space=vmem, size = 0x50000, scoped, tag = 'input window, operand 0']
    #allocation3 [shape = 's32[2]{0}', space=sflag, size = 0x8, scoped, tag = 'scoped memory for tpu_custom_call.1']
    #allocation4 [shape = 's32[2]{0}', space=sflag, size = 0x8, scoped, tag = 'scoped memory for tpu_custom_call.1']
    #allocation5 [shape = 'u8[589824]{0}', space=vmem, size = 0x90000, scoped, tag = 'input window, operand 1, single buffered']
    #allocation6 [shape = 's32[1]{0}', space=sflag, size = 0x4, scoped, tag = 'scoped memory for tpu_custom_call.1']
    #allocation7 [shape = 'u8[589824]{0}', space=vmem, size = 0x90000, scoped, tag = 'input window, operand 2, single buffered']
    #allocation8 [shape = 'u8[81920]{0}', space=vmem, size = 0x14000, scoped, tag = 'input window, operand 7, single buffered']
    #allocation9 [shape = 's32[1]{0}', space=sflag, size = 0x4, scoped, tag = 'scoped memory for tpu_custom_call.1']
    #allocation10 [shape = 'u8[327680]{0}', space=vmem, size = 0x50000, scoped, tag = 'output window, operand 0']
    %13 = vsyncpa [#allocation3], 0
    %s14 = scalar_lea.sflag [#allocation3], 1
    %15 = vsyncpa %s14, 0
    %16 = vsyncpa [#allocation6], 0
    %17 = vsyncpa [#allocation9], 0
    %18 = vsyncpa [#allocation4], 0
    %s19 = scalar_lea.sflag [#allocation4], 1
    %20 = vsyncpa %s19, 0
    loop: start=0, step=1, limit=4
    $region2: #{tpu_custom_call.1} parent=1 // loop_pre_header
      _
    $region3: #{tpu_custom_call.1} parent=1 // loop_header
      %s22 = sphi 0, %s26
      %p23 = scmp.ge.s32.totalorder %s22, 4
      %s32 = sphi 0, %s34
      %s35 = sphi 0, %s32
      %s36 = sphi 0, %s35
      %s52 = sphi 0, %s36
      %s56 = sphi 0, %s56
      %s58 = sphi 0, %s56
      %s59 = sphi 0, %s58
      %s73 = sphi 0, %s59
      %s77 = sphi 0, %s77
      %s79 = sphi 0, %s77
      %s80 = sphi 0, %s79
      %s94 = sphi 0, %s80
      %s98 = sphi 0, %s98
      %s100 = sphi 0, %s98
      %s101 = sphi 0, %s100
      %s115 = sphi 0, %s101
      %s119 = sphi 0, %s119
      %s121 = sphi 0, %s119
      %s122 = sphi 0, %s121
      %s136 = sphi 0, %s122
      %s140 = sphi 0, %s140
      %s142 = sphi 0, %s140
      %s143 = sphi 0, %s142
      %s157 = sphi 0, %s143
      %s161 = sphi 0, %s161
      %s163 = sphi 0, %s161
      %s164 = sphi 0, %s163
      %s178 = sphi 0, %s164
      %s182 = sphi 0, %s182
      %s184 = sphi 0, %s182
      %s185 = sphi 0, %s184
      %s199 = sphi 0, %s185
      %s205 = sphi 0, %s207
      %s208 = sphi 0, %s205
      %s209 = sphi 0, %s208
      %s225 = sphi 0, %s209
    $region4: #{tpu_custom_call.1} parent=1 // loop_header_branch
      %25 = sbr.rel (%p23) target = $region8
    $region5: #{tpu_custom_call.1} parent=1 // loop_body
      %s27 = ssub.s32 %s22, 1
      %s28 = ssub.s32 %s22, 2
      %s29 = sadd.s32 %s22, 1
      %s30 = ssub.s32 %s22, %s29
      %p31 = scmp.eq.s32.totalorder %s30, 0
      %s33 = sadd.s32 %s32, 1
      %s34 = scalar_select %p31, %s32, %s33
      %p37 = pneg %p31
      %p38 = scmp.eq.s32.totalorder %s22, 1
      %p39 = por %p37, %p38
      %p40 = scmp.ne.s32.totalorder %s32, %s35
      %p41 = scmp.eq.s32.totalorder %s22, 0
      %p42 = por %p40, %p41
      %p43 = scmp.ne.s32.totalorder %s32, %s35
      %p44 = scmp.eq.s32.totalorder %s27, 1
      %p45 = por %p43, %p44
      %p46 = scmp.ne.s32.totalorder %s35, %s36
      %p47 = scmp.eq.s32.totalorder %s27, 0
      %p48 = por %p46, %p47
      %p49 = scmp.ne.s32.totalorder %s35, %s36
      %p50 = scmp.eq.s32.totalorder %s28, 1
      %p51 = por %p49, %p50
      %p53 = scmp.ne.s32.totalorder %s36, %s52
      %p54 = scmp.eq.s32.totalorder %s28, 0
      %p55 = por %p53, %p54
      %s57 = sadd.s32 %s56, 1
      %p60 = scmp.eq.s32.totalorder %s22, 1
      %p61 = scmp.ne.s32.totalorder %s56, %s58
      %p62 = scmp.eq.s32.totalorder %s22, 0
      %p63 = por %p61, %p62
      %p64 = scmp.ne.s32.totalorder %s56, %s58
      %p65 = scmp.eq.s32.totalorder %s27, 1
      %p66 = por %p64, %p65
      %p67 = scmp.ne.s32.totalorder %s58, %s59
      %p68 = scmp.eq.s32.totalorder %s27, 0
      %p69 = por %p67, %p68
      %p70 = scmp.ne.s32.totalorder %s58, %s59
      %p71 = scmp.eq.s32.totalorder %s28, 1
      %p72 = por %p70, %p71
      %p74 = scmp.ne.s32.totalorder %s59, %s73
      %p75 = scmp.eq.s32.totalorder %s28, 0
      %p76 = por %p74, %p75
      %s78 = sadd.s32 %s77, 1
      %p81 = scmp.eq.s32.totalorder %s22, 1
      %p82 = scmp.ne.s32.totalorder %s77, %s79
      %p83 = scmp.eq.s32.totalorder %s22, 0
      %p84 = por %p82, %p83
      %p85 = scmp.ne.s32.totalorder %s77, %s79
      %p86 = scmp.eq.s32.totalorder %s27, 1
      %p87 = por %p85, %p86
      %p88 = scmp.ne.s32.totalorder %s79, %s80
      %p89 = scmp.eq.s32.totalorder %s27, 0
      %p90 = por %p88, %p89
      %p91 = scmp.ne.s32.totalorder %s79, %s80
      %p92 = scmp.eq.s32.totalorder %s28, 1
      %p93 = por %p91, %p92
      %p95 = scmp.ne.s32.totalorder %s80, %s94
      %p96 = scmp.eq.s32.totalorder %s28, 0
      %p97 = por %p95, %p96
      %s99 = sadd.s32 %s98, 1
      %p102 = scmp.eq.s32.totalorder %s22, 1
      %p103 = scmp.ne.s32.totalorder %s98, %s100
      %p104 = scmp.eq.s32.totalorder %s22, 0
      %p105 = por %p103, %p104
      %p106 = scmp.ne.s32.totalorder %s98, %s100
      %p107 = scmp.eq.s32.totalorder %s27, 1
      %p108 = por %p106, %p107
      %p109 = scmp.ne.s32.totalorder %s100, %s101
      %p110 = scmp.eq.s32.totalorder %s27, 0
      %p111 = por %p109, %p110
      %p112 = scmp.ne.s32.totalorder %s100, %s101
      %p113 = scmp.eq.s32.totalorder %s28, 1
      %p114 = por %p112, %p113
      %p116 = scmp.ne.s32.totalorder %s101, %s115
      %p117 = scmp.eq.s32.totalorder %s28, 0
      %p118 = por %p116, %p117
      %s120 = sadd.s32 %s119, 1
      %p123 = scmp.eq.s32.totalorder %s22, 1
      %p124 = scmp.ne.s32.totalorder %s119, %s121
      %p125 = scmp.eq.s32.totalorder %s22, 0
      %p126 = por %p124, %p125
      %p127 = scmp.ne.s32.totalorder %s119, %s121
      %p128 = scmp.eq.s32.totalorder %s27, 1
      %p129 = por %p127, %p128
      %p130 = scmp.ne.s32.totalorder %s121, %s122
      %p131 = scmp.eq.s32.totalorder %s27, 0
      %p132 = por %p130, %p131
      %p133 = scmp.ne.s32.totalorder %s121, %s122
      %p134 = scmp.eq.s32.totalorder %s28, 1
      %p135 = por %p133, %p134
      %p137 = scmp.ne.s32.totalorder %s122, %s136
      %p138 = scmp.eq.s32.totalorder %s28, 0
      %p139 = por %p137, %p138
      %s141 = sadd.s32 %s140, 1
      %p144 = scmp.eq.s32.totalorder %s22, 1
      %p145 = scmp.ne.s32.totalorder %s140, %s142
      %p146 = scmp.eq.s32.totalorder %s22, 0
      %p147 = por %p145, %p146
      %p148 = scmp.ne.s32.totalorder %s140, %s142
      %p149 = scmp.eq.s32.totalorder %s27, 1
      %p150 = por %p148, %p149
      %p151 = scmp.ne.s32.totalorder %s142, %s143
      %p152 = scmp.eq.s32.totalorder %s27, 0
      %p153 = por %p151, %p152
      %p154 = scmp.ne.s32.totalorder %s142, %s143
      %p155 = scmp.eq.s32.totalorder %s28, 1
      %p156 = por %p154, %p155
      %p158 = scmp.ne.s32.totalorder %s143, %s157
      %p159 = scmp.eq.s32.totalorder %s28, 0
      %p160 = por %p158, %p159
      %s162 = sadd.s32 %s161, 1
      %p165 = scmp.eq.s32.totalorder %s22, 1
      %p166 = scmp.ne.s32.totalorder %s161, %s163
      %p167 = scmp.eq.s32.totalorder %s22, 0
      %p168 = por %p166, %p167
      %p169 = scmp.ne.s32.totalorder %s161, %s163
      %p170 = scmp.eq.s32.totalorder %s27, 1
      %p171 = por %p169, %p170
      %p172 = scmp.ne.s32.totalorder %s163, %s164
      %p173 = scmp.eq.s32.totalorder %s27, 0
      %p174 = por %p172, %p173
      %p175 = scmp.ne.s32.totalorder %s163, %s164
      %p176 = scmp.eq.s32.totalorder %s28, 1
      %p177 = por %p175, %p176
      %p179 = scmp.ne.s32.totalorder %s164, %s178
      %p180 = scmp.eq.s32.totalorder %s28, 0
      %p181 = por %p179, %p180
      %s183 = sadd.s32 %s182, 1
      %p186 = scmp.eq.s32.totalorder %s22, 1
      %p187 = scmp.ne.s32.totalorder %s182, %s184
      %p188 = scmp.eq.s32.totalorder %s22, 0
      %p189 = por %p187, %p188
      %p190 = scmp.ne.s32.totalorder %s182, %s184
      %p191 = scmp.eq.s32.totalorder %s27, 1
      %p192 = por %p190, %p191
      %p193 = scmp.ne.s32.totalorder %s184, %s185
      %p194 = scmp.eq.s32.totalorder %s27, 0
      %p195 = por %p193, %p194
      %p196 = scmp.ne.s32.totalorder %s184, %s185
      %p197 = scmp.eq.s32.totalorder %s28, 1
      %p198 = por %p196, %p197
      %p200 = scmp.ne.s32.totalorder %s185, %s199
      %p201 = scmp.eq.s32.totalorder %s28, 0
      %p202 = por %p200, %p201
      %s203 = ssub.s32 %s22, %s29
      %p204 = scmp.eq.s32.totalorder %s203, 0
      %s206 = sadd.s32 %s205, 1
      %s207 = scalar_select %p204, %s205, %s206
      %p210 = pneg %p204
      %p211 = scmp.eq.s32.totalorder %s22, 1
      %p212 = por %p210, %p211
      %p213 = scmp.ne.s32.totalorder %s205, %s208
      %p214 = scmp.eq.s32.totalorder %s22, 0
      %p215 = por %p213, %p214
      %p216 = scmp.ne.s32.totalorder %s205, %s208
      %p217 = scmp.eq.s32.totalorder %s27, 1
      %p218 = por %p216, %p217
      %p219 = scmp.ne.s32.totalorder %s208, %s209
      %p220 = scmp.eq.s32.totalorder %s27, 0
      %p221 = por %p219, %p220
      %p222 = scmp.ne.s32.totalorder %s208, %s209
      %p223 = scmp.eq.s32.totalorder %s28, 1
      %p224 = por %p222, %p223
      %p226 = scmp.ne.s32.totalorder %s209, %s225
      %p227 = scmp.eq.s32.totalorder %s28, 0
      %p228 = por %p226, %p227
      %p229 = scmp.le.s32.totalorder 1, %s22
      %p230 = scmp.lt.s32.totalorder %s22, 3
      %p231 = pnand %p229, %p230
      %p232 = pneg %p231
      // Predicated region
      $region9: #{tpu_custom_call.1} parent=5 // pred_check
        _
      $region10: #{tpu_custom_call.1} parent=5 // pred_check_branch
        %234 = sbr.rel (%p231) target = $region12
      $region11: #{tpu_custom_call.1} parent=5 // pred_region
        %s235 = ssub.s32 %s22, 1
        // Predicated region
        $region13: #{tpu_custom_call.1} parent=11 // pred_check
          %p236 = pneg %p69
        $region14: #{tpu_custom_call.1} parent=11 // pred_check_branch
          %238 = sbr.rel (%p236) target = $region16
        $region15: #{tpu_custom_call.1} parent=11 // pred_region
          %240 = vsyncadd [#allocation6], 0
          %s241 = sshll.u32 %s1, 4
          %s242 = int_to_ptr.hbm [resolvable:$true] %s241
          %s243 = sshll.u32 [#allocation5], 4
          %s244 = int_to_ptr.vmem [resolvable:$true] %s243
          %249 = dma.hbm_to_vmem [thread:$0]  %s242, 18432, %s244, [#allocation6], 128, 128, 8
        $region16: #{tpu_custom_call.1} parent=11 // pred_fallthru
          _
        // Predicated region
        $region17: #{tpu_custom_call.1} parent=11 // pred_check
          %p250 = pneg %p90
        $region18: #{tpu_custom_call.1} parent=11 // pred_check_branch
          %252 = sbr.rel (%p250) target = $region20
        $region19: #{tpu_custom_call.1} parent=11 // pred_region
          %254 = vsyncadd [#allocation6], 0
          %s255 = sshll.u32 %s2, 4
          %s256 = int_to_ptr.hbm [resolvable:$true] %s255
          %s257 = sshll.u32 [#allocation7], 4
          %s258 = int_to_ptr.vmem [resolvable:$true] %s257
          %263 = dma.hbm_to_vmem [thread:$0]  %s256, 18432, %s258, [#allocation6], 128, 128, 8
        $region20: #{tpu_custom_call.1} parent=11 // pred_fallthru
          _
        // Predicated region
        $region21: #{tpu_custom_call.1} parent=11 // pred_check
          %p264 = pneg %p111
        $region22: #{tpu_custom_call.1} parent=11 // pred_check_branch
          %266 = sbr.rel (%p264) target = $region24
        $region23: #{tpu_custom_call.1} parent=11 // pred_region
          _
        $region24: #{tpu_custom_call.1} parent=11 // pred_fallthru
          _
        // Predicated region
        $region25: #{tpu_custom_call.1} parent=11 // pred_check
          %p267 = pneg %p132
        $region26: #{tpu_custom_call.1} parent=11 // pred_check_branch
          %269 = sbr.rel (%p267) target = $region28
        $region27: #{tpu_custom_call.1} parent=11 // pred_region
          _
        $region28: #{tpu_custom_call.1} parent=11 // pred_fallthru
          _
        // Predicated region
        $region29: #{tpu_custom_call.1} parent=11 // pred_check
          %p270 = pneg %p153
        $region30: #{tpu_custom_call.1} parent=11 // pred_check_branch
          %272 = sbr.rel (%p270) target = $region32
        $region31: #{tpu_custom_call.1} parent=11 // pred_region
          _
        $region32: #{tpu_custom_call.1} parent=11 // pred_fallthru
          _
        // Predicated region
        $region33: #{tpu_custom_call.1} parent=11 // pred_check
          %p273 = pneg %p174
        $region34: #{tpu_custom_call.1} parent=11 // pred_check_branch
          %275 = sbr.rel (%p273) target = $region36
        $region35: #{tpu_custom_call.1} parent=11 // pred_region
          _
        $region36: #{tpu_custom_call.1} parent=11 // pred_fallthru
          _
        // Predicated region
        $region37: #{tpu_custom_call.1} parent=11 // pred_check
          %p276 = pneg %p195
        $region38: #{tpu_custom_call.1} parent=11 // pred_check_branch
          %278 = sbr.rel (%p276) target = $region40
        $region39: #{tpu_custom_call.1} parent=11 // pred_region
          %280 = vsyncadd [#allocation9], 0
          %s281 = sshll.u32 %s7, 4
          %s282 = int_to_ptr.hbm [resolvable:$true] %s281
          %s283 = sshll.u32 [#allocation8], 4
          %s284 = int_to_ptr.vmem [resolvable:$true] %s283
          %289 = dma.hbm_to_vmem [thread:$0]  %s282, 2560, %s284, [#allocation9], 128, 128, 8
        $region40: #{tpu_custom_call.1} parent=11 // pred_fallthru
          _
      $region12: #{tpu_custom_call.1} parent=5 // pred_fallthru
        _
      %p290 = scmp.lt.s32.totalorder %s22, 2
      // Predicated region
      $region41: #{tpu_custom_call.1} parent=5 // pred_check
        %p291 = pneg %p290
      $region42: #{tpu_custom_call.1} parent=5 // pred_check_branch
        %293 = sbr.rel (%p291) target = $region44
      $region43: #{tpu_custom_call.1} parent=5 // pred_region
        // Predicated region
        $region45: #{tpu_custom_call.1} parent=43 // pred_check
          %p294 = pneg %p42
        $region46: #{tpu_custom_call.1} parent=43 // pred_check_branch
          %296 = sbr.rel (%p294) target = $region48
        $region47: #{tpu_custom_call.1} parent=43 // pred_region
          %s297 = sand.u32 %s32, 1
          %s298 = scalar_lea.sflag [#allocation3], %s297
          %s299 = sand.u32 %s32, 1
          %s300 = smul.addr %s299, 320
          %s301 = scalar_lea.vmem [#allocation2], %s300
          %s302 = smul.u32 40, %s22
          %304 = vsyncadd %s298, 0
          %s305 = smul.addr %s302, 8
          %s306 = scalar_lea.hbm %s0, %s305
          %s307 = sshll.u32 %s306, 4
          %s308 = int_to_ptr.hbm [resolvable:$true] %s307
          %s309 = sshll.u32 %s301, 4
          %s310 = int_to_ptr.vmem [resolvable:$true] %s309
          %315 = dma.hbm_to_vmem [thread:$0]  %s308, 5120, %s310, %s298, 128, 128, 8
        $region48: #{tpu_custom_call.1} parent=43 // pred_fallthru
          _
      $region44: #{tpu_custom_call.1} parent=5 // pred_fallthru
        _
      %p316 = scmp.le.s32.totalorder 1, %s22
      %p317 = scmp.lt.s32.totalorder %s22, 3
      %p318 = pnand %p316, %p317
      %p319 = pneg %p318
      // Predicated region
      $region49: #{tpu_custom_call.1} parent=5 // pred_check
        _
      $region50: #{tpu_custom_call.1} parent=5 // pred_check_branch
        %321 = sbr.rel (%p318) target = $region52
      $region51: #{tpu_custom_call.1} parent=5 // pred_region
        %s322 = ssub.s32 %s22, 1
        %s323 = sand.u32 %s35, 1
        %s324 = scalar_lea.sflag [#allocation3], %s323
        %s325 = sand.u32 %s35, 1
        %s326 = smul.addr %s325, 320
        %s327 = scalar_lea.vmem [#allocation2], %s326
        // Predicated region
        $region53: #{tpu_custom_call.1} parent=51 // pred_check
          %p328 = pneg %p48
        $region54: #{tpu_custom_call.1} parent=51 // pred_check_branch
          %330 = sbr.rel (%p328) target = $region56
        $region55: #{tpu_custom_call.1} parent=51 // pred_region
          %332 = dma.done %s324, 5120
        $region56: #{tpu_custom_call.1} parent=51 // pred_fallthru
          _
        // Predicated region
        $region57: #{tpu_custom_call.1} parent=51 // pred_check
          %p333 = pneg %p69
        $region58: #{tpu_custom_call.1} parent=51 // pred_check_branch
          %335 = sbr.rel (%p333) target = $region60
        $region59: #{tpu_custom_call.1} parent=51 // pred_region
          %337 = dma.done [#allocation6], 18432
        $region60: #{tpu_custom_call.1} parent=51 // pred_fallthru
          _
        // Predicated region
        $region61: #{tpu_custom_call.1} parent=51 // pred_check
          %p338 = pneg %p90
        $region62: #{tpu_custom_call.1} parent=51 // pred_check_branch
          %340 = sbr.rel (%p338) target = $region64
        $region63: #{tpu_custom_call.1} parent=51 // pred_region
          %342 = dma.done [#allocation6], 18432
        $region64: #{tpu_custom_call.1} parent=51 // pred_fallthru
          _
        // Predicated region
        $region65: #{tpu_custom_call.1} parent=51 // pred_check
          %p343 = pneg %p195
        $region66: #{tpu_custom_call.1} parent=51 // pred_check_branch
          %345 = sbr.rel (%p343) target = $region68
        $region67: #{tpu_custom_call.1} parent=51 // pred_region
          %347 = dma.done [#allocation9], 2560
        $region68: #{tpu_custom_call.1} parent=51 // pred_fallthru
          _
        %s348 = sand.u32 %s35, 1
        %s349 = scalar_lea.sflag [#allocation3], %s348
        %s350 = sand.u32 %s35, 1
        %s351 = smul.addr %s350, 320
        %s352 = scalar_lea.vmem [#allocation2], %s351
        %p353 = pneg %p48
        %p354 = pneg %p45
        %p355 = pneg %p69
        %p356 = pneg %p66
        %p357 = pneg %p90
        %p358 = pneg %p87
        %p359 = pneg %p111
        %p360 = pneg %p108
        %p361 = pneg %p132
        %p362 = pneg %p129
        %p363 = pneg %p153
        %p364 = pneg %p150
        %p365 = pneg %p174
        %p366 = pneg %p171
        %p367 = pneg %p195
        %p368 = pneg %p192
        %p369 = pneg %p221
        %p370 = pneg %p218
        %s371 = sand.u32 %s208, 1
        %s372 = scalar_lea.sflag [#allocation4], %s371
        %s373 = sand.u32 %s208, 1
        %s374 = smul.addr %s373, 320
        %s375 = scalar_lea.vmem [#allocation10], %s374
        %s376 = smul.u32 40, %s27
        %s377 = smul.u32 40, %s27
        %v378 = vld [vmem:[%s327] sm:$0xff]
        %v379 = vld [vmem:[%s327 + $0x8] sm:$0xff]
        %v380 = vld [vmem:[%s327 + $0x10] sm:$0xff]
        %v381 = vld [vmem:[%s327 + $0x18] sm:$0xff]
        %v382 = vld [vmem:[%s327 + $0x20] sm:$0xff]
        %v383 = vld [vmem:[%s327 + $0x28] sm:$0xff]
        %v384 = vld [vmem:[%s327 + $0x30] sm:$0xff]
        %v385 = vld [vmem:[%s327 + $0x38] sm:$0xff]
        %v386 = vld [vmem:[%s327 + $0x40] sm:$0xff]
        %v387 = vld [vmem:[%s327 + $0x48] sm:$0xff]
        %v388 = vld [vmem:[%s327 + $0x50] sm:$0xff]
        %v389 = vld [vmem:[%s327 + $0x58] sm:$0xff]
        %v390 = vld [vmem:[%s327 + $0x60] sm:$0xff]
        %v391 = vld [vmem:[%s327 + $0x68] sm:$0xff]
        %v392 = vld [vmem:[%s327 + $0x70] sm:$0xff]
        %v393 = vld [vmem:[%s327 + $0x78] sm:$0xff]
        %v394 = vld [vmem:[%s327 + $0x80] sm:$0xff]
        %v395 = vld [vmem:[%s327 + $0x88] sm:$0xff]
        %v396 = vld [vmem:[%s327 + $0x90] sm:$0xff]
        %v397 = vld [vmem:[%s327 + $0x98] sm:$0xff]
        %v398 = vld [vmem:[%s327 + $0xa0] sm:$0xff]
        %v399 = vld [vmem:[%s327 + $0xa8] sm:$0xff]
        %v400 = vld [vmem:[%s327 + $0xb0] sm:$0xff]
        %v401 = vld [vmem:[%s327 + $0xb8] sm:$0xff]
        %v402 = vld [vmem:[%s327 + $0xc0] sm:$0xff]
        %v403 = vld [vmem:[%s327 + $0xc8] sm:$0xff]
        %v404 = vld [vmem:[%s327 + $0xd0] sm:$0xff]
        %v405 = vld [vmem:[%s327 + $0xd8] sm:$0xff]
        %v406 = vld [vmem:[%s327 + $0xe0] sm:$0xff]
        %v407 = vld [vmem:[%s327 + $0xe8] sm:$0xff]
        %v408 = vld [vmem:[%s327 + $0xf0] sm:$0xff]
        %v409 = vld [vmem:[%s327 + $0xf8] sm:$0xff]
        %v410 = vld [vmem:[%s327 + $0x100] sm:$0xff]
        %v411 = vld [vmem:[%s327 + $0x108] sm:$0xff]
        %v412 = vld [vmem:[%s327 + $0x110] sm:$0xff]
        %v413 = vld [vmem:[%s327 + $0x118] sm:$0xff]
        %v414 = vld [vmem:[%s327 + $0x120] sm:$0xff]
        %v415 = vld [vmem:[%s327 + $0x128] sm:$0xff]
        %v416 = vld [vmem:[%s327 + $0x130] sm:$0xff]
        %v417 = vld [vmem:[%s327 + $0x138] sm:$0xff]
        %v418 = vld [vmem:[#allocation8] sm:$0xff]
        %v419 = vld [vmem:[#allocation8 + $0x8] sm:$0xff]
        %v420 = vld [vmem:[#allocation8 + $0x10] sm:$0xff]
        %v421 = vld [vmem:[#allocation8 + $0x18] sm:$0xff]
        %v422 = vld [vmem:[#allocation8 + $0x20] sm:$0xff]
        %v423 = vld [vmem:[#allocation8 + $0x28] sm:$0xff]
        %v424 = vld [vmem:[#allocation8 + $0x30] sm:$0xff]
        %v425 = vld [vmem:[#allocation8 + $0x38] sm:$0xff]
        %v426 = vld [vmem:[#allocation8 + $0x40] sm:$0xff]
        %v427 = vld [vmem:[#allocation8 + $0x48] sm:$0xff]
        %v428 = vld [vmem:[#allocation8 + $0x50] sm:$0xff]
        %v429 = vld [vmem:[#allocation8 + $0x58] sm:$0xff]
        %v430 = vld [vmem:[#allocation8 + $0x60] sm:$0xff]
        %v431 = vld [vmem:[#allocation8 + $0x68] sm:$0xff]
        %v432 = vld [vmem:[#allocation8 + $0x70] sm:$0xff]
        %v433 = vld [vmem:[#allocation8 + $0x78] sm:$0xff]
        %v434 = vld [vmem:[#allocation8 + $0x80] sm:$0xff]
        %v435 = vld [vmem:[#allocation8 + $0x88] sm:$0xff]
        %v436 = vld [vmem:[#allocation8 + $0x90] sm:$0xff]
        %v437 = vld [vmem:[#allocation8 + $0x98] sm:$0xff]
        %v438 = vld [vmem:[#allocation5] sm:$0xff]
        %v439 = vld [vmem:[#allocation5 + $0x8] sm:$0xff]
        %v440 = vld [vmem:[#allocation5 + $0x10] sm:$0xff]
        %v441 = vld [vmem:[#allocation5 + $0x18] sm:$0xff]
        %v442 = vld [vmem:[#allocation5 + $0x20] sm:$0xff]
        %v443 = vld [vmem:[#allocation5 + $0x28] sm:$0xff]
        %v444 = vld [vmem:[#allocation5 + $0x30] sm:$0xff]
        %v445 = vld [vmem:[#allocation5 + $0x38] sm:$0xff]
        %v446 = vld [vmem:[#allocation5 + $0x40] sm:$0xff]
        %v447 = vld [vmem:[#allocation5 + $0x48] sm:$0xff]
        %v448 = vld [vmem:[#allocation5 + $0x50] sm:$0xff]
        %v449 = vld [vmem:[#allocation5 + $0x58] sm:$0xff]
        %v450 = vld [vmem:[#allocation5 + $0x60] sm:$0xff]
        %v451 = vld [vmem:[#allocation5 + $0x68] sm:$0xff]
        %v452 = vld [vmem:[#allocation5 + $0x70] sm:$0xff]
        %v453 = vld [vmem:[#allocation5 + $0x78] sm:$0xff]
        %v454 = vld [vmem:[#allocation5 + $0x80] sm:$0xff]
        %v455 = vld [vmem:[#allocation5 + $0x88] sm:$0xff]
        %v456 = vld [vmem:[#allocation5 + $0x90] sm:$0xff]
        %v457 = vld [vmem:[#allocation5 + $0x98] sm:$0xff]
        %v458 = vld [vmem:[#allocation5 + $0xa0] sm:$0xff]
        %v459 = vld [vmem:[#allocation5 + $0xa8] sm:$0xff]
        %v460 = vld [vmem:[#allocation5 + $0xb0] sm:$0xff]
        %v461 = vld [vmem:[#allocation5 + $0xb8] sm:$0xff]
        %v462 = vld [vmem:[#allocation5 + $0xc0] sm:$0xff]
        %v463 = vld [vmem:[#allocation5 + $0xc8] sm:$0xff]
        %v464 = vld [vmem:[#allocation5 + $0xd0] sm:$0xff]
        %v465 = vld [vmem:[#allocation5 + $0xd8] sm:$0xff]
        %v466 = vld [vmem:[#allocation5 + $0xe0] sm:$0xff]
        %v467 = vld [vmem:[#allocation5 + $0xe8] sm:$0xff]
        %v468 = vld [vmem:[#allocation5 + $0xf0] sm:$0xff]
        %v469 = vld [vmem:[#allocation5 + $0xf8] sm:$0xff]
        %v470 = vld [vmem:[#allocation5 + $0x100] sm:$0xff]
        %v471 = vld [vmem:[#allocation5 + $0x108] sm:$0xff]
        %v472 = vld [vmem:[#allocation5 + $0x110] sm:$0xff]
        %v473 = vld [vmem:[#allocation5 + $0x118] sm:$0xff]
        %v474 = vld [vmem:[#allocation5 + $0x120] sm:$0xff]
        %v475 = vld [vmem:[#allocation5 + $0x128] sm:$0xff]
        %v476 = vld [vmem:[#allocation5 + $0x130] sm:$0xff]
        %v477 = vld [vmem:[#allocation5 + $0x138] sm:$0xff]
        %v478 = vld [vmem:[#allocation5 + $0x140] sm:$0xff]
        %v479 = vld [vmem:[#allocation5 + $0x148] sm:$0xff]
        %v480 = vld [vmem:[#allocation5 + $0x150] sm:$0xff]
        %v481 = vld [vmem:[#allocation5 + $0x158] sm:$0xff]
        %v482 = vld [vmem:[#allocation5 + $0x160] sm:$0xff]
        %v483 = vld [vmem:[#allocation5 + $0x168] sm:$0xff]
        %v484 = vld [vmem:[#allocation5 + $0x170] sm:$0xff]
        %v485 = vld [vmem:[#allocation5 + $0x178] sm:$0xff]
        %486 = vmatpush.msra.mxu0 %v453
        %487 = vmatpush.msra.mxu0 %v452
        %488 = vmatpush.msra.mxu0 %v451
        %489 = vmatpush.msra.mxu0 %v450
        %490 = vmatpush.msra.mxu0 %v449
        %491 = vmatpush.msra.mxu0 %v448
        %492 = vmatpush.msra.mxu0 %v447
        %493 = vmatpush.msra.mxu0 %v446
        %494 = vmatpush.msra.mxu0 %v445
        %495 = vmatpush.msra.mxu0 %v444
        %496 = vmatpush.msra.mxu0 %v443
        %497 = vmatpush.msra.mxu0 %v442
        %498 = vmatpush.msra.mxu0 %v441
        %499 = vmatpush.msra.mxu0 %v440
        %500 = vmatpush.msra.mxu0 %v439
        %501 = vmatpush.msra.mxu0 %v438
        %502 = vmatmul.f32.gmra.mxu0 %v416
        %v503 = vpop.f32.mrf.mxu0
        %v504 = vadd.f32 0.0, %v503
        %505 = vmatmul.f32.gmra.mxu0 %v417
        %v506 = vpop.f32.mrf.mxu0
        %v507 = vadd.f32 0.0, %v506
        %508 = vmatmul.f32.gmra.mxu0 %v378
        %v509 = vpop.f32.mrf.mxu0
        %v510 = vadd.f32 0.0, %v509
        %511 = vmatmul.f32.gmra.mxu0 %v379
        %v512 = vpop.f32.mrf.mxu0
        %v513 = vadd.f32 0.0, %v512
        %514 = vmatmul.f32.gmra.mxu0 %v380
        %v515 = vpop.f32.mrf.mxu0
        %v516 = vadd.f32 0.0, %v515
        %517 = vmatmul.f32.gmra.mxu0 %v381
        %v518 = vpop.f32.mrf.mxu0
        %v519 = vadd.f32 0.0, %v518
        %520 = vmatmul.f32.gmra.mxu0 %v382
        %v521 = vpop.f32.mrf.mxu0
        %v522 = vadd.f32 0.0, %v521
        %523 = vmatmul.f32.gmra.mxu0 %v383
        %v524 = vpop.f32.mrf.mxu0
        %v525 = vadd.f32 0.0, %v524
        %526 = vmatmul.f32.gmra.mxu0 %v384
        %v527 = vpop.f32.mrf.mxu0
        %v528 = vadd.f32 0.0, %v527
        %529 = vmatmul.f32.gmra.mxu0 %v385
        %v530 = vpop.f32.mrf.mxu0
        %v531 = vadd.f32 0.0, %v530
        %532 = vmatmul.f32.gmra.mxu0 %v386
        %v533 = vpop.f32.mrf.mxu0
        %v534 = vadd.f32 0.0, %v533
        %535 = vmatmul.f32.gmra.mxu0 %v387
        %v536 = vpop.f32.mrf.mxu0
        %v537 = vadd.f32 0.0, %v536
        %538 = vmatmul.f32.gmra.mxu0 %v388
        %v539 = vpop.f32.mrf.mxu0
        %v540 = vadd.f32 0.0, %v539
        %541 = vmatmul.f32.gmra.mxu0 %v389
        %v542 = vpop.f32.mrf.mxu0
        %v543 = vadd.f32 0.0, %v542
        %544 = vmatmul.f32.gmra.mxu0 %v390
        %v545 = vpop.f32.mrf.mxu0
        %v546 = vadd.f32 0.0, %v545
        %547 = vmatmul.f32.gmra.mxu0 %v391
        %v548 = vpop.f32.mrf.mxu0
        %v549 = vadd.f32 0.0, %v548
        %550 = vmatmul.f32.gmra.mxu0 %v392
        %v551 = vpop.f32.mrf.mxu0
        %v552 = vadd.f32 0.0, %v551
        %553 = vmatmul.f32.gmra.mxu0 %v393
        %v554 = vpop.f32.mrf.mxu0
        %v555 = vadd.f32 0.0, %v554
        %556 = vmatmul.f32.gmra.mxu0 %v394
        %v557 = vpop.f32.mrf.mxu0
        %v558 = vadd.f32 0.0, %v557
        %559 = vmatmul.f32.gmra.mxu0 %v395
        %v560 = vpop.f32.mrf.mxu0
        %v561 = vadd.f32 0.0, %v560
        %562 = vmatmul.f32.gmra.mxu0 %v396
        %v563 = vpop.f32.mrf.mxu0
        %v564 = vadd.f32 0.0, %v563
        %565 = vmatmul.f32.gmra.mxu0 %v397
        %v566 = vpop.f32.mrf.mxu0
        %v567 = vadd.f32 0.0, %v566
        %568 = vmatmul.f32.gmra.mxu0 %v398
        %v569 = vpop.f32.mrf.mxu0
        %v570 = vadd.f32 0.0, %v569
        %571 = vmatmul.f32.gmra.mxu0 %v399
        %v572 = vpop.f32.mrf.mxu0
        %v573 = vadd.f32 0.0, %v572
        %574 = vmatmul.f32.gmra.mxu0 %v400
        %v575 = vpop.f32.mrf.mxu0
        %v576 = vadd.f32 0.0, %v575
        %577 = vmatmul.f32.gmra.mxu0 %v401
        %v578 = vpop.f32.mrf.mxu0
        %v579 = vadd.f32 0.0, %v578
        %580 = vmatmul.f32.gmra.mxu0 %v402
        %v581 = vpop.f32.mrf.mxu0
        %v582 = vadd.f32 0.0, %v581
        %583 = vmatmul.f32.gmra.mxu0 %v403
        %v584 = vpop.f32.mrf.mxu0
        %v585 = vadd.f32 0.0, %v584
        %586 = vmatmul.f32.gmra.mxu0 %v404
        %v587 = vpop.f32.mrf.mxu0
        %v588 = vadd.f32 0.0, %v587
        %589 = vmatmul.f32.gmra.mxu0 %v405
        %v590 = vpop.f32.mrf.mxu0
        %v591 = vadd.f32 0.0, %v590
        %592 = vmatmul.f32.gmra.mxu0 %v406
        %v593 = vpop.f32.mrf.mxu0
        %v594 = vadd.f32 0.0, %v593
        %595 = vmatmul.f32.gmra.mxu0 %v407
        %v596 = vpop.f32.mrf.mxu0
        %v597 = vadd.f32 0.0, %v596
        %598 = vmatmul.f32.gmra.mxu0 %v408
        %v599 = vpop.f32.mrf.mxu0
        %v600 = vadd.f32 0.0, %v599
        %601 = vmatmul.f32.gmra.mxu0 %v409
        %v602 = vpop.f32.mrf.mxu0
        %v603 = vadd.f32 0.0, %v602
        %604 = vmatmul.f32.gmra.mxu0 %v410
        %v605 = vpop.f32.mrf.mxu0
        %v606 = vadd.f32 0.0, %v605
        %607 = vmatmul.f32.gmra.mxu0 %v411
        %v608 = vpop.f32.mrf.mxu0
        %v609 = vadd.f32 0.0, %v608
        %610 = vmatmul.f32.gmra.mxu0 %v412
        %v611 = vpop.f32.mrf.mxu0
        %v612 = vadd.f32 0.0, %v611
        %613 = vmatmul.f32.gmra.mxu0 %v413
        %v614 = vpop.f32.mrf.mxu0
        %v615 = vadd.f32 0.0, %v614
        %616 = vmatmul.f32.gmra.mxu0 %v414
        %v617 = vpop.f32.mrf.mxu0
        %v618 = vadd.f32 0.0, %v617
        %619 = vmatmul.f32.gmra.mxu0 %v415
        %v620 = vpop.f32.mrf.mxu0
        %v621 = vadd.f32 0.0, %v620
        %622 = vdwg.mxu0
        %623 = vmatpush.msra.mxu0 %v469
        %624 = vmatpush.msra.mxu0 %v468
        %625 = vmatpush.msra.mxu0 %v467
        %626 = vmatpush.msra.mxu0 %v466
        %627 = vmatpush.msra.mxu0 %v465
        %628 = vmatpush.msra.mxu0 %v464
        %629 = vmatpush.msra.mxu0 %v463
        %630 = vmatpush.msra.mxu0 %v462
        %631 = vmatpush.msra.mxu0 %v461
        %632 = vmatpush.msra.mxu0 %v460
        %633 = vmatpush.msra.mxu0 %v459
        %634 = vmatpush.msra.mxu0 %v458
        %635 = vmatpush.msra.mxu0 %v457
        %636 = vmatpush.msra.mxu0 %v456
        %637 = vmatpush.msra.mxu0 %v455
        %638 = vmatpush.msra.mxu0 %v454
        %639 = vmatmul.f32.gmra.mxu0 %v378
        %v640 = vpop.f32.mrf.mxu0
        %v641 = vadd.f32 %v504, %v640
        %642 = vmatmul.f32.gmra.mxu0 %v379
        %v643 = vpop.f32.mrf.mxu0
        %v644 = vadd.f32 %v507, %v643
        %645 = vmatmul.f32.gmra.mxu0 %v380
        %v646 = vpop.f32.mrf.mxu0
        %v647 = vadd.f32 %v510, %v646
        %648 = vmatmul.f32.gmra.mxu0 %v381
        %v649 = vpop.f32.mrf.mxu0
        %v650 = vadd.f32 %v513, %v649
        %651 = vmatmul.f32.gmra.mxu0 %v382
        %v652 = vpop.f32.mrf.mxu0
        %v653 = vadd.f32 %v516, %v652
        %654 = vmatmul.f32.gmra.mxu0 %v383
        %v655 = vpop.f32.mrf.mxu0
        %v656 = vadd.f32 %v519, %v655
        %657 = vmatmul.f32.gmra.mxu0 %v384
        %v658 = vpop.f32.mrf.mxu0
        %v659 = vadd.f32 %v522, %v658
        %660 = vmatmul.f32.gmra.mxu0 %v385
        %v661 = vpop.f32.mrf.mxu0
        %v662 = vadd.f32 %v525, %v661
        %663 = vmatmul.f32.gmra.mxu0 %v386
        %v664 = vpop.f32.mrf.mxu0
        %v665 = vadd.f32 %v528, %v664
        %666 = vmatmul.f32.gmra.mxu0 %v387
        %v667 = vpop.f32.mrf.mxu0
        %v668 = vadd.f32 %v531, %v667
        %669 = vmatmul.f32.gmra.mxu0 %v388
        %v670 = vpop.f32.mrf.mxu0
        %v671 = vadd.f32 %v534, %v670
        %672 = vmatmul.f32.gmra.mxu0 %v389
        %v673 = vpop.f32.mrf.mxu0
        %v674 = vadd.f32 %v537, %v673
        %675 = vmatmul.f32.gmra.mxu0 %v390
        %v676 = vpop.f32.mrf.mxu0
        %v677 = vadd.f32 %v540, %v676
        %678 = vmatmul.f32.gmra.mxu0 %v391
        %v679 = vpop.f32.mrf.mxu0
        %v680 = vadd.f32 %v543, %v679
        %681 = vmatmul.f32.gmra.mxu0 %v392
        %v682 = vpop.f32.mrf.mxu0
        %v683 = vadd.f32 %v546, %v682
        %684 = vmatmul.f32.gmra.mxu0 %v393
        %v685 = vpop.f32.mrf.mxu0
        %v686 = vadd.f32 %v549, %v685
        %687 = vmatmul.f32.gmra.mxu0 %v394
        %v688 = vpop.f32.mrf.mxu0
        %v689 = vadd.f32 %v552, %v688
        %690 = vmatmul.f32.gmra.mxu0 %v395
        %v691 = vpop.f32.mrf.mxu0
        %v692 = vadd.f32 %v555, %v691
        %693 = vmatmul.f32.gmra.mxu0 %v396
        %v694 = vpop.f32.mrf.mxu0
        %v695 = vadd.f32 %v558, %v694
        %696 = vmatmul.f32.gmra.mxu0 %v397
        %v697 = vpop.f32.mrf.mxu0
        %v698 = vadd.f32 %v561, %v697
        %699 = vmatmul.f32.gmra.mxu0 %v398
        %v700 = vpop.f32.mrf.mxu0
        %v701 = vadd.f32 %v564, %v700
        %702 = vmatmul.f32.gmra.mxu0 %v399
        %v703 = vpop.f32.mrf.mxu0
        %v704 = vadd.f32 %v567, %v703
        %705 = vmatmul.f32.gmra.mxu0 %v400
        %v706 = vpop.f32.mrf.mxu0
        %v707 = vadd.f32 %v570, %v706
        %708 = vmatmul.f32.gmra.mxu0 %v401
        %v709 = vpop.f32.mrf.mxu0
        %v710 = vadd.f32 %v573, %v709
        %711 = vmatmul.f32.gmra.mxu0 %v402
        %v712 = vpop.f32.mrf.mxu0
        %v713 = vadd.f32 %v576, %v712
        %714 = vmatmul.f32.gmra.mxu0 %v403
        %v715 = vpop.f32.mrf.mxu0
        %v716 = vadd.f32 %v579, %v715
        %717 = vmatmul.f32.gmra.mxu0 %v404
        %v718 = vpop.f32.mrf.mxu0
        %v719 = vadd.f32 %v582, %v718
        %720 = vmatmul.f32.gmra.mxu0 %v405
        %v721 = vpop.f32.mrf.mxu0
        %v722 = vadd.f32 %v585, %v721
        %723 = vmatmul.f32.gmra.mxu0 %v406
        %v724 = vpop.f32.mrf.mxu0
        %v725 = vadd.f32 %v588, %v724
        %726 = vmatmul.f32.gmra.mxu0 %v407
        %v727 = vpop.f32.mrf.mxu0
        %v728 = vadd.f32 %v591, %v727
        %729 = vmatmul.f32.gmra.mxu0 %v408
        %v730 = vpop.f32.mrf.mxu0
        %v731 = vadd.f32 %v594, %v730
        %732 = vmatmul.f32.gmra.mxu0 %v409
        %v733 = vpop.f32.mrf.mxu0
        %v734 = vadd.f32 %v597, %v733
        %735 = vmatmul.f32.gmra.mxu0 %v410
        %v736 = vpop.f32.mrf.mxu0
        %v737 = vadd.f32 %v600, %v736
        %738 = vmatmul.f32.gmra.mxu0 %v411
        %v739 = vpop.f32.mrf.mxu0
        %v740 = vadd.f32 %v603, %v739
        %741 = vmatmul.f32.gmra.mxu0 %v412
        %v742 = vpop.f32.mrf.mxu0
        %v743 = vadd.f32 %v606, %v742
        %744 = vmatmul.f32.gmra.mxu0 %v413
        %v745 = vpop.f32.mrf.mxu0
        %v746 = vadd.f32 %v609, %v745
        %747 = vmatmul.f32.gmra.mxu0 %v414
        %v748 = vpop.f32.mrf.mxu0
        %v749 = vadd.f32 %v612, %v748
        %750 = vmatmul.f32.gmra.mxu0 %v415
        %v751 = vpop.f32.mrf.mxu0
        %v752 = vadd.f32 %v615, %v751
        %753 = vmatmul.f32.gmra.mxu0 %v416
        %v754 = vpop.f32.mrf.mxu0
        %v755 = vadd.f32 %v618, %v754
        %756 = vmatmul.f32.gmra.mxu0 %v417
        %v757 = vpop.f32.mrf.mxu0
        %v758 = vadd.f32 %v621, %v757
        %759 = vdwg.mxu0
        %760 = vmatpush.msra.mxu0 %v485
        %761 = vmatpush.msra.mxu0 %v484
        %762 = vmatpush.msra.mxu0 %v483
        %763 = vmatpush.msra.mxu0 %v482
        %764 = vmatpush.msra.mxu0 %v481
        %765 = vmatpush.msra.mxu0 %v480
        %766 = vmatpush.msra.mxu0 %v479
        %767 = vmatpush.msra.mxu0 %v478
        %768 = vmatpush.msra.mxu0 %v477
        %769 = vmatpush.msra.mxu0 %v476
        %770 = vmatpush.msra.mxu0 %v475
        %771 = vmatpush.msra.mxu0 %v474
        %772 = vmatpush.msra.mxu0 %v473
        %773 = vmatpush.msra.mxu0 %v472
        %774 = vmatpush.msra.mxu0 %v471
        %775 = vmatpush.msra.mxu0 %v470
        %776 = vmatmul.f32.gmra.mxu0 %v380
        %v777 = vpop.f32.mrf.mxu0
        %v778 = vadd.f32 %v641, %v777
        %779 = vmatmul.f32.gmra.mxu0 %v381
        %v780 = vpop.f32.mrf.mxu0
        %v781 = vadd.f32 %v644, %v780
        %782 = vmatmul.f32.gmra.mxu0 %v382
        %v783 = vpop.f32.mrf.mxu0
        %v784 = vadd.f32 %v647, %v783
        %785 = vmatmul.f32.gmra.mxu0 %v383
        %v786 = vpop.f32.mrf.mxu0
        %v787 = vadd.f32 %v650, %v786
        %788 = vmatmul.f32.gmra.mxu0 %v384
        %v789 = vpop.f32.mrf.mxu0
        %v790 = vadd.f32 %v653, %v789
        %791 = vmatmul.f32.gmra.mxu0 %v385
        %v792 = vpop.f32.mrf.mxu0
        %v793 = vadd.f32 %v656, %v792
        %794 = vmatmul.f32.gmra.mxu0 %v386
        %v795 = vpop.f32.mrf.mxu0
        %v796 = vadd.f32 %v659, %v795
        %797 = vmatmul.f32.gmra.mxu0 %v387
        %v798 = vpop.f32.mrf.mxu0
        %v799 = vadd.f32 %v662, %v798
        %800 = vmatmul.f32.gmra.mxu0 %v388
        %v801 = vpop.f32.mrf.mxu0
        %v802 = vadd.f32 %v665, %v801
        %803 = vmatmul.f32.gmra.mxu0 %v389
        %v804 = vpop.f32.mrf.mxu0
        %v805 = vadd.f32 %v668, %v804
        %806 = vmatmul.f32.gmra.mxu0 %v390
        %v807 = vpop.f32.mrf.mxu0
        %v808 = vadd.f32 %v671, %v807
        %809 = vmatmul.f32.gmra.mxu0 %v391
        %v810 = vpop.f32.mrf.mxu0
        %v811 = vadd.f32 %v674, %v810
        %812 = vmatmul.f32.gmra.mxu0 %v392
        %v813 = vpop.f32.mrf.mxu0
        %v814 = vadd.f32 %v677, %v813
        %815 = vmatmul.f32.gmra.mxu0 %v393
        %v816 = vpop.f32.mrf.mxu0
        %v817 = vadd.f32 %v680, %v816
        %818 = vmatmul.f32.gmra.mxu0 %v394
        %v819 = vpop.f32.mrf.mxu0
        %v820 = vadd.f32 %v683, %v819
        %821 = vmatmul.f32.gmra.mxu0 %v395
        %v822 = vpop.f32.mrf.mxu0
        %v823 = vadd.f32 %v686, %v822
        %824 = vmatmul.f32.gmra.mxu0 %v396
        %v825 = vpop.f32.mrf.mxu0
        %v826 = vadd.f32 %v689, %v825
        %827 = vmatmul.f32.gmra.mxu0 %v397
        %v828 = vpop.f32.mrf.mxu0
        %v829 = vadd.f32 %v692, %v828
        %830 = vmatmul.f32.gmra.mxu0 %v398
        %v831 = vpop.f32.mrf.mxu0
        %v832 = vadd.f32 %v695, %v831
        %833 = vmatmul.f32.gmra.mxu0 %v399
        %v834 = vpop.f32.mrf.mxu0
        %v835 = vadd.f32 %v698, %v834
        %836 = vmatmul.f32.gmra.mxu0 %v400
        %v837 = vpop.f32.mrf.mxu0
        %v838 = vadd.f32 %v701, %v837
        %839 = vmatmul.f32.gmra.mxu0 %v401
        %v840 = vpop.f32.mrf.mxu0
        %v841 = vadd.f32 %v704, %v840
        %842 = vmatmul.f32.gmra.mxu0 %v402
        %v843 = vpop.f32.mrf.mxu0
        %v844 = vadd.f32 %v707, %v843
        %845 = vmatmul.f32.gmra.mxu0 %v403
        %v846 = vpop.f32.mrf.mxu0
        %v847 = vadd.f32 %v710, %v846
        %848 = vmatmul.f32.gmra.mxu0 %v404
        %v849 = vpop.f32.mrf.mxu0
        %v850 = vadd.f32 %v713, %v849
        %851 = vmatmul.f32.gmra.mxu0 %v405
        %v852 = vpop.f32.mrf.mxu0
        %v853 = vadd.f32 %v716, %v852
        %854 = vmatmul.f32.gmra.mxu0 %v406
        %v855 = vpop.f32.mrf.mxu0
        %v856 = vadd.f32 %v719, %v855
        %857 = vmatmul.f32.gmra.mxu0 %v407
        %v858 = vpop.f32.mrf.mxu0
        %v859 = vadd.f32 %v722, %v858
        %860 = vmatmul.f32.gmra.mxu0 %v408
        %v861 = vpop.f32.mrf.mxu0
        %v862 = vadd.f32 %v725, %v861
        %863 = vmatmul.f32.gmra.mxu0 %v409
        %v864 = vpop.f32.mrf.mxu0
        %v865 = vadd.f32 %v728, %v864
        %866 = vmatmul.f32.gmra.mxu0 %v410
        %v867 = vpop.f32.mrf.mxu0
        %v868 = vadd.f32 %v731, %v867
        %869 = vmatmul.f32.gmra.mxu0 %v411
        %v870 = vpop.f32.mrf.mxu0
        %v871 = vadd.f32 %v734, %v870
        %872 = vmatmul.f32.gmra.mxu0 %v412
        %v873 = vpop.f32.mrf.mxu0
        %v874 = vadd.f32 %v737, %v873
        %875 = vmatmul.f32.gmra.mxu0 %v413
        %v876 = vpop.f32.mrf.mxu0
        %v877 = vadd.f32 %v740, %v876
        %878 = vmatmul.f32.gmra.mxu0 %v414
        %v879 = vpop.f32.mrf.mxu0
        %v880 = vadd.f32 %v743, %v879
        %881 = vmatmul.f32.gmra.mxu0 %v415
        %v882 = vpop.f32.mrf.mxu0
        %v883 = vadd.f32 %v746, %v882
        %884 = vmatmul.f32.gmra.mxu0 %v416
        %v885 = vpop.f32.mrf.mxu0
        %v886 = vadd.f32 %v749, %v885
        %887 = vmatmul.f32.gmra.mxu0 %v417
        %v888 = vpop.f32.mrf.mxu0
        %v889 = vadd.f32 %v752, %v888
        %890 = vmatmul.f32.gmra.mxu0 %v378
        %v891 = vpop.f32.mrf.mxu0
        %v892 = vadd.f32 %v755, %v891
        %893 = vmatmul.f32.gmra.mxu0 %v379
        %v894 = vpop.f32.mrf.mxu0
        %v895 = vadd.f32 %v758, %v894
        %896 = vdwg.mxu0
        %s897 = scalar_lea.vmem [#allocation5], 384
        %v898 = vld [vmem:[%s897] sm:$0xff]
        %v899 = vld [vmem:[%s897 + $0x8] sm:$0xff]
        %v900 = vld [vmem:[%s897 + $0x10] sm:$0xff]
        %v901 = vld [vmem:[%s897 + $0x18] sm:$0xff]
        %v902 = vld [vmem:[%s897 + $0x20] sm:$0xff]
        %v903 = vld [vmem:[%s897 + $0x28] sm:$0xff]
        %v904 = vld [vmem:[%s897 + $0x30] sm:$0xff]
        %v905 = vld [vmem:[%s897 + $0x38] sm:$0xff]
        %v906 = vld [vmem:[%s897 + $0x40] sm:$0xff]
        %v907 = vld [vmem:[%s897 + $0x48] sm:$0xff]
        %v908 = vld [vmem:[%s897 + $0x50] sm:$0xff]
        %v909 = vld [vmem:[%s897 + $0x58] sm:$0xff]
        %v910 = vld [vmem:[%s897 + $0x60] sm:$0xff]
        %v911 = vld [vmem:[%s897 + $0x68] sm:$0xff]
        %v912 = vld [vmem:[%s897 + $0x70] sm:$0xff]
        %v913 = vld [vmem:[%s897 + $0x78] sm:$0xff]
        %v914 = vld [vmem:[%s897 + $0x80] sm:$0xff]
        %v915 = vld [vmem:[%s897 + $0x88] sm:$0xff]
        %v916 = vld [vmem:[%s897 + $0x90] sm:$0xff]
        %v917 = vld [vmem:[%s897 + $0x98] sm:$0xff]
        %v918 = vld [vmem:[%s897 + $0xa0] sm:$0xff]
        %v919 = vld [vmem:[%s897 + $0xa8] sm:$0xff]
        %v920 = vld [vmem:[%s897 + $0xb0] sm:$0xff]
        %v921 = vld [vmem:[%s897 + $0xb8] sm:$0xff]
        %v922 = vld [vmem:[%s897 + $0xc0] sm:$0xff]
        %v923 = vld [vmem:[%s897 + $0xc8] sm:$0xff]
        %v924 = vld [vmem:[%s897 + $0xd0] sm:$0xff]
        %v925 = vld [vmem:[%s897 + $0xd8] sm:$0xff]
        %v926 = vld [vmem:[%s897 + $0xe0] sm:$0xff]
        %v927 = vld [vmem:[%s897 + $0xe8] sm:$0xff]
        %v928 = vld [vmem:[%s897 + $0xf0] sm:$0xff]
        %v929 = vld [vmem:[%s897 + $0xf8] sm:$0xff]
        %v930 = vld [vmem:[%s897 + $0x100] sm:$0xff]
        %v931 = vld [vmem:[%s897 + $0x108] sm:$0xff]
        %v932 = vld [vmem:[%s897 + $0x110] sm:$0xff]
        %v933 = vld [vmem:[%s897 + $0x118] sm:$0xff]
        %v934 = vld [vmem:[%s897 + $0x120] sm:$0xff]
        %v935 = vld [vmem:[%s897 + $0x128] sm:$0xff]
        %v936 = vld [vmem:[%s897 + $0x130] sm:$0xff]
        %v937 = vld [vmem:[%s897 + $0x138] sm:$0xff]
        %v938 = vld [vmem:[%s897 + $0x140] sm:$0xff]
        %v939 = vld [vmem:[%s897 + $0x148] sm:$0xff]
        %v940 = vld [vmem:[%s897 + $0x150] sm:$0xff]
        %v941 = vld [vmem:[%s897 + $0x158] sm:$0xff]
        %v942 = vld [vmem:[%s897 + $0x160] sm:$0xff]
        %v943 = vld [vmem:[%s897 + $0x168] sm:$0xff]
        %v944 = vld [vmem:[%s897 + $0x170] sm:$0xff]
        %v945 = vld [vmem:[%s897 + $0x178] sm:$0xff]
        %946 = vmatpush.msra.mxu0 %v913
        %947 = vmatpush.msra.mxu0 %v912
        %948 = vmatpush.msra.mxu0 %v911
        %949 = vmatpush.msra.mxu0 %v910
        %950 = vmatpush.msra.mxu0 %v909
        %951 = vmatpush.msra.mxu0 %v908
        %952 = vmatpush.msra.mxu0 %v907
        %953 = vmatpush.msra.mxu0 %v906
        %954 = vmatpush.msra.mxu0 %v905
        %955 = vmatpush.msra.mxu0 %v904
        %956 = vmatpush.msra.mxu0 %v903
        %957 = vmatpush.msra.mxu0 %v902
        %958 = vmatpush.msra.mxu0 %v901
        %959 = vmatpush.msra.mxu0 %v900
        %960 = vmatpush.msra.mxu0 %v899
        %961 = vmatpush.msra.mxu0 %v898
        %962 = vmatmul.f32.gmra.mxu0 %v416
        %v963 = vpop.f32.mrf.mxu0
        %v964 = vadd.f32 0.0, %v963
        %965 = vmatmul.f32.gmra.mxu0 %v417
        %v966 = vpop.f32.mrf.mxu0
        %v967 = vadd.f32 0.0, %v966
        %968 = vmatmul.f32.gmra.mxu0 %v378
        %v969 = vpop.f32.mrf.mxu0
        %v970 = vadd.f32 0.0, %v969
        %971 = vmatmul.f32.gmra.mxu0 %v379
        %v972 = vpop.f32.mrf.mxu0
        %v973 = vadd.f32 0.0, %v972
        %974 = vmatmul.f32.gmra.mxu0 %v380
        %v975 = vpop.f32.mrf.mxu0
        %v976 = vadd.f32 0.0, %v975
        %977 = vmatmul.f32.gmra.mxu0 %v381
        %v978 = vpop.f32.mrf.mxu0
        %v979 = vadd.f32 0.0, %v978
        %980 = vmatmul.f32.gmra.mxu0 %v382
        %v981 = vpop.f32.mrf.mxu0
        %v982 = vadd.f32 0.0, %v981
        %983 = vmatmul.f32.gmra.mxu0 %v383
        %v984 = vpop.f32.mrf.mxu0
        %v985 = vadd.f32 0.0, %v984
        %986 = vmatmul.f32.gmra.mxu0 %v384
        %v987 = vpop.f32.mrf.mxu0
        %v988 = vadd.f32 0.0, %v987
        %989 = vmatmul.f32.gmra.mxu0 %v385
        %v990 = vpop.f32.mrf.mxu0
        %v991 = vadd.f32 0.0, %v990
        %992 = vmatmul.f32.gmra.mxu0 %v386
        %v993 = vpop.f32.mrf.mxu0
        %v994 = vadd.f32 0.0, %v993
        %995 = vmatmul.f32.gmra.mxu0 %v387
        %v996 = vpop.f32.mrf.mxu0
        %v997 = vadd.f32 0.0, %v996
        %998 = vmatmul.f32.gmra.mxu0 %v388
        %v999 = vpop.f32.mrf.mxu0
        %v1000 = vadd.f32 0.0, %v999
        %1001 = vmatmul.f32.gmra.mxu0 %v389
        %v1002 = vpop.f32.mrf.mxu0
        %v1003 = vadd.f32 0.0, %v1002
        %1004 = vmatmul.f32.gmra.mxu0 %v390
        %v1005 = vpop.f32.mrf.mxu0
        %v1006 = vadd.f32 0.0, %v1005
        %1007 = vmatmul.f32.gmra.mxu0 %v391
        %v1008 = vpop.f32.mrf.mxu0
        %v1009 = vadd.f32 0.0, %v1008
        %1010 = vmatmul.f32.gmra.mxu0 %v392
        %v1011 = vpop.f32.mrf.mxu0
        %v1012 = vadd.f32 0.0, %v1011
        %1013 = vmatmul.f32.gmra.mxu0 %v393
        %v1014 = vpop.f32.mrf.mxu0
        %v1015 = vadd.f32 0.0, %v1014
        %1016 = vmatmul.f32.gmra.mxu0 %v394
        %v1017 = vpop.f32.mrf.mxu0
        %v1018 = vadd.f32 0.0, %v1017
        %1019 = vmatmul.f32.gmra.mxu0 %v395
        %v1020 = vpop.f32.mrf.mxu0
        %v1021 = vadd.f32 0.0, %v1020
        %1022 = vmatmul.f32.gmra.mxu0 %v396
        %v1023 = vpop.f32.mrf.mxu0
        %v1024 = vadd.f32 0.0, %v1023
        %1025 = vmatmul.f32.gmra.mxu0 %v397
        %v1026 = vpop.f32.mrf.mxu0
        %v1027 = vadd.f32 0.0, %v1026
        %1028 = vmatmul.f32.gmra.mxu0 %v398
        %v1029 = vpop.f32.mrf.mxu0
        %v1030 = vadd.f32 0.0, %v1029
        %1031 = vmatmul.f32.gmra.mxu0 %v399
        %v1032 = vpop.f32.mrf.mxu0
        %v1033 = vadd.f32 0.0, %v1032
        %1034 = vmatmul.f32.gmra.mxu0 %v400
        %v1035 = vpop.f32.mrf.mxu0
        %v1036 = vadd.f32 0.0, %v1035
        %1037 = vmatmul.f32.gmra.mxu0 %v401
        %v1038 = vpop.f32.mrf.mxu0
        %v1039 = vadd.f32 0.0, %v1038
        %1040 = vmatmul.f32.gmra.mxu0 %v402
        %v1041 = vpop.f32.mrf.mxu0
        %v1042 = vadd.f32 0.0, %v1041
        %1043 = vmatmul.f32.gmra.mxu0 %v403
        %v1044 = vpop.f32.mrf.mxu0
        %v1045 = vadd.f32 0.0, %v1044
        %1046 = vmatmul.f32.gmra.mxu0 %v404
        %v1047 = vpop.f32.mrf.mxu0
        %v1048 = vadd.f32 0.0, %v1047
        %1049 = vmatmul.f32.gmra.mxu0 %v405
        %v1050 = vpop.f32.mrf.mxu0
        %v1051 = vadd.f32 0.0, %v1050
        %1052 = vmatmul.f32.gmra.mxu0 %v406
        %v1053 = vpop.f32.mrf.mxu0
        %v1054 = vadd.f32 0.0, %v1053
        %1055 = vmatmul.f32.gmra.mxu0 %v407
        %v1056 = vpop.f32.mrf.mxu0
        %v1057 = vadd.f32 0.0, %v1056
        %1058 = vmatmul.f32.gmra.mxu0 %v408
        %v1059 = vpop.f32.mrf.mxu0
        %v1060 = vadd.f32 0.0, %v1059
        %1061 = vmatmul.f32.gmra.mxu0 %v409
        %v1062 = vpop.f32.mrf.mxu0
        %v1063 = vadd.f32 0.0, %v1062
        %1064 = vmatmul.f32.gmra.mxu0 %v410
        %v1065 = vpop.f32.mrf.mxu0
        %v1066 = vadd.f32 0.0, %v1065
        %1067 = vmatmul.f32.gmra.mxu0 %v411
        %v1068 = vpop.f32.mrf.mxu0
        %v1069 = vadd.f32 0.0, %v1068
        %1070 = vmatmul.f32.gmra.mxu0 %v412
        %v1071 = vpop.f32.mrf.mxu0
        %v1072 = vadd.f32 0.0, %v1071
        %1073 = vmatmul.f32.gmra.mxu0 %v413
        %v1074 = vpop.f32.mrf.mxu0
        %v1075 = vadd.f32 0.0, %v1074
        %1076 = vmatmul.f32.gmra.mxu0 %v414
        %v1077 = vpop.f32.mrf.mxu0
        %v1078 = vadd.f32 0.0, %v1077
        %1079 = vmatmul.f32.gmra.mxu0 %v415
        %v1080 = vpop.f32.mrf.mxu0
        %v1081 = vadd.f32 0.0, %v1080
        %1082 = vdwg.mxu0
        %1083 = vmatpush.msra.mxu0 %v929
        %1084 = vmatpush.msra.mxu0 %v928
        %1085 = vmatpush.msra.mxu0 %v927
        %1086 = vmatpush.msra.mxu0 %v926
        %1087 = vmatpush.msra.mxu0 %v925
        %1088 = vmatpush.msra.mxu0 %v924
        %1089 = vmatpush.msra.mxu0 %v923
        %1090 = vmatpush.msra.mxu0 %v922
        %1091 = vmatpush.msra.mxu0 %v921
        %1092 = vmatpush.msra.mxu0 %v920
        %1093 = vmatpush.msra.mxu0 %v919
        %1094 = vmatpush.msra.mxu0 %v918
        %1095 = vmatpush.msra.mxu0 %v917
        %1096 = vmatpush.msra.mxu0 %v916
        %1097 = vmatpush.msra.mxu0 %v915
        %1098 = vmatpush.msra.mxu0 %v914
        %1099 = vmatmul.f32.gmra.mxu0 %v378
        %v1100 = vpop.f32.mrf.mxu0
        %v1101 = vadd.f32 %v964, %v1100
        %1102 = vmatmul.f32.gmra.mxu0 %v379
        %v1103 = vpop.f32.mrf.mxu0
        %v1104 = vadd.f32 %v967, %v1103
        %1105 = vmatmul.f32.gmra.mxu0 %v380
        %v1106 = vpop.f32.mrf.mxu0
        %v1107 = vadd.f32 %v970, %v1106
        %1108 = vmatmul.f32.gmra.mxu0 %v381
        %v1109 = vpop.f32.mrf.mxu0
        %v1110 = vadd.f32 %v973, %v1109
        %1111 = vmatmul.f32.gmra.mxu0 %v382
        %v1112 = vpop.f32.mrf.mxu0
        %v1113 = vadd.f32 %v976, %v1112
        %1114 = vmatmul.f32.gmra.mxu0 %v383
        %v1115 = vpop.f32.mrf.mxu0
        %v1116 = vadd.f32 %v979, %v1115
        %1117 = vmatmul.f32.gmra.mxu0 %v384
        %v1118 = vpop.f32.mrf.mxu0
        %v1119 = vadd.f32 %v982, %v1118
        %1120 = vmatmul.f32.gmra.mxu0 %v385
        %v1121 = vpop.f32.mrf.mxu0
        %v1122 = vadd.f32 %v985, %v1121
        %1123 = vmatmul.f32.gmra.mxu0 %v386
        %v1124 = vpop.f32.mrf.mxu0
        %v1125 = vadd.f32 %v988, %v1124
        %1126 = vmatmul.f32.gmra.mxu0 %v387
        %v1127 = vpop.f32.mrf.mxu0
        %v1128 = vadd.f32 %v991, %v1127
        %1129 = vmatmul.f32.gmra.mxu0 %v388
        %v1130 = vpop.f32.mrf.mxu0
        %v1131 = vadd.f32 %v994, %v1130
        %1132 = vmatmul.f32.gmra.mxu0 %v389
        %v1133 = vpop.f32.mrf.mxu0
        %v1134 = vadd.f32 %v997, %v1133
        %1135 = vmatmul.f32.gmra.mxu0 %v390
        %v1136 = vpop.f32.mrf.mxu0
        %v1137 = vadd.f32 %v1000, %v1136
        %1138 = vmatmul.f32.gmra.mxu0 %v391
        %v1139 = vpop.f32.mrf.mxu0
        %v1140 = vadd.f32 %v1003, %v1139
        %1141 = vmatmul.f32.gmra.mxu0 %v392
        %v1142 = vpop.f32.mrf.mxu0
        %v1143 = vadd.f32 %v1006, %v1142
        %1144 = vmatmul.f32.gmra.mxu0 %v393
        %v1145 = vpop.f32.mrf.mxu0
        %v1146 = vadd.f32 %v1009, %v1145
        %1147 = vmatmul.f32.gmra.mxu0 %v394
        %v1148 = vpop.f32.mrf.mxu0
        %v1149 = vadd.f32 %v1012, %v1148
        %1150 = vmatmul.f32.gmra.mxu0 %v395
        %v1151 = vpop.f32.mrf.mxu0
        %v1152 = vadd.f32 %v1015, %v1151
        %1153 = vmatmul.f32.gmra.mxu0 %v396
        %v1154 = vpop.f32.mrf.mxu0
        %v1155 = vadd.f32 %v1018, %v1154
        %1156 = vmatmul.f32.gmra.mxu0 %v397
        %v1157 = vpop.f32.mrf.mxu0
        %v1158 = vadd.f32 %v1021, %v1157
        %1159 = vmatmul.f32.gmra.mxu0 %v398
        %v1160 = vpop.f32.mrf.mxu0
        %v1161 = vadd.f32 %v1024, %v1160
        %1162 = vmatmul.f32.gmra.mxu0 %v399
        %v1163 = vpop.f32.mrf.mxu0
        %v1164 = vadd.f32 %v1027, %v1163
        %1165 = vmatmul.f32.gmra.mxu0 %v400
        %v1166 = vpop.f32.mrf.mxu0
        %v1167 = vadd.f32 %v1030, %v1166
        %1168 = vmatmul.f32.gmra.mxu0 %v401
        %v1169 = vpop.f32.mrf.mxu0
        %v1170 = vadd.f32 %v1033, %v1169
        %1171 = vmatmul.f32.gmra.mxu0 %v402
        %v1172 = vpop.f32.mrf.mxu0
        %v1173 = vadd.f32 %v1036, %v1172
        %1174 = vmatmul.f32.gmra.mxu0 %v403
        %v1175 = vpop.f32.mrf.mxu0
        %v1176 = vadd.f32 %v1039, %v1175
        %1177 = vmatmul.f32.gmra.mxu0 %v404
        %v1178 = vpop.f32.mrf.mxu0
        %v1179 = vadd.f32 %v1042, %v1178
        %1180 = vmatmul.f32.gmra.mxu0 %v405
        %v1181 = vpop.f32.mrf.mxu0
        %v1182 = vadd.f32 %v1045, %v1181
        %1183 = vmatmul.f32.gmra.mxu0 %v406
        %v1184 = vpop.f32.mrf.mxu0
        %v1185 = vadd.f32 %v1048, %v1184
        %1186 = vmatmul.f32.gmra.mxu0 %v407
        %v1187 = vpop.f32.mrf.mxu0
        %v1188 = vadd.f32 %v1051, %v1187
        %1189 = vmatmul.f32.gmra.mxu0 %v408
        %v1190 = vpop.f32.mrf.mxu0
        %v1191 = vadd.f32 %v1054, %v1190
        %1192 = vmatmul.f32.gmra.mxu0 %v409
        %v1193 = vpop.f32.mrf.mxu0
        %v1194 = vadd.f32 %v1057, %v1193
        %1195 = vmatmul.f32.gmra.mxu0 %v410
        %v1196 = vpop.f32.mrf.mxu0
        %v1197 = vadd.f32 %v1060, %v1196
        %1198 = vmatmul.f32.gmra.mxu0 %v411
        %v1199 = vpop.f32.mrf.mxu0
        %v1200 = vadd.f32 %v1063, %v1199
        %1201 = vmatmul.f32.gmra.mxu0 %v412
        %v1202 = vpop.f32.mrf.mxu0
        %v1203 = vadd.f32 %v1066, %v1202
        %1204 = vmatmul.f32.gmra.mxu0 %v413
        %v1205 = vpop.f32.mrf.mxu0
        %v1206 = vadd.f32 %v1069, %v1205
        %1207 = vmatmul.f32.gmra.mxu0 %v414
        %v1208 = vpop.f32.mrf.mxu0
        %v1209 = vadd.f32 %v1072, %v1208
        %1210 = vmatmul.f32.gmra.mxu0 %v415
        %v1211 = vpop.f32.mrf.mxu0
        %v1212 = vadd.f32 %v1075, %v1211
        %1213 = vmatmul.f32.gmra.mxu0 %v416
        %v1214 = vpop.f32.mrf.mxu0
        %v1215 = vadd.f32 %v1078, %v1214
        %1216 = vmatmul.f32.gmra.mxu0 %v417
        %v1217 = vpop.f32.mrf.mxu0
        %v1218 = vadd.f32 %v1081, %v1217
        %1219 = vdwg.mxu0
        %1220 = vmatpush.msra.mxu0 %v945
        %1221 = vmatpush.msra.mxu0 %v944
        %1222 = vmatpush.msra.mxu0 %v943
        %1223 = vmatpush.msra.mxu0 %v942
        %1224 = vmatpush.msra.mxu0 %v941
        %1225 = vmatpush.msra.mxu0 %v940
        %1226 = vmatpush.msra.mxu0 %v939
        %1227 = vmatpush.msra.mxu0 %v938
        %1228 = vmatpush.msra.mxu0 %v937
        %1229 = vmatpush.msra.mxu0 %v936
        %1230 = vmatpush.msra.mxu0 %v935
        %1231 = vmatpush.msra.mxu0 %v934
        %1232 = vmatpush.msra.mxu0 %v933
        %1233 = vmatpush.msra.mxu0 %v932
        %1234 = vmatpush.msra.mxu0 %v931
        %1235 = vmatpush.msra.mxu0 %v930
        %1236 = vmatmul.f32.gmra.mxu0 %v380
        %v1237 = vpop.f32.mrf.mxu0
        %v1238 = vadd.f32 %v1101, %v1237
        %1239 = vmatmul.f32.gmra.mxu0 %v381
        %v1240 = vpop.f32.mrf.mxu0
        %v1241 = vadd.f32 %v1104, %v1240
        %1242 = vmatmul.f32.gmra.mxu0 %v382
        %v1243 = vpop.f32.mrf.mxu0
        %v1244 = vadd.f32 %v1107, %v1243
        %1245 = vmatmul.f32.gmra.mxu0 %v383
        %v1246 = vpop.f32.mrf.mxu0
        %v1247 = vadd.f32 %v1110, %v1246
        %1248 = vmatmul.f32.gmra.mxu0 %v384
        %v1249 = vpop.f32.mrf.mxu0
        %v1250 = vadd.f32 %v1113, %v1249
        %1251 = vmatmul.f32.gmra.mxu0 %v385
        %v1252 = vpop.f32.mrf.mxu0
        %v1253 = vadd.f32 %v1116, %v1252
        %1254 = vmatmul.f32.gmra.mxu0 %v386
        %v1255 = vpop.f32.mrf.mxu0
        %v1256 = vadd.f32 %v1119, %v1255
        %1257 = vmatmul.f32.gmra.mxu0 %v387
        %v1258 = vpop.f32.mrf.mxu0
        %v1259 = vadd.f32 %v1122, %v1258
        %1260 = vmatmul.f32.gmra.mxu0 %v388
        %v1261 = vpop.f32.mrf.mxu0
        %v1262 = vadd.f32 %v1125, %v1261
        %1263 = vmatmul.f32.gmra.mxu0 %v389
        %v1264 = vpop.f32.mrf.mxu0
        %v1265 = vadd.f32 %v1128, %v1264
        %1266 = vmatmul.f32.gmra.mxu0 %v390
        %v1267 = vpop.f32.mrf.mxu0
        %v1268 = vadd.f32 %v1131, %v1267
        %1269 = vmatmul.f32.gmra.mxu0 %v391
        %v1270 = vpop.f32.mrf.mxu0
        %v1271 = vadd.f32 %v1134, %v1270
        %1272 = vmatmul.f32.gmra.mxu0 %v392
        %v1273 = vpop.f32.mrf.mxu0
        %v1274 = vadd.f32 %v1137, %v1273
        %1275 = vmatmul.f32.gmra.mxu0 %v393
        %v1276 = vpop.f32.mrf.mxu0
        %v1277 = vadd.f32 %v1140, %v1276
        %1278 = vmatmul.f32.gmra.mxu0 %v394
        %v1279 = vpop.f32.mrf.mxu0
        %v1280 = vadd.f32 %v1143, %v1279
        %1281 = vmatmul.f32.gmra.mxu0 %v395
        %v1282 = vpop.f32.mrf.mxu0
        %v1283 = vadd.f32 %v1146, %v1282
        %1284 = vmatmul.f32.gmra.mxu0 %v396
        %v1285 = vpop.f32.mrf.mxu0
        %v1286 = vadd.f32 %v1149, %v1285
        %1287 = vmatmul.f32.gmra.mxu0 %v397
        %v1288 = vpop.f32.mrf.mxu0
        %v1289 = vadd.f32 %v1152, %v1288
        %1290 = vmatmul.f32.gmra.mxu0 %v398
        %v1291 = vpop.f32.mrf.mxu0
        %v1292 = vadd.f32 %v1155, %v1291
        %1293 = vmatmul.f32.gmra.mxu0 %v399
        %v1294 = vpop.f32.mrf.mxu0
        %v1295 = vadd.f32 %v1158, %v1294
        %1296 = vmatmul.f32.gmra.mxu0 %v400
        %v1297 = vpop.f32.mrf.mxu0
        %v1298 = vadd.f32 %v1161, %v1297
        %1299 = vmatmul.f32.gmra.mxu0 %v401
        %v1300 = vpop.f32.mrf.mxu0
        %v1301 = vadd.f32 %v1164, %v1300
        %1302 = vmatmul.f32.gmra.mxu0 %v402
        %v1303 = vpop.f32.mrf.mxu0
        %v1304 = vadd.f32 %v1167, %v1303
        %1305 = vmatmul.f32.gmra.mxu0 %v403
        %v1306 = vpop.f32.mrf.mxu0
        %v1307 = vadd.f32 %v1170, %v1306
        %1308 = vmatmul.f32.gmra.mxu0 %v404
        %v1309 = vpop.f32.mrf.mxu0
        %v1310 = vadd.f32 %v1173, %v1309
        %1311 = vmatmul.f32.gmra.mxu0 %v405
        %v1312 = vpop.f32.mrf.mxu0
        %v1313 = vadd.f32 %v1176, %v1312
        %1314 = vmatmul.f32.gmra.mxu0 %v406
        %v1315 = vpop.f32.mrf.mxu0
        %v1316 = vadd.f32 %v1179, %v1315
        %1317 = vmatmul.f32.gmra.mxu0 %v407
        %v1318 = vpop.f32.mrf.mxu0
        %v1319 = vadd.f32 %v1182, %v1318
        %1320 = vmatmul.f32.gmra.mxu0 %v408
        %v1321 = vpop.f32.mrf.mxu0
        %v1322 = vadd.f32 %v1185, %v1321
        %1323 = vmatmul.f32.gmra.mxu0 %v409
        %v1324 = vpop.f32.mrf.mxu0
        %v1325 = vadd.f32 %v1188, %v1324
        %1326 = vmatmul.f32.gmra.mxu0 %v410
        %v1327 = vpop.f32.mrf.mxu0
        %v1328 = vadd.f32 %v1191, %v1327
        %1329 = vmatmul.f32.gmra.mxu0 %v411
        %v1330 = vpop.f32.mrf.mxu0
        %v1331 = vadd.f32 %v1194, %v1330
        %1332 = vmatmul.f32.gmra.mxu0 %v412
        %v1333 = vpop.f32.mrf.mxu0
        %v1334 = vadd.f32 %v1197, %v1333
        %1335 = vmatmul.f32.gmra.mxu0 %v413
        %v1336 = vpop.f32.mrf.mxu0
        %v1337 = vadd.f32 %v1200, %v1336
        %1338 = vmatmul.f32.gmra.mxu0 %v414
        %v1339 = vpop.f32.mrf.mxu0
        %v1340 = vadd.f32 %v1203, %v1339
        %1341 = vmatmul.f32.gmra.mxu0 %v415
        %v1342 = vpop.f32.mrf.mxu0
        %v1343 = vadd.f32 %v1206, %v1342
        %1344 = vmatmul.f32.gmra.mxu0 %v416
        %v1345 = vpop.f32.mrf.mxu0
        %v1346 = vadd.f32 %v1209, %v1345
        %1347 = vmatmul.f32.gmra.mxu0 %v417
        %v1348 = vpop.f32.mrf.mxu0
        %v1349 = vadd.f32 %v1212, %v1348
        %1350 = vmatmul.f32.gmra.mxu0 %v378
        %v1351 = vpop.f32.mrf.mxu0
        %v1352 = vadd.f32 %v1215, %v1351
        %1353 = vmatmul.f32.gmra.mxu0 %v379
        %v1354 = vpop.f32.mrf.mxu0
        %v1355 = vadd.f32 %v1218, %v1354
        %1356 = vdwg.mxu0
        %s1357 = scalar_lea.vmem [#allocation5], 768
        %v1358 = vld [vmem:[%s1357] sm:$0xff]
        %v1359 = vld [vmem:[%s1357 + $0x8] sm:$0xff]
        %v1360 = vld [vmem:[%s1357 + $0x10] sm:$0xff]
        %v1361 = vld [vmem:[%s1357 + $0x18] sm:$0xff]
        %v1362 = vld [vmem:[%s1357 + $0x20] sm:$0xff]
        %v1363 = vld [vmem:[%s1357 + $0x28] sm:$0xff]
        %v1364 = vld [vmem:[%s1357 + $0x30] sm:$0xff]
        %v1365 = vld [vmem:[%s1357 + $0x38] sm:$0xff]
        %v1366 = vld [vmem:[%s1357 + $0x40] sm:$0xff]
        %v1367 = vld [vmem:[%s1357 + $0x48] sm:$0xff]
        %v1368 = vld [vmem:[%s1357 + $0x50] sm:$0xff]
        %v1369 = vld [vmem:[%s1357 + $0x58] sm:$0xff]
        %v1370 = vld [vmem:[%s1357 + $0x60] sm:$0xff]
        %v1371 = vld [vmem:[%s1357 + $0x68] sm:$0xff]
        %v1372 = vld [vmem:[%s1357 + $0x70] sm:$0xff]
        %v1373 = vld [vmem:[%s1357 + $0x78] sm:$0xff]
        %v1374 = vld [vmem:[%s1357 + $0x80] sm:$0xff]
        %v1375 = vld [vmem:[%s1357 + $0x88] sm:$0xff]
        %v1376 = vld [vmem:[%s1357 + $0x90] sm:$0xff]
        %v1377 = vld [vmem:[%s1357 + $0x98] sm:$0xff]
        %v1378 = vld [vmem:[%s1357 + $0xa0] sm:$0xff]
        %v1379 = vld [vmem:[%s1357 + $0xa8] sm:$0xff]
        %v1380 = vld [vmem:[%s1357 + $0xb0] sm:$0xff]
        %v1381 = vld [vmem:[%s1357 + $0xb8] sm:$0xff]
        %v1382 = vld [vmem:[%s1357 + $0xc0] sm:$0xff]
        %v1383 = vld [vmem:[%s1357 + $0xc8] sm:$0xff]
        %v1384 = vld [vmem:[%s1357 + $0xd0] sm:$0xff]
        %v1385 = vld [vmem:[%s1357 + $0xd8] sm:$0xff]
        %v1386 = vld [vmem:[%s1357 + $0xe0] sm:$0xff]
        %v1387 = vld [vmem:[%s1357 + $0xe8] sm:$0xff]
        %v1388 = vld [vmem:[%s1357 + $0xf0] sm:$0xff]
        %v1389 = vld [vmem:[%s1357 + $0xf8] sm:$0xff]
        %v1390 = vld [vmem:[%s1357 + $0x100] sm:$0xff]
        %v1391 = vld [vmem:[%s1357 + $0x108] sm:$0xff]
        %v1392 = vld [vmem:[%s1357 + $0x110] sm:$0xff]
        %v1393 = vld [vmem:[%s1357 + $0x118] sm:$0xff]
        %v1394 = vld [vmem:[%s1357 + $0x120] sm:$0xff]
        %v1395 = vld [vmem:[%s1357 + $0x128] sm:$0xff]
        %v1396 = vld [vmem:[%s1357 + $0x130] sm:$0xff]
        %v1397 = vld [vmem:[%s1357 + $0x138] sm:$0xff]
        %v1398 = vld [vmem:[%s1357 + $0x140] sm:$0xff]
        %v1399 = vld [vmem:[%s1357 + $0x148] sm:$0xff]
        %v1400 = vld [vmem:[%s1357 + $0x150] sm:$0xff]
        %v1401 = vld [vmem:[%s1357 + $0x158] sm:$0xff]
        %v1402 = vld [vmem:[%s1357 + $0x160] sm:$0xff]
        %v1403 = vld [vmem:[%s1357 + $0x168] sm:$0xff]
        %v1404 = vld [vmem:[%s1357 + $0x170] sm:$0xff]
        %v1405 = vld [vmem:[%s1357 + $0x178] sm:$0xff]
        %1406 = vmatpush.msra.mxu0 %v1373
        %1407 = vmatpush.msra.mxu0 %v1372
        %1408 = vmatpush.msra.mxu0 %v1371
        %1409 = vmatpush.msra.mxu0 %v1370
        %1410 = vmatpush.msra.mxu0 %v1369
        %1411 = vmatpush.msra.mxu0 %v1368
        %1412 = vmatpush.msra.mxu0 %v1367
        %1413 = vmatpush.msra.mxu0 %v1366
        %1414 = vmatpush.msra.mxu0 %v1365
        %1415 = vmatpush.msra.mxu0 %v1364
        %1416 = vmatpush.msra.mxu0 %v1363
        %1417 = vmatpush.msra.mxu0 %v1362
        %1418 = vmatpush.msra.mxu0 %v1361
        %1419 = vmatpush.msra.mxu0 %v1360
        %1420 = vmatpush.msra.mxu0 %v1359
        %1421 = vmatpush.msra.mxu0 %v1358
        %1422 = vmatmul.f32.gmra.mxu0 %v416
        %v1423 = vpop.f32.mrf.mxu0
        %v1424 = vadd.f32 0.0, %v1423
        %1425 = vmatmul.f32.gmra.mxu0 %v417
        %v1426 = vpop.f32.mrf.mxu0
        %v1427 = vadd.f32 0.0, %v1426
        %1428 = vmatmul.f32.gmra.mxu0 %v378
        %v1429 = vpop.f32.mrf.mxu0
        %v1430 = vadd.f32 0.0, %v1429
        %1431 = vmatmul.f32.gmra.mxu0 %v379
        %v1432 = vpop.f32.mrf.mxu0
        %v1433 = vadd.f32 0.0, %v1432
        %1434 = vmatmul.f32.gmra.mxu0 %v380
        %v1435 = vpop.f32.mrf.mxu0
        %v1436 = vadd.f32 0.0, %v1435
        %1437 = vmatmul.f32.gmra.mxu0 %v381
        %v1438 = vpop.f32.mrf.mxu0
        %v1439 = vadd.f32 0.0, %v1438
        %1440 = vmatmul.f32.gmra.mxu0 %v382
        %v1441 = vpop.f32.mrf.mxu0
        %v1442 = vadd.f32 0.0, %v1441
        %1443 = vmatmul.f32.gmra.mxu0 %v383
        %v1444 = vpop.f32.mrf.mxu0
        %v1445 = vadd.f32 0.0, %v1444
        %1446 = vmatmul.f32.gmra.mxu0 %v384
        %v1447 = vpop.f32.mrf.mxu0
        %v1448 = vadd.f32 0.0, %v1447
        %1449 = vmatmul.f32.gmra.mxu0 %v385
        %v1450 = vpop.f32.mrf.mxu0
        %v1451 = vadd.f32 0.0, %v1450
        %1452 = vmatmul.f32.gmra.mxu0 %v386
        %v1453 = vpop.f32.mrf.mxu0
        %v1454 = vadd.f32 0.0, %v1453
        %1455 = vmatmul.f32.gmra.mxu0 %v387
        %v1456 = vpop.f32.mrf.mxu0
        %v1457 = vadd.f32 0.0, %v1456
        %1458 = vmatmul.f32.gmra.mxu0 %v388
        %v1459 = vpop.f32.mrf.mxu0
        %v1460 = vadd.f32 0.0, %v1459
        %1461 = vmatmul.f32.gmra.mxu0 %v389
        %v1462 = vpop.f32.mrf.mxu0
        %v1463 = vadd.f32 0.0, %v1462
        %1464 = vmatmul.f32.gmra.mxu0 %v390
        %v1465 = vpop.f32.mrf.mxu0
        %v1466 = vadd.f32 0.0, %v1465
        %1467 = vmatmul.f32.gmra.mxu0 %v391
        %v1468 = vpop.f32.mrf.mxu0
        %v1469 = vadd.f32 0.0, %v1468
        %1470 = vmatmul.f32.gmra.mxu0 %v392
        %v1471 = vpop.f32.mrf.mxu0
        %v1472 = vadd.f32 0.0, %v1471
        %1473 = vmatmul.f32.gmra.mxu0 %v393
        %v1474 = vpop.f32.mrf.mxu0
        %v1475 = vadd.f32 0.0, %v1474
        %1476 = vmatmul.f32.gmra.mxu0 %v394
        %v1477 = vpop.f32.mrf.mxu0
        %v1478 = vadd.f32 0.0, %v1477
        %1479 = vmatmul.f32.gmra.mxu0 %v395
        %v1480 = vpop.f32.mrf.mxu0
        %v1481 = vadd.f32 0.0, %v1480
        %1482 = vmatmul.f32.gmra.mxu0 %v396
        %v1483 = vpop.f32.mrf.mxu0
        %v1484 = vadd.f32 0.0, %v1483
        %1485 = vmatmul.f32.gmra.mxu0 %v397
        %v1486 = vpop.f32.mrf.mxu0
        %v1487 = vadd.f32 0.0, %v1486
        %1488 = vmatmul.f32.gmra.mxu0 %v398
        %v1489 = vpop.f32.mrf.mxu0
        %v1490 = vadd.f32 0.0, %v1489
        %1491 = vmatmul.f32.gmra.mxu0 %v399
        %v1492 = vpop.f32.mrf.mxu0
        %v1493 = vadd.f32 0.0, %v1492
        %1494 = vmatmul.f32.gmra.mxu0 %v400
        %v1495 = vpop.f32.mrf.mxu0
        %v1496 = vadd.f32 0.0, %v1495
        %1497 = vmatmul.f32.gmra.mxu0 %v401
        %v1498 = vpop.f32.mrf.mxu0
        %v1499 = vadd.f32 0.0, %v1498
        %1500 = vmatmul.f32.gmra.mxu0 %v402
        %v1501 = vpop.f32.mrf.mxu0
        %v1502 = vadd.f32 0.0, %v1501
        %1503 = vmatmul.f32.gmra.mxu0 %v403
        %v1504 = vpop.f32.mrf.mxu0
        %v1505 = vadd.f32 0.0, %v1504
        %1506 = vmatmul.f32.gmra.mxu0 %v404
        %v1507 = vpop.f32.mrf.mxu0
        %v1508 = vadd.f32 0.0, %v1507
        %1509 = vmatmul.f32.gmra.mxu0 %v405
        %v1510 = vpop.f32.mrf.mxu0
        %v1511 = vadd.f32 0.0, %v1510
        %1512 = vmatmul.f32.gmra.mxu0 %v406
        %v1513 = vpop.f32.mrf.mxu0
        %v1514 = vadd.f32 0.0, %v1513
        %1515 = vmatmul.f32.gmra.mxu0 %v407
        %v1516 = vpop.f32.mrf.mxu0
        %v1517 = vadd.f32 0.0, %v1516
        %1518 = vmatmul.f32.gmra.mxu0 %v408
        %v1519 = vpop.f32.mrf.mxu0
        %v1520 = vadd.f32 0.0, %v1519
        %1521 = vmatmul.f32.gmra.mxu0 %v409
        %v1522 = vpop.f32.mrf.mxu0
        %v1523 = vadd.f32 0.0, %v1522
        %1524 = vmatmul.f32.gmra.mxu0 %v410
        %v1525 = vpop.f32.mrf.mxu0
        %v1526 = vadd.f32 0.0, %v1525
        %1527 = vmatmul.f32.gmra.mxu0 %v411
        %v1528 = vpop.f32.mrf.mxu0
        %v1529 = vadd.f32 0.0, %v1528
        %1530 = vmatmul.f32.gmra.mxu0 %v412
        %v1531 = vpop.f32.mrf.mxu0
        %v1532 = vadd.f32 0.0, %v1531
        %1533 = vmatmul.f32.gmra.mxu0 %v413
        %v1534 = vpop.f32.mrf.mxu0
        %v1535 = vadd.f32 0.0, %v1534
        %1536 = vmatmul.f32.gmra.mxu0 %v414
        %v1537 = vpop.f32.mrf.mxu0
        %v1538 = vadd.f32 0.0, %v1537
        %1539 = vmatmul.f32.gmra.mxu0 %v415
        %v1540 = vpop.f32.mrf.mxu0
        %v1541 = vadd.f32 0.0, %v1540
        %1542 = vdwg.mxu0
        %1543 = vmatpush.msra.mxu0 %v1389
        %1544 = vmatpush.msra.mxu0 %v1388
        %1545 = vmatpush.msra.mxu0 %v1387
        %1546 = vmatpush.msra.mxu0 %v1386
        %1547 = vmatpush.msra.mxu0 %v1385
        %1548 = vmatpush.msra.mxu0 %v1384
        %1549 = vmatpush.msra.mxu0 %v1383
        %1550 = vmatpush.msra.mxu0 %v1382
        %1551 = vmatpush.msra.mxu0 %v1381
        %1552 = vmatpush.msra.mxu0 %v1380
        %1553 = vmatpush.msra.mxu0 %v1379
        %1554 = vmatpush.msra.mxu0 %v1378
        %1555 = vmatpush.msra.mxu0 %v1377
        %1556 = vmatpush.msra.mxu0 %v1376
        %1557 = vmatpush.msra.mxu0 %v1375
        %1558 = vmatpush.msra.mxu0 %v1374
        %1559 = vmatmul.f32.gmra.mxu0 %v378
        %v1560 = vpop.f32.mrf.mxu0
        %v1561 = vadd.f32 %v1424, %v1560
        %1562 = vmatmul.f32.gmra.mxu0 %v379
        %v1563 = vpop.f32.mrf.mxu0
        %v1564 = vadd.f32 %v1427, %v1563
        %1565 = vmatmul.f32.gmra.mxu0 %v380
        %v1566 = vpop.f32.mrf.mxu0
        %v1567 = vadd.f32 %v1430, %v1566
        %1568 = vmatmul.f32.gmra.mxu0 %v381
        %v1569 = vpop.f32.mrf.mxu0
        %v1570 = vadd.f32 %v1433, %v1569
        %1571 = vmatmul.f32.gmra.mxu0 %v382
        %v1572 = vpop.f32.mrf.mxu0
        %v1573 = vadd.f32 %v1436, %v1572
        %1574 = vmatmul.f32.gmra.mxu0 %v383
        %v1575 = vpop.f32.mrf.mxu0
        %v1576 = vadd.f32 %v1439, %v1575
        %1577 = vmatmul.f32.gmra.mxu0 %v384
        %v1578 = vpop.f32.mrf.mxu0
        %v1579 = vadd.f32 %v1442, %v1578
        %1580 = vmatmul.f32.gmra.mxu0 %v385
        %v1581 = vpop.f32.mrf.mxu0
        %v1582 = vadd.f32 %v1445, %v1581
        %1583 = vmatmul.f32.gmra.mxu0 %v386
        %v1584 = vpop.f32.mrf.mxu0
        %v1585 = vadd.f32 %v1448, %v1584
        %1586 = vmatmul.f32.gmra.mxu0 %v387
        %v1587 = vpop.f32.mrf.mxu0
        %v1588 = vadd.f32 %v1451, %v1587
        %1589 = vmatmul.f32.gmra.mxu0 %v388
        %v1590 = vpop.f32.mrf.mxu0
        %v1591 = vadd.f32 %v1454, %v1590
        %1592 = vmatmul.f32.gmra.mxu0 %v389
        %v1593 = vpop.f32.mrf.mxu0
        %v1594 = vadd.f32 %v1457, %v1593
        %1595 = vmatmul.f32.gmra.mxu0 %v390
        %v1596 = vpop.f32.mrf.mxu0
        %v1597 = vadd.f32 %v1460, %v1596
        %1598 = vmatmul.f32.gmra.mxu0 %v391
        %v1599 = vpop.f32.mrf.mxu0
        %v1600 = vadd.f32 %v1463, %v1599
        %1601 = vmatmul.f32.gmra.mxu0 %v392
        %v1602 = vpop.f32.mrf.mxu0
        %v1603 = vadd.f32 %v1466, %v1602
        %1604 = vmatmul.f32.gmra.mxu0 %v393
        %v1605 = vpop.f32.mrf.mxu0
        %v1606 = vadd.f32 %v1469, %v1605
        %1607 = vmatmul.f32.gmra.mxu0 %v394
        %v1608 = vpop.f32.mrf.mxu0
        %v1609 = vadd.f32 %v1472, %v1608
        %1610 = vmatmul.f32.gmra.mxu0 %v395
        %v1611 = vpop.f32.mrf.mxu0
        %v1612 = vadd.f32 %v1475, %v1611
        %1613 = vmatmul.f32.gmra.mxu0 %v396
        %v1614 = vpop.f32.mrf.mxu0
        %v1615 = vadd.f32 %v1478, %v1614
        %1616 = vmatmul.f32.gmra.mxu0 %v397
        %v1617 = vpop.f32.mrf.mxu0
        %v1618 = vadd.f32 %v1481, %v1617
        %1619 = vmatmul.f32.gmra.mxu0 %v398
        %v1620 = vpop.f32.mrf.mxu0
        %v1621 = vadd.f32 %v1484, %v1620
        %1622 = vmatmul.f32.gmra.mxu0 %v399
        %v1623 = vpop.f32.mrf.mxu0
        %v1624 = vadd.f32 %v1487, %v1623
        %1625 = vmatmul.f32.gmra.mxu0 %v400
        %v1626 = vpop.f32.mrf.mxu0
        %v1627 = vadd.f32 %v1490, %v1626
        %1628 = vmatmul.f32.gmra.mxu0 %v401
        %v1629 = vpop.f32.mrf.mxu0
        %v1630 = vadd.f32 %v1493, %v1629
        %1631 = vmatmul.f32.gmra.mxu0 %v402
        %v1632 = vpop.f32.mrf.mxu0
        %v1633 = vadd.f32 %v1496, %v1632
        %1634 = vmatmul.f32.gmra.mxu0 %v403
        %v1635 = vpop.f32.mrf.mxu0
        %v1636 = vadd.f32 %v1499, %v1635
        %1637 = vmatmul.f32.gmra.mxu0 %v404
        %v1638 = vpop.f32.mrf.mxu0
        %v1639 = vadd.f32 %v1502, %v1638
        %1640 = vmatmul.f32.gmra.mxu0 %v405
        %v1641 = vpop.f32.mrf.mxu0
        %v1642 = vadd.f32 %v1505, %v1641
        %1643 = vmatmul.f32.gmra.mxu0 %v406
        %v1644 = vpop.f32.mrf.mxu0
        %v1645 = vadd.f32 %v1508, %v1644
        %1646 = vmatmul.f32.gmra.mxu0 %v407
        %v1647 = vpop.f32.mrf.mxu0
        %v1648 = vadd.f32 %v1511, %v1647
        %1649 = vmatmul.f32.gmra.mxu0 %v408
        %v1650 = vpop.f32.mrf.mxu0
        %v1651 = vadd.f32 %v1514, %v1650
        %1652 = vmatmul.f32.gmra.mxu0 %v409
        %v1653 = vpop.f32.mrf.mxu0
        %v1654 = vadd.f32 %v1517, %v1653
        %1655 = vmatmul.f32.gmra.mxu0 %v410
        %v1656 = vpop.f32.mrf.mxu0
        %v1657 = vadd.f32 %v1520, %v1656
        %1658 = vmatmul.f32.gmra.mxu0 %v411
        %v1659 = vpop.f32.mrf.mxu0
        %v1660 = vadd.f32 %v1523, %v1659
        %1661 = vmatmul.f32.gmra.mxu0 %v412
        %v1662 = vpop.f32.mrf.mxu0
        %v1663 = vadd.f32 %v1526, %v1662
        %1664 = vmatmul.f32.gmra.mxu0 %v413
        %v1665 = vpop.f32.mrf.mxu0
        %v1666 = vadd.f32 %v1529, %v1665
        %1667 = vmatmul.f32.gmra.mxu0 %v414
        %v1668 = vpop.f32.mrf.mxu0
        %v1669 = vadd.f32 %v1532, %v1668
        %1670 = vmatmul.f32.gmra.mxu0 %v415
        %v1671 = vpop.f32.mrf.mxu0
        %v1672 = vadd.f32 %v1535, %v1671
        %1673 = vmatmul.f32.gmra.mxu0 %v416
        %v1674 = vpop.f32.mrf.mxu0
        %v1675 = vadd.f32 %v1538, %v1674
        %1676 = vmatmul.f32.gmra.mxu0 %v417
        %v1677 = vpop.f32.mrf.mxu0
        %v1678 = vadd.f32 %v1541, %v1677
        %1679 = vdwg.mxu0
        %1680 = vmatpush.msra.mxu0 %v1405
        %1681 = vmatpush.msra.mxu0 %v1404
        %1682 = vmatpush.msra.mxu0 %v1403
        %1683 = vmatpush.msra.mxu0 %v1402
        %1684 = vmatpush.msra.mxu0 %v1401
        %1685 = vmatpush.msra.mxu0 %v1400
        %1686 = vmatpush.msra.mxu0 %v1399
        %1687 = vmatpush.msra.mxu0 %v1398
        %1688 = vmatpush.msra.mxu0 %v1397
        %1689 = vmatpush.msra.mxu0 %v1396
        %1690 = vmatpush.msra.mxu0 %v1395
        %1691 = vmatpush.msra.mxu0 %v1394
        %1692 = vmatpush.msra.mxu0 %v1393
        %1693 = vmatpush.msra.mxu0 %v1392
        %1694 = vmatpush.msra.mxu0 %v1391
        %1695 = vmatpush.msra.mxu0 %v1390
        %1696 = vmatmul.f32.gmra.mxu0 %v380
        %v1697 = vpop.f32.mrf.mxu0
        %v1698 = vadd.f32 %v1561, %v1697
        %1699 = vmatmul.f32.gmra.mxu0 %v381
        %v1700 = vpop.f32.mrf.mxu0
        %v1701 = vadd.f32 %v1564, %v1700
        %1702 = vmatmul.f32.gmra.mxu0 %v382
        %v1703 = vpop.f32.mrf.mxu0
        %v1704 = vadd.f32 %v1567, %v1703
        %1705 = vmatmul.f32.gmra.mxu0 %v383
        %v1706 = vpop.f32.mrf.mxu0
        %v1707 = vadd.f32 %v1570, %v1706
        %1708 = vmatmul.f32.gmra.mxu0 %v384
        %v1709 = vpop.f32.mrf.mxu0
        %v1710 = vadd.f32 %v1573, %v1709
        %1711 = vmatmul.f32.gmra.mxu0 %v385
        %v1712 = vpop.f32.mrf.mxu0
        %v1713 = vadd.f32 %v1576, %v1712
        %1714 = vmatmul.f32.gmra.mxu0 %v386
        %v1715 = vpop.f32.mrf.mxu0
        %v1716 = vadd.f32 %v1579, %v1715
        %1717 = vmatmul.f32.gmra.mxu0 %v387
        %v1718 = vpop.f32.mrf.mxu0
        %v1719 = vadd.f32 %v1582, %v1718
        %1720 = vmatmul.f32.gmra.mxu0 %v388
        %v1721 = vpop.f32.mrf.mxu0
        %v1722 = vadd.f32 %v1585, %v1721
        %1723 = vmatmul.f32.gmra.mxu0 %v389
        %v1724 = vpop.f32.mrf.mxu0
        %v1725 = vadd.f32 %v1588, %v1724
        %1726 = vmatmul.f32.gmra.mxu0 %v390
        %v1727 = vpop.f32.mrf.mxu0
        %v1728 = vadd.f32 %v1591, %v1727
        %1729 = vmatmul.f32.gmra.mxu0 %v391
        %v1730 = vpop.f32.mrf.mxu0
        %v1731 = vadd.f32 %v1594, %v1730
        %1732 = vmatmul.f32.gmra.mxu0 %v392
        %v1733 = vpop.f32.mrf.mxu0
        %v1734 = vadd.f32 %v1597, %v1733
        %1735 = vmatmul.f32.gmra.mxu0 %v393
        %v1736 = vpop.f32.mrf.mxu0
        %v1737 = vadd.f32 %v1600, %v1736
        %1738 = vmatmul.f32.gmra.mxu0 %v394
        %v1739 = vpop.f32.mrf.mxu0
        %v1740 = vadd.f32 %v1603, %v1739
        %1741 = vmatmul.f32.gmra.mxu0 %v395
        %v1742 = vpop.f32.mrf.mxu0
        %v1743 = vadd.f32 %v1606, %v1742
        %1744 = vmatmul.f32.gmra.mxu0 %v396
        %v1745 = vpop.f32.mrf.mxu0
        %v1746 = vadd.f32 %v1609, %v1745
        %1747 = vmatmul.f32.gmra.mxu0 %v397
        %v1748 = vpop.f32.mrf.mxu0
        %v1749 = vadd.f32 %v1612, %v1748
        %1750 = vmatmul.f32.gmra.mxu0 %v398
        %v1751 = vpop.f32.mrf.mxu0
        %v1752 = vadd.f32 %v1615, %v1751
        %1753 = vmatmul.f32.gmra.mxu0 %v399
        %v1754 = vpop.f32.mrf.mxu0
        %v1755 = vadd.f32 %v1618, %v1754
        %1756 = vmatmul.f32.gmra.mxu0 %v400
        %v1757 = vpop.f32.mrf.mxu0
        %v1758 = vadd.f32 %v1621, %v1757
        %1759 = vmatmul.f32.gmra.mxu0 %v401
        %v1760 = vpop.f32.mrf.mxu0
        %v1761 = vadd.f32 %v1624, %v1760
        %1762 = vmatmul.f32.gmra.mxu0 %v402
        %v1763 = vpop.f32.mrf.mxu0
        %v1764 = vadd.f32 %v1627, %v1763
        %1765 = vmatmul.f32.gmra.mxu0 %v403
        %v1766 = vpop.f32.mrf.mxu0
        %v1767 = vadd.f32 %v1630, %v1766
        %1768 = vmatmul.f32.gmra.mxu0 %v404
        %v1769 = vpop.f32.mrf.mxu0
        %v1770 = vadd.f32 %v1633, %v1769
        %1771 = vmatmul.f32.gmra.mxu0 %v405
        %v1772 = vpop.f32.mrf.mxu0
        %v1773 = vadd.f32 %v1636, %v1772
        %1774 = vmatmul.f32.gmra.mxu0 %v406
        %v1775 = vpop.f32.mrf.mxu0
        %v1776 = vadd.f32 %v1639, %v1775
        %1777 = vmatmul.f32.gmra.mxu0 %v407
        %v1778 = vpop.f32.mrf.mxu0
        %v1779 = vadd.f32 %v1642, %v1778
        %1780 = vmatmul.f32.gmra.mxu0 %v408
        %v1781 = vpop.f32.mrf.mxu0
        %v1782 = vadd.f32 %v1645, %v1781
        %1783 = vmatmul.f32.gmra.mxu0 %v409
        %v1784 = vpop.f32.mrf.mxu0
        %v1785 = vadd.f32 %v1648, %v1784
        %1786 = vmatmul.f32.gmra.mxu0 %v410
        %v1787 = vpop.f32.mrf.mxu0
        %v1788 = vadd.f32 %v1651, %v1787
        %1789 = vmatmul.f32.gmra.mxu0 %v411
        %v1790 = vpop.f32.mrf.mxu0
        %v1791 = vadd.f32 %v1654, %v1790
        %1792 = vmatmul.f32.gmra.mxu0 %v412
        %v1793 = vpop.f32.mrf.mxu0
        %v1794 = vadd.f32 %v1657, %v1793
        %1795 = vmatmul.f32.gmra.mxu0 %v413
        %v1796 = vpop.f32.mrf.mxu0
        %v1797 = vadd.f32 %v1660, %v1796
        %1798 = vmatmul.f32.gmra.mxu0 %v414
        %v1799 = vpop.f32.mrf.mxu0
        %v1800 = vadd.f32 %v1663, %v1799
        %1801 = vmatmul.f32.gmra.mxu0 %v415
        %v1802 = vpop.f32.mrf.mxu0
        %v1803 = vadd.f32 %v1666, %v1802
        %1804 = vmatmul.f32.gmra.mxu0 %v416
        %v1805 = vpop.f32.mrf.mxu0
        %v1806 = vadd.f32 %v1669, %v1805
        %1807 = vmatmul.f32.gmra.mxu0 %v417
        %v1808 = vpop.f32.mrf.mxu0
        %v1809 = vadd.f32 %v1672, %v1808
        %1810 = vmatmul.f32.gmra.mxu0 %v378
        %v1811 = vpop.f32.mrf.mxu0
        %v1812 = vadd.f32 %v1675, %v1811
        %1813 = vmatmul.f32.gmra.mxu0 %v379
        %v1814 = vpop.f32.mrf.mxu0
        %v1815 = vadd.f32 %v1678, %v1814
        %1816 = vdwg.mxu0
        %v1817 = vrot.slane %v778, 7
        %v1818 = vrot.slane %v781, 7
        %v1819 = vrot.slane %v784, 7
        %v1820 = vrot.slane %v787, 7
        %v1821 = vrot.slane %v790, 7
        %v1822 = vrot.slane %v793, 7
        %v1823 = vrot.slane %v796, 7
        %v1824 = vrot.slane %v799, 7
        %v1825 = vrot.slane %v802, 7
        %v1826 = vrot.slane %v805, 7
        %v1827 = vrot.slane %v808, 7
        %v1828 = vrot.slane %v811, 7
        %v1829 = vrot.slane %v814, 7
        %v1830 = vrot.slane %v817, 7
        %v1831 = vrot.slane %v820, 7
        %v1832 = vrot.slane %v823, 7
        %v1833 = vrot.slane %v826, 7
        %v1834 = vrot.slane %v829, 7
        %v1835 = vrot.slane %v832, 7
        %v1836 = vrot.slane %v835, 7
        %v1837 = vrot.slane %v838, 7
        %v1838 = vrot.slane %v841, 7
        %v1839 = vrot.slane %v844, 7
        %v1840 = vrot.slane %v847, 7
        %v1841 = vrot.slane %v850, 7
        %v1842 = vrot.slane %v853, 7
        %v1843 = vrot.slane %v856, 7
        %v1844 = vrot.slane %v859, 7
        %v1845 = vrot.slane %v862, 7
        %v1846 = vrot.slane %v865, 7
        %v1847 = vrot.slane %v868, 7
        %v1848 = vrot.slane %v871, 7
        %v1849 = vrot.slane %v874, 7
        %v1850 = vrot.slane %v877, 7
        %v1851 = vrot.slane %v880, 7
        %v1852 = vrot.slane %v883, 7
        %v1853 = vrot.slane %v886, 7
        %v1854 = vrot.slane %v889, 7
        %v1855 = vrot.slane %v892, 7
        %v1856 = vrot.slane %v895, 7
        %v1857 = vlaneseq
        %v1858 = vshrl.u32 %v1857, 7
        %vm1859 = vcmp.lt.s32.totalorder %v1858, 1
        %v1860 = vsel %vm1859, %v1855, %v1856
        %v1861 = vsel %vm1859, %v1854, %v1855
        %v1862 = vsel %vm1859, %v1853, %v1854
        %v1863 = vsel %vm1859, %v1852, %v1853
        %v1864 = vsel %vm1859, %v1851, %v1852
        %v1865 = vsel %vm1859, %v1850, %v1851
        %v1866 = vsel %vm1859, %v1849, %v1850
        %v1867 = vsel %vm1859, %v1848, %v1849
        %v1868 = vsel %vm1859, %v1847, %v1848
        %v1869 = vsel %vm1859, %v1846, %v1847
        %v1870 = vsel %vm1859, %v1845, %v1846
        %v1871 = vsel %vm1859, %v1844, %v1845
        %v1872 = vsel %vm1859, %v1843, %v1844
        %v1873 = vsel %vm1859, %v1842, %v1843
        %v1874 = vsel %vm1859, %v1841, %v1842
        %v1875 = vsel %vm1859, %v1840, %v1841
        %v1876 = vsel %vm1859, %v1839, %v1840
        %v1877 = vsel %vm1859, %v1838, %v1839
        %v1878 = vsel %vm1859, %v1837, %v1838
        %v1879 = vsel %vm1859, %v1836, %v1837
        %v1880 = vsel %vm1859, %v1835, %v1836
        %v1881 = vsel %vm1859, %v1834, %v1835
        %v1882 = vsel %vm1859, %v1833, %v1834
        %v1883 = vsel %vm1859, %v1832, %v1833
        %v1884 = vsel %vm1859, %v1831, %v1832
        %v1885 = vsel %vm1859, %v1830, %v1831
        %v1886 = vsel %vm1859, %v1829, %v1830
        %v1887 = vsel %vm1859, %v1828, %v1829
        %v1888 = vsel %vm1859, %v1827, %v1828
        %v1889 = vsel %vm1859, %v1826, %v1827
        %v1890 = vsel %vm1859, %v1825, %v1826
        %v1891 = vsel %vm1859, %v1824, %v1825
        %v1892 = vsel %vm1859, %v1823, %v1824
        %v1893 = vsel %vm1859, %v1822, %v1823
        %v1894 = vsel %vm1859, %v1821, %v1822
        %v1895 = vsel %vm1859, %v1820, %v1821
        %v1896 = vsel %vm1859, %v1819, %v1820
        %v1897 = vsel %vm1859, %v1818, %v1819
        %v1898 = vsel %vm1859, %v1817, %v1818
        %v1899 = vsel %vm1859, %v1856, %v1817
        %v1900 = vadd.f32 %v1899, %v1238
        %v1901 = vadd.f32 %v1898, %v1241
        %v1902 = vadd.f32 %v1897, %v1244
        %v1903 = vadd.f32 %v1896, %v1247
        %v1904 = vadd.f32 %v1895, %v1250
        %v1905 = vadd.f32 %v1894, %v1253
        %v1906 = vadd.f32 %v1893, %v1256
        %v1907 = vadd.f32 %v1892, %v1259
        %v1908 = vadd.f32 %v1891, %v1262
        %v1909 = vadd.f32 %v1890, %v1265
        %v1910 = vadd.f32 %v1889, %v1268
        %v1911 = vadd.f32 %v1888, %v1271
        %v1912 = vadd.f32 %v1887, %v1274
        %v1913 = vadd.f32 %v1886, %v1277
        %v1914 = vadd.f32 %v1885, %v1280
        %v1915 = vadd.f32 %v1884, %v1283
        %v1916 = vadd.f32 %v1883, %v1286
        %v1917 = vadd.f32 %v1882, %v1289
        %v1918 = vadd.f32 %v1881, %v1292
        %v1919 = vadd.f32 %v1880, %v1295
        %v1920 = vadd.f32 %v1879, %v1298
        %v1921 = vadd.f32 %v1878, %v1301
        %v1922 = vadd.f32 %v1877, %v1304
        %v1923 = vadd.f32 %v1876, %v1307
        %v1924 = vadd.f32 %v1875, %v1310
        %v1925 = vadd.f32 %v1874, %v1313
        %v1926 = vadd.f32 %v1873, %v1316
        %v1927 = vadd.f32 %v1872, %v1319
        %v1928 = vadd.f32 %v1871, %v1322
        %v1929 = vadd.f32 %v1870, %v1325
        %v1930 = vadd.f32 %v1869, %v1328
        %v1931 = vadd.f32 %v1868, %v1331
        %v1932 = vadd.f32 %v1867, %v1334
        %v1933 = vadd.f32 %v1866, %v1337
        %v1934 = vadd.f32 %v1865, %v1340
        %v1935 = vadd.f32 %v1864, %v1343
        %v1936 = vadd.f32 %v1863, %v1346
        %v1937 = vadd.f32 %v1862, %v1349
        %v1938 = vadd.f32 %v1861, %v1352
        %v1939 = vadd.f32 %v1860, %v1355
        %v1940 = vrot.slane %v1698, 1
        %v1941 = vrot.slane %v1701, 1
        %v1942 = vrot.slane %v1704, 1
        %v1943 = vrot.slane %v1707, 1
        %v1944 = vrot.slane %v1710, 1
        %v1945 = vrot.slane %v1713, 1
        %v1946 = vrot.slane %v1716, 1
        %v1947 = vrot.slane %v1719, 1
        %v1948 = vrot.slane %v1722, 1
        %v1949 = vrot.slane %v1725, 1
        %v1950 = vrot.slane %v1728, 1
        %v1951 = vrot.slane %v1731, 1
        %v1952 = vrot.slane %v1734, 1
        %v1953 = vrot.slane %v1737, 1
        %v1954 = vrot.slane %v1740, 1
        %v1955 = vrot.slane %v1743, 1
        %v1956 = vrot.slane %v1746, 1
        %v1957 = vrot.slane %v1749, 1
        %v1958 = vrot.slane %v1752, 1
        %v1959 = vrot.slane %v1755, 1
        %v1960 = vrot.slane %v1758, 1
        %v1961 = vrot.slane %v1761, 1
        %v1962 = vrot.slane %v1764, 1
        %v1963 = vrot.slane %v1767, 1
        %v1964 = vrot.slane %v1770, 1
        %v1965 = vrot.slane %v1773, 1
        %v1966 = vrot.slane %v1776, 1
        %v1967 = vrot.slane %v1779, 1
        %v1968 = vrot.slane %v1782, 1
        %v1969 = vrot.slane %v1785, 1
        %v1970 = vrot.slane %v1788, 1
        %v1971 = vrot.slane %v1791, 1
        %v1972 = vrot.slane %v1794, 1
        %v1973 = vrot.slane %v1797, 1
        %v1974 = vrot.slane %v1800, 1
        %v1975 = vrot.slane %v1803, 1
        %v1976 = vrot.slane %v1806, 1
        %v1977 = vrot.slane %v1809, 1
        %v1978 = vrot.slane %v1812, 1
        %v1979 = vrot.slane %v1815, 1
        %vm1980 = vcmp.lt.s32.totalorder %v1858, 7
        %v1981 = vsel %vm1980, %v1978, %v1979
        %v1982 = vsel %vm1980, %v1977, %v1978
        %v1983 = vsel %vm1980, %v1976, %v1977
        %v1984 = vsel %vm1980, %v1975, %v1976
        %v1985 = vsel %vm1980, %v1974, %v1975
        %v1986 = vsel %vm1980, %v1973, %v1974
        %v1987 = vsel %vm1980, %v1972, %v1973
        %v1988 = vsel %vm1980, %v1971, %v1972
        %v1989 = vsel %vm1980, %v1970, %v1971
        %v1990 = vsel %vm1980, %v1969, %v1970
        %v1991 = vsel %vm1980, %v1968, %v1969
        %v1992 = vsel %vm1980, %v1967, %v1968
        %v1993 = vsel %vm1980, %v1966, %v1967
        %v1994 = vsel %vm1980, %v1965, %v1966
        %v1995 = vsel %vm1980, %v1964, %v1965
        %v1996 = vsel %vm1980, %v1963, %v1964
        %v1997 = vsel %vm1980, %v1962, %v1963
        %v1998 = vsel %vm1980, %v1961, %v1962
        %v1999 = vsel %vm1980, %v1960, %v1961
        %v2000 = vsel %vm1980, %v1959, %v1960
        %v2001 = vsel %vm1980, %v1958, %v1959
        %v2002 = vsel %vm1980, %v1957, %v1958
        %v2003 = vsel %vm1980, %v1956, %v1957
        %v2004 = vsel %vm1980, %v1955, %v1956
        %v2005 = vsel %vm1980, %v1954, %v1955
        %v2006 = vsel %vm1980, %v1953, %v1954
        %v2007 = vsel %vm1980, %v1952, %v1953
        %v2008 = vsel %vm1980, %v1951, %v1952
        %v2009 = vsel %vm1980, %v1950, %v1951
        %v2010 = vsel %vm1980, %v1949, %v1950
        %v2011 = vsel %vm1980, %v1948, %v1949
        %v2012 = vsel %vm1980, %v1947, %v1948
        %v2013 = vsel %vm1980, %v1946, %v1947
        %v2014 = vsel %vm1980, %v1945, %v1946
        %v2015 = vsel %vm1980, %v1944, %v1945
        %v2016 = vsel %vm1980, %v1943, %v1944
        %v2017 = vsel %vm1980, %v1942, %v1943
        %v2018 = vsel %vm1980, %v1941, %v1942
        %v2019 = vsel %vm1980, %v1940, %v1941
        %v2020 = vsel %vm1980, %v1979, %v1940
        %v2021 = vadd.f32 %v1900, %v2019
        %v2022 = vadd.f32 %v1901, %v2018
        %v2023 = vadd.f32 %v1902, %v2017
        %v2024 = vadd.f32 %v1903, %v2016
        %v2025 = vadd.f32 %v1904, %v2015
        %v2026 = vadd.f32 %v1905, %v2014
        %v2027 = vadd.f32 %v1906, %v2013
        %v2028 = vadd.f32 %v1907, %v2012
        %v2029 = vadd.f32 %v1908, %v2011
        %v2030 = vadd.f32 %v1909, %v2010
        %v2031 = vadd.f32 %v1910, %v2009
        %v2032 = vadd.f32 %v1911, %v2008
        %v2033 = vadd.f32 %v1912, %v2007
        %v2034 = vadd.f32 %v1913, %v2006
        %v2035 = vadd.f32 %v1914, %v2005
        %v2036 = vadd.f32 %v1915, %v2004
        %v2037 = vadd.f32 %v1916, %v2003
        %v2038 = vadd.f32 %v1917, %v2002
        %v2039 = vadd.f32 %v1918, %v2001
        %v2040 = vadd.f32 %v1919, %v2000
        %v2041 = vadd.f32 %v1920, %v1999
        %v2042 = vadd.f32 %v1921, %v1998
        %v2043 = vadd.f32 %v1922, %v1997
        %v2044 = vadd.f32 %v1923, %v1996
        %v2045 = vadd.f32 %v1924, %v1995
        %v2046 = vadd.f32 %v1925, %v1994
        %v2047 = vadd.f32 %v1926, %v1993
        %v2048 = vadd.f32 %v1927, %v1992
        %v2049 = vadd.f32 %v1928, %v1991
        %v2050 = vadd.f32 %v1929, %v1990
        %v2051 = vadd.f32 %v1930, %v1989
        %v2052 = vadd.f32 %v1931, %v1988
        %v2053 = vadd.f32 %v1932, %v1987
        %v2054 = vadd.f32 %v1933, %v1986
        %v2055 = vadd.f32 %v1934, %v1985
        %v2056 = vadd.f32 %v1935, %v1984
        %v2057 = vadd.f32 %v1936, %v1983
        %v2058 = vadd.f32 %v1937, %v1982
        %v2059 = vadd.f32 %v1938, %v1981
        %v2060 = vadd.f32 %v1939, %v2020
        %v2061 = vld [vmem:[%s3] sm:$0x1]
        %v2063 = vperm.slane %v2061, 0
        %v2065 = vmul.f32 %v2021, %v2063
        %v2066 = vmul.f32 %v2022, %v2063
        %v2067 = vmul.f32 %v2023, %v2063
        %v2068 = vmul.f32 %v2024, %v2063
        %v2069 = vmul.f32 %v2025, %v2063
        %v2070 = vmul.f32 %v2026, %v2063
        %v2071 = vmul.f32 %v2027, %v2063
        %v2072 = vmul.f32 %v2028, %v2063
        %v2073 = vmul.f32 %v2029, %v2063
        %v2074 = vmul.f32 %v2030, %v2063
        %v2075 = vmul.f32 %v2031, %v2063
        %v2076 = vmul.f32 %v2032, %v2063
        %v2077 = vmul.f32 %v2033, %v2063
        %v2078 = vmul.f32 %v2034, %v2063
        %v2079 = vmul.f32 %v2035, %v2063
        %v2080 = vmul.f32 %v2036, %v2063
        %v2081 = vmul.f32 %v2037, %v2063
        %v2082 = vmul.f32 %v2038, %v2063
        %v2083 = vmul.f32 %v2039, %v2063
        %v2084 = vmul.f32 %v2040, %v2063
        %v2085 = vmul.f32 %v2041, %v2063
        %v2086 = vmul.f32 %v2042, %v2063
        %v2087 = vmul.f32 %v2043, %v2063
        %v2088 = vmul.f32 %v2044, %v2063
        %v2089 = vmul.f32 %v2045, %v2063
        %v2090 = vmul.f32 %v2046, %v2063
        %v2091 = vmul.f32 %v2047, %v2063
        %v2092 = vmul.f32 %v2048, %v2063
        %v2093 = vmul.f32 %v2049, %v2063
        %v2094 = vmul.f32 %v2050, %v2063
        %v2095 = vmul.f32 %v2051, %v2063
        %v2096 = vmul.f32 %v2052, %v2063
        %v2097 = vmul.f32 %v2053, %v2063
        %v2098 = vmul.f32 %v2054, %v2063
        %v2099 = vmul.f32 %v2055, %v2063
        %v2100 = vmul.f32 %v2056, %v2063
        %v2101 = vmul.f32 %v2057, %v2063
        %v2102 = vmul.f32 %v2058, %v2063
        %v2103 = vmul.f32 %v2059, %v2063
        %v2104 = vmul.f32 %v2060, %v2063
        %v2105 = vld [vmem:[%s4] sm:$0x1]
        %v2107 = vperm.slane %v2105, 0
        %v2109 = vadd.f32 %v2065, %v2107
        %v2110 = vadd.f32 %v2066, %v2107
        %v2111 = vadd.f32 %v2067, %v2107
        %v2112 = vadd.f32 %v2068, %v2107
        %v2113 = vadd.f32 %v2069, %v2107
        %v2114 = vadd.f32 %v2070, %v2107
        %v2115 = vadd.f32 %v2071, %v2107
        %v2116 = vadd.f32 %v2072, %v2107
        %v2117 = vadd.f32 %v2073, %v2107
        %v2118 = vadd.f32 %v2074, %v2107
        %v2119 = vadd.f32 %v2075, %v2107
        %v2120 = vadd.f32 %v2076, %v2107
        %v2121 = vadd.f32 %v2077, %v2107
        %v2122 = vadd.f32 %v2078, %v2107
        %v2123 = vadd.f32 %v2079, %v2107
        %v2124 = vadd.f32 %v2080, %v2107
        %v2125 = vadd.f32 %v2081, %v2107
        %v2126 = vadd.f32 %v2082, %v2107
        %v2127 = vadd.f32 %v2083, %v2107
        %v2128 = vadd.f32 %v2084, %v2107
        %v2129 = vadd.f32 %v2085, %v2107
        %v2130 = vadd.f32 %v2086, %v2107
        %v2131 = vadd.f32 %v2087, %v2107
        %v2132 = vadd.f32 %v2088, %v2107
        %v2133 = vadd.f32 %v2089, %v2107
        %v2134 = vadd.f32 %v2090, %v2107
        %v2135 = vadd.f32 %v2091, %v2107
        %v2136 = vadd.f32 %v2092, %v2107
        %v2137 = vadd.f32 %v2093, %v2107
        %v2138 = vadd.f32 %v2094, %v2107
        %v2139 = vadd.f32 %v2095, %v2107
        %v2140 = vadd.f32 %v2096, %v2107
        %v2141 = vadd.f32 %v2097, %v2107
        %v2142 = vadd.f32 %v2098, %v2107
        %v2143 = vadd.f32 %v2099, %v2107
        %v2144 = vadd.f32 %v2100, %v2107
        %v2145 = vadd.f32 %v2101, %v2107
        %v2146 = vadd.f32 %v2102, %v2107
        %v2147 = vadd.f32 %v2103, %v2107
        %v2148 = vadd.f32 %v2104, %v2107
        %v2149 = vmax.f32 %v2109, 0.0
        %v2150 = vmax.f32 %v2110, 0.0
        %v2151 = vmax.f32 %v2111, 0.0
        %v2152 = vmax.f32 %v2112, 0.0
        %v2153 = vmax.f32 %v2113, 0.0
        %v2154 = vmax.f32 %v2114, 0.0
        %v2155 = vmax.f32 %v2115, 0.0
        %v2156 = vmax.f32 %v2116, 0.0
        %v2157 = vmax.f32 %v2117, 0.0
        %v2158 = vmax.f32 %v2118, 0.0
        %v2159 = vmax.f32 %v2119, 0.0
        %v2160 = vmax.f32 %v2120, 0.0
        %v2161 = vmax.f32 %v2121, 0.0
        %v2162 = vmax.f32 %v2122, 0.0
        %v2163 = vmax.f32 %v2123, 0.0
        %v2164 = vmax.f32 %v2124, 0.0
        %v2165 = vmax.f32 %v2125, 0.0
        %v2166 = vmax.f32 %v2126, 0.0
        %v2167 = vmax.f32 %v2127, 0.0
        %v2168 = vmax.f32 %v2128, 0.0
        %v2169 = vmax.f32 %v2129, 0.0
        %v2170 = vmax.f32 %v2130, 0.0
        %v2171 = vmax.f32 %v2131, 0.0
        %v2172 = vmax.f32 %v2132, 0.0
        %v2173 = vmax.f32 %v2133, 0.0
        %v2174 = vmax.f32 %v2134, 0.0
        %v2175 = vmax.f32 %v2135, 0.0
        %v2176 = vmax.f32 %v2136, 0.0
        %v2177 = vmax.f32 %v2137, 0.0
        %v2178 = vmax.f32 %v2138, 0.0
        %v2179 = vmax.f32 %v2139, 0.0
        %v2180 = vmax.f32 %v2140, 0.0
        %v2181 = vmax.f32 %v2141, 0.0
        %v2182 = vmax.f32 %v2142, 0.0
        %v2183 = vmax.f32 %v2143, 0.0
        %v2184 = vmax.f32 %v2144, 0.0
        %v2185 = vmax.f32 %v2145, 0.0
        %v2186 = vmax.f32 %v2146, 0.0
        %v2187 = vmax.f32 %v2147, 0.0
        %v2188 = vmax.f32 %v2148, 0.0
        %v2189 = vmul.f32 %v2149, %v418
        %v2190 = vmul.f32 %v2150, %v419
        %v2191 = vmul.f32 %v2151, %v420
        %v2192 = vmul.f32 %v2152, %v421
        %v2193 = vmul.f32 %v2153, %v422
        %v2194 = vmul.f32 %v2154, %v423
        %v2195 = vmul.f32 %v2155, %v424
        %v2196 = vmul.f32 %v2156, %v425
        %v2197 = vmul.f32 %v2157, %v426
        %v2198 = vmul.f32 %v2158, %v427
        %v2199 = vmul.f32 %v2159, %v428
        %v2200 = vmul.f32 %v2160, %v429
        %v2201 = vmul.f32 %v2161, %v430
        %v2202 = vmul.f32 %v2162, %v431
        %v2203 = vmul.f32 %v2163, %v432
        %v2204 = vmul.f32 %v2164, %v433
        %v2205 = vmul.f32 %v2165, %v434
        %v2206 = vmul.f32 %v2166, %v435
        %v2207 = vmul.f32 %v2167, %v436
        %v2208 = vmul.f32 %v2168, %v437
        %v2209 = vmul.f32 %v2169, %v418
        %v2210 = vmul.f32 %v2170, %v419
        %v2211 = vmul.f32 %v2171, %v420
        %v2212 = vmul.f32 %v2172, %v421
        %v2213 = vmul.f32 %v2173, %v422
        %v2214 = vmul.f32 %v2174, %v423
        %v2215 = vmul.f32 %v2175, %v424
        %v2216 = vmul.f32 %v2176, %v425
        %v2217 = vmul.f32 %v2177, %v426
        %v2218 = vmul.f32 %v2178, %v427
        %v2219 = vmul.f32 %v2179, %v428
        %v2220 = vmul.f32 %v2180, %v429
        %v2221 = vmul.f32 %v2181, %v430
        %v2222 = vmul.f32 %v2182, %v431
        %v2223 = vmul.f32 %v2183, %v432
        %v2224 = vmul.f32 %v2184, %v433
        %v2225 = vmul.f32 %v2185, %v434
        %v2226 = vmul.f32 %v2186, %v435
        %v2227 = vmul.f32 %v2187, %v436
        %v2228 = vmul.f32 %v2188, %v437
        %v2229 = vld [vmem:[#allocation7] sm:$0xff]
        %v2230 = vld [vmem:[#allocation7 + $0x8] sm:$0xff]
        %v2231 = vld [vmem:[#allocation7 + $0x10] sm:$0xff]
        %v2232 = vld [vmem:[#allocation7 + $0x18] sm:$0xff]
        %v2233 = vld [vmem:[#allocation7 + $0x20] sm:$0xff]
        %v2234 = vld [vmem:[#allocation7 + $0x28] sm:$0xff]
        %v2235 = vld [vmem:[#allocation7 + $0x30] sm:$0xff]
        %v2236 = vld [vmem:[#allocation7 + $0x38] sm:$0xff]
        %v2237 = vld [vmem:[#allocation7 + $0x40] sm:$0xff]
        %v2238 = vld [vmem:[#allocation7 + $0x48] sm:$0xff]
        %v2239 = vld [vmem:[#allocation7 + $0x50] sm:$0xff]
        %v2240 = vld [vmem:[#allocation7 + $0x58] sm:$0xff]
        %v2241 = vld [vmem:[#allocation7 + $0x60] sm:$0xff]
        %v2242 = vld [vmem:[#allocation7 + $0x68] sm:$0xff]
        %v2243 = vld [vmem:[#allocation7 + $0x70] sm:$0xff]
        %v2244 = vld [vmem:[#allocation7 + $0x78] sm:$0xff]
        %v2245 = vld [vmem:[#allocation7 + $0x80] sm:$0xff]
        %v2246 = vld [vmem:[#allocation7 + $0x88] sm:$0xff]
        %v2247 = vld [vmem:[#allocation7 + $0x90] sm:$0xff]
        %v2248 = vld [vmem:[#allocation7 + $0x98] sm:$0xff]
        %v2249 = vld [vmem:[#allocation7 + $0xa0] sm:$0xff]
        %v2250 = vld [vmem:[#allocation7 + $0xa8] sm:$0xff]
        %v2251 = vld [vmem:[#allocation7 + $0xb0] sm:$0xff]
        %v2252 = vld [vmem:[#allocation7 + $0xb8] sm:$0xff]
        %v2253 = vld [vmem:[#allocation7 + $0xc0] sm:$0xff]
        %v2254 = vld [vmem:[#allocation7 + $0xc8] sm:$0xff]
        %v2255 = vld [vmem:[#allocation7 + $0xd0] sm:$0xff]
        %v2256 = vld [vmem:[#allocation7 + $0xd8] sm:$0xff]
        %v2257 = vld [vmem:[#allocation7 + $0xe0] sm:$0xff]
        %v2258 = vld [vmem:[#allocation7 + $0xe8] sm:$0xff]
        %v2259 = vld [vmem:[#allocation7 + $0xf0] sm:$0xff]
        %v2260 = vld [vmem:[#allocation7 + $0xf8] sm:$0xff]
        %v2261 = vld [vmem:[#allocation7 + $0x100] sm:$0xff]
        %v2262 = vld [vmem:[#allocation7 + $0x108] sm:$0xff]
        %v2263 = vld [vmem:[#allocation7 + $0x110] sm:$0xff]
        %v2264 = vld [vmem:[#allocation7 + $0x118] sm:$0xff]
        %v2265 = vld [vmem:[#allocation7 + $0x120] sm:$0xff]
        %v2266 = vld [vmem:[#allocation7 + $0x128] sm:$0xff]
        %v2267 = vld [vmem:[#allocation7 + $0x130] sm:$0xff]
        %v2268 = vld [vmem:[#allocation7 + $0x138] sm:$0xff]
        %v2269 = vld [vmem:[#allocation7 + $0x140] sm:$0xff]
        %v2270 = vld [vmem:[#allocation7 + $0x148] sm:$0xff]
        %v2271 = vld [vmem:[#allocation7 + $0x150] sm:$0xff]
        %v2272 = vld [vmem:[#allocation7 + $0x158] sm:$0xff]
        %v2273 = vld [vmem:[#allocation7 + $0x160] sm:$0xff]
        %v2274 = vld [vmem:[#allocation7 + $0x168] sm:$0xff]
        %v2275 = vld [vmem:[#allocation7 + $0x170] sm:$0xff]
        %v2276 = vld [vmem:[#allocation7 + $0x178] sm:$0xff]
        %2277 = vmatpush.msra.mxu0 %v2244
        %2278 = vmatpush.msra.mxu0 %v2243
        %2279 = vmatpush.msra.mxu0 %v2242
        %2280 = vmatpush.msra.mxu0 %v2241
        %2281 = vmatpush.msra.mxu0 %v2240
        %2282 = vmatpush.msra.mxu0 %v2239
        %2283 = vmatpush.msra.mxu0 %v2238
        %2284 = vmatpush.msra.mxu0 %v2237
        %2285 = vmatpush.msra.mxu0 %v2236
        %2286 = vmatpush.msra.mxu0 %v2235
        %2287 = vmatpush.msra.mxu0 %v2234
        %2288 = vmatpush.msra.mxu0 %v2233
        %2289 = vmatpush.msra.mxu0 %v2232
        %2290 = vmatpush.msra.mxu0 %v2231
        %2291 = vmatpush.msra.mxu0 %v2230
        %2292 = vmatpush.msra.mxu0 %v2229
        %2293 = vmatmul.f32.gmra.mxu0 %v2227
        %v2294 = vpop.f32.mrf.mxu0
        %v2295 = vadd.f32 0.0, %v2294
        %2296 = vmatmul.f32.gmra.mxu0 %v2228
        %v2297 = vpop.f32.mrf.mxu0
        %v2298 = vadd.f32 0.0, %v2297
        %2299 = vmatmul.f32.gmra.mxu0 %v2189
        %v2300 = vpop.f32.mrf.mxu0
        %v2301 = vadd.f32 0.0, %v2300
        %2302 = vmatmul.f32.gmra.mxu0 %v2190
        %v2303 = vpop.f32.mrf.mxu0
        %v2304 = vadd.f32 0.0, %v2303
        %2305 = vmatmul.f32.gmra.mxu0 %v2191
        %v2306 = vpop.f32.mrf.mxu0
        %v2307 = vadd.f32 0.0, %v2306
        %2308 = vmatmul.f32.gmra.mxu0 %v2192
        %v2309 = vpop.f32.mrf.mxu0
        %v2310 = vadd.f32 0.0, %v2309
        %2311 = vmatmul.f32.gmra.mxu0 %v2193
        %v2312 = vpop.f32.mrf.mxu0
        %v2313 = vadd.f32 0.0, %v2312
        %2314 = vmatmul.f32.gmra.mxu0 %v2194
        %v2315 = vpop.f32.mrf.mxu0
        %v2316 = vadd.f32 0.0, %v2315
        %2317 = vmatmul.f32.gmra.mxu0 %v2195
        %v2318 = vpop.f32.mrf.mxu0
        %v2319 = vadd.f32 0.0, %v2318
        %2320 = vmatmul.f32.gmra.mxu0 %v2196
        %v2321 = vpop.f32.mrf.mxu0
        %v2322 = vadd.f32 0.0, %v2321
        %2323 = vmatmul.f32.gmra.mxu0 %v2197
        %v2324 = vpop.f32.mrf.mxu0
        %v2325 = vadd.f32 0.0, %v2324
        %2326 = vmatmul.f32.gmra.mxu0 %v2198
        %v2327 = vpop.f32.mrf.mxu0
        %v2328 = vadd.f32 0.0, %v2327
        %2329 = vmatmul.f32.gmra.mxu0 %v2199
        %v2330 = vpop.f32.mrf.mxu0
        %v2331 = vadd.f32 0.0, %v2330
        %2332 = vmatmul.f32.gmra.mxu0 %v2200
        %v2333 = vpop.f32.mrf.mxu0
        %v2334 = vadd.f32 0.0, %v2333
        %2335 = vmatmul.f32.gmra.mxu0 %v2201
        %v2336 = vpop.f32.mrf.mxu0
        %v2337 = vadd.f32 0.0, %v2336
        %2338 = vmatmul.f32.gmra.mxu0 %v2202
        %v2339 = vpop.f32.mrf.mxu0
        %v2340 = vadd.f32 0.0, %v2339
        %2341 = vmatmul.f32.gmra.mxu0 %v2203
        %v2342 = vpop.f32.mrf.mxu0
        %v2343 = vadd.f32 0.0, %v2342
        %2344 = vmatmul.f32.gmra.mxu0 %v2204
        %v2345 = vpop.f32.mrf.mxu0
        %v2346 = vadd.f32 0.0, %v2345
        %2347 = vmatmul.f32.gmra.mxu0 %v2205
        %v2348 = vpop.f32.mrf.mxu0
        %v2349 = vadd.f32 0.0, %v2348
        %2350 = vmatmul.f32.gmra.mxu0 %v2206
        %v2351 = vpop.f32.mrf.mxu0
        %v2352 = vadd.f32 0.0, %v2351
        %2353 = vmatmul.f32.gmra.mxu0 %v2207
        %v2354 = vpop.f32.mrf.mxu0
        %v2355 = vadd.f32 0.0, %v2354
        %2356 = vmatmul.f32.gmra.mxu0 %v2208
        %v2357 = vpop.f32.mrf.mxu0
        %v2358 = vadd.f32 0.0, %v2357
        %2359 = vmatmul.f32.gmra.mxu0 %v2209
        %v2360 = vpop.f32.mrf.mxu0
        %v2361 = vadd.f32 0.0, %v2360
        %2362 = vmatmul.f32.gmra.mxu0 %v2210
        %v2363 = vpop.f32.mrf.mxu0
        %v2364 = vadd.f32 0.0, %v2363
        %2365 = vmatmul.f32.gmra.mxu0 %v2211
        %v2366 = vpop.f32.mrf.mxu0
        %v2367 = vadd.f32 0.0, %v2366
        %2368 = vmatmul.f32.gmra.mxu0 %v2212
        %v2369 = vpop.f32.mrf.mxu0
        %v2370 = vadd.f32 0.0, %v2369
        %2371 = vmatmul.f32.gmra.mxu0 %v2213
        %v2372 = vpop.f32.mrf.mxu0
        %v2373 = vadd.f32 0.0, %v2372
        %2374 = vmatmul.f32.gmra.mxu0 %v2214
        %v2375 = vpop.f32.mrf.mxu0
        %v2376 = vadd.f32 0.0, %v2375
        %2377 = vmatmul.f32.gmra.mxu0 %v2215
        %v2378 = vpop.f32.mrf.mxu0
        %v2379 = vadd.f32 0.0, %v2378
        %2380 = vmatmul.f32.gmra.mxu0 %v2216
        %v2381 = vpop.f32.mrf.mxu0
        %v2382 = vadd.f32 0.0, %v2381
        %2383 = vmatmul.f32.gmra.mxu0 %v2217
        %v2384 = vpop.f32.mrf.mxu0
        %v2385 = vadd.f32 0.0, %v2384
        %2386 = vmatmul.f32.gmra.mxu0 %v2218
        %v2387 = vpop.f32.mrf.mxu0
        %v2388 = vadd.f32 0.0, %v2387
        %2389 = vmatmul.f32.gmra.mxu0 %v2219
        %v2390 = vpop.f32.mrf.mxu0
        %v2391 = vadd.f32 0.0, %v2390
        %2392 = vmatmul.f32.gmra.mxu0 %v2220
        %v2393 = vpop.f32.mrf.mxu0
        %v2394 = vadd.f32 0.0, %v2393
        %2395 = vmatmul.f32.gmra.mxu0 %v2221
        %v2396 = vpop.f32.mrf.mxu0
        %v2397 = vadd.f32 0.0, %v2396
        %2398 = vmatmul.f32.gmra.mxu0 %v2222
        %v2399 = vpop.f32.mrf.mxu0
        %v2400 = vadd.f32 0.0, %v2399
        %2401 = vmatmul.f32.gmra.mxu0 %v2223
        %v2402 = vpop.f32.mrf.mxu0
        %v2403 = vadd.f32 0.0, %v2402
        %2404 = vmatmul.f32.gmra.mxu0 %v2224
        %v2405 = vpop.f32.mrf.mxu0
        %v2406 = vadd.f32 0.0, %v2405
        %2407 = vmatmul.f32.gmra.mxu0 %v2225
        %v2408 = vpop.f32.mrf.mxu0
        %v2409 = vadd.f32 0.0, %v2408
        %2410 = vmatmul.f32.gmra.mxu0 %v2226
        %v2411 = vpop.f32.mrf.mxu0
        %v2412 = vadd.f32 0.0, %v2411
        %2413 = vdwg.mxu0
        %2414 = vmatpush.msra.mxu0 %v2260
        %2415 = vmatpush.msra.mxu0 %v2259
        %2416 = vmatpush.msra.mxu0 %v2258
        %2417 = vmatpush.msra.mxu0 %v2257
        %2418 = vmatpush.msra.mxu0 %v2256
        %2419 = vmatpush.msra.mxu0 %v2255
        %2420 = vmatpush.msra.mxu0 %v2254
        %2421 = vmatpush.msra.mxu0 %v2253
        %2422 = vmatpush.msra.mxu0 %v2252
        %2423 = vmatpush.msra.mxu0 %v2251
        %2424 = vmatpush.msra.mxu0 %v2250
        %2425 = vmatpush.msra.mxu0 %v2249
        %2426 = vmatpush.msra.mxu0 %v2248
        %2427 = vmatpush.msra.mxu0 %v2247
        %2428 = vmatpush.msra.mxu0 %v2246
        %2429 = vmatpush.msra.mxu0 %v2245
        %2430 = vmatmul.f32.gmra.mxu0 %v2189
        %v2431 = vpop.f32.mrf.mxu0
        %v2432 = vadd.f32 %v2295, %v2431
        %2433 = vmatmul.f32.gmra.mxu0 %v2190
        %v2434 = vpop.f32.mrf.mxu0
        %v2435 = vadd.f32 %v2298, %v2434
        %2436 = vmatmul.f32.gmra.mxu0 %v2191
        %v2437 = vpop.f32.mrf.mxu0
        %v2438 = vadd.f32 %v2301, %v2437
        %2439 = vmatmul.f32.gmra.mxu0 %v2192
        %v2440 = vpop.f32.mrf.mxu0
        %v2441 = vadd.f32 %v2304, %v2440
        %2442 = vmatmul.f32.gmra.mxu0 %v2193
        %v2443 = vpop.f32.mrf.mxu0
        %v2444 = vadd.f32 %v2307, %v2443
        %2445 = vmatmul.f32.gmra.mxu0 %v2194
        %v2446 = vpop.f32.mrf.mxu0
        %v2447 = vadd.f32 %v2310, %v2446
        %2448 = vmatmul.f32.gmra.mxu0 %v2195
        %v2449 = vpop.f32.mrf.mxu0
        %v2450 = vadd.f32 %v2313, %v2449
        %2451 = vmatmul.f32.gmra.mxu0 %v2196
        %v2452 = vpop.f32.mrf.mxu0
        %v2453 = vadd.f32 %v2316, %v2452
        %2454 = vmatmul.f32.gmra.mxu0 %v2197
        %v2455 = vpop.f32.mrf.mxu0
        %v2456 = vadd.f32 %v2319, %v2455
        %2457 = vmatmul.f32.gmra.mxu0 %v2198
        %v2458 = vpop.f32.mrf.mxu0
        %v2459 = vadd.f32 %v2322, %v2458
        %2460 = vmatmul.f32.gmra.mxu0 %v2199
        %v2461 = vpop.f32.mrf.mxu0
        %v2462 = vadd.f32 %v2325, %v2461
        %2463 = vmatmul.f32.gmra.mxu0 %v2200
        %v2464 = vpop.f32.mrf.mxu0
        %v2465 = vadd.f32 %v2328, %v2464
        %2466 = vmatmul.f32.gmra.mxu0 %v2201
        %v2467 = vpop.f32.mrf.mxu0
        %v2468 = vadd.f32 %v2331, %v2467
        %2469 = vmatmul.f32.gmra.mxu0 %v2202
        %v2470 = vpop.f32.mrf.mxu0
        %v2471 = vadd.f32 %v2334, %v2470
        %2472 = vmatmul.f32.gmra.mxu0 %v2203
        %v2473 = vpop.f32.mrf.mxu0
        %v2474 = vadd.f32 %v2337, %v2473
        %2475 = vmatmul.f32.gmra.mxu0 %v2204
        %v2476 = vpop.f32.mrf.mxu0
        %v2477 = vadd.f32 %v2340, %v2476
        %2478 = vmatmul.f32.gmra.mxu0 %v2205
        %v2479 = vpop.f32.mrf.mxu0
        %v2480 = vadd.f32 %v2343, %v2479
        %2481 = vmatmul.f32.gmra.mxu0 %v2206
        %v2482 = vpop.f32.mrf.mxu0
        %v2483 = vadd.f32 %v2346, %v2482
        %2484 = vmatmul.f32.gmra.mxu0 %v2207
        %v2485 = vpop.f32.mrf.mxu0
        %v2486 = vadd.f32 %v2349, %v2485
        %2487 = vmatmul.f32.gmra.mxu0 %v2208
        %v2488 = vpop.f32.mrf.mxu0
        %v2489 = vadd.f32 %v2352, %v2488
        %2490 = vmatmul.f32.gmra.mxu0 %v2209
        %v2491 = vpop.f32.mrf.mxu0
        %v2492 = vadd.f32 %v2355, %v2491
        %2493 = vmatmul.f32.gmra.mxu0 %v2210
        %v2494 = vpop.f32.mrf.mxu0
        %v2495 = vadd.f32 %v2358, %v2494
        %2496 = vmatmul.f32.gmra.mxu0 %v2211
        %v2497 = vpop.f32.mrf.mxu0
        %v2498 = vadd.f32 %v2361, %v2497
        %2499 = vmatmul.f32.gmra.mxu0 %v2212
        %v2500 = vpop.f32.mrf.mxu0
        %v2501 = vadd.f32 %v2364, %v2500
        %2502 = vmatmul.f32.gmra.mxu0 %v2213
        %v2503 = vpop.f32.mrf.mxu0
        %v2504 = vadd.f32 %v2367, %v2503
        %2505 = vmatmul.f32.gmra.mxu0 %v2214
        %v2506 = vpop.f32.mrf.mxu0
        %v2507 = vadd.f32 %v2370, %v2506
        %2508 = vmatmul.f32.gmra.mxu0 %v2215
        %v2509 = vpop.f32.mrf.mxu0
        %v2510 = vadd.f32 %v2373, %v2509
        %2511 = vmatmul.f32.gmra.mxu0 %v2216
        %v2512 = vpop.f32.mrf.mxu0
        %v2513 = vadd.f32 %v2376, %v2512
        %2514 = vmatmul.f32.gmra.mxu0 %v2217
        %v2515 = vpop.f32.mrf.mxu0
        %v2516 = vadd.f32 %v2379, %v2515
        %2517 = vmatmul.f32.gmra.mxu0 %v2218
        %v2518 = vpop.f32.mrf.mxu0
        %v2519 = vadd.f32 %v2382, %v2518
        %2520 = vmatmul.f32.gmra.mxu0 %v2219
        %v2521 = vpop.f32.mrf.mxu0
        %v2522 = vadd.f32 %v2385, %v2521
        %2523 = vmatmul.f32.gmra.mxu0 %v2220
        %v2524 = vpop.f32.mrf.mxu0
        %v2525 = vadd.f32 %v2388, %v2524
        %2526 = vmatmul.f32.gmra.mxu0 %v2221
        %v2527 = vpop.f32.mrf.mxu0
        %v2528 = vadd.f32 %v2391, %v2527
        %2529 = vmatmul.f32.gmra.mxu0 %v2222
        %v2530 = vpop.f32.mrf.mxu0
        %v2531 = vadd.f32 %v2394, %v2530
        %2532 = vmatmul.f32.gmra.mxu0 %v2223
        %v2533 = vpop.f32.mrf.mxu0
        %v2534 = vadd.f32 %v2397, %v2533
        %2535 = vmatmul.f32.gmra.mxu0 %v2224
        %v2536 = vpop.f32.mrf.mxu0
        %v2537 = vadd.f32 %v2400, %v2536
        %2538 = vmatmul.f32.gmra.mxu0 %v2225
        %v2539 = vpop.f32.mrf.mxu0
        %v2540 = vadd.f32 %v2403, %v2539
        %2541 = vmatmul.f32.gmra.mxu0 %v2226
        %v2542 = vpop.f32.mrf.mxu0
        %v2543 = vadd.f32 %v2406, %v2542
        %2544 = vmatmul.f32.gmra.mxu0 %v2227
        %v2545 = vpop.f32.mrf.mxu0
        %v2546 = vadd.f32 %v2409, %v2545
        %2547 = vmatmul.f32.gmra.mxu0 %v2228
        %v2548 = vpop.f32.mrf.mxu0
        %v2549 = vadd.f32 %v2412, %v2548
        %2550 = vdwg.mxu0
        %2551 = vmatpush.msra.mxu0 %v2276
        %2552 = vmatpush.msra.mxu0 %v2275
        %2553 = vmatpush.msra.mxu0 %v2274
        %2554 = vmatpush.msra.mxu0 %v2273
        %2555 = vmatpush.msra.mxu0 %v2272
        %2556 = vmatpush.msra.mxu0 %v2271
        %2557 = vmatpush.msra.mxu0 %v2270
        %2558 = vmatpush.msra.mxu0 %v2269
        %2559 = vmatpush.msra.mxu0 %v2268
        %2560 = vmatpush.msra.mxu0 %v2267
        %2561 = vmatpush.msra.mxu0 %v2266
        %2562 = vmatpush.msra.mxu0 %v2265
        %2563 = vmatpush.msra.mxu0 %v2264
        %2564 = vmatpush.msra.mxu0 %v2263
        %2565 = vmatpush.msra.mxu0 %v2262
        %2566 = vmatpush.msra.mxu0 %v2261
        %2567 = vmatmul.f32.gmra.mxu0 %v2191
        %v2568 = vpop.f32.mrf.mxu0
        %v2569 = vadd.f32 %v2432, %v2568
        %2570 = vmatmul.f32.gmra.mxu0 %v2192
        %v2571 = vpop.f32.mrf.mxu0
        %v2572 = vadd.f32 %v2435, %v2571
        %2573 = vmatmul.f32.gmra.mxu0 %v2193
        %v2574 = vpop.f32.mrf.mxu0
        %v2575 = vadd.f32 %v2438, %v2574
        %2576 = vmatmul.f32.gmra.mxu0 %v2194
        %v2577 = vpop.f32.mrf.mxu0
        %v2578 = vadd.f32 %v2441, %v2577
        %2579 = vmatmul.f32.gmra.mxu0 %v2195
        %v2580 = vpop.f32.mrf.mxu0
        %v2581 = vadd.f32 %v2444, %v2580
        %2582 = vmatmul.f32.gmra.mxu0 %v2196
        %v2583 = vpop.f32.mrf.mxu0
        %v2584 = vadd.f32 %v2447, %v2583
        %2585 = vmatmul.f32.gmra.mxu0 %v2197
        %v2586 = vpop.f32.mrf.mxu0
        %v2587 = vadd.f32 %v2450, %v2586
        %2588 = vmatmul.f32.gmra.mxu0 %v2198
        %v2589 = vpop.f32.mrf.mxu0
        %v2590 = vadd.f32 %v2453, %v2589
        %2591 = vmatmul.f32.gmra.mxu0 %v2199
        %v2592 = vpop.f32.mrf.mxu0
        %v2593 = vadd.f32 %v2456, %v2592
        %2594 = vmatmul.f32.gmra.mxu0 %v2200
        %v2595 = vpop.f32.mrf.mxu0
        %v2596 = vadd.f32 %v2459, %v2595
        %2597 = vmatmul.f32.gmra.mxu0 %v2201
        %v2598 = vpop.f32.mrf.mxu0
        %v2599 = vadd.f32 %v2462, %v2598
        %2600 = vmatmul.f32.gmra.mxu0 %v2202
        %v2601 = vpop.f32.mrf.mxu0
        %v2602 = vadd.f32 %v2465, %v2601
        %2603 = vmatmul.f32.gmra.mxu0 %v2203
        %v2604 = vpop.f32.mrf.mxu0
        %v2605 = vadd.f32 %v2468, %v2604
        %2606 = vmatmul.f32.gmra.mxu0 %v2204
        %v2607 = vpop.f32.mrf.mxu0
        %v2608 = vadd.f32 %v2471, %v2607
        %2609 = vmatmul.f32.gmra.mxu0 %v2205
        %v2610 = vpop.f32.mrf.mxu0
        %v2611 = vadd.f32 %v2474, %v2610
        %2612 = vmatmul.f32.gmra.mxu0 %v2206
        %v2613 = vpop.f32.mrf.mxu0
        %v2614 = vadd.f32 %v2477, %v2613
        %2615 = vmatmul.f32.gmra.mxu0 %v2207
        %v2616 = vpop.f32.mrf.mxu0
        %v2617 = vadd.f32 %v2480, %v2616
        %2618 = vmatmul.f32.gmra.mxu0 %v2208
        %v2619 = vpop.f32.mrf.mxu0
        %v2620 = vadd.f32 %v2483, %v2619
        %2621 = vmatmul.f32.gmra.mxu0 %v2209
        %v2622 = vpop.f32.mrf.mxu0
        %v2623 = vadd.f32 %v2486, %v2622
        %2624 = vmatmul.f32.gmra.mxu0 %v2210
        %v2625 = vpop.f32.mrf.mxu0
        %v2626 = vadd.f32 %v2489, %v2625
        %2627 = vmatmul.f32.gmra.mxu0 %v2211
        %v2628 = vpop.f32.mrf.mxu0
        %v2629 = vadd.f32 %v2492, %v2628
        %2630 = vmatmul.f32.gmra.mxu0 %v2212
        %v2631 = vpop.f32.mrf.mxu0
        %v2632 = vadd.f32 %v2495, %v2631
        %2633 = vmatmul.f32.gmra.mxu0 %v2213
        %v2634 = vpop.f32.mrf.mxu0
        %v2635 = vadd.f32 %v2498, %v2634
        %2636 = vmatmul.f32.gmra.mxu0 %v2214
        %v2637 = vpop.f32.mrf.mxu0
        %v2638 = vadd.f32 %v2501, %v2637
        %2639 = vmatmul.f32.gmra.mxu0 %v2215
        %v2640 = vpop.f32.mrf.mxu0
        %v2641 = vadd.f32 %v2504, %v2640
        %2642 = vmatmul.f32.gmra.mxu0 %v2216
        %v2643 = vpop.f32.mrf.mxu0
        %v2644 = vadd.f32 %v2507, %v2643
        %2645 = vmatmul.f32.gmra.mxu0 %v2217
        %v2646 = vpop.f32.mrf.mxu0
        %v2647 = vadd.f32 %v2510, %v2646
        %2648 = vmatmul.f32.gmra.mxu0 %v2218
        %v2649 = vpop.f32.mrf.mxu0
        %v2650 = vadd.f32 %v2513, %v2649
        %2651 = vmatmul.f32.gmra.mxu0 %v2219
        %v2652 = vpop.f32.mrf.mxu0
        %v2653 = vadd.f32 %v2516, %v2652
        %2654 = vmatmul.f32.gmra.mxu0 %v2220
        %v2655 = vpop.f32.mrf.mxu0
        %v2656 = vadd.f32 %v2519, %v2655
        %2657 = vmatmul.f32.gmra.mxu0 %v2221
        %v2658 = vpop.f32.mrf.mxu0
        %v2659 = vadd.f32 %v2522, %v2658
        %2660 = vmatmul.f32.gmra.mxu0 %v2222
        %v2661 = vpop.f32.mrf.mxu0
        %v2662 = vadd.f32 %v2525, %v2661
        %2663 = vmatmul.f32.gmra.mxu0 %v2223
        %v2664 = vpop.f32.mrf.mxu0
        %v2665 = vadd.f32 %v2528, %v2664
        %2666 = vmatmul.f32.gmra.mxu0 %v2224
        %v2667 = vpop.f32.mrf.mxu0
        %v2668 = vadd.f32 %v2531, %v2667
        %2669 = vmatmul.f32.gmra.mxu0 %v2225
        %v2670 = vpop.f32.mrf.mxu0
        %v2671 = vadd.f32 %v2534, %v2670
        %2672 = vmatmul.f32.gmra.mxu0 %v2226
        %v2673 = vpop.f32.mrf.mxu0
        %v2674 = vadd.f32 %v2537, %v2673
        %2675 = vmatmul.f32.gmra.mxu0 %v2227
        %v2676 = vpop.f32.mrf.mxu0
        %v2677 = vadd.f32 %v2540, %v2676
        %2678 = vmatmul.f32.gmra.mxu0 %v2228
        %v2679 = vpop.f32.mrf.mxu0
        %v2680 = vadd.f32 %v2543, %v2679
        %2681 = vmatmul.f32.gmra.mxu0 %v2189
        %v2682 = vpop.f32.mrf.mxu0
        %v2683 = vadd.f32 %v2546, %v2682
        %2684 = vmatmul.f32.gmra.mxu0 %v2190
        %v2685 = vpop.f32.mrf.mxu0
        %v2686 = vadd.f32 %v2549, %v2685
        %2687 = vdwg.mxu0
        %s2688 = scalar_lea.vmem [#allocation7], 384
        %v2689 = vld [vmem:[%s2688] sm:$0xff]
        %v2690 = vld [vmem:[%s2688 + $0x8] sm:$0xff]
        %v2691 = vld [vmem:[%s2688 + $0x10] sm:$0xff]
        %v2692 = vld [vmem:[%s2688 + $0x18] sm:$0xff]
        %v2693 = vld [vmem:[%s2688 + $0x20] sm:$0xff]
        %v2694 = vld [vmem:[%s2688 + $0x28] sm:$0xff]
        %v2695 = vld [vmem:[%s2688 + $0x30] sm:$0xff]
        %v2696 = vld [vmem:[%s2688 + $0x38] sm:$0xff]
        %v2697 = vld [vmem:[%s2688 + $0x40] sm:$0xff]
        %v2698 = vld [vmem:[%s2688 + $0x48] sm:$0xff]
        %v2699 = vld [vmem:[%s2688 + $0x50] sm:$0xff]
        %v2700 = vld [vmem:[%s2688 + $0x58] sm:$0xff]
        %v2701 = vld [vmem:[%s2688 + $0x60] sm:$0xff]
        %v2702 = vld [vmem:[%s2688 + $0x68] sm:$0xff]
        %v2703 = vld [vmem:[%s2688 + $0x70] sm:$0xff]
        %v2704 = vld [vmem:[%s2688 + $0x78] sm:$0xff]
        %v2705 = vld [vmem:[%s2688 + $0x80] sm:$0xff]
        %v2706 = vld [vmem:[%s2688 + $0x88] sm:$0xff]
        %v2707 = vld [vmem:[%s2688 + $0x90] sm:$0xff]
        %v2708 = vld [vmem:[%s2688 + $0x98] sm:$0xff]
        %v2709 = vld [vmem:[%s2688 + $0xa0] sm:$0xff]
        %v2710 = vld [vmem:[%s2688 + $0xa8] sm:$0xff]
        %v2711 = vld [vmem:[%s2688 + $0xb0] sm:$0xff]
        %v2712 = vld [vmem:[%s2688 + $0xb8] sm:$0xff]
        %v2713 = vld [vmem:[%s2688 + $0xc0] sm:$0xff]
        %v2714 = vld [vmem:[%s2688 + $0xc8] sm:$0xff]
        %v2715 = vld [vmem:[%s2688 + $0xd0] sm:$0xff]
        %v2716 = vld [vmem:[%s2688 + $0xd8] sm:$0xff]
        %v2717 = vld [vmem:[%s2688 + $0xe0] sm:$0xff]
        %v2718 = vld [vmem:[%s2688 + $0xe8] sm:$0xff]
        %v2719 = vld [vmem:[%s2688 + $0xf0] sm:$0xff]
        %v2720 = vld [vmem:[%s2688 + $0xf8] sm:$0xff]
        %v2721 = vld [vmem:[%s2688 + $0x100] sm:$0xff]
        %v2722 = vld [vmem:[%s2688 + $0x108] sm:$0xff]
        %v2723 = vld [vmem:[%s2688 + $0x110] sm:$0xff]
        %v2724 = vld [vmem:[%s2688 + $0x118] sm:$0xff]
        %v2725 = vld [vmem:[%s2688 + $0x120] sm:$0xff]
        %v2726 = vld [vmem:[%s2688 + $0x128] sm:$0xff]
        %v2727 = vld [vmem:[%s2688 + $0x130] sm:$0xff]
        %v2728 = vld [vmem:[%s2688 + $0x138] sm:$0xff]
        %v2729 = vld [vmem:[%s2688 + $0x140] sm:$0xff]
        %v2730 = vld [vmem:[%s2688 + $0x148] sm:$0xff]
        %v2731 = vld [vmem:[%s2688 + $0x150] sm:$0xff]
        %v2732 = vld [vmem:[%s2688 + $0x158] sm:$0xff]
        %v2733 = vld [vmem:[%s2688 + $0x160] sm:$0xff]
        %v2734 = vld [vmem:[%s2688 + $0x168] sm:$0xff]
        %v2735 = vld [vmem:[%s2688 + $0x170] sm:$0xff]
        %v2736 = vld [vmem:[%s2688 + $0x178] sm:$0xff]
        %2737 = vmatpush.msra.mxu0 %v2704
        %2738 = vmatpush.msra.mxu0 %v2703
        %2739 = vmatpush.msra.mxu0 %v2702
        %2740 = vmatpush.msra.mxu0 %v2701
        %2741 = vmatpush.msra.mxu0 %v2700
        %2742 = vmatpush.msra.mxu0 %v2699
        %2743 = vmatpush.msra.mxu0 %v2698
        %2744 = vmatpush.msra.mxu0 %v2697
        %2745 = vmatpush.msra.mxu0 %v2696
        %2746 = vmatpush.msra.mxu0 %v2695
        %2747 = vmatpush.msra.mxu0 %v2694
        %2748 = vmatpush.msra.mxu0 %v2693
        %2749 = vmatpush.msra.mxu0 %v2692
        %2750 = vmatpush.msra.mxu0 %v2691
        %2751 = vmatpush.msra.mxu0 %v2690
        %2752 = vmatpush.msra.mxu0 %v2689
        %2753 = vmatmul.f32.gmra.mxu0 %v2227
        %v2754 = vpop.f32.mrf.mxu0
        %v2755 = vadd.f32 0.0, %v2754
        %2756 = vmatmul.f32.gmra.mxu0 %v2228
        %v2757 = vpop.f32.mrf.mxu0
        %v2758 = vadd.f32 0.0, %v2757
        %2759 = vmatmul.f32.gmra.mxu0 %v2189
        %v2760 = vpop.f32.mrf.mxu0
        %v2761 = vadd.f32 0.0, %v2760
        %2762 = vmatmul.f32.gmra.mxu0 %v2190
        %v2763 = vpop.f32.mrf.mxu0
        %v2764 = vadd.f32 0.0, %v2763
        %2765 = vmatmul.f32.gmra.mxu0 %v2191
        %v2766 = vpop.f32.mrf.mxu0
        %v2767 = vadd.f32 0.0, %v2766
        %2768 = vmatmul.f32.gmra.mxu0 %v2192
        %v2769 = vpop.f32.mrf.mxu0
        %v2770 = vadd.f32 0.0, %v2769
        %2771 = vmatmul.f32.gmra.mxu0 %v2193
        %v2772 = vpop.f32.mrf.mxu0
        %v2773 = vadd.f32 0.0, %v2772
        %2774 = vmatmul.f32.gmra.mxu0 %v2194
        %v2775 = vpop.f32.mrf.mxu0
        %v2776 = vadd.f32 0.0, %v2775
        %2777 = vmatmul.f32.gmra.mxu0 %v2195
        %v2778 = vpop.f32.mrf.mxu0
        %v2779 = vadd.f32 0.0, %v2778
        %2780 = vmatmul.f32.gmra.mxu0 %v2196
        %v2781 = vpop.f32.mrf.mxu0
        %v2782 = vadd.f32 0.0, %v2781
        %2783 = vmatmul.f32.gmra.mxu0 %v2197
        %v2784 = vpop.f32.mrf.mxu0
        %v2785 = vadd.f32 0.0, %v2784
        %2786 = vmatmul.f32.gmra.mxu0 %v2198
        %v2787 = vpop.f32.mrf.mxu0
        %v2788 = vadd.f32 0.0, %v2787
        %2789 = vmatmul.f32.gmra.mxu0 %v2199
        %v2790 = vpop.f32.mrf.mxu0
        %v2791 = vadd.f32 0.0, %v2790
        %2792 = vmatmul.f32.gmra.mxu0 %v2200
        %v2793 = vpop.f32.mrf.mxu0
        %v2794 = vadd.f32 0.0, %v2793
        %2795 = vmatmul.f32.gmra.mxu0 %v2201
        %v2796 = vpop.f32.mrf.mxu0
        %v2797 = vadd.f32 0.0, %v2796
        %2798 = vmatmul.f32.gmra.mxu0 %v2202
        %v2799 = vpop.f32.mrf.mxu0
        %v2800 = vadd.f32 0.0, %v2799
        %2801 = vmatmul.f32.gmra.mxu0 %v2203
        %v2802 = vpop.f32.mrf.mxu0
        %v2803 = vadd.f32 0.0, %v2802
        %2804 = vmatmul.f32.gmra.mxu0 %v2204
        %v2805 = vpop.f32.mrf.mxu0
        %v2806 = vadd.f32 0.0, %v2805
        %2807 = vmatmul.f32.gmra.mxu0 %v2205
        %v2808 = vpop.f32.mrf.mxu0
        %v2809 = vadd.f32 0.0, %v2808
        %2810 = vmatmul.f32.gmra.mxu0 %v2206
        %v2811 = vpop.f32.mrf.mxu0
        %v2812 = vadd.f32 0.0, %v2811
        %2813 = vmatmul.f32.gmra.mxu0 %v2207
        %v2814 = vpop.f32.mrf.mxu0
        %v2815 = vadd.f32 0.0, %v2814
        %2816 = vmatmul.f32.gmra.mxu0 %v2208
        %v2817 = vpop.f32.mrf.mxu0
        %v2818 = vadd.f32 0.0, %v2817
        %2819 = vmatmul.f32.gmra.mxu0 %v2209
        %v2820 = vpop.f32.mrf.mxu0
        %v2821 = vadd.f32 0.0, %v2820
        %2822 = vmatmul.f32.gmra.mxu0 %v2210
        %v2823 = vpop.f32.mrf.mxu0
        %v2824 = vadd.f32 0.0, %v2823
        %2825 = vmatmul.f32.gmra.mxu0 %v2211
        %v2826 = vpop.f32.mrf.mxu0
        %v2827 = vadd.f32 0.0, %v2826
        %2828 = vmatmul.f32.gmra.mxu0 %v2212
        %v2829 = vpop.f32.mrf.mxu0
        %v2830 = vadd.f32 0.0, %v2829
        %2831 = vmatmul.f32.gmra.mxu0 %v2213
        %v2832 = vpop.f32.mrf.mxu0
        %v2833 = vadd.f32 0.0, %v2832
        %2834 = vmatmul.f32.gmra.mxu0 %v2214
        %v2835 = vpop.f32.mrf.mxu0
        %v2836 = vadd.f32 0.0, %v2835
        %2837 = vmatmul.f32.gmra.mxu0 %v2215
        %v2838 = vpop.f32.mrf.mxu0
        %v2839 = vadd.f32 0.0, %v2838
        %2840 = vmatmul.f32.gmra.mxu0 %v2216
        %v2841 = vpop.f32.mrf.mxu0
        %v2842 = vadd.f32 0.0, %v2841
        %2843 = vmatmul.f32.gmra.mxu0 %v2217
        %v2844 = vpop.f32.mrf.mxu0
        %v2845 = vadd.f32 0.0, %v2844
        %2846 = vmatmul.f32.gmra.mxu0 %v2218
        %v2847 = vpop.f32.mrf.mxu0
        %v2848 = vadd.f32 0.0, %v2847
        %2849 = vmatmul.f32.gmra.mxu0 %v2219
        %v2850 = vpop.f32.mrf.mxu0
        %v2851 = vadd.f32 0.0, %v2850
        %2852 = vmatmul.f32.gmra.mxu0 %v2220
        %v2853 = vpop.f32.mrf.mxu0
        %v2854 = vadd.f32 0.0, %v2853
        %2855 = vmatmul.f32.gmra.mxu0 %v2221
        %v2856 = vpop.f32.mrf.mxu0
        %v2857 = vadd.f32 0.0, %v2856
        %2858 = vmatmul.f32.gmra.mxu0 %v2222
        %v2859 = vpop.f32.mrf.mxu0
        %v2860 = vadd.f32 0.0, %v2859
        %2861 = vmatmul.f32.gmra.mxu0 %v2223
        %v2862 = vpop.f32.mrf.mxu0
        %v2863 = vadd.f32 0.0, %v2862
        %2864 = vmatmul.f32.gmra.mxu0 %v2224
        %v2865 = vpop.f32.mrf.mxu0
        %v2866 = vadd.f32 0.0, %v2865
        %2867 = vmatmul.f32.gmra.mxu0 %v2225
        %v2868 = vpop.f32.mrf.mxu0
        %v2869 = vadd.f32 0.0, %v2868
        %2870 = vmatmul.f32.gmra.mxu0 %v2226
        %v2871 = vpop.f32.mrf.mxu0
        %v2872 = vadd.f32 0.0, %v2871
        %2873 = vdwg.mxu0
        %2874 = vmatpush.msra.mxu0 %v2720
        %2875 = vmatpush.msra.mxu0 %v2719
        %2876 = vmatpush.msra.mxu0 %v2718
        %2877 = vmatpush.msra.mxu0 %v2717
        %2878 = vmatpush.msra.mxu0 %v2716
        %2879 = vmatpush.msra.mxu0 %v2715
        %2880 = vmatpush.msra.mxu0 %v2714
        %2881 = vmatpush.msra.mxu0 %v2713
        %2882 = vmatpush.msra.mxu0 %v2712
        %2883 = vmatpush.msra.mxu0 %v2711
        %2884 = vmatpush.msra.mxu0 %v2710
        %2885 = vmatpush.msra.mxu0 %v2709
        %2886 = vmatpush.msra.mxu0 %v2708
        %2887 = vmatpush.msra.mxu0 %v2707
        %2888 = vmatpush.msra.mxu0 %v2706
        %2889 = vmatpush.msra.mxu0 %v2705
        %2890 = vmatmul.f32.gmra.mxu0 %v2189
        %v2891 = vpop.f32.mrf.mxu0
        %v2892 = vadd.f32 %v2755, %v2891
        %2893 = vmatmul.f32.gmra.mxu0 %v2190
        %v2894 = vpop.f32.mrf.mxu0
        %v2895 = vadd.f32 %v2758, %v2894
        %2896 = vmatmul.f32.gmra.mxu0 %v2191
        %v2897 = vpop.f32.mrf.mxu0
        %v2898 = vadd.f32 %v2761, %v2897
        %2899 = vmatmul.f32.gmra.mxu0 %v2192
        %v2900 = vpop.f32.mrf.mxu0
        %v2901 = vadd.f32 %v2764, %v2900
        %2902 = vmatmul.f32.gmra.mxu0 %v2193
        %v2903 = vpop.f32.mrf.mxu0
        %v2904 = vadd.f32 %v2767, %v2903
        %2905 = vmatmul.f32.gmra.mxu0 %v2194
        %v2906 = vpop.f32.mrf.mxu0
        %v2907 = vadd.f32 %v2770, %v2906
        %2908 = vmatmul.f32.gmra.mxu0 %v2195
        %v2909 = vpop.f32.mrf.mxu0
        %v2910 = vadd.f32 %v2773, %v2909
        %2911 = vmatmul.f32.gmra.mxu0 %v2196
        %v2912 = vpop.f32.mrf.mxu0
        %v2913 = vadd.f32 %v2776, %v2912
        %2914 = vmatmul.f32.gmra.mxu0 %v2197
        %v2915 = vpop.f32.mrf.mxu0
        %v2916 = vadd.f32 %v2779, %v2915
        %2917 = vmatmul.f32.gmra.mxu0 %v2198
        %v2918 = vpop.f32.mrf.mxu0
        %v2919 = vadd.f32 %v2782, %v2918
        %2920 = vmatmul.f32.gmra.mxu0 %v2199
        %v2921 = vpop.f32.mrf.mxu0
        %v2922 = vadd.f32 %v2785, %v2921
        %2923 = vmatmul.f32.gmra.mxu0 %v2200
        %v2924 = vpop.f32.mrf.mxu0
        %v2925 = vadd.f32 %v2788, %v2924
        %2926 = vmatmul.f32.gmra.mxu0 %v2201
        %v2927 = vpop.f32.mrf.mxu0
        %v2928 = vadd.f32 %v2791, %v2927
        %2929 = vmatmul.f32.gmra.mxu0 %v2202
        %v2930 = vpop.f32.mrf.mxu0
        %v2931 = vadd.f32 %v2794, %v2930
        %2932 = vmatmul.f32.gmra.mxu0 %v2203
        %v2933 = vpop.f32.mrf.mxu0
        %v2934 = vadd.f32 %v2797, %v2933
        %2935 = vmatmul.f32.gmra.mxu0 %v2204
        %v2936 = vpop.f32.mrf.mxu0
        %v2937 = vadd.f32 %v2800, %v2936
        %2938 = vmatmul.f32.gmra.mxu0 %v2205
        %v2939 = vpop.f32.mrf.mxu0
        %v2940 = vadd.f32 %v2803, %v2939
        %2941 = vmatmul.f32.gmra.mxu0 %v2206
        %v2942 = vpop.f32.mrf.mxu0
        %v2943 = vadd.f32 %v2806, %v2942
        %2944 = vmatmul.f32.gmra.mxu0 %v2207
        %v2945 = vpop.f32.mrf.mxu0
        %v2946 = vadd.f32 %v2809, %v2945
        %2947 = vmatmul.f32.gmra.mxu0 %v2208
        %v2948 = vpop.f32.mrf.mxu0
        %v2949 = vadd.f32 %v2812, %v2948
        %2950 = vmatmul.f32.gmra.mxu0 %v2209
        %v2951 = vpop.f32.mrf.mxu0
        %v2952 = vadd.f32 %v2815, %v2951
        %2953 = vmatmul.f32.gmra.mxu0 %v2210
        %v2954 = vpop.f32.mrf.mxu0
        %v2955 = vadd.f32 %v2818, %v2954
        %2956 = vmatmul.f32.gmra.mxu0 %v2211
        %v2957 = vpop.f32.mrf.mxu0
        %v2958 = vadd.f32 %v2821, %v2957
        %2959 = vmatmul.f32.gmra.mxu0 %v2212
        %v2960 = vpop.f32.mrf.mxu0
        %v2961 = vadd.f32 %v2824, %v2960
        %2962 = vmatmul.f32.gmra.mxu0 %v2213
        %v2963 = vpop.f32.mrf.mxu0
        %v2964 = vadd.f32 %v2827, %v2963
        %2965 = vmatmul.f32.gmra.mxu0 %v2214
        %v2966 = vpop.f32.mrf.mxu0
        %v2967 = vadd.f32 %v2830, %v2966
        %2968 = vmatmul.f32.gmra.mxu0 %v2215
        %v2969 = vpop.f32.mrf.mxu0
        %v2970 = vadd.f32 %v2833, %v2969
        %2971 = vmatmul.f32.gmra.mxu0 %v2216
        %v2972 = vpop.f32.mrf.mxu0
        %v2973 = vadd.f32 %v2836, %v2972
        %2974 = vmatmul.f32.gmra.mxu0 %v2217
        %v2975 = vpop.f32.mrf.mxu0
        %v2976 = vadd.f32 %v2839, %v2975
        %2977 = vmatmul.f32.gmra.mxu0 %v2218
        %v2978 = vpop.f32.mrf.mxu0
        %v2979 = vadd.f32 %v2842, %v2978
        %2980 = vmatmul.f32.gmra.mxu0 %v2219
        %v2981 = vpop.f32.mrf.mxu0
        %v2982 = vadd.f32 %v2845, %v2981
        %2983 = vmatmul.f32.gmra.mxu0 %v2220
        %v2984 = vpop.f32.mrf.mxu0
        %v2985 = vadd.f32 %v2848, %v2984
        %2986 = vmatmul.f32.gmra.mxu0 %v2221
        %v2987 = vpop.f32.mrf.mxu0
        %v2988 = vadd.f32 %v2851, %v2987
        %2989 = vmatmul.f32.gmra.mxu0 %v2222
        %v2990 = vpop.f32.mrf.mxu0
        %v2991 = vadd.f32 %v2854, %v2990
        %2992 = vmatmul.f32.gmra.mxu0 %v2223
        %v2993 = vpop.f32.mrf.mxu0
        %v2994 = vadd.f32 %v2857, %v2993
        %2995 = vmatmul.f32.gmra.mxu0 %v2224
        %v2996 = vpop.f32.mrf.mxu0
        %v2997 = vadd.f32 %v2860, %v2996
        %2998 = vmatmul.f32.gmra.mxu0 %v2225
        %v2999 = vpop.f32.mrf.mxu0
        %v3000 = vadd.f32 %v2863, %v2999
        %3001 = vmatmul.f32.gmra.mxu0 %v2226
        %v3002 = vpop.f32.mrf.mxu0
        %v3003 = vadd.f32 %v2866, %v3002
        %3004 = vmatmul.f32.gmra.mxu0 %v2227
        %v3005 = vpop.f32.mrf.mxu0
        %v3006 = vadd.f32 %v2869, %v3005
        %3007 = vmatmul.f32.gmra.mxu0 %v2228
        %v3008 = vpop.f32.mrf.mxu0
        %v3009 = vadd.f32 %v2872, %v3008
        %3010 = vdwg.mxu0
        %3011 = vmatpush.msra.mxu0 %v2736
        %3012 = vmatpush.msra.mxu0 %v2735
        %3013 = vmatpush.msra.mxu0 %v2734
        %3014 = vmatpush.msra.mxu0 %v2733
        %3015 = vmatpush.msra.mxu0 %v2732
        %3016 = vmatpush.msra.mxu0 %v2731
        %3017 = vmatpush.msra.mxu0 %v2730
        %3018 = vmatpush.msra.mxu0 %v2729
        %3019 = vmatpush.msra.mxu0 %v2728
        %3020 = vmatpush.msra.mxu0 %v2727
        %3021 = vmatpush.msra.mxu0 %v2726
        %3022 = vmatpush.msra.mxu0 %v2725
        %3023 = vmatpush.msra.mxu0 %v2724
        %3024 = vmatpush.msra.mxu0 %v2723
        %3025 = vmatpush.msra.mxu0 %v2722
        %3026 = vmatpush.msra.mxu0 %v2721
        %3027 = vmatmul.f32.gmra.mxu0 %v2191
        %v3028 = vpop.f32.mrf.mxu0
        %v3029 = vadd.f32 %v2892, %v3028
        %3030 = vmatmul.f32.gmra.mxu0 %v2192
        %v3031 = vpop.f32.mrf.mxu0
        %v3032 = vadd.f32 %v2895, %v3031
        %3033 = vmatmul.f32.gmra.mxu0 %v2193
        %v3034 = vpop.f32.mrf.mxu0
        %v3035 = vadd.f32 %v2898, %v3034
        %3036 = vmatmul.f32.gmra.mxu0 %v2194
        %v3037 = vpop.f32.mrf.mxu0
        %v3038 = vadd.f32 %v2901, %v3037
        %3039 = vmatmul.f32.gmra.mxu0 %v2195
        %v3040 = vpop.f32.mrf.mxu0
        %v3041 = vadd.f32 %v2904, %v3040
        %3042 = vmatmul.f32.gmra.mxu0 %v2196
        %v3043 = vpop.f32.mrf.mxu0
        %v3044 = vadd.f32 %v2907, %v3043
        %3045 = vmatmul.f32.gmra.mxu0 %v2197
        %v3046 = vpop.f32.mrf.mxu0
        %v3047 = vadd.f32 %v2910, %v3046
        %3048 = vmatmul.f32.gmra.mxu0 %v2198
        %v3049 = vpop.f32.mrf.mxu0
        %v3050 = vadd.f32 %v2913, %v3049
        %3051 = vmatmul.f32.gmra.mxu0 %v2199
        %v3052 = vpop.f32.mrf.mxu0
        %v3053 = vadd.f32 %v2916, %v3052
        %3054 = vmatmul.f32.gmra.mxu0 %v2200
        %v3055 = vpop.f32.mrf.mxu0
        %v3056 = vadd.f32 %v2919, %v3055
        %3057 = vmatmul.f32.gmra.mxu0 %v2201
        %v3058 = vpop.f32.mrf.mxu0
        %v3059 = vadd.f32 %v2922, %v3058
        %3060 = vmatmul.f32.gmra.mxu0 %v2202
        %v3061 = vpop.f32.mrf.mxu0
        %v3062 = vadd.f32 %v2925, %v3061
        %3063 = vmatmul.f32.gmra.mxu0 %v2203
        %v3064 = vpop.f32.mrf.mxu0
        %v3065 = vadd.f32 %v2928, %v3064
        %3066 = vmatmul.f32.gmra.mxu0 %v2204
        %v3067 = vpop.f32.mrf.mxu0
        %v3068 = vadd.f32 %v2931, %v3067
        %3069 = vmatmul.f32.gmra.mxu0 %v2205
        %v3070 = vpop.f32.mrf.mxu0
        %v3071 = vadd.f32 %v2934, %v3070
        %3072 = vmatmul.f32.gmra.mxu0 %v2206
        %v3073 = vpop.f32.mrf.mxu0
        %v3074 = vadd.f32 %v2937, %v3073
        %3075 = vmatmul.f32.gmra.mxu0 %v2207
        %v3076 = vpop.f32.mrf.mxu0
        %v3077 = vadd.f32 %v2940, %v3076
        %3078 = vmatmul.f32.gmra.mxu0 %v2208
        %v3079 = vpop.f32.mrf.mxu0
        %v3080 = vadd.f32 %v2943, %v3079
        %3081 = vmatmul.f32.gmra.mxu0 %v2209
        %v3082 = vpop.f32.mrf.mxu0
        %v3083 = vadd.f32 %v2946, %v3082
        %3084 = vmatmul.f32.gmra.mxu0 %v2210
        %v3085 = vpop.f32.mrf.mxu0
        %v3086 = vadd.f32 %v2949, %v3085
        %3087 = vmatmul.f32.gmra.mxu0 %v2211
        %v3088 = vpop.f32.mrf.mxu0
        %v3089 = vadd.f32 %v2952, %v3088
        %3090 = vmatmul.f32.gmra.mxu0 %v2212
        %v3091 = vpop.f32.mrf.mxu0
        %v3092 = vadd.f32 %v2955, %v3091
        %3093 = vmatmul.f32.gmra.mxu0 %v2213
        %v3094 = vpop.f32.mrf.mxu0
        %v3095 = vadd.f32 %v2958, %v3094
        %3096 = vmatmul.f32.gmra.mxu0 %v2214
        %v3097 = vpop.f32.mrf.mxu0
        %v3098 = vadd.f32 %v2961, %v3097
        %3099 = vmatmul.f32.gmra.mxu0 %v2215
        %v3100 = vpop.f32.mrf.mxu0
        %v3101 = vadd.f32 %v2964, %v3100
        %3102 = vmatmul.f32.gmra.mxu0 %v2216
        %v3103 = vpop.f32.mrf.mxu0
        %v3104 = vadd.f32 %v2967, %v3103
        %3105 = vmatmul.f32.gmra.mxu0 %v2217
        %v3106 = vpop.f32.mrf.mxu0
        %v3107 = vadd.f32 %v2970, %v3106
        %3108 = vmatmul.f32.gmra.mxu0 %v2218
        %v3109 = vpop.f32.mrf.mxu0
        %v3110 = vadd.f32 %v2973, %v3109
        %3111 = vmatmul.f32.gmra.mxu0 %v2219
        %v3112 = vpop.f32.mrf.mxu0
        %v3113 = vadd.f32 %v2976, %v3112
        %3114 = vmatmul.f32.gmra.mxu0 %v2220
        %v3115 = vpop.f32.mrf.mxu0
        %v3116 = vadd.f32 %v2979, %v3115
        %3117 = vmatmul.f32.gmra.mxu0 %v2221
        %v3118 = vpop.f32.mrf.mxu0
        %v3119 = vadd.f32 %v2982, %v3118
        %3120 = vmatmul.f32.gmra.mxu0 %v2222
        %v3121 = vpop.f32.mrf.mxu0
        %v3122 = vadd.f32 %v2985, %v3121
        %3123 = vmatmul.f32.gmra.mxu0 %v2223
        %v3124 = vpop.f32.mrf.mxu0
        %v3125 = vadd.f32 %v2988, %v3124
        %3126 = vmatmul.f32.gmra.mxu0 %v2224
        %v3127 = vpop.f32.mrf.mxu0
        %v3128 = vadd.f32 %v2991, %v3127
        %3129 = vmatmul.f32.gmra.mxu0 %v2225
        %v3130 = vpop.f32.mrf.mxu0
        %v3131 = vadd.f32 %v2994, %v3130
        %3132 = vmatmul.f32.gmra.mxu0 %v2226
        %v3133 = vpop.f32.mrf.mxu0
        %v3134 = vadd.f32 %v2997, %v3133
        %3135 = vmatmul.f32.gmra.mxu0 %v2227
        %v3136 = vpop.f32.mrf.mxu0
        %v3137 = vadd.f32 %v3000, %v3136
        %3138 = vmatmul.f32.gmra.mxu0 %v2228
        %v3139 = vpop.f32.mrf.mxu0
        %v3140 = vadd.f32 %v3003, %v3139
        %3141 = vmatmul.f32.gmra.mxu0 %v2189
        %v3142 = vpop.f32.mrf.mxu0
        %v3143 = vadd.f32 %v3006, %v3142
        %3144 = vmatmul.f32.gmra.mxu0 %v2190
        %v3145 = vpop.f32.mrf.mxu0
        %v3146 = vadd.f32 %v3009, %v3145
        %3147 = vdwg.mxu0
        %s3148 = scalar_lea.vmem [#allocation7], 768
        %v3149 = vld [vmem:[%s3148] sm:$0xff]
        %v3150 = vld [vmem:[%s3148 + $0x8] sm:$0xff]
        %v3151 = vld [vmem:[%s3148 + $0x10] sm:$0xff]
        %v3152 = vld [vmem:[%s3148 + $0x18] sm:$0xff]
        %v3153 = vld [vmem:[%s3148 + $0x20] sm:$0xff]
        %v3154 = vld [vmem:[%s3148 + $0x28] sm:$0xff]
        %v3155 = vld [vmem:[%s3148 + $0x30] sm:$0xff]
        %v3156 = vld [vmem:[%s3148 + $0x38] sm:$0xff]
        %v3157 = vld [vmem:[%s3148 + $0x40] sm:$0xff]
        %v3158 = vld [vmem:[%s3148 + $0x48] sm:$0xff]
        %v3159 = vld [vmem:[%s3148 + $0x50] sm:$0xff]
        %v3160 = vld [vmem:[%s3148 + $0x58] sm:$0xff]
        %v3161 = vld [vmem:[%s3148 + $0x60] sm:$0xff]
        %v3162 = vld [vmem:[%s3148 + $0x68] sm:$0xff]
        %v3163 = vld [vmem:[%s3148 + $0x70] sm:$0xff]
        %v3164 = vld [vmem:[%s3148 + $0x78] sm:$0xff]
        %v3165 = vld [vmem:[%s3148 + $0x80] sm:$0xff]
        %v3166 = vld [vmem:[%s3148 + $0x88] sm:$0xff]
        %v3167 = vld [vmem:[%s3148 + $0x90] sm:$0xff]
        %v3168 = vld [vmem:[%s3148 + $0x98] sm:$0xff]
        %v3169 = vld [vmem:[%s3148 + $0xa0] sm:$0xff]
        %v3170 = vld [vmem:[%s3148 + $0xa8] sm:$0xff]
        %v3171 = vld [vmem:[%s3148 + $0xb0] sm:$0xff]
        %v3172 = vld [vmem:[%s3148 + $0xb8] sm:$0xff]
        %v3173 = vld [vmem:[%s3148 + $0xc0] sm:$0xff]
        %v3174 = vld [vmem:[%s3148 + $0xc8] sm:$0xff]
        %v3175 = vld [vmem:[%s3148 + $0xd0] sm:$0xff]
        %v3176 = vld [vmem:[%s3148 + $0xd8] sm:$0xff]
        %v3177 = vld [vmem:[%s3148 + $0xe0] sm:$0xff]
        %v3178 = vld [vmem:[%s3148 + $0xe8] sm:$0xff]
        %v3179 = vld [vmem:[%s3148 + $0xf0] sm:$0xff]
        %v3180 = vld [vmem:[%s3148 + $0xf8] sm:$0xff]
        %v3181 = vld [vmem:[%s3148 + $0x100] sm:$0xff]
        %v3182 = vld [vmem:[%s3148 + $0x108] sm:$0xff]
        %v3183 = vld [vmem:[%s3148 + $0x110] sm:$0xff]
        %v3184 = vld [vmem:[%s3148 + $0x118] sm:$0xff]
        %v3185 = vld [vmem:[%s3148 + $0x120] sm:$0xff]
        %v3186 = vld [vmem:[%s3148 + $0x128] sm:$0xff]
        %v3187 = vld [vmem:[%s3148 + $0x130] sm:$0xff]
        %v3188 = vld [vmem:[%s3148 + $0x138] sm:$0xff]
        %v3189 = vld [vmem:[%s3148 + $0x140] sm:$0xff]
        %v3190 = vld [vmem:[%s3148 + $0x148] sm:$0xff]
        %v3191 = vld [vmem:[%s3148 + $0x150] sm:$0xff]
        %v3192 = vld [vmem:[%s3148 + $0x158] sm:$0xff]
        %v3193 = vld [vmem:[%s3148 + $0x160] sm:$0xff]
        %v3194 = vld [vmem:[%s3148 + $0x168] sm:$0xff]
        %v3195 = vld [vmem:[%s3148 + $0x170] sm:$0xff]
        %v3196 = vld [vmem:[%s3148 + $0x178] sm:$0xff]
        %3197 = vmatpush.msra.mxu0 %v3164
        %3198 = vmatpush.msra.mxu0 %v3163
        %3199 = vmatpush.msra.mxu0 %v3162
        %3200 = vmatpush.msra.mxu0 %v3161
        %3201 = vmatpush.msra.mxu0 %v3160
        %3202 = vmatpush.msra.mxu0 %v3159
        %3203 = vmatpush.msra.mxu0 %v3158
        %3204 = vmatpush.msra.mxu0 %v3157
        %3205 = vmatpush.msra.mxu0 %v3156
        %3206 = vmatpush.msra.mxu0 %v3155
        %3207 = vmatpush.msra.mxu0 %v3154
        %3208 = vmatpush.msra.mxu0 %v3153
        %3209 = vmatpush.msra.mxu0 %v3152
        %3210 = vmatpush.msra.mxu0 %v3151
        %3211 = vmatpush.msra.mxu0 %v3150
        %3212 = vmatpush.msra.mxu0 %v3149
        %3213 = vmatmul.f32.gmra.mxu0 %v2227
        %v3214 = vpop.f32.mrf.mxu0
        %v3215 = vadd.f32 0.0, %v3214
        %3216 = vmatmul.f32.gmra.mxu0 %v2228
        %v3217 = vpop.f32.mrf.mxu0
        %v3218 = vadd.f32 0.0, %v3217
        %3219 = vmatmul.f32.gmra.mxu0 %v2189
        %v3220 = vpop.f32.mrf.mxu0
        %v3221 = vadd.f32 0.0, %v3220
        %3222 = vmatmul.f32.gmra.mxu0 %v2190
        %v3223 = vpop.f32.mrf.mxu0
        %v3224 = vadd.f32 0.0, %v3223
        %3225 = vmatmul.f32.gmra.mxu0 %v2191
        %v3226 = vpop.f32.mrf.mxu0
        %v3227 = vadd.f32 0.0, %v3226
        %3228 = vmatmul.f32.gmra.mxu0 %v2192
        %v3229 = vpop.f32.mrf.mxu0
        %v3230 = vadd.f32 0.0, %v3229
        %3231 = vmatmul.f32.gmra.mxu0 %v2193
        %v3232 = vpop.f32.mrf.mxu0
        %v3233 = vadd.f32 0.0, %v3232
        %3234 = vmatmul.f32.gmra.mxu0 %v2194
        %v3235 = vpop.f32.mrf.mxu0
        %v3236 = vadd.f32 0.0, %v3235
        %3237 = vmatmul.f32.gmra.mxu0 %v2195
        %v3238 = vpop.f32.mrf.mxu0
        %v3239 = vadd.f32 0.0, %v3238
        %3240 = vmatmul.f32.gmra.mxu0 %v2196
        %v3241 = vpop.f32.mrf.mxu0
        %v3242 = vadd.f32 0.0, %v3241
        %3243 = vmatmul.f32.gmra.mxu0 %v2197
        %v3244 = vpop.f32.mrf.mxu0
        %v3245 = vadd.f32 0.0, %v3244
        %3246 = vmatmul.f32.gmra.mxu0 %v2198
        %v3247 = vpop.f32.mrf.mxu0
        %v3248 = vadd.f32 0.0, %v3247
        %3249 = vmatmul.f32.gmra.mxu0 %v2199
        %v3250 = vpop.f32.mrf.mxu0
        %v3251 = vadd.f32 0.0, %v3250
        %3252 = vmatmul.f32.gmra.mxu0 %v2200
        %v3253 = vpop.f32.mrf.mxu0
        %v3254 = vadd.f32 0.0, %v3253
        %3255 = vmatmul.f32.gmra.mxu0 %v2201
        %v3256 = vpop.f32.mrf.mxu0
        %v3257 = vadd.f32 0.0, %v3256
        %3258 = vmatmul.f32.gmra.mxu0 %v2202
        %v3259 = vpop.f32.mrf.mxu0
        %v3260 = vadd.f32 0.0, %v3259
        %3261 = vmatmul.f32.gmra.mxu0 %v2203
        %v3262 = vpop.f32.mrf.mxu0
        %v3263 = vadd.f32 0.0, %v3262
        %3264 = vmatmul.f32.gmra.mxu0 %v2204
        %v3265 = vpop.f32.mrf.mxu0
        %v3266 = vadd.f32 0.0, %v3265
        %3267 = vmatmul.f32.gmra.mxu0 %v2205
        %v3268 = vpop.f32.mrf.mxu0
        %v3269 = vadd.f32 0.0, %v3268
        %3270 = vmatmul.f32.gmra.mxu0 %v2206
        %v3271 = vpop.f32.mrf.mxu0
        %v3272 = vadd.f32 0.0, %v3271
        %3273 = vmatmul.f32.gmra.mxu0 %v2207
        %v3274 = vpop.f32.mrf.mxu0
        %v3275 = vadd.f32 0.0, %v3274
        %3276 = vmatmul.f32.gmra.mxu0 %v2208
        %v3277 = vpop.f32.mrf.mxu0
        %v3278 = vadd.f32 0.0, %v3277
        %3279 = vmatmul.f32.gmra.mxu0 %v2209
        %v3280 = vpop.f32.mrf.mxu0
        %v3281 = vadd.f32 0.0, %v3280
        %3282 = vmatmul.f32.gmra.mxu0 %v2210
        %v3283 = vpop.f32.mrf.mxu0
        %v3284 = vadd.f32 0.0, %v3283
        %3285 = vmatmul.f32.gmra.mxu0 %v2211
        %v3286 = vpop.f32.mrf.mxu0
        %v3287 = vadd.f32 0.0, %v3286
        %3288 = vmatmul.f32.gmra.mxu0 %v2212
        %v3289 = vpop.f32.mrf.mxu0
        %v3290 = vadd.f32 0.0, %v3289
        %3291 = vmatmul.f32.gmra.mxu0 %v2213
        %v3292 = vpop.f32.mrf.mxu0
        %v3293 = vadd.f32 0.0, %v3292
        %3294 = vmatmul.f32.gmra.mxu0 %v2214
        %v3295 = vpop.f32.mrf.mxu0
        %v3296 = vadd.f32 0.0, %v3295
        %3297 = vmatmul.f32.gmra.mxu0 %v2215
        %v3298 = vpop.f32.mrf.mxu0
        %v3299 = vadd.f32 0.0, %v3298
        %3300 = vmatmul.f32.gmra.mxu0 %v2216
        %v3301 = vpop.f32.mrf.mxu0
        %v3302 = vadd.f32 0.0, %v3301
        %3303 = vmatmul.f32.gmra.mxu0 %v2217
        %v3304 = vpop.f32.mrf.mxu0
        %v3305 = vadd.f32 0.0, %v3304
        %3306 = vmatmul.f32.gmra.mxu0 %v2218
        %v3307 = vpop.f32.mrf.mxu0
        %v3308 = vadd.f32 0.0, %v3307
        %3309 = vmatmul.f32.gmra.mxu0 %v2219
        %v3310 = vpop.f32.mrf.mxu0
        %v3311 = vadd.f32 0.0, %v3310
        %3312 = vmatmul.f32.gmra.mxu0 %v2220
        %v3313 = vpop.f32.mrf.mxu0
        %v3314 = vadd.f32 0.0, %v3313
        %3315 = vmatmul.f32.gmra.mxu0 %v2221
        %v3316 = vpop.f32.mrf.mxu0
        %v3317 = vadd.f32 0.0, %v3316
        %3318 = vmatmul.f32.gmra.mxu0 %v2222
        %v3319 = vpop.f32.mrf.mxu0
        %v3320 = vadd.f32 0.0, %v3319
        %3321 = vmatmul.f32.gmra.mxu0 %v2223
        %v3322 = vpop.f32.mrf.mxu0
        %v3323 = vadd.f32 0.0, %v3322
        %3324 = vmatmul.f32.gmra.mxu0 %v2224
        %v3325 = vpop.f32.mrf.mxu0
        %v3326 = vadd.f32 0.0, %v3325
        %3327 = vmatmul.f32.gmra.mxu0 %v2225
        %v3328 = vpop.f32.mrf.mxu0
        %v3329 = vadd.f32 0.0, %v3328
        %3330 = vmatmul.f32.gmra.mxu0 %v2226
        %v3331 = vpop.f32.mrf.mxu0
        %v3332 = vadd.f32 0.0, %v3331
        %3333 = vdwg.mxu0
        %3334 = vmatpush.msra.mxu0 %v3180
        %3335 = vmatpush.msra.mxu0 %v3179
        %3336 = vmatpush.msra.mxu0 %v3178
        %3337 = vmatpush.msra.mxu0 %v3177
        %3338 = vmatpush.msra.mxu0 %v3176
        %3339 = vmatpush.msra.mxu0 %v3175
        %3340 = vmatpush.msra.mxu0 %v3174
        %3341 = vmatpush.msra.mxu0 %v3173
        %3342 = vmatpush.msra.mxu0 %v3172
        %3343 = vmatpush.msra.mxu0 %v3171
        %3344 = vmatpush.msra.mxu0 %v3170
        %3345 = vmatpush.msra.mxu0 %v3169
        %3346 = vmatpush.msra.mxu0 %v3168
        %3347 = vmatpush.msra.mxu0 %v3167
        %3348 = vmatpush.msra.mxu0 %v3166
        %3349 = vmatpush.msra.mxu0 %v3165
        %3350 = vmatmul.f32.gmra.mxu0 %v2189
        %v3351 = vpop.f32.mrf.mxu0
        %v3352 = vadd.f32 %v3215, %v3351
        %3353 = vmatmul.f32.gmra.mxu0 %v2190
        %v3354 = vpop.f32.mrf.mxu0
        %v3355 = vadd.f32 %v3218, %v3354
        %3356 = vmatmul.f32.gmra.mxu0 %v2191
        %v3357 = vpop.f32.mrf.mxu0
        %v3358 = vadd.f32 %v3221, %v3357
        %3359 = vmatmul.f32.gmra.mxu0 %v2192
        %v3360 = vpop.f32.mrf.mxu0
        %v3361 = vadd.f32 %v3224, %v3360
        %3362 = vmatmul.f32.gmra.mxu0 %v2193
        %v3363 = vpop.f32.mrf.mxu0
        %v3364 = vadd.f32 %v3227, %v3363
        %3365 = vmatmul.f32.gmra.mxu0 %v2194
        %v3366 = vpop.f32.mrf.mxu0
        %v3367 = vadd.f32 %v3230, %v3366
        %3368 = vmatmul.f32.gmra.mxu0 %v2195
        %v3369 = vpop.f32.mrf.mxu0
        %v3370 = vadd.f32 %v3233, %v3369
        %3371 = vmatmul.f32.gmra.mxu0 %v2196
        %v3372 = vpop.f32.mrf.mxu0
        %v3373 = vadd.f32 %v3236, %v3372
        %3374 = vmatmul.f32.gmra.mxu0 %v2197
        %v3375 = vpop.f32.mrf.mxu0
        %v3376 = vadd.f32 %v3239, %v3375
        %3377 = vmatmul.f32.gmra.mxu0 %v2198
        %v3378 = vpop.f32.mrf.mxu0
        %v3379 = vadd.f32 %v3242, %v3378
        %3380 = vmatmul.f32.gmra.mxu0 %v2199
        %v3381 = vpop.f32.mrf.mxu0
        %v3382 = vadd.f32 %v3245, %v3381
        %3383 = vmatmul.f32.gmra.mxu0 %v2200
        %v3384 = vpop.f32.mrf.mxu0
        %v3385 = vadd.f32 %v3248, %v3384
        %3386 = vmatmul.f32.gmra.mxu0 %v2201
        %v3387 = vpop.f32.mrf.mxu0
        %v3388 = vadd.f32 %v3251, %v3387
        %3389 = vmatmul.f32.gmra.mxu0 %v2202
        %v3390 = vpop.f32.mrf.mxu0
        %v3391 = vadd.f32 %v3254, %v3390
        %3392 = vmatmul.f32.gmra.mxu0 %v2203
        %v3393 = vpop.f32.mrf.mxu0
        %v3394 = vadd.f32 %v3257, %v3393
        %3395 = vmatmul.f32.gmra.mxu0 %v2204
        %v3396 = vpop.f32.mrf.mxu0
        %v3397 = vadd.f32 %v3260, %v3396
        %3398 = vmatmul.f32.gmra.mxu0 %v2205
        %v3399 = vpop.f32.mrf.mxu0
        %v3400 = vadd.f32 %v3263, %v3399
        %3401 = vmatmul.f32.gmra.mxu0 %v2206
        %v3402 = vpop.f32.mrf.mxu0
        %v3403 = vadd.f32 %v3266, %v3402
        %3404 = vmatmul.f32.gmra.mxu0 %v2207
        %v3405 = vpop.f32.mrf.mxu0
        %v3406 = vadd.f32 %v3269, %v3405
        %3407 = vmatmul.f32.gmra.mxu0 %v2208
        %v3408 = vpop.f32.mrf.mxu0
        %v3409 = vadd.f32 %v3272, %v3408
        %3410 = vmatmul.f32.gmra.mxu0 %v2209
        %v3411 = vpop.f32.mrf.mxu0
        %v3412 = vadd.f32 %v3275, %v3411
        %3413 = vmatmul.f32.gmra.mxu0 %v2210
        %v3414 = vpop.f32.mrf.mxu0
        %v3415 = vadd.f32 %v3278, %v3414
        %3416 = vmatmul.f32.gmra.mxu0 %v2211
        %v3417 = vpop.f32.mrf.mxu0
        %v3418 = vadd.f32 %v3281, %v3417
        %3419 = vmatmul.f32.gmra.mxu0 %v2212
        %v3420 = vpop.f32.mrf.mxu0
        %v3421 = vadd.f32 %v3284, %v3420
        %3422 = vmatmul.f32.gmra.mxu0 %v2213
        %v3423 = vpop.f32.mrf.mxu0
        %v3424 = vadd.f32 %v3287, %v3423
        %3425 = vmatmul.f32.gmra.mxu0 %v2214
        %v3426 = vpop.f32.mrf.mxu0
        %v3427 = vadd.f32 %v3290, %v3426
        %3428 = vmatmul.f32.gmra.mxu0 %v2215
        %v3429 = vpop.f32.mrf.mxu0
        %v3430 = vadd.f32 %v3293, %v3429
        %3431 = vmatmul.f32.gmra.mxu0 %v2216
        %v3432 = vpop.f32.mrf.mxu0
        %v3433 = vadd.f32 %v3296, %v3432
        %3434 = vmatmul.f32.gmra.mxu0 %v2217
        %v3435 = vpop.f32.mrf.mxu0
        %v3436 = vadd.f32 %v3299, %v3435
        %3437 = vmatmul.f32.gmra.mxu0 %v2218
        %v3438 = vpop.f32.mrf.mxu0
        %v3439 = vadd.f32 %v3302, %v3438
        %3440 = vmatmul.f32.gmra.mxu0 %v2219
        %v3441 = vpop.f32.mrf.mxu0
        %v3442 = vadd.f32 %v3305, %v3441
        %3443 = vmatmul.f32.gmra.mxu0 %v2220
        %v3444 = vpop.f32.mrf.mxu0
        %v3445 = vadd.f32 %v3308, %v3444
        %3446 = vmatmul.f32.gmra.mxu0 %v2221
        %v3447 = vpop.f32.mrf.mxu0
        %v3448 = vadd.f32 %v3311, %v3447
        %3449 = vmatmul.f32.gmra.mxu0 %v2222
        %v3450 = vpop.f32.mrf.mxu0
        %v3451 = vadd.f32 %v3314, %v3450
        %3452 = vmatmul.f32.gmra.mxu0 %v2223
        %v3453 = vpop.f32.mrf.mxu0
        %v3454 = vadd.f32 %v3317, %v3453
        %3455 = vmatmul.f32.gmra.mxu0 %v2224
        %v3456 = vpop.f32.mrf.mxu0
        %v3457 = vadd.f32 %v3320, %v3456
        %3458 = vmatmul.f32.gmra.mxu0 %v2225
        %v3459 = vpop.f32.mrf.mxu0
        %v3460 = vadd.f32 %v3323, %v3459
        %3461 = vmatmul.f32.gmra.mxu0 %v2226
        %v3462 = vpop.f32.mrf.mxu0
        %v3463 = vadd.f32 %v3326, %v3462
        %3464 = vmatmul.f32.gmra.mxu0 %v2227
        %v3465 = vpop.f32.mrf.mxu0
        %v3466 = vadd.f32 %v3329, %v3465
        %3467 = vmatmul.f32.gmra.mxu0 %v2228
        %v3468 = vpop.f32.mrf.mxu0
        %v3469 = vadd.f32 %v3332, %v3468
        %3470 = vdwg.mxu0
        %3471 = vmatpush.msra.mxu0 %v3196
        %3472 = vmatpush.msra.mxu0 %v3195
        %3473 = vmatpush.msra.mxu0 %v3194
        %3474 = vmatpush.msra.mxu0 %v3193
        %3475 = vmatpush.msra.mxu0 %v3192
        %3476 = vmatpush.msra.mxu0 %v3191
        %3477 = vmatpush.msra.mxu0 %v3190
        %3478 = vmatpush.msra.mxu0 %v3189
        %3479 = vmatpush.msra.mxu0 %v3188
        %3480 = vmatpush.msra.mxu0 %v3187
        %3481 = vmatpush.msra.mxu0 %v3186
        %3482 = vmatpush.msra.mxu0 %v3185
        %3483 = vmatpush.msra.mxu0 %v3184
        %3484 = vmatpush.msra.mxu0 %v3183
        %3485 = vmatpush.msra.mxu0 %v3182
        %3486 = vmatpush.msra.mxu0 %v3181
        %3487 = vmatmul.f32.gmra.mxu0 %v2191
        %v3488 = vpop.f32.mrf.mxu0
        %v3489 = vadd.f32 %v3352, %v3488
        %3490 = vmatmul.f32.gmra.mxu0 %v2192
        %v3491 = vpop.f32.mrf.mxu0
        %v3492 = vadd.f32 %v3355, %v3491
        %3493 = vmatmul.f32.gmra.mxu0 %v2193
        %v3494 = vpop.f32.mrf.mxu0
        %v3495 = vadd.f32 %v3358, %v3494
        %3496 = vmatmul.f32.gmra.mxu0 %v2194
        %v3497 = vpop.f32.mrf.mxu0
        %v3498 = vadd.f32 %v3361, %v3497
        %3499 = vmatmul.f32.gmra.mxu0 %v2195
        %v3500 = vpop.f32.mrf.mxu0
        %v3501 = vadd.f32 %v3364, %v3500
        %3502 = vmatmul.f32.gmra.mxu0 %v2196
        %v3503 = vpop.f32.mrf.mxu0
        %v3504 = vadd.f32 %v3367, %v3503
        %3505 = vmatmul.f32.gmra.mxu0 %v2197
        %v3506 = vpop.f32.mrf.mxu0
        %v3507 = vadd.f32 %v3370, %v3506
        %3508 = vmatmul.f32.gmra.mxu0 %v2198
        %v3509 = vpop.f32.mrf.mxu0
        %v3510 = vadd.f32 %v3373, %v3509
        %3511 = vmatmul.f32.gmra.mxu0 %v2199
        %v3512 = vpop.f32.mrf.mxu0
        %v3513 = vadd.f32 %v3376, %v3512
        %3514 = vmatmul.f32.gmra.mxu0 %v2200
        %v3515 = vpop.f32.mrf.mxu0
        %v3516 = vadd.f32 %v3379, %v3515
        %3517 = vmatmul.f32.gmra.mxu0 %v2201
        %v3518 = vpop.f32.mrf.mxu0
        %v3519 = vadd.f32 %v3382, %v3518
        %3520 = vmatmul.f32.gmra.mxu0 %v2202
        %v3521 = vpop.f32.mrf.mxu0
        %v3522 = vadd.f32 %v3385, %v3521
        %3523 = vmatmul.f32.gmra.mxu0 %v2203
        %v3524 = vpop.f32.mrf.mxu0
        %v3525 = vadd.f32 %v3388, %v3524
        %3526 = vmatmul.f32.gmra.mxu0 %v2204
        %v3527 = vpop.f32.mrf.mxu0
        %v3528 = vadd.f32 %v3391, %v3527
        %3529 = vmatmul.f32.gmra.mxu0 %v2205
        %v3530 = vpop.f32.mrf.mxu0
        %v3531 = vadd.f32 %v3394, %v3530
        %3532 = vmatmul.f32.gmra.mxu0 %v2206
        %v3533 = vpop.f32.mrf.mxu0
        %v3534 = vadd.f32 %v3397, %v3533
        %3535 = vmatmul.f32.gmra.mxu0 %v2207
        %v3536 = vpop.f32.mrf.mxu0
        %v3537 = vadd.f32 %v3400, %v3536
        %3538 = vmatmul.f32.gmra.mxu0 %v2208
        %v3539 = vpop.f32.mrf.mxu0
        %v3540 = vadd.f32 %v3403, %v3539
        %3541 = vmatmul.f32.gmra.mxu0 %v2209
        %v3542 = vpop.f32.mrf.mxu0
        %v3543 = vadd.f32 %v3406, %v3542
        %3544 = vmatmul.f32.gmra.mxu0 %v2210
        %v3545 = vpop.f32.mrf.mxu0
        %v3546 = vadd.f32 %v3409, %v3545
        %3547 = vmatmul.f32.gmra.mxu0 %v2211
        %v3548 = vpop.f32.mrf.mxu0
        %v3549 = vadd.f32 %v3412, %v3548
        %3550 = vmatmul.f32.gmra.mxu0 %v2212
        %v3551 = vpop.f32.mrf.mxu0
        %v3552 = vadd.f32 %v3415, %v3551
        %3553 = vmatmul.f32.gmra.mxu0 %v2213
        %v3554 = vpop.f32.mrf.mxu0
        %v3555 = vadd.f32 %v3418, %v3554
        %3556 = vmatmul.f32.gmra.mxu0 %v2214
        %v3557 = vpop.f32.mrf.mxu0
        %v3558 = vadd.f32 %v3421, %v3557
        %3559 = vmatmul.f32.gmra.mxu0 %v2215
        %v3560 = vpop.f32.mrf.mxu0
        %v3561 = vadd.f32 %v3424, %v3560
        %3562 = vmatmul.f32.gmra.mxu0 %v2216
        %v3563 = vpop.f32.mrf.mxu0
        %v3564 = vadd.f32 %v3427, %v3563
        %3565 = vmatmul.f32.gmra.mxu0 %v2217
        %v3566 = vpop.f32.mrf.mxu0
        %v3567 = vadd.f32 %v3430, %v3566
        %3568 = vmatmul.f32.gmra.mxu0 %v2218
        %v3569 = vpop.f32.mrf.mxu0
        %v3570 = vadd.f32 %v3433, %v3569
        %3571 = vmatmul.f32.gmra.mxu0 %v2219
        %v3572 = vpop.f32.mrf.mxu0
        %v3573 = vadd.f32 %v3436, %v3572
        %3574 = vmatmul.f32.gmra.mxu0 %v2220
        %v3575 = vpop.f32.mrf.mxu0
        %v3576 = vadd.f32 %v3439, %v3575
        %3577 = vmatmul.f32.gmra.mxu0 %v2221
        %v3578 = vpop.f32.mrf.mxu0
        %v3579 = vadd.f32 %v3442, %v3578
        %3580 = vmatmul.f32.gmra.mxu0 %v2222
        %v3581 = vpop.f32.mrf.mxu0
        %v3582 = vadd.f32 %v3445, %v3581
        %3583 = vmatmul.f32.gmra.mxu0 %v2223
        %v3584 = vpop.f32.mrf.mxu0
        %v3585 = vadd.f32 %v3448, %v3584
        %3586 = vmatmul.f32.gmra.mxu0 %v2224
        %v3587 = vpop.f32.mrf.mxu0
        %v3588 = vadd.f32 %v3451, %v3587
        %3589 = vmatmul.f32.gmra.mxu0 %v2225
        %v3590 = vpop.f32.mrf.mxu0
        %v3591 = vadd.f32 %v3454, %v3590
        %3592 = vmatmul.f32.gmra.mxu0 %v2226
        %v3593 = vpop.f32.mrf.mxu0
        %v3594 = vadd.f32 %v3457, %v3593
        %3595 = vmatmul.f32.gmra.mxu0 %v2227
        %v3596 = vpop.f32.mrf.mxu0
        %v3597 = vadd.f32 %v3460, %v3596
        %3598 = vmatmul.f32.gmra.mxu0 %v2228
        %v3599 = vpop.f32.mrf.mxu0
        %v3600 = vadd.f32 %v3463, %v3599
        %3601 = vmatmul.f32.gmra.mxu0 %v2189
        %v3602 = vpop.f32.mrf.mxu0
        %v3603 = vadd.f32 %v3466, %v3602
        %3604 = vmatmul.f32.gmra.mxu0 %v2190
        %v3605 = vpop.f32.mrf.mxu0
        %v3606 = vadd.f32 %v3469, %v3605
        %3607 = vdwg.mxu0
        %v3608 = vrot.slane %v2569, 7
        %v3609 = vrot.slane %v2572, 7
        %v3610 = vrot.slane %v2575, 7
        %v3611 = vrot.slane %v2578, 7
        %v3612 = vrot.slane %v2581, 7
        %v3613 = vrot.slane %v2584, 7
        %v3614 = vrot.slane %v2587, 7
        %v3615 = vrot.slane %v2590, 7
        %v3616 = vrot.slane %v2593, 7
        %v3617 = vrot.slane %v2596, 7
        %v3618 = vrot.slane %v2599, 7
        %v3619 = vrot.slane %v2602, 7
        %v3620 = vrot.slane %v2605, 7
        %v3621 = vrot.slane %v2608, 7
        %v3622 = vrot.slane %v2611, 7
        %v3623 = vrot.slane %v2614, 7
        %v3624 = vrot.slane %v2617, 7
        %v3625 = vrot.slane %v2620, 7
        %v3626 = vrot.slane %v2623, 7
        %v3627 = vrot.slane %v2626, 7
        %v3628 = vrot.slane %v2629, 7
        %v3629 = vrot.slane %v2632, 7
        %v3630 = vrot.slane %v2635, 7
        %v3631 = vrot.slane %v2638, 7
        %v3632 = vrot.slane %v2641, 7
        %v3633 = vrot.slane %v2644, 7
        %v3634 = vrot.slane %v2647, 7
        %v3635 = vrot.slane %v2650, 7
        %v3636 = vrot.slane %v2653, 7
        %v3637 = vrot.slane %v2656, 7
        %v3638 = vrot.slane %v2659, 7
        %v3639 = vrot.slane %v2662, 7
        %v3640 = vrot.slane %v2665, 7
        %v3641 = vrot.slane %v2668, 7
        %v3642 = vrot.slane %v2671, 7
        %v3643 = vrot.slane %v2674, 7
        %v3644 = vrot.slane %v2677, 7
        %v3645 = vrot.slane %v2680, 7
        %v3646 = vrot.slane %v2683, 7
        %v3647 = vrot.slane %v2686, 7
        %v3648 = vsel %vm1859, %v3646, %v3647
        %v3649 = vsel %vm1859, %v3645, %v3646
        %v3650 = vsel %vm1859, %v3644, %v3645
        %v3651 = vsel %vm1859, %v3643, %v3644
        %v3652 = vsel %vm1859, %v3642, %v3643
        %v3653 = vsel %vm1859, %v3641, %v3642
        %v3654 = vsel %vm1859, %v3640, %v3641
        %v3655 = vsel %vm1859, %v3639, %v3640
        %v3656 = vsel %vm1859, %v3638, %v3639
        %v3657 = vsel %vm1859, %v3637, %v3638
        %v3658 = vsel %vm1859, %v3636, %v3637
        %v3659 = vsel %vm1859, %v3635, %v3636
        %v3660 = vsel %vm1859, %v3634, %v3635
        %v3661 = vsel %vm1859, %v3633, %v3634
        %v3662 = vsel %vm1859, %v3632, %v3633
        %v3663 = vsel %vm1859, %v3631, %v3632
        %v3664 = vsel %vm1859, %v3630, %v3631
        %v3665 = vsel %vm1859, %v3629, %v3630
        %v3666 = vsel %vm1859, %v3628, %v3629
        %v3667 = vsel %vm1859, %v3627, %v3628
        %v3668 = vsel %vm1859, %v3626, %v3627
        %v3669 = vsel %vm1859, %v3625, %v3626
        %v3670 = vsel %vm1859, %v3624, %v3625
        %v3671 = vsel %vm1859, %v3623, %v3624
        %v3672 = vsel %vm1859, %v3622, %v3623
        %v3673 = vsel %vm1859, %v3621, %v3622
        %v3674 = vsel %vm1859, %v3620, %v3621
        %v3675 = vsel %vm1859, %v3619, %v3620
        %v3676 = vsel %vm1859, %v3618, %v3619
        %v3677 = vsel %vm1859, %v3617, %v3618
        %v3678 = vsel %vm1859, %v3616, %v3617
        %v3679 = vsel %vm1859, %v3615, %v3616
        %v3680 = vsel %vm1859, %v3614, %v3615
        %v3681 = vsel %vm1859, %v3613, %v3614
        %v3682 = vsel %vm1859, %v3612, %v3613
        %v3683 = vsel %vm1859, %v3611, %v3612
        %v3684 = vsel %vm1859, %v3610, %v3611
        %v3685 = vsel %vm1859, %v3609, %v3610
        %v3686 = vsel %vm1859, %v3608, %v3609
        %v3687 = vsel %vm1859, %v3647, %v3608
        %v3688 = vadd.f32 %v3687, %v3029
        %v3689 = vadd.f32 %v3686, %v3032
        %v3690 = vadd.f32 %v3685, %v3035
        %v3691 = vadd.f32 %v3684, %v3038
        %v3692 = vadd.f32 %v3683, %v3041
        %v3693 = vadd.f32 %v3682, %v3044
        %v3694 = vadd.f32 %v3681, %v3047
        %v3695 = vadd.f32 %v3680, %v3050
        %v3696 = vadd.f32 %v3679, %v3053
        %v3697 = vadd.f32 %v3678, %v3056
        %v3698 = vadd.f32 %v3677, %v3059
        %v3699 = vadd.f32 %v3676, %v3062
        %v3700 = vadd.f32 %v3675, %v3065
        %v3701 = vadd.f32 %v3674, %v3068
        %v3702 = vadd.f32 %v3673, %v3071
        %v3703 = vadd.f32 %v3672, %v3074
        %v3704 = vadd.f32 %v3671, %v3077
        %v3705 = vadd.f32 %v3670, %v3080
        %v3706 = vadd.f32 %v3669, %v3083
        %v3707 = vadd.f32 %v3668, %v3086
        %v3708 = vadd.f32 %v3667, %v3089
        %v3709 = vadd.f32 %v3666, %v3092
        %v3710 = vadd.f32 %v3665, %v3095
        %v3711 = vadd.f32 %v3664, %v3098
        %v3712 = vadd.f32 %v3663, %v3101
        %v3713 = vadd.f32 %v3662, %v3104
        %v3714 = vadd.f32 %v3661, %v3107
        %v3715 = vadd.f32 %v3660, %v3110
        %v3716 = vadd.f32 %v3659, %v3113
        %v3717 = vadd.f32 %v3658, %v3116
        %v3718 = vadd.f32 %v3657, %v3119
        %v3719 = vadd.f32 %v3656, %v3122
        %v3720 = vadd.f32 %v3655, %v3125
        %v3721 = vadd.f32 %v3654, %v3128
        %v3722 = vadd.f32 %v3653, %v3131
        %v3723 = vadd.f32 %v3652, %v3134
        %v3724 = vadd.f32 %v3651, %v3137
        %v3725 = vadd.f32 %v3650, %v3140
        %v3726 = vadd.f32 %v3649, %v3143
        %v3727 = vadd.f32 %v3648, %v3146
        %v3728 = vrot.slane %v3489, 1
        %v3729 = vrot.slane %v3492, 1
        %v3730 = vrot.slane %v3495, 1
        %v3731 = vrot.slane %v3498, 1
        %v3732 = vrot.slane %v3501, 1
        %v3733 = vrot.slane %v3504, 1
        %v3734 = vrot.slane %v3507, 1
        %v3735 = vrot.slane %v3510, 1
        %v3736 = vrot.slane %v3513, 1
        %v3737 = vrot.slane %v3516, 1
        %v3738 = vrot.slane %v3519, 1
        %v3739 = vrot.slane %v3522, 1
        %v3740 = vrot.slane %v3525, 1
        %v3741 = vrot.slane %v3528, 1
        %v3742 = vrot.slane %v3531, 1
        %v3743 = vrot.slane %v3534, 1
        %v3744 = vrot.slane %v3537, 1
        %v3745 = vrot.slane %v3540, 1
        %v3746 = vrot.slane %v3543, 1
        %v3747 = vrot.slane %v3546, 1
        %v3748 = vrot.slane %v3549, 1
        %v3749 = vrot.slane %v3552, 1
        %v3750 = vrot.slane %v3555, 1
        %v3751 = vrot.slane %v3558, 1
        %v3752 = vrot.slane %v3561, 1
        %v3753 = vrot.slane %v3564, 1
        %v3754 = vrot.slane %v3567, 1
        %v3755 = vrot.slane %v3570, 1
        %v3756 = vrot.slane %v3573, 1
        %v3757 = vrot.slane %v3576, 1
        %v3758 = vrot.slane %v3579, 1
        %v3759 = vrot.slane %v3582, 1
        %v3760 = vrot.slane %v3585, 1
        %v3761 = vrot.slane %v3588, 1
        %v3762 = vrot.slane %v3591, 1
        %v3763 = vrot.slane %v3594, 1
        %v3764 = vrot.slane %v3597, 1
        %v3765 = vrot.slane %v3600, 1
        %v3766 = vrot.slane %v3603, 1
        %v3767 = vrot.slane %v3606, 1
        %v3768 = vsel %vm1980, %v3766, %v3767
        %v3769 = vsel %vm1980, %v3765, %v3766
        %v3770 = vsel %vm1980, %v3764, %v3765
        %v3771 = vsel %vm1980, %v3763, %v3764
        %v3772 = vsel %vm1980, %v3762, %v3763
        %v3773 = vsel %vm1980, %v3761, %v3762
        %v3774 = vsel %vm1980, %v3760, %v3761
        %v3775 = vsel %vm1980, %v3759, %v3760
        %v3776 = vsel %vm1980, %v3758, %v3759
        %v3777 = vsel %vm1980, %v3757, %v3758
        %v3778 = vsel %vm1980, %v3756, %v3757
        %v3779 = vsel %vm1980, %v3755, %v3756
        %v3780 = vsel %vm1980, %v3754, %v3755
        %v3781 = vsel %vm1980, %v3753, %v3754
        %v3782 = vsel %vm1980, %v3752, %v3753
        %v3783 = vsel %vm1980, %v3751, %v3752
        %v3784 = vsel %vm1980, %v3750, %v3751
        %v3785 = vsel %vm1980, %v3749, %v3750
        %v3786 = vsel %vm1980, %v3748, %v3749
        %v3787 = vsel %vm1980, %v3747, %v3748
        %v3788 = vsel %vm1980, %v3746, %v3747
        %v3789 = vsel %vm1980, %v3745, %v3746
        %v3790 = vsel %vm1980, %v3744, %v3745
        %v3791 = vsel %vm1980, %v3743, %v3744
        %v3792 = vsel %vm1980, %v3742, %v3743
        %v3793 = vsel %vm1980, %v3741, %v3742
        %v3794 = vsel %vm1980, %v3740, %v3741
        %v3795 = vsel %vm1980, %v3739, %v3740
        %v3796 = vsel %vm1980, %v3738, %v3739
        %v3797 = vsel %vm1980, %v3737, %v3738
        %v3798 = vsel %vm1980, %v3736, %v3737
        %v3799 = vsel %vm1980, %v3735, %v3736
        %v3800 = vsel %vm1980, %v3734, %v3735
        %v3801 = vsel %vm1980, %v3733, %v3734
        %v3802 = vsel %vm1980, %v3732, %v3733
        %v3803 = vsel %vm1980, %v3731, %v3732
        %v3804 = vsel %vm1980, %v3730, %v3731
        %v3805 = vsel %vm1980, %v3729, %v3730
        %v3806 = vsel %vm1980, %v3728, %v3729
        %v3807 = vsel %vm1980, %v3767, %v3728
        %v3808 = vadd.f32 %v3688, %v3806
        %v3809 = vadd.f32 %v3689, %v3805
        %v3810 = vadd.f32 %v3690, %v3804
        %v3811 = vadd.f32 %v3691, %v3803
        %v3812 = vadd.f32 %v3692, %v3802
        %v3813 = vadd.f32 %v3693, %v3801
        %v3814 = vadd.f32 %v3694, %v3800
        %v3815 = vadd.f32 %v3695, %v3799
        %v3816 = vadd.f32 %v3696, %v3798
        %v3817 = vadd.f32 %v3697, %v3797
        %v3818 = vadd.f32 %v3698, %v3796
        %v3819 = vadd.f32 %v3699, %v3795
        %v3820 = vadd.f32 %v3700, %v3794
        %v3821 = vadd.f32 %v3701, %v3793
        %v3822 = vadd.f32 %v3702, %v3792
        %v3823 = vadd.f32 %v3703, %v3791
        %v3824 = vadd.f32 %v3704, %v3790
        %v3825 = vadd.f32 %v3705, %v3789
        %v3826 = vadd.f32 %v3706, %v3788
        %v3827 = vadd.f32 %v3707, %v3787
        %v3828 = vadd.f32 %v3708, %v3786
        %v3829 = vadd.f32 %v3709, %v3785
        %v3830 = vadd.f32 %v3710, %v3784
        %v3831 = vadd.f32 %v3711, %v3783
        %v3832 = vadd.f32 %v3712, %v3782
        %v3833 = vadd.f32 %v3713, %v3781
        %v3834 = vadd.f32 %v3714, %v3780
        %v3835 = vadd.f32 %v3715, %v3779
        %v3836 = vadd.f32 %v3716, %v3778
        %v3837 = vadd.f32 %v3717, %v3777
        %v3838 = vadd.f32 %v3718, %v3776
        %v3839 = vadd.f32 %v3719, %v3775
        %v3840 = vadd.f32 %v3720, %v3774
        %v3841 = vadd.f32 %v3721, %v3773
        %v3842 = vadd.f32 %v3722, %v3772
        %v3843 = vadd.f32 %v3723, %v3771
        %v3844 = vadd.f32 %v3724, %v3770
        %v3845 = vadd.f32 %v3725, %v3769
        %v3846 = vadd.f32 %v3726, %v3768
        %v3847 = vadd.f32 %v3727, %v3807
        %v3848 = vld [vmem:[%s5] sm:$0x1]
        %v3850 = vperm.slane %v3848, 0
        %v3852 = vmul.f32 %v3808, %v3850
        %v3853 = vmul.f32 %v3809, %v3850
        %v3854 = vmul.f32 %v3810, %v3850
        %v3855 = vmul.f32 %v3811, %v3850
        %v3856 = vmul.f32 %v3812, %v3850
        %v3857 = vmul.f32 %v3813, %v3850
        %v3858 = vmul.f32 %v3814, %v3850
        %v3859 = vmul.f32 %v3815, %v3850
        %v3860 = vmul.f32 %v3816, %v3850
        %v3861 = vmul.f32 %v3817, %v3850
        %v3862 = vmul.f32 %v3818, %v3850
        %v3863 = vmul.f32 %v3819, %v3850
        %v3864 = vmul.f32 %v3820, %v3850
        %v3865 = vmul.f32 %v3821, %v3850
        %v3866 = vmul.f32 %v3822, %v3850
        %v3867 = vmul.f32 %v3823, %v3850
        %v3868 = vmul.f32 %v3824, %v3850
        %v3869 = vmul.f32 %v3825, %v3850
        %v3870 = vmul.f32 %v3826, %v3850
        %v3871 = vmul.f32 %v3827, %v3850
        %v3872 = vmul.f32 %v3828, %v3850
        %v3873 = vmul.f32 %v3829, %v3850
        %v3874 = vmul.f32 %v3830, %v3850
        %v3875 = vmul.f32 %v3831, %v3850
        %v3876 = vmul.f32 %v3832, %v3850
        %v3877 = vmul.f32 %v3833, %v3850
        %v3878 = vmul.f32 %v3834, %v3850
        %v3879 = vmul.f32 %v3835, %v3850
        %v3880 = vmul.f32 %v3836, %v3850
        %v3881 = vmul.f32 %v3837, %v3850
        %v3882 = vmul.f32 %v3838, %v3850
        %v3883 = vmul.f32 %v3839, %v3850
        %v3884 = vmul.f32 %v3840, %v3850
        %v3885 = vmul.f32 %v3841, %v3850
        %v3886 = vmul.f32 %v3842, %v3850
        %v3887 = vmul.f32 %v3843, %v3850
        %v3888 = vmul.f32 %v3844, %v3850
        %v3889 = vmul.f32 %v3845, %v3850
        %v3890 = vmul.f32 %v3846, %v3850
        %v3891 = vmul.f32 %v3847, %v3850
        %v3892 = vld [vmem:[%s6] sm:$0x1]
        %v3894 = vperm.slane %v3892, 0
        %v3896 = vadd.f32 %v3852, %v3894
        %v3897 = vadd.f32 %v3853, %v3894
        %v3898 = vadd.f32 %v3854, %v3894
        %v3899 = vadd.f32 %v3855, %v3894
        %v3900 = vadd.f32 %v3856, %v3894
        %v3901 = vadd.f32 %v3857, %v3894
        %v3902 = vadd.f32 %v3858, %v3894
        %v3903 = vadd.f32 %v3859, %v3894
        %v3904 = vadd.f32 %v3860, %v3894
        %v3905 = vadd.f32 %v3861, %v3894
        %v3906 = vadd.f32 %v3862, %v3894
        %v3907 = vadd.f32 %v3863, %v3894
        %v3908 = vadd.f32 %v3864, %v3894
        %v3909 = vadd.f32 %v3865, %v3894
        %v3910 = vadd.f32 %v3866, %v3894
        %v3911 = vadd.f32 %v3867, %v3894
        %v3912 = vadd.f32 %v3868, %v3894
        %v3913 = vadd.f32 %v3869, %v3894
        %v3914 = vadd.f32 %v3870, %v3894
        %v3915 = vadd.f32 %v3871, %v3894
        %v3916 = vadd.f32 %v3872, %v3894
        %v3917 = vadd.f32 %v3873, %v3894
        %v3918 = vadd.f32 %v3874, %v3894
        %v3919 = vadd.f32 %v3875, %v3894
        %v3920 = vadd.f32 %v3876, %v3894
        %v3921 = vadd.f32 %v3877, %v3894
        %v3922 = vadd.f32 %v3878, %v3894
        %v3923 = vadd.f32 %v3879, %v3894
        %v3924 = vadd.f32 %v3880, %v3894
        %v3925 = vadd.f32 %v3881, %v3894
        %v3926 = vadd.f32 %v3882, %v3894
        %v3927 = vadd.f32 %v3883, %v3894
        %v3928 = vadd.f32 %v3884, %v3894
        %v3929 = vadd.f32 %v3885, %v3894
        %v3930 = vadd.f32 %v3886, %v3894
        %v3931 = vadd.f32 %v3887, %v3894
        %v3932 = vadd.f32 %v3888, %v3894
        %v3933 = vadd.f32 %v3889, %v3894
        %v3934 = vadd.f32 %v3890, %v3894
        %v3935 = vadd.f32 %v3891, %v3894
        %v3936 = vmul.f32 %v3896, %v418
        %v3937 = vmul.f32 %v3897, %v419
        %v3938 = vmul.f32 %v3898, %v420
        %v3939 = vmul.f32 %v3899, %v421
        %v3940 = vmul.f32 %v3900, %v422
        %v3941 = vmul.f32 %v3901, %v423
        %v3942 = vmul.f32 %v3902, %v424
        %v3943 = vmul.f32 %v3903, %v425
        %v3944 = vmul.f32 %v3904, %v426
        %v3945 = vmul.f32 %v3905, %v427
        %v3946 = vmul.f32 %v3906, %v428
        %v3947 = vmul.f32 %v3907, %v429
        %v3948 = vmul.f32 %v3908, %v430
        %v3949 = vmul.f32 %v3909, %v431
        %v3950 = vmul.f32 %v3910, %v432
        %v3951 = vmul.f32 %v3911, %v433
        %v3952 = vmul.f32 %v3912, %v434
        %v3953 = vmul.f32 %v3913, %v435
        %v3954 = vmul.f32 %v3914, %v436
        %v3955 = vmul.f32 %v3915, %v437
        %v3956 = vmul.f32 %v3916, %v418
        %v3957 = vmul.f32 %v3917, %v419
        %v3958 = vmul.f32 %v3918, %v420
        %v3959 = vmul.f32 %v3919, %v421
        %v3960 = vmul.f32 %v3920, %v422
        %v3961 = vmul.f32 %v3921, %v423
        %v3962 = vmul.f32 %v3922, %v424
        %v3963 = vmul.f32 %v3923, %v425
        %v3964 = vmul.f32 %v3924, %v426
        %v3965 = vmul.f32 %v3925, %v427
        %v3966 = vmul.f32 %v3926, %v428
        %v3967 = vmul.f32 %v3927, %v429
        %v3968 = vmul.f32 %v3928, %v430
        %v3969 = vmul.f32 %v3929, %v431
        %v3970 = vmul.f32 %v3930, %v432
        %v3971 = vmul.f32 %v3931, %v433
        %v3972 = vmul.f32 %v3932, %v434
        %v3973 = vmul.f32 %v3933, %v435
        %v3974 = vmul.f32 %v3934, %v436
        %v3975 = vmul.f32 %v3935, %v437
        %v3976 = vadd.f32 %v378, %v3936
        %v3977 = vadd.f32 %v379, %v3937
        %v3978 = vadd.f32 %v380, %v3938
        %v3979 = vadd.f32 %v381, %v3939
        %v3980 = vadd.f32 %v382, %v3940
        %v3981 = vadd.f32 %v383, %v3941
        %v3982 = vadd.f32 %v384, %v3942
        %v3983 = vadd.f32 %v385, %v3943
        %v3984 = vadd.f32 %v386, %v3944
        %v3985 = vadd.f32 %v387, %v3945
        %v3986 = vadd.f32 %v388, %v3946
        %v3987 = vadd.f32 %v389, %v3947
        %v3988 = vadd.f32 %v390, %v3948
        %v3989 = vadd.f32 %v391, %v3949
        %v3990 = vadd.f32 %v392, %v3950
        %v3991 = vadd.f32 %v393, %v3951
        %v3992 = vadd.f32 %v394, %v3952
        %v3993 = vadd.f32 %v395, %v3953
        %v3994 = vadd.f32 %v396, %v3954
        %v3995 = vadd.f32 %v397, %v3955
        %v3996 = vadd.f32 %v398, %v3956
        %v3997 = vadd.f32 %v399, %v3957
        %v3998 = vadd.f32 %v400, %v3958
        %v3999 = vadd.f32 %v401, %v3959
        %v4000 = vadd.f32 %v402, %v3960
        %v4001 = vadd.f32 %v403, %v3961
        %v4002 = vadd.f32 %v404, %v3962
        %v4003 = vadd.f32 %v405, %v3963
        %v4004 = vadd.f32 %v406, %v3964
        %v4005 = vadd.f32 %v407, %v3965
        %v4006 = vadd.f32 %v408, %v3966
        %v4007 = vadd.f32 %v409, %v3967
        %v4008 = vadd.f32 %v410, %v3968
        %v4009 = vadd.f32 %v411, %v3969
        %v4010 = vadd.f32 %v412, %v3970
        %v4011 = vadd.f32 %v413, %v3971
        %v4012 = vadd.f32 %v414, %v3972
        %v4013 = vadd.f32 %v415, %v3973
        %v4014 = vadd.f32 %v416, %v3974
        %v4015 = vadd.f32 %v417, %v3975
        %v4016 = vmax.f32 %v3976, 0.0
        %v4017 = vmax.f32 %v3977, 0.0
        %v4018 = vmax.f32 %v3978, 0.0
        %v4019 = vmax.f32 %v3979, 0.0
        %v4020 = vmax.f32 %v3980, 0.0
        %v4021 = vmax.f32 %v3981, 0.0
        %v4022 = vmax.f32 %v3982, 0.0
        %v4023 = vmax.f32 %v3983, 0.0
        %v4024 = vmax.f32 %v3984, 0.0
        %v4025 = vmax.f32 %v3985, 0.0
        %v4026 = vmax.f32 %v3986, 0.0
        %v4027 = vmax.f32 %v3987, 0.0
        %v4028 = vmax.f32 %v3988, 0.0
        %v4029 = vmax.f32 %v3989, 0.0
        %v4030 = vmax.f32 %v3990, 0.0
        %v4031 = vmax.f32 %v3991, 0.0
        %v4032 = vmax.f32 %v3992, 0.0
        %v4033 = vmax.f32 %v3993, 0.0
        %v4034 = vmax.f32 %v3994, 0.0
        %v4035 = vmax.f32 %v3995, 0.0
        %v4036 = vmax.f32 %v3996, 0.0
        %v4037 = vmax.f32 %v3997, 0.0
        %v4038 = vmax.f32 %v3998, 0.0
        %v4039 = vmax.f32 %v3999, 0.0
        %v4040 = vmax.f32 %v4000, 0.0
        %v4041 = vmax.f32 %v4001, 0.0
        %v4042 = vmax.f32 %v4002, 0.0
        %v4043 = vmax.f32 %v4003, 0.0
        %v4044 = vmax.f32 %v4004, 0.0
        %v4045 = vmax.f32 %v4005, 0.0
        %v4046 = vmax.f32 %v4006, 0.0
        %v4047 = vmax.f32 %v4007, 0.0
        %v4048 = vmax.f32 %v4008, 0.0
        %v4049 = vmax.f32 %v4009, 0.0
        %v4050 = vmax.f32 %v4010, 0.0
        %v4051 = vmax.f32 %v4011, 0.0
        %v4052 = vmax.f32 %v4012, 0.0
        %v4053 = vmax.f32 %v4013, 0.0
        %v4054 = vmax.f32 %v4014, 0.0
        %v4055 = vmax.f32 %v4015, 0.0
        %4056 = vst [vmem:[%s375] sm:$0xff] %v4016
        %4057 = vst [vmem:[%s375 + $0x8] sm:$0xff] %v4017
        %4058 = vst [vmem:[%s375 + $0x10] sm:$0xff] %v4018
        %4059 = vst [vmem:[%s375 + $0x18] sm:$0xff] %v4019
        %4060 = vst [vmem:[%s375 + $0x20] sm:$0xff] %v4020
        %4061 = vst [vmem:[%s375 + $0x28] sm:$0xff] %v4021
        %4062 = vst [vmem:[%s375 + $0x30] sm:$0xff] %v4022
        %4063 = vst [vmem:[%s375 + $0x38] sm:$0xff] %v4023
        %4064 = vst [vmem:[%s375 + $0x40] sm:$0xff] %v4024
        %4065 = vst [vmem:[%s375 + $0x48] sm:$0xff] %v4025
        %4066 = vst [vmem:[%s375 + $0x50] sm:$0xff] %v4026
        %4067 = vst [vmem:[%s375 + $0x58] sm:$0xff] %v4027
        %4068 = vst [vmem:[%s375 + $0x60] sm:$0xff] %v4028
        %4069 = vst [vmem:[%s375 + $0x68] sm:$0xff] %v4029
        %4070 = vst [vmem:[%s375 + $0x70] sm:$0xff] %v4030
        %4071 = vst [vmem:[%s375 + $0x78] sm:$0xff] %v4031
        %4072 = vst [vmem:[%s375 + $0x80] sm:$0xff] %v4032
        %4073 = vst [vmem:[%s375 + $0x88] sm:$0xff] %v4033
        %4074 = vst [vmem:[%s375 + $0x90] sm:$0xff] %v4034
        %4075 = vst [vmem:[%s375 + $0x98] sm:$0xff] %v4035
        %4076 = vst [vmem:[%s375 + $0xa0] sm:$0xff] %v4036
        %4077 = vst [vmem:[%s375 + $0xa8] sm:$0xff] %v4037
        %4078 = vst [vmem:[%s375 + $0xb0] sm:$0xff] %v4038
        %4079 = vst [vmem:[%s375 + $0xb8] sm:$0xff] %v4039
        %4080 = vst [vmem:[%s375 + $0xc0] sm:$0xff] %v4040
        %4081 = vst [vmem:[%s375 + $0xc8] sm:$0xff] %v4041
        %4082 = vst [vmem:[%s375 + $0xd0] sm:$0xff] %v4042
        %4083 = vst [vmem:[%s375 + $0xd8] sm:$0xff] %v4043
        %4084 = vst [vmem:[%s375 + $0xe0] sm:$0xff] %v4044
        %4085 = vst [vmem:[%s375 + $0xe8] sm:$0xff] %v4045
        %4086 = vst [vmem:[%s375 + $0xf0] sm:$0xff] %v4046
        %4087 = vst [vmem:[%s375 + $0xf8] sm:$0xff] %v4047
        %4088 = vst [vmem:[%s375 + $0x100] sm:$0xff] %v4048
        %4089 = vst [vmem:[%s375 + $0x108] sm:$0xff] %v4049
        %4090 = vst [vmem:[%s375 + $0x110] sm:$0xff] %v4050
        %4091 = vst [vmem:[%s375 + $0x118] sm:$0xff] %v4051
        %4092 = vst [vmem:[%s375 + $0x120] sm:$0xff] %v4052
        %4093 = vst [vmem:[%s375 + $0x128] sm:$0xff] %v4053
        %4094 = vst [vmem:[%s375 + $0x130] sm:$0xff] %v4054
        %4095 = vst [vmem:[%s375 + $0x138] sm:$0xff] %v4055
        %s4096 = sand.u32 %s208, 1
        %s4097 = scalar_lea.sflag [#allocation4], %s4096
        %s4098 = sand.u32 %s208, 1
        %s4099 = smul.addr %s4098, 320
        %s4100 = scalar_lea.vmem [#allocation10], %s4099
        // Predicated region
        $region69: #{tpu_custom_call.1} parent=51 // pred_check
          %p4101 = pneg %p218
        $region70: #{tpu_custom_call.1} parent=51 // pred_check_branch
          %4103 = sbr.rel (%p4101) target = $region72
        $region71: #{tpu_custom_call.1} parent=51 // pred_region
          %s4104 = smul.u32 40, %s27
          %4106 = vsyncadd %s4097, 0
          %s4107 = smul.addr %s4104, 8
          %s4108 = scalar_lea.hbm %s8, %s4107
          %s4109 = sshll.u32 %s4100, 4
          %s4110 = int_to_ptr.vmem [resolvable:$true] %s4109
          %s4111 = sshll.u32 %s4108, 4
          %s4112 = int_to_ptr.hbm [resolvable:$true] %s4111
          %4117 = dma.vmem_to_hbm [thread:$0]  %s4110, 5120, %s4112, %s4097, 128, 128, 8
        $region72: #{tpu_custom_call.1} parent=51 // pred_fallthru
          _
      $region52: #{tpu_custom_call.1} parent=5 // pred_fallthru
        _
      %p4118 = scmp.le.s32.totalorder 2, %s22
      // Predicated region
      $region73: #{tpu_custom_call.1} parent=5 // pred_check
        %p4119 = pneg %p4118
      $region74: #{tpu_custom_call.1} parent=5 // pred_check_branch
        %4121 = sbr.rel (%p4119) target = $region76
      $region75: #{tpu_custom_call.1} parent=5 // pred_region
        %s4122 = ssub.s32 %s22, 2
        // Predicated region
        $region77: #{tpu_custom_call.1} parent=75 // pred_check
          %p4123 = pneg %p224
        $region78: #{tpu_custom_call.1} parent=75 // pred_check_branch
          %4125 = sbr.rel (%p4123) target = $region80
        $region79: #{tpu_custom_call.1} parent=75 // pred_region
          %s4126 = sand.u32 %s209, 1
          %s4127 = scalar_lea.sflag [#allocation4], %s4126
          %s4128 = sand.u32 %s209, 1
          %s4129 = smul.addr %s4128, 320
          %s4130 = scalar_lea.vmem [#allocation10], %s4129
          %4132 = dma.done %s4127, 5120
        $region80: #{tpu_custom_call.1} parent=75 // pred_fallthru
          _
      $region76: #{tpu_custom_call.1} parent=5 // pred_fallthru
        _
    $region6: #{tpu_custom_call.1} parent=1 // loop_footer
      %s26 = sadd.s32 1, %s22
    $region7: #{tpu_custom_call.1} parent=1 // loop_footer_branch
      %21 = sbr.rel target = $region3
    $region8: #{tpu_custom_call.1} parent=1 // loop_exit
      _
    %4133 = vsyncpa [#allocation3], 1
    %s4134 = scalar_lea.sflag [#allocation3], 1
    %4135 = vsyncpa %s4134, 1
    %4136 = vsyncpa [#allocation6], 1
    %4137 = vsyncpa [#allocation9], 1
    %4138 = vsyncpa [#allocation4], 1
    %s4139 = scalar_lea.sflag [#allocation4], 1
    %4140 = vsyncpa %s4139, 1

</llo_original>
